<compile_context>
chip_gen: v5e
topology: v5e:2x2
jax: 0.10.0
libtpu: 0.0.40
codegen_flags: <defaults>
</compile_context>

<pallas_src>
import functools

import jax
import jax.numpy as jnp
from jax import lax
from jax.experimental import pallas as pl
from jax.experimental.pallas import tpu as pltpu


# ------------------------------ small helpers -------------------------------

def _gelu(x):
    # exact (erf-based) GELU, matching torch.nn.functional.gelu default
    return 0.5 * x * (1.0 + lax.erf(x * 0.7071067811865476))


# ----------------------------- Pallas kernels -------------------------------

def _time_mlp_kernel(e_ref, we_ref, be_ref, wd_ref, bd_ref, o_ref):
    # temb = ( SiLU(emb_in @ We + be) ) @ Wd + bd          (B, width)
    h = jnp.dot(e_ref[...], we_ref[...],
                preferred_element_type=jnp.float32) + be_ref[...]
    h = h * jax.nn.sigmoid(h)                                   # SiLU
    o_ref[...] = jnp.dot(h, wd_ref[...],
                         preferred_element_type=jnp.float32) + bd_ref[...]


def time_mlp(emb_in, we, be, wd, bd):
    """emb_in: (B, E); we: (E, E); be: (1, E); wd: (E, C); bd: (1, C)."""
    B, E = emb_in.shape
    C = wd.shape[1]
    return pl.pallas_call(
        _time_mlp_kernel,
        out_shape=jax.ShapeDtypeStruct((B, C), jnp.float32),
        grid=(1,),
        in_specs=[
            pl.BlockSpec((B, E), lambda i: (0, 0)),
            pl.BlockSpec((E, E), lambda i: (0, 0)),
            pl.BlockSpec((1, E), lambda i: (0, 0)),
            pl.BlockSpec((E, C), lambda i: (0, 0)),
            pl.BlockSpec((1, C), lambda i: (0, 0)),
        ],
        out_specs=pl.BlockSpec((B, C), lambda i: (0, 0)),
    )(emb_in, we, be, wd, bd)


def _fc0_kernel(f_ref, w_ref, b_ref, o_ref):
    # y = W @ feats + b     (C, row_tile), channels-first layout
    o_ref[0] = jnp.dot(w_ref[0], f_ref[0],
                       preferred_element_type=jnp.float32) + b_ref[0]


def fc0_fused(feats, W, b, row_tile=256):
    """feats: (2, 3, R); W: (2, C, 3); b: (2, C, 1) -> (2, C, R)."""
    G, F, R = feats.shape
    C = W.shape[1]
    RT = row_tile if R % row_tile == 0 else R
    return pl.pallas_call(
        _fc0_kernel,
        out_shape=jax.ShapeDtypeStruct((G, C, R), jnp.float32),
        grid=(G, R // RT),
        in_specs=[
            pl.BlockSpec((1, F, RT), lambda g, r: (g, 0, r)),
            pl.BlockSpec((1, C, F), lambda g, r: (g, 0, 0)),
            pl.BlockSpec((1, C, 1), lambda g, r: (g, 0, 0)),
        ],
        out_specs=pl.BlockSpec((1, C, RT), lambda g, r: (g, 0, r)),
        compiler_params=pltpu.CompilerParams(
            dimension_semantics=("parallel", "parallel")),
    )(feats, W, b)


def _cmix_kernel(x_ref, w_ref, o_ref, *, b):
    # per-mode complex channel mixing, all modes batched in one einsum.
    # x: (M, 2B, Cin)  rows = [real; imag]
    # w: (M, Cin, 2Cout) cols = [w_real | w_imag]
    x = x_ref[0]
    w = w_ref[0]
    c = w.shape[2] // 2
    p = jnp.einsum("mbc,mco->mbo", x, w,
                   preferred_element_type=jnp.float32)          # (M, 2B, 2C)
    o_ref[0, :, :b, :] = p[:, :b, :c] - p[:, b:, c:]            # real part
    o_ref[0, :, b:, :] = p[:, :b, c:] + p[:, b:, :c]            # imag part


def complex_mix(X, Wc):
    """X: (4, M, 2B, C); Wc: (4, M, C, 2C) -> (4, M, 2B, C) ([real; imag])."""
    G, M, R2, C = X.shape
    return pl.pallas_call(
        functools.partial(_cmix_kernel, b=R2 // 2),
        out_shape=jax.ShapeDtypeStruct((G, M, R2, C), jnp.float32),
        grid=(G,),
        in_specs=[
            pl.BlockSpec((1, M, R2, C), lambda g: (g, 0, 0, 0)),
            pl.BlockSpec((1, M, C, 2 * C), lambda g: (g, 0, 0, 0)),
        ],
        out_specs=pl.BlockSpec((1, M, R2, C), lambda g: (g, 0, 0, 0)),
        compiler_params=pltpu.CompilerParams(
            dimension_semantics=("parallel",)),
    )(X, Wc)


def _fno_block_kernel(cur_ref, spec_ref, w_ref, b_ref, temb_ref, o_ref,
                      *, apply_gelu):
    # fused: out = [gelu]( conv1x1(cur) + spectral + (t_embed if x-branch) )
    y = jnp.dot(w_ref[0], cur_ref[0], preferred_element_type=jnp.float32)
    y = y + b_ref[0] + spec_ref[0]
    maybe_act = _gelu if apply_gelu else (lambda v: v)
    is_x_branch = pl.program_id(0) == 0

    @pl.when(is_x_branch)
    def _():
        o_ref[0] = maybe_act(y + temb_ref[...])

    @pl.when(jnp.logical_not(is_x_branch))
    def _():
        o_ref[0] = maybe_act(y)


def fno_block(cur, spec, wconv, bconv, temb_cr, apply_gelu, row_tile=256):
    """cur, spec: (2, C, R); wconv: (2, C, C); bconv: (2, C, 1); temb_cr: (C, R)."""
    G, C, R = cur.shape
    RT = row_tile if R % row_tile == 0 else R
    kernel = functools.partial(_fno_block_kernel, apply_gelu=apply_gelu)
    return pl.pallas_call(
        kernel,
        out_shape=jax.ShapeDtypeStruct((G, C, R), jnp.float32),
        grid=(G, R // RT),
        in_specs=[
            pl.BlockSpec((1, C, RT), lambda g, r: (g, 0, r)),
            pl.BlockSpec((1, C, RT), lambda g, r: (g, 0, r)),
            pl.BlockSpec((1, C, C), lambda g, r: (g, 0, 0)),
            pl.BlockSpec((1, C, 1), lambda g, r: (g, 0, 0)),
            pl.BlockSpec((C, RT), lambda g, r: (0, r)),
        ],
        out_specs=pl.BlockSpec((1, C, RT), lambda g, r: (g, 0, r)),
        compiler_params=pltpu.CompilerParams(
            dimension_semantics=("parallel", "parallel")),
    )(cur, spec, wconv, bconv, temb_cr)


def _head_kernel(xf_ref, wf_ref, w0_ref, b0_ref, w1_ref, b1_ref,
                 w2_ref, b2_ref, w3_ref, b3_ref, o_ref):
    # transformation_net (conv1x1+GELU, conv1x1+GELU) + fc1 + GELU + fc2,
    # all intermediates live in VMEM / vregs.  cat(x, w) along channels is
    # implemented as two dots against the split tn0 weight.
    C = xf_ref.shape[0]
    h = (jnp.dot(w0_ref[:, :C], xf_ref[...], preferred_element_type=jnp.float32)
         + jnp.dot(w0_ref[:, C:], wf_ref[...], preferred_element_type=jnp.float32)
         + b0_ref[...])
    h = _gelu(h)
    h = _gelu(jnp.dot(w1_ref[...], h,
                      preferred_element_type=jnp.float32) + b1_ref[...])
    h = _gelu(jnp.dot(w2_ref[...], h,
                      preferred_element_type=jnp.float32) + b2_ref[...])
    o_ref[...] = jnp.dot(w3_ref[...], h,
                         preferred_element_type=jnp.float32) + b3_ref[...]


def head(xf, wf, params, row_tile=128):
    """xf, wf: (C, R) -> (1, R) (lane-dense output)."""
    C, R = xf.shape
    RT = row_tile if R % row_tile == 0 else R
    NH = params["fc1_W"].shape[0]
    return pl.pallas_call(
        _head_kernel,
        out_shape=jax.ShapeDtypeStruct((1, R), jnp.float32),
        grid=(R // RT,),
        in_specs=[
            pl.BlockSpec((C, RT), lambda r: (0, r)),
            pl.BlockSpec((C, RT), lambda r: (0, r)),
            pl.BlockSpec((C, 2 * C), lambda r: (0, 0)),
            pl.BlockSpec((C, 1), lambda r: (0, 0)),
            pl.BlockSpec((C, C), lambda r: (0, 0)),
            pl.BlockSpec((C, 1), lambda r: (0, 0)),
            pl.BlockSpec((NH, C), lambda r: (0, 0)),
            pl.BlockSpec((NH, 1), lambda r: (0, 0)),
            pl.BlockSpec((1, NH), lambda r: (0, 0)),
            pl.BlockSpec((1, 1), lambda r: (0, 0)),
        ],
        out_specs=pl.BlockSpec((1, RT), lambda r: (0, r)),
        compiler_params=pltpu.CompilerParams(
            dimension_semantics=("parallel",)),
    )(xf, wf, params["tn0_W"], params["tn0_b"], params["tn1_W"],
      params["tn1_b"], params["fc1_W"], params["fc1_b"],
      params["fc2_W"], params["fc2_b"])


# --------------------------- SpectralConv2d glue ----------------------------

def spectral_layer(cur_cr, wpack, B, H, W, C, m1, m2):
    """Spectral conv for BOTH branches in one complex_mix call.
    cur_cr: (2, C, R); wpack: (4, M, C, 2C) packed weights."""
    # TODO(synk): rfft2/irfft2 stay in plain JAX — no Pallas FFT primitive.
    M = m1 * m2
    x = cur_cr.reshape(2, C, B, H, W)
    ft = jnp.fft.rfft2(x)                                       # (2,C,B,H,Wf)

    def corner(blk):
        # (2, C, B, m1, m2) complex -> (2, M, 2B, C) real ([real; imag] rows)
        re = jnp.real(blk).transpose(0, 3, 4, 2, 1).reshape(2, M, B, C)
        im = jnp.imag(blk).transpose(0, 3, 4, 2, 1).reshape(2, M, B, C)
        return jnp.concatenate([re, im], axis=2)

    x1 = corner(ft[:, :, :, :m1, :m2])
    x2 = corner(ft[:, :, :, H - m1:, :m2])
    # groups ordered (branch, corner): (x,w1),(x,w2),(w,w1),(w,w2)
    X = jnp.concatenate([x1[:, None], x2[:, None]], axis=1).reshape(
        4, M, 2 * B, C)

    out = complex_mix(X, wpack)                                 # (4, M, 2B, C)
    out = out.reshape(2, 2, M, 2 * B, C)

    def uncorner(o):
        # (2, M, 2B, C) -> (2, C, B, m1, m2) complex
        oc = o[:, :, :B, :] + 1j * o[:, :, B:, :]               # (2, M, B, C)
        return oc.reshape(2, m1, m2, B, C).transpose(0, 4, 3, 1, 2)

    o1 = uncorner(out[:, 0])
    o2 = uncorner(out[:, 1])

    Wf = W // 2 + 1
    out_ft = jnp.zeros((2, C, B, H, Wf), dtype=jnp.complex64)
    out_ft = out_ft.at[:, :, :, :m1, :m2].set(o1)
    out_ft = out_ft.at[:, :, :, H - m1:, :m2].set(o2)
    spec = jnp.fft.irfft2(out_ft, s=(H, W))                     # (2,C,B,H,W)
    return spec.reshape(2, C, B * H * W)


# ------------------------------ full forward --------------------------------

def fno2d_forward(params, t, x, w, *, modes1, modes2, width, embed_dim,
                  sigma=25.0):
    B, H, W = x.shape
    N = H * W
    R = B * N
    C = width

    # get_grid + input concat, channels-first rows (plain-JAX glue)
    gridx = jnp.linspace(0.0, 1.0, H, dtype=jnp.float32)
    gridy = jnp.linspace(0.0, 1.0, W, dtype=jnp.float32)
    gx = jnp.broadcast_to(gridx[None, :, None], (B, H, W)).reshape(R)
    gy = jnp.broadcast_to(gridy[None, None, :], (B, H, W)).reshape(R)
    feats = jnp.stack([
        jnp.stack([x.reshape(R), gx, gy], axis=0),
        jnp.stack([w.reshape(R), gx, gy], axis=0),
    ], axis=0)                                                  # (2, 3, R)

    # fc0 / fc0_w fused (Pallas)
    cur = fc0_fused(feats, params["fc0_W"], params["fc0_b"])    # (2, C, R)

    # time embedding: GaussianFourierProjection (glue) -> fused MLP (Pallas)
    proj = t[:, None] * params["gfp_W"][None, :] * (2.0 * jnp.pi)
    emb_in = jnp.concatenate([jnp.sin(proj), jnp.cos(proj)], axis=-1)
    temb = time_mlp(emb_in, params["emb_w"], params["emb_b"],
                    params["dense0_w"], params["dense0_b"])     # (B, C)
    temb_cr = jnp.broadcast_to(temb.T[:, :, None], (C, B, N)).reshape(C, R)

    # 4 FNO layers, x-branch and w-branch advance together
    for k in range(4):
        spec = spectral_layer(cur, params["conv_pack"][k],
                              B, H, W, C, modes1, modes2)       # (2, C, R)
        cur = fno_block(cur, spec, params["wconv"][k], params["bconv"][k],
                        temb_cr, apply_gelu=(k < 3))            # (2, C, R)

    # cat along channels + transformation net + head, fully fused (Pallas)
    out_rows = head(cur[0], cur[1], params)                     # (1, R)
    out = out_rows.reshape(B, H, W)

    std = jnp.sqrt((sigma ** (2.0 * t) - 1.0) / (2.0 * jnp.log(sigma)))
    return out / std[:, None, None]


# --------------------------- deterministic params ---------------------------

def init_params(key, width, modes1, modes2, embed_dim):
    n_layers = 4
    keys = iter(jax.random.split(key, 256))
    M = modes1 * modes2

    def nrm(shape, scale=0.1):
        return (scale * jax.random.normal(next(keys), shape)).astype(jnp.float32)

    def spec_pack():
        # per layer: 4 groups (x-branch w1, x-branch w2, w-branch w1, w-branch w2)
        # pre-packed as (4, M, Cin, 2*Cout) = [w_real | w_imag] per mode.
        s = 1.0 / (width * width)
        groups = []
        for _ in range(4):
            wr = s * jax.random.uniform(next(keys),
                                        (width, width, modes1, modes2))
            wi = s * jax.random.uniform(next(keys),
                                        (width, width, modes1, modes2))
            wrm = jnp.transpose(wr, (2, 3, 0, 1)).reshape(M, width, width)
            wim = jnp.transpose(wi, (2, 3, 0, 1)).reshape(M, width, width)
            groups.append(jnp.concatenate([wrm, wim], axis=-1))
        return jnp.stack(groups, axis=0).astype(jnp.float32)    # (4, M, C, 2C)

    # NB: 1x1-conv / fc0 / head weights stored (Cout, Cin) for the CR layout.
    params = dict(
        fc0_W=jnp.stack([nrm((width, 3)), nrm((width, 3))], 0),
        fc0_b=jnp.stack([nrm((width, 1)), nrm((width, 1))], 0),
        gfp_W=(30.0 * jax.random.normal(next(keys), (embed_dim // 2,))
               ).astype(jnp.float32),
        emb_w=nrm((embed_dim, embed_dim)), emb_b=nrm((1, embed_dim)),
        dense0_w=nrm((embed_dim, width)), dense0_b=nrm((1, width)),
        conv_pack=[spec_pack() for _ in range(n_layers)],
        wconv=[jnp.stack([nrm((width, width)), nrm((width, width))], 0)
               for _ in range(n_layers)],
        bconv=[jnp.stack([nrm((width, 1)), nrm((width, 1))], 0)
               for _ in range(n_layers)],
        tn0_W=nrm((width, 2 * width)), tn0_b=nrm((width, 1)),
        tn1_W=nrm((width, width)), tn1_b=nrm((width, 1)),
        fc1_W=nrm((128, width)), fc1_b=nrm((128, 1)),
        fc2_W=nrm((1, 128)), fc2_b=nrm((1, 1)),
    )
    return params


# ----------------------------------- main ------------------------------------

if __name__ == "__main__":
    B, H, W = 2, 16, 16
    width, modes1, modes2, embed_dim = 20, 6, 6, 32

    key = jax.random.PRNGKey(0)
    kp, kt, kx, kw = jax.random.split(key, 4)
    params = init_params(kp, width, modes1, modes2, embed_dim)

    t = jax.random.uniform(kt, (B,), minval=1e-3, maxval=1.0,
                           dtype=jnp.float32)
    x = jax.random.normal(kx, (B, H, W), dtype=jnp.float32)
    w = jax.random.normal(kw, (B, H, W), dtype=jnp.float32)

    fwd = jax.jit(functools.partial(fno2d_forward, modes1=modes1,
                                    modes2=modes2, width=width,
                                    embed_dim=embed_dim))
    out = fwd(params, t, x, w)
    jax.block_until_ready(out)
    assert out.shape == (B, H, W) and bool(jnp.all(jnp.isfinite(out)))
    print("KERNEL_OK")
</pallas_src>

<mosaic_0001>
module attributes {stable_mosaic.version = 11 : i64} {
  func.func @_fc0_kernel(%arg0: i32, %arg1: i32, %arg2: memref<1x3x256xf32, #tpu.memory_space<vmem>>, %arg3: memref<1x20x3xf32, #tpu.memory_space<vmem>>, %arg4: memref<1x20x1xf32, #tpu.memory_space<vmem>>, %arg5: memref<1x20x256xf32, #tpu.memory_space<vmem>>) attributes {dimension_semantics = [#tpu.dimension_semantics<parallel>, #tpu.dimension_semantics<parallel>], iteration_bounds = array<i64: 2, 2>, scalar_prefetch = 0 : i64, scratch_operands = 0 : i64, tpu.core_type = #tpu.core_type<tc>, window_params = [{transform_indices = @transform_0, window_bounds = array<i64: 1, 3, 256>}, {transform_indices = @transform_1, window_bounds = array<i64: 1, 20, 3>}, {transform_indices = @transform_2, window_bounds = array<i64: 1, 20, 1>}, {transform_indices = @transform_3, window_bounds = array<i64: 1, 20, 256>}]} {
    %c0 = arith.constant 0 : index
    %c0_0 = arith.constant 0 : index
    %c0_1 = arith.constant 0 : index
    %0 = vector.load %arg3[%c0, %c0_0, %c0_1] : memref<1x20x3xf32, #tpu.memory_space<vmem>>, vector<1x20x3xf32>
    %1 = vector.shape_cast %0 : vector<1x20x3xf32> to vector<20x3xf32>
    %c0_2 = arith.constant 0 : index
    %c0_3 = arith.constant 0 : index
    %c0_4 = arith.constant 0 : index
    %2 = vector.load %arg2[%c0_2, %c0_3, %c0_4] : memref<1x3x256xf32, #tpu.memory_space<vmem>>, vector<1x3x256xf32>
    %3 = vector.shape_cast %2 : vector<1x3x256xf32> to vector<3x256xf32>
    %cst = arith.constant dense<0.000000e+00> : vector<20x256xf32>
    %4 = tpu.matmul %1, %3, %cst {dimension_numbers = #tpu.dot_dimension_numbers<[1], [0], [0], [1], [0, 0, 1, 1], [], []>} : vector<20x3xf32>, vector<3x256xf32>, vector<20x256xf32> -> vector<20x256xf32>
    %c0_5 = arith.constant 0 : index
    %c0_6 = arith.constant 0 : index
    %c0_7 = arith.constant 0 : index
    %5 = vector.load %arg4[%c0_5, %c0_6, %c0_7] : memref<1x20x1xf32, #tpu.memory_space<vmem>>, vector<1x20x1xf32>
    %6 = vector.shape_cast %5 : vector<1x20x1xf32> to vector<20x1xf32>
    %7 = vector.broadcast %6 : vector<20x1xf32> to vector<20x256xf32>
    %8 = arith.addf %4, %7 : vector<20x256xf32>
    %c0_8 = arith.constant 0 : index
    %c0_9 = arith.constant 0 : index
    %c0_10 = arith.constant 0 : index
    %9 = vector.load %arg5[%c0_8, %c0_9, %c0_10] : memref<1x20x256xf32, #tpu.memory_space<vmem>>, vector<1x20x256xf32>
    %10 = vector.shape_cast %9 : vector<1x20x256xf32> to vector<20x256xf32>
    %11 = vector.shape_cast %8 : vector<20x256xf32> to vector<1x20x256xf32>
    tpu.vector_store %arg5[%c0_8, %c0_9, %c0_10], %11 {strides = array<i32>} : memref<1x20x256xf32, #tpu.memory_space<vmem>>, vector<1x20x256xf32>,
    return
  }
  func.func @transform_0(%arg0: i32, %arg1: i32) -> (i32, i32, i32) {
    %c0_i32 = arith.constant 0 : i32
    %c0_i32_0 = arith.constant 0 : i32
    return %arg0, %c0_i32, %arg1 : i32, i32, i32
  }
  func.func @transform_1(%arg0: i32, %arg1: i32) -> (i32, i32, i32) {
    %c0_i32 = arith.constant 0 : i32
    %c0_i32_0 = arith.constant 0 : i32
    %c0_i32_1 = arith.constant 0 : i32
    return %arg0, %c0_i32, %c0_i32_0 : i32, i32, i32
  }
  func.func @transform_2(%arg0: i32, %arg1: i32) -> (i32, i32, i32) {
    %c0_i32 = arith.constant 0 : i32
    %c0_i32_0 = arith.constant 0 : i32
    %c0_i32_1 = arith.constant 0 : i32
    return %arg0, %c0_i32, %c0_i32_0 : i32, i32, i32
  }
  func.func @transform_3(%arg0: i32, %arg1: i32) -> (i32, i32, i32) {
    %c0_i32 = arith.constant 0 : i32
    %c0_i32_0 = arith.constant 0 : i32
    return %arg0, %c0_i32, %arg1 : i32, i32, i32
  }
}

module attributes {stable_mosaic.version = 11 : i64} {
  func.func @_cmix_kernel(%arg0: i32, %arg1: memref<1x36x4x20xf32, #tpu.memory_space<vmem>>, %arg2: memref<1x36x20x40xf32, #tpu.memory_space<vmem>>, %arg3: memref<1x36x4x20xf32, #tpu.memory_space<vmem>>) attributes {dimension_semantics = [#tpu.dimension_semantics<parallel>], iteration_bounds = array<i64: 4>, scalar_prefetch = 0 : i64, scratch_operands = 0 : i64, tpu.core_type = #tpu.core_type<tc>, window_params = [{transform_indices = @transform_0, window_bounds = array<i64: 1, 36, 4, 20>}, {transform_indices = @transform_1, window_bounds = array<i64: 1, 36, 20, 40>}, {transform_indices = @transform_2, window_bounds = array<i64: 1, 36, 4, 20>}]} {
    %c0 = arith.constant 0 : index
    %c0_0 = arith.constant 0 : index
    %c0_1 = arith.constant 0 : index
    %c0_2 = arith.constant 0 : index
    %0 = vector.load %arg1[%c0, %c0_0, %c0_1, %c0_2] : memref<1x36x4x20xf32, #tpu.memory_space<vmem>>, vector<1x36x4x20xf32>
    %1 = vector.shape_cast %0 : vector<1x36x4x20xf32> to vector<36x4x20xf32>
    %c0_3 = arith.constant 0 : index
    %c0_4 = arith.constant 0 : index
    %c0_5 = arith.constant 0 : index
    %c0_6 = arith.constant 0 : index
    %2 = vector.load %arg2[%c0_3, %c0_4, %c0_5, %c0_6] : memref<1x36x20x40xf32, #tpu.memory_space<vmem>>, vector<1x36x20x40xf32>
    %3 = vector.shape_cast %2 : vector<1x36x20x40xf32> to vector<36x20x40xf32>
    "tpu.trace_start"() <{level = 10 : i32, message = "mbc,mco->mbo"}> : () -> ()
    %cst = arith.constant dense<0.000000e+00> : vector<36x4x40xf32>
    %4 = tpu.matmul %1, %3, %cst {dimension_numbers = #tpu.dot_dimension_numbers<[2], [1], [1], [2], [0, 0, 0, 1, 1, 2], [0], [0]>} : vector<36x4x20xf32>, vector<36x20x40xf32>, vector<36x4x40xf32> -> vector<36x4x40xf32>
    "tpu.trace_stop"() : () -> ()
    %5 = vector.extract_strided_slice %4 {offsets = [0, 0, 0], sizes = [36, 2, 20], strides = [1, 1, 1]} : vector<36x4x40xf32> to vector<36x2x20xf32>
    %6 = vector.extract_strided_slice %4 {offsets = [0, 2, 20], sizes = [36, 2, 20], strides = [1, 1, 1]} : vector<36x4x40xf32> to vector<36x2x20xf32>
    %7 = arith.subf %5, %6 : vector<36x2x20xf32>
    %c0_7 = arith.constant 0 : index
    %c0_8 = arith.constant 0 : index
    %c0_9 = arith.constant 0 : index
    %c0_10 = arith.constant 0 : index
    %8 = vector.load %arg3[%c0_7, %c0_8, %c0_9, %c0_10] : memref<1x36x4x20xf32, #tpu.memory_space<vmem>>, vector<1x36x2x20xf32>
    %9 = vector.shape_cast %8 : vector<1x36x2x20xf32> to vector<36x2x20xf32>
    %10 = vector.shape_cast %7 : vector<36x2x20xf32> to vector<1x36x2x20xf32>
    tpu.vector_store %arg3[%c0_7, %c0_8, %c0_9, %c0_10], %10 {strides = array<i32>} : memref<1x36x4x20xf32, #tpu.memory_space<vmem>>, vector<1x36x2x20xf32>,
    %11 = vector.extract_strided_slice %4 {offsets = [0, 0, 20], sizes = [36, 2, 20], strides = [1, 1, 1]} : vector<36x4x40xf32> to vector<36x2x20xf32>
    %12 = vector.extract_strided_slice %4 {offsets = [0, 2, 0], sizes = [36, 2, 20], strides = [1, 1, 1]} : vector<36x4x40xf32> to vector<36x2x20xf32>
    %13 = arith.addf %11, %12 : vector<36x2x20xf32>
    %c0_11 = arith.constant 0 : index
    %c0_12 = arith.constant 0 : index
    %c2 = arith.constant 2 : index
    %c0_13 = arith.constant 0 : index
    %14 = vector.load %arg3[%c0_11, %c0_12, %c2, %c0_13] : memref<1x36x4x20xf32, #tpu.memory_space<vmem>>, vector<1x36x2x20xf32>
    %15 = vector.shape_cast %14 : vector<1x36x2x20xf32> to vector<36x2x20xf32>
    %16 = vector.shape_cast %13 : vector<36x2x20xf32> to vector<1x36x2x20xf32>
    tpu.vector_store %arg3[%c0_11, %c0_12, %c2, %c0_13], %16 {strides = array<i32>} : memref<1x36x4x20xf32, #tpu.memory_space<vmem>>, vector<1x36x2x20xf32>,
    return
  }
  func.func @transform_0(%arg0: i32) -> (i32, i32, i32, i32) {
    %c0_i32 = arith.constant 0 : i32
    %c0_i32_0 = arith.constant 0 : i32
    %c0_i32_1 = arith.constant 0 : i32
    %c0_i32_2 = arith.constant 0 : i32
    return %arg0, %c0_i32, %c0_i32_0, %c0_i32_1 : i32, i32, i32, i32
  }
  func.func @transform_1(%arg0: i32) -> (i32, i32, i32, i32) {
    %c0_i32 = arith.constant 0 : i32
    %c0_i32_0 = arith.constant 0 : i32
    %c0_i32_1 = arith.constant 0 : i32
    %c0_i32_2 = arith.constant 0 : i32
    return %arg0, %c0_i32, %c0_i32_0, %c0_i32_1 : i32, i32, i32, i32
  }
  func.func @transform_2(%arg0: i32) -> (i32, i32, i32, i32) {
    %c0_i32 = arith.constant 0 : i32
    %c0_i32_0 = arith.constant 0 : i32
    %c0_i32_1 = arith.constant 0 : i32
    %c0_i32_2 = arith.constant 0 : i32
    return %arg0, %c0_i32, %c0_i32_0, %c0_i32_1 : i32, i32, i32, i32
  }
}

module attributes {stable_mosaic.version = 11 : i64} {
  func.func @_time_mlp_kernel(%arg0: i32, %arg1: memref<2x32xf32, #tpu.memory_space<vmem>>, %arg2: memref<32x32xf32, #tpu.memory_space<vmem>>, %arg3: memref<1x32xf32, #tpu.memory_space<vmem>>, %arg4: memref<32x20xf32, #tpu.memory_space<vmem>>, %arg5: memref<1x20xf32, #tpu.memory_space<vmem>>, %arg6: memref<2x20xf32, #tpu.memory_space<vmem>>) attributes {dimension_semantics = [#tpu.dimension_semantics<arbitrary>], iteration_bounds = array<i64: 1>, scalar_prefetch = 0 : i64, scratch_operands = 0 : i64, tpu.core_type = #tpu.core_type<tc>, window_params = [{pipeline_mode = #tpu.pipeline_mode<synchronous>, transform_indices = @transform_0, window_bounds = array<i64: 2, 32>}, {pipeline_mode = #tpu.pipeline_mode<synchronous>, transform_indices = @transform_1, window_bounds = array<i64: 32, 32>}, {pipeline_mode = #tpu.pipeline_mode<synchronous>, transform_indices = @transform_2, window_bounds = array<i64: 1, 32>}, {pipeline_mode = #tpu.pipeline_mode<synchronous>, transform_indices = @transform_3, window_bounds = array<i64: 32, 20>}, {pipeline_mode = #tpu.pipeline_mode<synchronous>, transform_indices = @transform_4, window_bounds = array<i64: 1, 20>}, {pipeline_mode = #tpu.pipeline_mode<synchronous>, transform_indices = @transform_5, window_bounds = array<i64: 2, 20>}]} {
    %c0 = arith.constant 0 : index
    %c0_0 = arith.constant 0 : index
    %0 = vector.load %arg1[%c0, %c0_0] : memref<2x32xf32, #tpu.memory_space<vmem>>, vector<2x32xf32>
    %c0_1 = arith.constant 0 : index
    %c0_2 = arith.constant 0 : index
    %1 = vector.load %arg2[%c0_1, %c0_2] : memref<32x32xf32, #tpu.memory_space<vmem>>, vector<32x32xf32>
    %cst = arith.constant dense<0.000000e+00> : vector<2x32xf32>
    %2 = tpu.matmul %0, %1, %cst {dimension_numbers = #tpu.dot_dimension_numbers<[1], [0], [0], [1], [0, 0, 1, 1], [], []>} : vector<2x32xf32>, vector<32x32xf32>, vector<2x32xf32> -> vector<2x32xf32>
    %c0_3 = arith.constant 0 : index
    %c0_4 = arith.constant 0 : index
    %3 = vector.load %arg3[%c0_3, %c0_4] : memref<1x32xf32, #tpu.memory_space<vmem>>, vector<1x32xf32>
    %4 = vector.broadcast %3 : vector<1x32xf32> to vector<2x32xf32>
    %5 = arith.addf %2, %4 : vector<2x32xf32>
    %6 = arith.negf %5 : vector<2x32xf32>
    %7 = math.exp %6 : vector<2x32xf32>
    %cst_5 = arith.constant 1.000000e+00 : f32
    %8 = vector.broadcast %cst_5 : f32 to vector<2x32xf32>
    %9 = arith.addf %8, %7 : vector<2x32xf32>
    %10 = arith.divf %8, %9 : vector<2x32xf32>
    %11 = arith.mulf %5, %10 : vector<2x32xf32>
    %c0_6 = arith.constant 0 : index
    %c0_7 = arith.constant 0 : index
    %12 = vector.load %arg4[%c0_6, %c0_7] : memref<32x20xf32, #tpu.memory_space<vmem>>, vector<32x20xf32>
    %cst_8 = arith.constant dense<0.000000e+00> : vector<2x20xf32>
    %13 = tpu.matmul %11, %12, %cst_8 {dimension_numbers = #tpu.dot_dimension_numbers<[1], [0], [0], [1], [0, 0, 1, 1], [], []>} : vector<2x32xf32>, vector<32x20xf32>, vector<2x20xf32> -> vector<2x20xf32>
    %c0_9 = arith.constant 0 : index
    %c0_10 = arith.constant 0 : index
    %14 = vector.load %arg5[%c0_9, %c0_10] : memref<1x20xf32, #tpu.memory_space<vmem>>, vector<1x20xf32>
    %15 = vector.broadcast %14 : vector<1x20xf32> to vector<2x20xf32>
    %16 = arith.addf %13, %15 : vector<2x20xf32>
    %c0_11 = arith.constant 0 : index
    %c0_12 = arith.constant 0 : index
    %17 = vector.load %arg6[%c0_11, %c0_12] : memref<2x20xf32, #tpu.memory_space<vmem>>, vector<2x20xf32>
    tpu.vector_store %arg6[%c0_11, %c0_12], %16 {strides = array<i32>} : memref<2x20xf32, #tpu.memory_space<vmem>>, vector<2x20xf32>,
    return
  }
  func.func @transform_0(%arg0: i32) -> (i32, i32) {
    %c0_i32 = arith.constant 0 : i32
    %c0_i32_0 = arith.constant 0 : i32
    %c0_i32_1 = arith.constant 0 : i32
    return %c0_i32, %c0_i32_0 : i32, i32
  }
  func.func @transform_1(%arg0: i32) -> (i32, i32) {
    %c0_i32 = arith.constant 0 : i32
    %c0_i32_0 = arith.constant 0 : i32
    %c0_i32_1 = arith.constant 0 : i32
    return %c0_i32, %c0_i32_0 : i32, i32
  }
  func.func @transform_2(%arg0: i32) -> (i32, i32) {
    %c0_i32 = arith.constant 0 : i32
    %c0_i32_0 = arith.constant 0 : i32
    %c0_i32_1 = arith.constant 0 : i32
    return %c0_i32, %c0_i32_0 : i32, i32
  }
  func.func @transform_3(%arg0: i32) -> (i32, i32) {
    %c0_i32 = arith.constant 0 : i32
    %c0_i32_0 = arith.constant 0 : i32
    %c0_i32_1 = arith.constant 0 : i32
    return %c0_i32, %c0_i32_0 : i32, i32
  }
  func.func @transform_4(%arg0: i32) -> (i32, i32) {
    %c0_i32 = arith.constant 0 : i32
    %c0_i32_0 = arith.constant 0 : i32
    %c0_i32_1 = arith.constant 0 : i32
    return %c0_i32, %c0_i32_0 : i32, i32
  }
  func.func @transform_5(%arg0: i32) -> (i32, i32) {
    %c0_i32 = arith.constant 0 : i32
    %c0_i32_0 = arith.constant 0 : i32
    %c0_i32_1 = arith.constant 0 : i32
    return %c0_i32, %c0_i32_0 : i32, i32
  }
}

module attributes {stable_mosaic.version = 11 : i64} {
  func.func @_fno_block_kernel(%arg0: i32, %arg1: i32, %arg2: memref<1x20x256xf32, #tpu.memory_space<vmem>>, %arg3: memref<1x20x256xf32, #tpu.memory_space<vmem>>, %arg4: memref<1x20x20xf32, #tpu.memory_space<vmem>>, %arg5: memref<1x20x1xf32, #tpu.memory_space<vmem>>, %arg6: memref<20x256xf32, #tpu.memory_space<vmem>>, %arg7: memref<1x20x256xf32, #tpu.memory_space<vmem>>) attributes {dimension_semantics = [#tpu.dimension_semantics<parallel>, #tpu.dimension_semantics<parallel>], iteration_bounds = array<i64: 2, 2>, scalar_prefetch = 0 : i64, scratch_operands = 0 : i64, tpu.core_type = #tpu.core_type<tc>, window_params = [{transform_indices = @transform_0, window_bounds = array<i64: 1, 20, 256>}, {transform_indices = @transform_1, window_bounds = array<i64: 1, 20, 256>}, {transform_indices = @transform_2, window_bounds = array<i64: 1, 20, 20>}, {transform_indices = @transform_3, window_bounds = array<i64: 1, 20, 1>}, {transform_indices = @transform_4, window_bounds = array<i64: 20, 256>}, {transform_indices = @transform_5, window_bounds = array<i64: 1, 20, 256>}]} {
    %c0 = arith.constant 0 : index
    %c0_0 = arith.constant 0 : index
    %c0_1 = arith.constant 0 : index
    %0 = vector.load %arg4[%c0, %c0_0, %c0_1] : memref<1x20x20xf32, #tpu.memory_space<vmem>>, vector<1x20x20xf32>
    %1 = vector.shape_cast %0 : vector<1x20x20xf32> to vector<20x20xf32>
    %c0_2 = arith.constant 0 : index
    %c0_3 = arith.constant 0 : index
    %c0_4 = arith.constant 0 : index
    %2 = vector.load %arg2[%c0_2, %c0_3, %c0_4] : memref<1x20x256xf32, #tpu.memory_space<vmem>>, vector<1x20x256xf32>
    %3 = vector.shape_cast %2 : vector<1x20x256xf32> to vector<20x256xf32>
    %cst = arith.constant dense<0.000000e+00> : vector<20x256xf32>
    %4 = tpu.matmul %1, %3, %cst {dimension_numbers = #tpu.dot_dimension_numbers<[1], [0], [0], [1], [0, 0, 1, 1], [], []>} : vector<20x20xf32>, vector<20x256xf32>, vector<20x256xf32> -> vector<20x256xf32>
    %c0_5 = arith.constant 0 : index
    %c0_6 = arith.constant 0 : index
    %c0_7 = arith.constant 0 : index
    %5 = vector.load %arg5[%c0_5, %c0_6, %c0_7] : memref<1x20x1xf32, #tpu.memory_space<vmem>>, vector<1x20x1xf32>
    %6 = vector.shape_cast %5 : vector<1x20x1xf32> to vector<20x1xf32>
    %7 = vector.broadcast %6 : vector<20x1xf32> to vector<20x256xf32>
    %8 = arith.addf %4, %7 : vector<20x256xf32>
    %c0_8 = arith.constant 0 : index
    %c0_9 = arith.constant 0 : index
    %c0_10 = arith.constant 0 : index
    %9 = vector.load %arg3[%c0_8, %c0_9, %c0_10] : memref<1x20x256xf32, #tpu.memory_space<vmem>>, vector<1x20x256xf32>
    %10 = vector.shape_cast %9 : vector<1x20x256xf32> to vector<20x256xf32>
    %11 = arith.addf %8, %10 : vector<20x256xf32>
    %c0_i32 = arith.constant 0 : i32
    %12 = arith.cmpi eq, %arg0, %c0_i32 : i32
    %13 = arith.extui %12 : i1 to i32
    %c0_i32_11 = arith.constant 0 : i32
    %14 = arith.cmpi ne, %13, %c0_i32_11 : i32
    scf.if %14 {
      %c0_13 = arith.constant 0 : index
      %c0_14 = arith.constant 0 : index
      %18 = vector.load %arg6[%c0_13, %c0_14] : memref<20x256xf32, #tpu.memory_space<vmem>>, vector<20x256xf32>
      %19 = arith.addf %11, %18 : vector<20x256xf32>
      %cst_15 = arith.constant 5.000000e-01 : f32
      %20 = vector.broadcast %cst_15 : f32 to vector<20x256xf32>
      %21 = arith.mulf %20, %19 : vector<20x256xf32>
      %cst_16 = arith.constant 0.707106769 : f32
      %22 = vector.broadcast %cst_16 : f32 to vector<20x256xf32>
      %23 = arith.mulf %19, %22 : vector<20x256xf32>
      %24 = math.erf %23 : vector<20x256xf32>
      %cst_17 = arith.constant 1.000000e+00 : f32
      %25 = vector.broadcast %cst_17 : f32 to vector<20x256xf32>
      %26 = arith.addf %25, %24 : vector<20x256xf32>
      %27 = arith.mulf %21, %26 : vector<20x256xf32>
      %c0_18 = arith.constant 0 : index
      %c0_19 = arith.constant 0 : index
      %c0_20 = arith.constant 0 : index
      %28 = vector.load %arg7[%c0_18, %c0_19, %c0_20] : memref<1x20x256xf32, #tpu.memory_space<vmem>>, vector<1x20x256xf32>
      %29 = vector.shape_cast %28 : vector<1x20x256xf32> to vector<20x256xf32>
      %30 = vector.shape_cast %27 : vector<20x256xf32> to vector<1x20x256xf32>
      tpu.vector_store %arg7[%c0_18, %c0_19, %c0_20], %30 {strides = array<i32>} : memref<1x20x256xf32, #tpu.memory_space<vmem>>, vector<1x20x256xf32>,
    } else {
    }
    %true = arith.constant true
    %15 = arith.xori %12, %true : i1
    %16 = arith.extui %15 : i1 to i32
    %c0_i32_12 = arith.constant 0 : i32
    %17 = arith.cmpi ne, %16, %c0_i32_12 : i32
    scf.if %17 {
      %cst_13 = arith.constant 5.000000e-01 : f32
      %18 = vector.broadcast %cst_13 : f32 to vector<20x256xf32>
      %19 = arith.mulf %18, %11 : vector<20x256xf32>
      %cst_14 = arith.constant 0.707106769 : f32
      %20 = vector.broadcast %cst_14 : f32 to vector<20x256xf32>
      %21 = arith.mulf %11, %20 : vector<20x256xf32>
      %22 = math.erf %21 : vector<20x256xf32>
      %cst_15 = arith.constant 1.000000e+00 : f32
      %23 = vector.broadcast %cst_15 : f32 to vector<20x256xf32>
      %24 = arith.addf %23, %22 : vector<20x256xf32>
      %25 = arith.mulf %19, %24 : vector<20x256xf32>
      %c0_16 = arith.constant 0 : index
      %c0_17 = arith.constant 0 : index
      %c0_18 = arith.constant 0 : index
      %26 = vector.load %arg7[%c0_16, %c0_17, %c0_18] : memref<1x20x256xf32, #tpu.memory_space<vmem>>, vector<1x20x256xf32>
      %27 = vector.shape_cast %26 : vector<1x20x256xf32> to vector<20x256xf32>
      %28 = vector.shape_cast %25 : vector<20x256xf32> to vector<1x20x256xf32>
      tpu.vector_store %arg7[%c0_16, %c0_17, %c0_18], %28 {strides = array<i32>} : memref<1x20x256xf32, #tpu.memory_space<vmem>>, vector<1x20x256xf32>,
    } else {
    }
    return
  }
  func.func @transform_0(%arg0: i32, %arg1: i32) -> (i32, i32, i32) {
    %c0_i32 = arith.constant 0 : i32
    %c0_i32_0 = arith.constant 0 : i32
    return %arg0, %c0_i32, %arg1 : i32, i32, i32
  }
  func.func @transform_1(%arg0: i32, %arg1: i32) -> (i32, i32, i32) {
    %c0_i32 = arith.constant 0 : i32
    %c0_i32_0 = arith.constant 0 : i32
    return %arg0, %c0_i32, %arg1 : i32, i32, i32
  }
  func.func @transform_2(%arg0: i32, %arg1: i32) -> (i32, i32, i32) {
    %c0_i32 = arith.constant 0 : i32
    %c0_i32_0 = arith.constant 0 : i32
    %c0_i32_1 = arith.constant 0 : i32
    return %arg0, %c0_i32, %c0_i32_0 : i32, i32, i32
  }
  func.func @transform_3(%arg0: i32, %arg1: i32) -> (i32, i32, i32) {
    %c0_i32 = arith.constant 0 : i32
    %c0_i32_0 = arith.constant 0 : i32
    %c0_i32_1 = arith.constant 0 : i32
    return %arg0, %c0_i32, %c0_i32_0 : i32, i32, i32
  }
  func.func @transform_4(%arg0: i32, %arg1: i32) -> (i32, i32) {
    %c0_i32 = arith.constant 0 : i32
    %c0_i32_0 = arith.constant 0 : i32
    return %c0_i32, %arg1 : i32, i32
  }
  func.func @transform_5(%arg0: i32, %arg1: i32) -> (i32, i32, i32) {
    %c0_i32 = arith.constant 0 : i32
    %c0_i32_0 = arith.constant 0 : i32
    return %arg0, %c0_i32, %arg1 : i32, i32, i32
  }
}

module attributes {stable_mosaic.version = 11 : i64} {
  func.func @_fno_block_kernel(%arg0: i32, %arg1: i32, %arg2: memref<1x20x256xf32, #tpu.memory_space<vmem>>, %arg3: memref<1x20x256xf32, #tpu.memory_space<vmem>>, %arg4: memref<1x20x20xf32, #tpu.memory_space<vmem>>, %arg5: memref<1x20x1xf32, #tpu.memory_space<vmem>>, %arg6: memref<20x256xf32, #tpu.memory_space<vmem>>, %arg7: memref<1x20x256xf32, #tpu.memory_space<vmem>>) attributes {dimension_semantics = [#tpu.dimension_semantics<parallel>, #tpu.dimension_semantics<parallel>], iteration_bounds = array<i64: 2, 2>, scalar_prefetch = 0 : i64, scratch_operands = 0 : i64, tpu.core_type = #tpu.core_type<tc>, window_params = [{transform_indices = @transform_0, window_bounds = array<i64: 1, 20, 256>}, {transform_indices = @transform_1, window_bounds = array<i64: 1, 20, 256>}, {transform_indices = @transform_2, window_bounds = array<i64: 1, 20, 20>}, {transform_indices = @transform_3, window_bounds = array<i64: 1, 20, 1>}, {transform_indices = @transform_4, window_bounds = array<i64: 20, 256>}, {transform_indices = @transform_5, window_bounds = array<i64: 1, 20, 256>}]} {
    %c0 = arith.constant 0 : index
    %c0_0 = arith.constant 0 : index
    %c0_1 = arith.constant 0 : index
    %0 = vector.load %arg4[%c0, %c0_0, %c0_1] : memref<1x20x20xf32, #tpu.memory_space<vmem>>, vector<1x20x20xf32>
    %1 = vector.shape_cast %0 : vector<1x20x20xf32> to vector<20x20xf32>
    %c0_2 = arith.constant 0 : index
    %c0_3 = arith.constant 0 : index
    %c0_4 = arith.constant 0 : index
    %2 = vector.load %arg2[%c0_2, %c0_3, %c0_4] : memref<1x20x256xf32, #tpu.memory_space<vmem>>, vector<1x20x256xf32>
    %3 = vector.shape_cast %2 : vector<1x20x256xf32> to vector<20x256xf32>
    %cst = arith.constant dense<0.000000e+00> : vector<20x256xf32>
    %4 = tpu.matmul %1, %3, %cst {dimension_numbers = #tpu.dot_dimension_numbers<[1], [0], [0], [1], [0, 0, 1, 1], [], []>} : vector<20x20xf32>, vector<20x256xf32>, vector<20x256xf32> -> vector<20x256xf32>
    %c0_5 = arith.constant 0 : index
    %c0_6 = arith.constant 0 : index
    %c0_7 = arith.constant 0 : index
    %5 = vector.load %arg5[%c0_5, %c0_6, %c0_7] : memref<1x20x1xf32, #tpu.memory_space<vmem>>, vector<1x20x1xf32>
    %6 = vector.shape_cast %5 : vector<1x20x1xf32> to vector<20x1xf32>
    %7 = vector.broadcast %6 : vector<20x1xf32> to vector<20x256xf32>
    %8 = arith.addf %4, %7 : vector<20x256xf32>
    %c0_8 = arith.constant 0 : index
    %c0_9 = arith.constant 0 : index
    %c0_10 = arith.constant 0 : index
    %9 = vector.load %arg3[%c0_8, %c0_9, %c0_10] : memref<1x20x256xf32, #tpu.memory_space<vmem>>, vector<1x20x256xf32>
    %10 = vector.shape_cast %9 : vector<1x20x256xf32> to vector<20x256xf32>
    %11 = arith.addf %8, %10 : vector<20x256xf32>
    %c0_i32 = arith.constant 0 : i32
    %12 = arith.cmpi eq, %arg0, %c0_i32 : i32
    %13 = arith.extui %12 : i1 to i32
    %c0_i32_11 = arith.constant 0 : i32
    %14 = arith.cmpi ne, %13, %c0_i32_11 : i32
    scf.if %14 {
      %c0_13 = arith.constant 0 : index
      %c0_14 = arith.constant 0 : index
      %18 = vector.load %arg6[%c0_13, %c0_14] : memref<20x256xf32, #tpu.memory_space<vmem>>, vector<20x256xf32>
      %19 = arith.addf %11, %18 : vector<20x256xf32>
      %c0_15 = arith.constant 0 : index
      %c0_16 = arith.constant 0 : index
      %c0_17 = arith.constant 0 : index
      %20 = vector.load %arg7[%c0_15, %c0_16, %c0_17] : memref<1x20x256xf32, #tpu.memory_space<vmem>>, vector<1x20x256xf32>
      %21 = vector.shape_cast %20 : vector<1x20x256xf32> to vector<20x256xf32>
      %22 = vector.shape_cast %19 : vector<20x256xf32> to vector<1x20x256xf32>
      tpu.vector_store %arg7[%c0_15, %c0_16, %c0_17], %22 {strides = array<i32>} : memref<1x20x256xf32, #tpu.memory_space<vmem>>, vector<1x20x256xf32>,
    } else {
    }
    %true = arith.constant true
    %15 = arith.xori %12, %true : i1
    %16 = arith.extui %15 : i1 to i32
    %c0_i32_12 = arith.constant 0 : i32
    %17 = arith.cmpi ne, %16, %c0_i32_12 : i32
    scf.if %17 {
      %c0_13 = arith.constant 0 : index
      %c0_14 = arith.constant 0 : index
      %c0_15 = arith.constant 0 : index
      %18 = vector.load %arg7[%c0_13, %c0_14, %c0_15] : memref<1x20x256xf32, #tpu.memory_space<vmem>>, vector<1x20x256xf32>
      %19 = vector.shape_cast %18 : vector<1x20x256xf32> to vector<20x256xf32>
      %20 = vector.shape_cast %11 : vector<20x256xf32> to vector<1x20x256xf32>
      tpu.vector_store %arg7[%c0_13, %c0_14, %c0_15], %20 {strides = array<i32>} : memref<1x20x256xf32, #tpu.memory_space<vmem>>, vector<1x20x256xf32>,
    } else {
    }
    return
  }
  func.func @transform_0(%arg0: i32, %arg1: i32) -> (i32, i32, i32) {
    %c0_i32 = arith.constant 0 : i32
    %c0_i32_0 = arith.constant 0 : i32
    return %arg0, %c0_i32, %arg1 : i32, i32, i32
  }
  func.func @transform_1(%arg0: i32, %arg1: i32) -> (i32, i32, i32) {
    %c0_i32 = arith.constant 0 : i32
    %c0_i32_0 = arith.constant 0 : i32
    return %arg0, %c0_i32, %arg1 : i32, i32, i32
  }
  func.func @transform_2(%arg0: i32, %arg1: i32) -> (i32, i32, i32) {
    %c0_i32 = arith.constant 0 : i32
    %c0_i32_0 = arith.constant 0 : i32
    %c0_i32_1 = arith.constant 0 : i32
    return %arg0, %c0_i32, %c0_i32_0 : i32, i32, i32
  }
  func.func @transform_3(%arg0: i32, %arg1: i32) -> (i32, i32, i32) {
    %c0_i32 = arith.constant 0 : i32
    %c0_i32_0 = arith.constant 0 : i32
    %c0_i32_1 = arith.constant 0 : i32
    return %arg0, %c0_i32, %c0_i32_0 : i32, i32, i32
  }
  func.func @transform_4(%arg0: i32, %arg1: i32) -> (i32, i32) {
    %c0_i32 = arith.constant 0 : i32
    %c0_i32_0 = arith.constant 0 : i32
    return %c0_i32, %arg1 : i32, i32
  }
  func.func @transform_5(%arg0: i32, %arg1: i32) -> (i32, i32, i32) {
    %c0_i32 = arith.constant 0 : i32
    %c0_i32_0 = arith.constant 0 : i32
    return %arg0, %c0_i32, %arg1 : i32, i32, i32
  }
}

module attributes {stable_mosaic.version = 11 : i64} {
  func.func @_head_kernel(%arg0: i32, %arg1: memref<20x128xf32, #tpu.memory_space<vmem>>, %arg2: memref<20x128xf32, #tpu.memory_space<vmem>>, %arg3: memref<20x40xf32, #tpu.memory_space<vmem>>, %arg4: memref<20x1xf32, #tpu.memory_space<vmem>>, %arg5: memref<20x20xf32, #tpu.memory_space<vmem>>, %arg6: memref<20x1xf32, #tpu.memory_space<vmem>>, %arg7: memref<128x20xf32, #tpu.memory_space<vmem>>, %arg8: memref<128x1xf32, #tpu.memory_space<vmem>>, %arg9: memref<1x128xf32, #tpu.memory_space<vmem>>, %arg10: memref<1x1xf32, #tpu.memory_space<vmem>>, %arg11: memref<1x128xf32, #tpu.memory_space<vmem>>) attributes {dimension_semantics = [#tpu.dimension_semantics<parallel>], iteration_bounds = array<i64: 4>, scalar_prefetch = 0 : i64, scratch_operands = 0 : i64, tpu.core_type = #tpu.core_type<tc>, window_params = [{transform_indices = @transform_0, window_bounds = array<i64: 20, 128>}, {transform_indices = @transform_1, window_bounds = array<i64: 20, 128>}, {pipeline_mode = #tpu.pipeline_mode<synchronous>, transform_indices = @transform_2, window_bounds = array<i64: 20, 40>}, {pipeline_mode = #tpu.pipeline_mode<synchronous>, transform_indices = @transform_3, window_bounds = array<i64: 20, 1>}, {pipeline_mode = #tpu.pipeline_mode<synchronous>, transform_indices = @transform_4, window_bounds = array<i64: 20, 20>}, {pipeline_mode = #tpu.pipeline_mode<synchronous>, transform_indices = @transform_5, window_bounds = array<i64: 20, 1>}, {pipeline_mode = #tpu.pipeline_mode<synchronous>, transform_indices = @transform_6, window_bounds = array<i64: 128, 20>}, {pipeline_mode = #tpu.pipeline_mode<synchronous>, transform_indices = @transform_7, window_bounds = array<i64: 128, 1>}, {pipeline_mode = #tpu.pipeline_mode<synchronous>, transform_indices = @transform_8, window_bounds = array<i64: 1, 128>}, {pipeline_mode = #tpu.pipeline_mode<synchronous>, transform_indices = @transform_9, window_bounds = array<i64: 1, 1>}, {transform_indices = @transform_10, window_bounds = array<i64: 1, 128>}]} {
    %c0 = arith.constant 0 : index
    %c0_0 = arith.constant 0 : index
    %0 = vector.load %arg3[%c0, %c0_0] : memref<20x40xf32, #tpu.memory_space<vmem>>, vector<20x20xf32>
    %c0_1 = arith.constant 0 : index
    %c0_2 = arith.constant 0 : index
    %1 = vector.load %arg1[%c0_1, %c0_2] : memref<20x128xf32, #tpu.memory_space<vmem>>, vector<20x128xf32>
    %cst = arith.constant dense<0.000000e+00> : vector<20x128xf32>
    %2 = tpu.matmul %0, %1, %cst {dimension_numbers = #tpu.dot_dimension_numbers<[1], [0], [0], [1], [0, 0, 1, 1], [], []>} : vector<20x20xf32>, vector<20x128xf32>, vector<20x128xf32> -> vector<20x128xf32>
    %c0_3 = arith.constant 0 : index
    %c20 = arith.constant 20 : index
    %3 = vector.load %arg3[%c0_3, %c20] : memref<20x40xf32, #tpu.memory_space<vmem>>, vector<20x20xf32>
    %c0_4 = arith.constant 0 : index
    %c0_5 = arith.constant 0 : index
    %4 = vector.load %arg2[%c0_4, %c0_5] : memref<20x128xf32, #tpu.memory_space<vmem>>, vector<20x128xf32>
    %cst_6 = arith.constant dense<0.000000e+00> : vector<20x128xf32>
    %5 = tpu.matmul %3, %4, %cst_6 {dimension_numbers = #tpu.dot_dimension_numbers<[1], [0], [0], [1], [0, 0, 1, 1], [], []>} : vector<20x20xf32>, vector<20x128xf32>, vector<20x128xf32> -> vector<20x128xf32>
    %6 = arith.addf %2, %5 : vector<20x128xf32>
    %c0_7 = arith.constant 0 : index
    %c0_8 = arith.constant 0 : index
    %7 = vector.load %arg4[%c0_7, %c0_8] : memref<20x1xf32, #tpu.memory_space<vmem>>, vector<20x1xf32>
    %8 = vector.broadcast %7 : vector<20x1xf32> to vector<20x128xf32>
    %9 = arith.addf %6, %8 : vector<20x128xf32>
    %cst_9 = arith.constant 5.000000e-01 : f32
    %10 = vector.broadcast %cst_9 : f32 to vector<20x128xf32>
    %11 = arith.mulf %10, %9 : vector<20x128xf32>
    %cst_10 = arith.constant 0.707106769 : f32
    %12 = vector.broadcast %cst_10 : f32 to vector<20x128xf32>
    %13 = arith.mulf %9, %12 : vector<20x128xf32>
    %14 = math.erf %13 : vector<20x128xf32>
    %cst_11 = arith.constant 1.000000e+00 : f32
    %15 = vector.broadcast %cst_11 : f32 to vector<20x128xf32>
    %16 = arith.addf %15, %14 : vector<20x128xf32>
    %17 = arith.mulf %11, %16 : vector<20x128xf32>
    %c0_12 = arith.constant 0 : index
    %c0_13 = arith.constant 0 : index
    %18 = vector.load %arg5[%c0_12, %c0_13] : memref<20x20xf32, #tpu.memory_space<vmem>>, vector<20x20xf32>
    %cst_14 = arith.constant dense<0.000000e+00> : vector<20x128xf32>
    %19 = tpu.matmul %18, %17, %cst_14 {dimension_numbers = #tpu.dot_dimension_numbers<[1], [0], [0], [1], [0, 0, 1, 1], [], []>} : vector<20x20xf32>, vector<20x128xf32>, vector<20x128xf32> -> vector<20x128xf32>
    %c0_15 = arith.constant 0 : index
    %c0_16 = arith.constant 0 : index
    %20 = vector.load %arg6[%c0_15, %c0_16] : memref<20x1xf32, #tpu.memory_space<vmem>>, vector<20x1xf32>
    %21 = vector.broadcast %20 : vector<20x1xf32> to vector<20x128xf32>
    %22 = arith.addf %19, %21 : vector<20x128xf32>
    %cst_17 = arith.constant 5.000000e-01 : f32
    %23 = vector.broadcast %cst_17 : f32 to vector<20x128xf32>
    %24 = arith.mulf %23, %22 : vector<20x128xf32>
    %cst_18 = arith.constant 0.707106769 : f32
    %25 = vector.broadcast %cst_18 : f32 to vector<20x128xf32>
    %26 = arith.mulf %22, %25 : vector<20x128xf32>
    %27 = math.erf %26 : vector<20x128xf32>
    %cst_19 = arith.constant 1.000000e+00 : f32
    %28 = vector.broadcast %cst_19 : f32 to vector<20x128xf32>
    %29 = arith.addf %28, %27 : vector<20x128xf32>
    %30 = arith.mulf %24, %29 : vector<20x128xf32>
    %c0_20 = arith.constant 0 : index
    %c0_21 = arith.constant 0 : index
    %31 = vector.load %arg7[%c0_20, %c0_21] : memref<128x20xf32, #tpu.memory_space<vmem>>, vector<128x20xf32>
    %cst_22 = arith.constant dense<0.000000e+00> : vector<128x128xf32>
    %32 = tpu.matmul %31, %30, %cst_22 {dimension_numbers = #tpu.dot_dimension_numbers<[1], [0], [0], [1], [0, 0, 1, 1], [], []>} : vector<128x20xf32>, vector<20x128xf32>, vector<128x128xf32> -> vector<128x128xf32>
    %c0_23 = arith.constant 0 : index
    %c0_24 = arith.constant 0 : index
    %33 = vector.load %arg8[%c0_23, %c0_24] : memref<128x1xf32, #tpu.memory_space<vmem>>, vector<128x1xf32>
    %34 = vector.broadcast %33 : vector<128x1xf32> to vector<128x128xf32>
    %35 = arith.addf %32, %34 : vector<128x128xf32>
    %cst_25 = arith.constant 5.000000e-01 : f32
    %36 = vector.broadcast %cst_25 : f32 to vector<128x128xf32>
    %37 = arith.mulf %36, %35 : vector<128x128xf32>
    %cst_26 = arith.constant 0.707106769 : f32
    %38 = vector.broadcast %cst_26 : f32 to vector<128x128xf32>
    %39 = arith.mulf %35, %38 : vector<128x128xf32>
    %40 = math.erf %39 : vector<128x128xf32>
    %cst_27 = arith.constant 1.000000e+00 : f32
    %41 = vector.broadcast %cst_27 : f32 to vector<128x128xf32>
    %42 = arith.addf %41, %40 : vector<128x128xf32>
    %43 = arith.mulf %37, %42 : vector<128x128xf32>
    %c0_28 = arith.constant 0 : index
    %c0_29 = arith.constant 0 : index
    %44 = vector.load %arg9[%c0_28, %c0_29] : memref<1x128xf32, #tpu.memory_space<vmem>>, vector<1x128xf32>
    %cst_30 = arith.constant dense<0.000000e+00> : vector<1x128xf32>
    %45 = tpu.matmul %44, %43, %cst_30 {dimension_numbers = #tpu.dot_dimension_numbers<[1], [0], [0], [1], [0, 0, 1, 1], [], []>} : vector<1x128xf32>, vector<128x128xf32>, vector<1x128xf32> -> vector<1x128xf32>
    %c0_31 = arith.constant 0 : index
    %c0_32 = arith.constant 0 : index
    %46 = vector.load %arg10[%c0_31, %c0_32] : memref<1x1xf32, #tpu.memory_space<vmem>>, vector<1x1xf32>
    %47 = vector.broadcast %46 : vector<1x1xf32> to vector<1x128xf32>
    %48 = arith.addf %45, %47 : vector<1x128xf32>
    %c0_33 = arith.constant 0 : index
    %c0_34 = arith.constant 0 : index
    %49 = vector.load %arg11[%c0_33, %c0_34] : memref<1x128xf32, #tpu.memory_space<vmem>>, vector<1x128xf32>
    tpu.vector_store %arg11[%c0_33, %c0_34], %48 {strides = array<i32>} : memref<1x128xf32, #tpu.memory_space<vmem>>, vector<1x128xf32>,
    return
  }
  func.func @transform_0(%arg0: i32) -> (i32, i32) {
    %c0_i32 = arith.constant 0 : i32
    %c0_i32_0 = arith.constant 0 : i32
    return %c0_i32, %arg0 : i32, i32
  }
  func.func @transform_1(%arg0: i32) -> (i32, i32) {
    %c0_i32 = arith.constant 0 : i32
    %c0_i32_0 = arith.constant 0 : i32
    return %c0_i32, %arg0 : i32, i32
  }
  func.func @transform_2(%arg0: i32) -> (i32, i32) {
    %c0_i32 = arith.constant 0 : i32
    %c0_i32_0 = arith.constant 0 : i32
    %c0_i32_1 = arith.constant 0 : i32
    return %c0_i32, %c0_i32_0 : i32, i32
  }
  func.func @transform_3(%arg0: i32) -> (i32, i32) {
    %c0_i32 = arith.constant 0 : i32
    %c0_i32_0 = arith.constant 0 : i32
    %c0_i32_1 = arith.constant 0 : i32
    return %c0_i32, %c0_i32_0 : i32, i32
  }
  func.func @transform_4(%arg0: i32) -> (i32, i32) {
    %c0_i32 = arith.constant 0 : i32
    %c0_i32_0 = arith.constant 0 : i32
    %c0_i32_1 = arith.constant 0 : i32
    return %c0_i32, %c0_i32_0 : i32, i32
  }
  func.func @transform_5(%arg0: i32) -> (i32, i32) {
    %c0_i32 = arith.constant 0 : i32
    %c0_i32_0 = arith.constant 0 : i32
    %c0_i32_1 = arith.constant 0 : i32
    return %c0_i32, %c0_i32_0 : i32, i32
  }
  func.func @transform_6(%arg0: i32) -> (i32, i32) {
    %c0_i32 = arith.constant 0 : i32
    %c0_i32_0 = arith.constant 0 : i32
    %c0_i32_1 = arith.constant 0 : i32
    return %c0_i32, %c0_i32_0 : i32, i32
  }
  func.func @transform_7(%arg0: i32) -> (i32, i32) {
    %c0_i32 = arith.constant 0 : i32
    %c0_i32_0 = arith.constant 0 : i32
    %c0_i32_1 = arith.constant 0 : i32
    return %c0_i32, %c0_i32_0 : i32, i32
  }
  func.func @transform_8(%arg0: i32) -> (i32, i32) {
    %c0_i32 = arith.constant 0 : i32
    %c0_i32_0 = arith.constant 0 : i32
    %c0_i32_1 = arith.constant 0 : i32
    return %c0_i32, %c0_i32_0 : i32, i32
  }
  func.func @transform_9(%arg0: i32) -> (i32, i32) {
    %c0_i32 = arith.constant 0 : i32
    %c0_i32_0 = arith.constant 0 : i32
    %c0_i32_1 = arith.constant 0 : i32
    return %c0_i32, %c0_i32_0 : i32, i32
  }
  func.func @transform_10(%arg0: i32) -> (i32, i32) {
    %c0_i32 = arith.constant 0 : i32
    %c0_i32_0 = arith.constant 0 : i32
    return %c0_i32, %arg0 : i32, i32
  }
}

</mosaic_0001>

<llo_original>
// kernel: fno2d_forward.11
$region0: #{fno2d_forward.11}
  #allocation0 [shape = 'u32[]', space=smem, size = 0x4, offset = 0x4, fixed_abs, tag = 'smem constant byte address 0x4 - core index']
  #allocation1 [shape = 'u32[72,128]{1,0:T(1,128)}', space=vmem, size = 0x9000, scoped, tag = 'internal scratch']
  %s0 = inlined_call_operand.vmem [shape: f32[2,3,512], index: 0, kind: input, shape index: {}]
  %s1 = inlined_call_operand.vmem [shape: f32[2,20,3], index: 1, kind: input, shape index: {}]
  %s2 = inlined_call_operand.vmem [shape: f32[2,20,1], index: 2, kind: input, shape index: {}]
  %s3 = inlined_call_operand.vmem [shape: f32[2,20,512], index: 3, kind: output, shape index: {}]
  %s4 = sld [smem:[#allocation0]]
  $region64: #{fno2d_forward.11} parent=0
    _
  %s6 = ssub.s32 1, %s4
  %s7 = scalar_select 0, %s6, %s4
  $region1: #{fno2d_forward.11} parent=0
    #allocation2 [shape = 'u8[49152]{0}', space=vmem, size = 0xc000, scoped, tag = 'output window, operand 0']
    loop: start=0, step=1, limit=6
    $region2: #{fno2d_forward.11} parent=1 // loop_pre_header
      _
    $region3: #{fno2d_forward.11} parent=1 // loop_header
      %s9 = sphi 0, %s13
      %p10 = scmp.ge.s32.totalorder %s9, 6
      %s16 = sphi 0, %s28
      %s17 = sphi 0, %s24
      %s18 = sphi 0, %s16
      %s19 = sphi 0, %s17
      %s20 = sphi 0, %s18
      %s21 = sphi 0, %s19
      %s33 = sphi 0, %s35
      %s36 = sphi 0, %s33
      %s37 = sphi 0, %s36
      %s53 = sphi 0, %s37
      %s59 = sphi 0, %s61
      %s62 = sphi 0, %s59
      %s63 = sphi 0, %s62
      %s79 = sphi 0, %s63
      %s85 = sphi 0, %s87
      %s88 = sphi 0, %s85
      %s89 = sphi 0, %s88
      %s105 = sphi 0, %s89
      %s113 = sphi 0, %s115
      %s116 = sphi 0, %s113
      %s117 = sphi 0, %s116
      %s133 = sphi 0, %s117
    $region4: #{fno2d_forward.11} parent=1 // loop_header_branch
      %12 = sbr.rel (%p10) target = $region8
    $region5: #{fno2d_forward.11} parent=1 // loop_body
      %s14 = ssub.s32 %s9, 1
      %s15 = ssub.s32 %s9, 2
      %s22 = sadd.s32 1, %s17
      %p23 = scmp.ge.s32.totalorder %s22, 2
      %s24 = scalar_select %p23, 0, %s22
      %s25 = sadd.s32 1, %s16
      %s26 = scalar_select %p23, %s25, %s16
      %p27 = scmp.ge.s32.totalorder %s26, 2
      %s28 = scalar_select %p27, 0, %s26
      %s29 = ssub.s32 %s16, %s28
      %s30 = ssub.s32 %s17, %s24
      %s31 = sor.u32 %s29, %s30
      %p32 = scmp.eq.s32.totalorder %s31, 0
      %s34 = sadd.s32 %s33, 1
      %s35 = scalar_select %p32, %s33, %s34
      %p38 = pneg %p32
      %p39 = scmp.eq.s32.totalorder %s9, 3
      %p40 = por %p38, %p39
      %p41 = scmp.ne.s32.totalorder %s33, %s36
      %p42 = scmp.eq.s32.totalorder %s9, 0
      %p43 = por %p41, %p42
      %p44 = scmp.ne.s32.totalorder %s33, %s36
      %p45 = scmp.eq.s32.totalorder %s14, 3
      %p46 = por %p44, %p45
      %p47 = scmp.ne.s32.totalorder %s36, %s37
      %p48 = scmp.eq.s32.totalorder %s14, 0
      %p49 = por %p47, %p48
      %p50 = scmp.ne.s32.totalorder %s36, %s37
      %p51 = scmp.eq.s32.totalorder %s15, 3
      %p52 = por %p50, %p51
      %p54 = scmp.ne.s32.totalorder %s37, %s53
      %p55 = scmp.eq.s32.totalorder %s15, 0
      %p56 = por %p54, %p55
      %s57 = ssub.s32 %s16, %s28
      %p58 = scmp.eq.s32.totalorder %s57, 0
      %s60 = sadd.s32 %s59, 1
      %s61 = scalar_select %p58, %s59, %s60
      %p64 = pneg %p58
      %p65 = scmp.eq.s32.totalorder %s9, 3
      %p66 = por %p64, %p65
      %p67 = scmp.ne.s32.totalorder %s59, %s62
      %p68 = scmp.eq.s32.totalorder %s9, 0
      %p69 = por %p67, %p68
      %p70 = scmp.ne.s32.totalorder %s59, %s62
      %p71 = scmp.eq.s32.totalorder %s14, 3
      %p72 = por %p70, %p71
      %p73 = scmp.ne.s32.totalorder %s62, %s63
      %p74 = scmp.eq.s32.totalorder %s14, 0
      %p75 = por %p73, %p74
      %p76 = scmp.ne.s32.totalorder %s62, %s63
      %p77 = scmp.eq.s32.totalorder %s15, 3
      %p78 = por %p76, %p77
      %p80 = scmp.ne.s32.totalorder %s63, %s79
      %p81 = scmp.eq.s32.totalorder %s15, 0
      %p82 = por %p80, %p81
      %s83 = ssub.s32 %s16, %s28
      %p84 = scmp.eq.s32.totalorder %s83, 0
      %s86 = sadd.s32 %s85, 1
      %s87 = scalar_select %p84, %s85, %s86
      %p90 = pneg %p84
      %p91 = scmp.eq.s32.totalorder %s9, 3
      %p92 = por %p90, %p91
      %p93 = scmp.ne.s32.totalorder %s85, %s88
      %p94 = scmp.eq.s32.totalorder %s9, 0
      %p95 = por %p93, %p94
      %p96 = scmp.ne.s32.totalorder %s85, %s88
      %p97 = scmp.eq.s32.totalorder %s14, 3
      %p98 = por %p96, %p97
      %p99 = scmp.ne.s32.totalorder %s88, %s89
      %p100 = scmp.eq.s32.totalorder %s14, 0
      %p101 = por %p99, %p100
      %p102 = scmp.ne.s32.totalorder %s88, %s89
      %p103 = scmp.eq.s32.totalorder %s15, 3
      %p104 = por %p102, %p103
      %p106 = scmp.ne.s32.totalorder %s89, %s105
      %p107 = scmp.eq.s32.totalorder %s15, 0
      %p108 = por %p106, %p107
      %s109 = ssub.s32 %s16, %s28
      %s110 = ssub.s32 %s17, %s24
      %s111 = sor.u32 %s109, %s110
      %p112 = scmp.eq.s32.totalorder %s111, 0
      %s114 = sadd.s32 %s113, 1
      %s115 = scalar_select %p112, %s113, %s114
      %p118 = pneg %p112
      %p119 = scmp.eq.s32.totalorder %s9, 3
      %p120 = por %p118, %p119
      %p121 = scmp.ne.s32.totalorder %s113, %s116
      %p122 = scmp.eq.s32.totalorder %s9, 0
      %p123 = por %p121, %p122
      %p124 = scmp.ne.s32.totalorder %s113, %s116
      %p125 = scmp.eq.s32.totalorder %s14, 3
      %p126 = por %p124, %p125
      %p127 = scmp.ne.s32.totalorder %s116, %s117
      %p128 = scmp.eq.s32.totalorder %s14, 0
      %p129 = por %p127, %p128
      %p130 = scmp.ne.s32.totalorder %s116, %s117
      %p131 = scmp.eq.s32.totalorder %s15, 3
      %p132 = por %p130, %p131
      %p134 = scmp.ne.s32.totalorder %s117, %s133
      %p135 = scmp.eq.s32.totalorder %s15, 0
      %p136 = por %p134, %p135
      %p137 = scmp.le.s32.totalorder 1, %s9
      %p138 = scmp.lt.s32.totalorder %s9, 5
      %p139 = pnand %p137, %p138
      %p140 = pneg %p139
      // Predicated region
      $region9: #{fno2d_forward.11} parent=5 // pred_check
        _
      $region10: #{fno2d_forward.11} parent=5 // pred_check_branch
        %142 = sbr.rel (%p139) target = $region12
      $region11: #{fno2d_forward.11} parent=5 // pred_region
        %s143 = ssub.s32 %s9, 1
      $region12: #{fno2d_forward.11} parent=5 // pred_fallthru
        _
      %p144 = scmp.lt.s32.totalorder %s9, 4
      // Predicated region
      $region13: #{fno2d_forward.11} parent=5 // pred_check
        %p145 = pneg %p144
      $region14: #{fno2d_forward.11} parent=5 // pred_check_branch
        %147 = sbr.rel (%p145) target = $region16
      $region15: #{fno2d_forward.11} parent=5 // pred_region
        // Predicated region
        $region17: #{fno2d_forward.11} parent=15 // pred_check
          %p148 = pneg %p43
        $region18: #{fno2d_forward.11} parent=15 // pred_check_branch
          %150 = sbr.rel (%p148) target = $region20
        $region19: #{fno2d_forward.11} parent=15 // pred_region
          %s151 = smul.u32 2, %s17
          %p152 = scmp.lt.s32.totalorder %s16, 1
          %s153 = scalar_select %p152, %s16, 1
          %p154 = scmp.lt.s32.totalorder %s151, 3
          %s155 = scalar_select %p154, %s151, 3
          %s156 = smul.addr %s153, 4
          %s157 = sadd.s32 %s155, %s156
          %s158 = smul.addr %s157, 4
          %s159 = scalar_lea.vmem %s0, %s158
          %s160 = smul.u32 2, %s17
        $region20: #{fno2d_forward.11} parent=15 // pred_fallthru
          _
        // Predicated region
        $region21: #{fno2d_forward.11} parent=15 // pred_check
          %p161 = pneg %p69
        $region22: #{fno2d_forward.11} parent=15 // pred_check_branch
          %163 = sbr.rel (%p161) target = $region24
        $region23: #{fno2d_forward.11} parent=15 // pred_region
          %p164 = scmp.lt.s32.totalorder %s16, 1
          %s165 = scalar_select %p164, %s16, 1
          %s166 = smul.addr %s165, 3
          %s167 = smul.addr %s166, 8
          %s168 = scalar_lea.vmem %s1, %s167
        $region24: #{fno2d_forward.11} parent=15 // pred_fallthru
          _
        // Predicated region
        $region25: #{fno2d_forward.11} parent=15 // pred_check
          %p169 = pneg %p95
        $region26: #{fno2d_forward.11} parent=15 // pred_check_branch
          %171 = sbr.rel (%p169) target = $region28
        $region27: #{fno2d_forward.11} parent=15 // pred_region
          %p172 = scmp.lt.s32.totalorder %s16, 1
          %s173 = scalar_select %p172, %s16, 1
          %s174 = smul.addr %s173, 3
          %s175 = smul.addr %s174, 8
          %s176 = scalar_lea.vmem %s2, %s175
        $region28: #{fno2d_forward.11} parent=15 // pred_fallthru
          _
      $region16: #{fno2d_forward.11} parent=5 // pred_fallthru
        _
      %p177 = scmp.le.s32.totalorder 1, %s9
      %p178 = scmp.lt.s32.totalorder %s9, 5
      %p179 = pnand %p177, %p178
      %p180 = pneg %p179
      // Predicated region
      $region29: #{fno2d_forward.11} parent=5 // pred_check
        _
      $region30: #{fno2d_forward.11} parent=5 // pred_check_branch
        %182 = sbr.rel (%p179) target = $region32
      $region31: #{fno2d_forward.11} parent=5 // pred_region
        %s183 = ssub.s32 %s9, 1
        %s184 = smul.u32 2, %s19
        %p185 = scmp.lt.s32.totalorder %s18, 1
        %s186 = scalar_select %p185, %s18, 1
        %p187 = scmp.lt.s32.totalorder %s184, 3
        %s188 = scalar_select %p187, %s184, 3
        %s189 = smul.addr %s186, 4
        %s190 = sadd.s32 %s188, %s189
        %s191 = smul.addr %s190, 4
        %s192 = scalar_lea.vmem %s0, %s191
        %p193 = pneg %p49
        %p194 = pneg %p46
        %p195 = scmp.lt.s32.totalorder %s18, 1
        %s196 = scalar_select %p195, %s18, 1
        %s197 = smul.addr %s196, 3
        %s198 = smul.addr %s197, 8
        %s199 = scalar_lea.vmem %s1, %s198
        %p200 = pneg %p75
        %p201 = pneg %p72
        %p202 = scmp.lt.s32.totalorder %s18, 1
        %s203 = scalar_select %p202, %s18, 1
        %s204 = smul.addr %s203, 3
        %s205 = smul.addr %s204, 8
        %s206 = scalar_lea.vmem %s2, %s205
        %p207 = pneg %p101
        %p208 = pneg %p98
        %p209 = pneg %p129
        %p210 = pneg %p126
        %s211 = sand.u32 %s116, 1
        %s212 = sand.u32 %s116, 1
        %s213 = smul.addr %s212, 48
        %s214 = scalar_lea.vmem [#allocation2], %s213
        %s215 = smul.u32 2, %s19
        %p216 = scmp.lt.s32.totalorder %s18, 1
        %s217 = scalar_select %p216, %s18, 1
        %p218 = scmp.lt.s32.totalorder %s215, 3
        %s219 = scalar_select %p218, %s215, 3
        %s220 = smul.addr %s217, 4
        %s221 = sadd.s32 %s219, %s220
        %s222 = smul.addr %s221, 4
        %s223 = scalar_lea.vmem %s0, %s222
        %s224 = smul.u32 2, %s19
        %p225 = scmp.lt.s32.totalorder %s18, 1
        %s226 = scalar_select %p225, %s18, 1
        %s227 = smul.addr %s226, 3
        %s228 = smul.addr %s227, 8
        %s229 = scalar_lea.vmem %s1, %s228
        %p230 = scmp.lt.s32.totalorder %s18, 1
        %s231 = scalar_select %p230, %s18, 1
        %s232 = smul.addr %s231, 3
        %s233 = smul.addr %s232, 8
        %s234 = scalar_lea.vmem %s2, %s233
        %s235 = smul.u32 2, %s19
        %v236 = vld [vmem:[%s229] sm:$0xff]
        %v237 = vld [vmem:[%s229 + $0x8] sm:$0xff]
        %v238 = vld [vmem:[%s229 + $0x10] sm:$0xf]
        %v239 = vld [vmem:[%s223] sm:$0x77]
        %v240 = vld [vmem:[%s234] sm:$0xff]
        %v241 = vld [vmem:[%s234 + $0x8] sm:$0xff]
        %v242 = vld [vmem:[%s234 + $0x10] sm:$0xf]
        %244 = vset.pattern.permute.xlu0 0
        %245 = vperm.xlu0 %244, %v240
        %v246 = vpop.permute.xlu0 %245
        %249 = vset.pattern.permute.xlu0 0
        %250 = vperm.xlu0 %249, %v241
        %v251 = vpop.permute.xlu0 %250
        %254 = vset.pattern.permute.xlu0 0
        %255 = vperm.xlu0 %254, %v242
        %v256 = vpop.permute.xlu0 %255
        %259 = vst [vmem:[#allocation1] ss:$2 sm:$0xff] %v239
        %v260 = vld.sshfl [vmem:[#allocation1] sm:$0xff pattern:$0x75316420]
        %v261 = vld.sshfl [vmem:[#allocation1 + $0x8] sm:$0xff pattern:$0x75316420]
        %vm262 = vcmask 23552
        %v264 = vsel %vm262, %v236, 0
        %v267 = vsel %vm262, %v237, 0
        %v270 = vsel %vm262, %v238, 0
        %vm272 = vcmask 1042432
        %v273 = vsel %vm272, %v260, 0
        %v275 = vsel %vm272, %v261, 0
        %277 = vmatpush.msra.mxu0 0.0
        %278 = vmatpush.msra.mxu0 0.0
        %279 = vmatpush.msra.mxu0 0.0
        %280 = vmatpush.msra.mxu0 0.0
        %281 = vmatpush.msra.mxu0 0.0
        %282 = vmatpush.msra.mxu0 0.0
        %283 = vmatpush.msra.mxu0 0.0
        %284 = vmatpush.msra.mxu0 0.0
        %285 = vmatpush.msra.mxu0 0.0
        %286 = vmatpush.msra.mxu0 0.0
        %287 = vmatpush.msra.mxu0 0.0
        %288 = vmatpush.msra.mxu0 0.0
        %289 = vmatpush.msra.mxu0 0.0
        %290 = vmatpush.msra.mxu0 0.0
        %291 = vmatpush.msra.mxu0 0.0
        %292 = vmatpush.msra.mxu0 %v273
        %293 = vmatmul.f32.gmra.mxu0 %v264
        %v294 = vpop.f32.mrf.mxu0
        %v295 = vadd.f32 %v246, %v294
        %296 = vmatmul.f32.gmra.mxu0 %v267
        %v297 = vpop.f32.mrf.mxu0
        %v298 = vadd.f32 %v251, %v297
        %299 = vmatmul.f32.gmra.mxu0 %v270
        %v300 = vpop.f32.mrf.mxu0
        %v301 = vadd.f32 %v256, %v300
        %302 = vdwg.mxu0
        %303 = vmatpush.msra.mxu0 0.0
        %304 = vmatpush.msra.mxu0 0.0
        %305 = vmatpush.msra.mxu0 0.0
        %306 = vmatpush.msra.mxu0 0.0
        %307 = vmatpush.msra.mxu0 0.0
        %308 = vmatpush.msra.mxu0 0.0
        %309 = vmatpush.msra.mxu0 0.0
        %310 = vmatpush.msra.mxu0 0.0
        %311 = vmatpush.msra.mxu0 0.0
        %312 = vmatpush.msra.mxu0 0.0
        %313 = vmatpush.msra.mxu0 0.0
        %314 = vmatpush.msra.mxu0 0.0
        %315 = vmatpush.msra.mxu0 0.0
        %316 = vmatpush.msra.mxu0 0.0
        %317 = vmatpush.msra.mxu0 0.0
        %318 = vmatpush.msra.mxu0 %v275
        %319 = vmatmul.f32.gmra.mxu0 %v264
        %v320 = vpop.f32.mrf.mxu0
        %v321 = vadd.f32 %v246, %v320
        %322 = vmatmul.f32.gmra.mxu0 %v267
        %v323 = vpop.f32.mrf.mxu0
        %v324 = vadd.f32 %v251, %v323
        %325 = vmatmul.f32.gmra.mxu0 %v270
        %v326 = vpop.f32.mrf.mxu0
        %v327 = vadd.f32 %v256, %v326
        %328 = vdwg.mxu0
        %329 = vst [vmem:[%s214] sm:$0xff] %v295
        %330 = vst [vmem:[%s214 + $0x8] sm:$0xff] %v321
        %331 = vst [vmem:[%s214 + $0x10] sm:$0xff] %v298
        %332 = vst [vmem:[%s214 + $0x18] sm:$0xff] %v324
        %333 = vst [vmem:[%s214 + $0x20] sm:$0xf] %v301
        %334 = vst [vmem:[%s214 + $0x28] sm:$0xf] %v327
        %s335 = sand.u32 %s116, 1
        %s336 = sand.u32 %s116, 1
        %s337 = smul.addr %s336, 48
        %s338 = scalar_lea.vmem [#allocation2], %s337
        // Predicated region
        $region33: #{fno2d_forward.11} parent=31 // pred_check
          %p339 = pneg %p126
        $region34: #{fno2d_forward.11} parent=31 // pred_check_branch
          %341 = sbr.rel (%p339) target = $region36
        $region35: #{fno2d_forward.11} parent=31 // pred_region
          %s342 = smul.u32 2, %s19
          %s343 = smul.addr %s18, 12
          %s344 = sadd.s32 %s342, %s343
          %s345 = smul.addr %s344, 8
          %s346 = scalar_lea.vmem %s3, %s345
          // Predicated region
          $region37: #{fno2d_forward.11} parent=35 // pred_check
            _
          $region38: #{fno2d_forward.11} parent=35 // pred_check_branch
            %348 = sbr.rel (0) target = $region40
          $region39: #{fno2d_forward.11} parent=35 // pred_region
            // Predicated region
            $region41: #{fno2d_forward.11} parent=39 // pred_check
              _
            $region42: #{fno2d_forward.11} parent=39 // pred_check_branch
              %350 = sbr.rel (0) target = $region44
            $region43: #{fno2d_forward.11} parent=39 // pred_region
              loop: start=0, step=1, limit=1
              $region45: #{fno2d_forward.11} parent=43 // loop_pre_header
                _
              $region46: #{fno2d_forward.11} parent=43 // loop_header
                %s352 = sphi 0, %s356
                %p353 = scmp.ge.s32.totalorder %s352, 1
                %s357 = sphi %s338, %s338
                %s358 = sphi %s346, %s346
              $region47: #{fno2d_forward.11} parent=43 // loop_header_branch
                %355 = sbr.rel (%p353) target = $region51
              $region48: #{fno2d_forward.11} parent=43 // loop_body
                %v359 = vld [vmem:[%s357] sm:$0xff]
                %360 = vst [vmem:[%s358] sm:$0xff] %v359
                %v361 = vld [vmem:[%s357 + $0x8] sm:$0xff]
                %362 = vst [vmem:[%s358 + $0x8] sm:$0xff] %v361
                %v363 = vld [vmem:[%s357 + $0x10] sm:$0xff]
                %364 = vst [vmem:[%s358 + $0x20] sm:$0xff] %v363
                %v365 = vld [vmem:[%s357 + $0x18] sm:$0xff]
                %366 = vst [vmem:[%s358 + $0x28] sm:$0xff] %v365
                %v367 = vld [vmem:[%s357 + $0x20] sm:$0xff]
                %368 = vst [vmem:[%s358 + $0x40] sm:$0xff] %v367
                %v369 = vld [vmem:[%s357 + $0x28] sm:$0xff]
                %370 = vst [vmem:[%s358 + $0x48] sm:$0xff] %v369
              $region49: #{fno2d_forward.11} parent=43 // loop_footer
                %s356 = sadd.s32 1, %s352
              $region50: #{fno2d_forward.11} parent=43 // loop_footer_branch
                %351 = sbr.rel target = $region46
              $region51: #{fno2d_forward.11} parent=43 // loop_exit
                _
            $region44: #{fno2d_forward.11} parent=39 // pred_fallthru
              _
            // Predicated region
            $region52: #{fno2d_forward.11} parent=39 // pred_check
              _
            $region53: #{fno2d_forward.11} parent=39 // pred_check_branch
              %372 = sbr.rel target = $region55
            $region54: #{fno2d_forward.11} parent=39 // pred_region
              _
            $region55: #{fno2d_forward.11} parent=39 // pred_fallthru
              _
          $region40: #{fno2d_forward.11} parent=35 // pred_fallthru
            _
          %373 = vnop
        $region36: #{fno2d_forward.11} parent=31 // pred_fallthru
          _
      $region32: #{fno2d_forward.11} parent=5 // pred_fallthru
        _
      %p374 = scmp.le.s32.totalorder 2, %s9
      // Predicated region
      $region56: #{fno2d_forward.11} parent=5 // pred_check
        %p375 = pneg %p374
      $region57: #{fno2d_forward.11} parent=5 // pred_check_branch
        %377 = sbr.rel (%p375) target = $region59
      $region58: #{fno2d_forward.11} parent=5 // pred_region
        %s378 = ssub.s32 %s9, 2
        // Predicated region
        $region60: #{fno2d_forward.11} parent=58 // pred_check
          %p379 = pneg %p132
        $region61: #{fno2d_forward.11} parent=58 // pred_check_branch
          %381 = sbr.rel (%p379) target = $region63
        $region62: #{fno2d_forward.11} parent=58 // pred_region
          %s382 = sand.u32 %s117, 1
          %s383 = sand.u32 %s117, 1
          %s384 = smul.addr %s383, 48
          %s385 = scalar_lea.vmem [#allocation2], %s384
        $region63: #{fno2d_forward.11} parent=58 // pred_fallthru
          _
      $region59: #{fno2d_forward.11} parent=5 // pred_fallthru
        _
    $region6: #{fno2d_forward.11} parent=1 // loop_footer
      %s13 = sadd.s32 1, %s9
    $region7: #{fno2d_forward.11} parent=1 // loop_footer_branch
      %8 = sbr.rel target = $region3
    $region8: #{fno2d_forward.11} parent=1 // loop_exit
      _

// kernel: fno2d_forward.12
$region0: #{fno2d_forward.12}
  #allocation0 [shape = 'u32[]', space=smem, size = 0x4, offset = 0x4, fixed_abs, tag = 'smem constant byte address 0x4 - core index']
  #allocation1 [shape = 'u32[72,128]{1,0:T(1,128)}', space=vmem, size = 0x9000, scoped, tag = 'internal scratch']
  %s0 = inlined_call_operand.vmem [shape: f32[4,36,4,20], index: 0, kind: input, shape index: {}]
  %s1 = inlined_call_operand.vmem [shape: f32[4,36,20,40], index: 1, kind: input, shape index: {}]
  %s2 = inlined_call_operand.vmem [shape: f32[4,36,4,20], index: 2, kind: output, shape index: {}]
  %s3 = sld [smem:[#allocation0]]
  $region41: #{fno2d_forward.12} parent=0
    _
  %s5 = ssub.s32 1, %s3
  %s6 = scalar_select 0, %s5, %s3
  loop: start=0, step=1, limit=6
  $region2: #{fno2d_forward.12} parent=0 // loop_pre_header
    _
  $region3: #{fno2d_forward.12} parent=0 // loop_header
    %s8 = sphi 0, %s12
    %p9 = scmp.ge.s32.totalorder %s8, 6
    %s18 = sphi 0, %s20
    %s21 = sphi 0, %s18
    %s22 = sphi 0, %s21
    %s38 = sphi 0, %s22
    %s44 = sphi 0, %s46
    %s47 = sphi 0, %s44
    %s48 = sphi 0, %s47
    %s64 = sphi 0, %s48
    %s70 = sphi 0, %s72
    %s73 = sphi 0, %s70
    %s74 = sphi 0, %s73
    %s90 = sphi 0, %s74
  $region4: #{fno2d_forward.12} parent=0 // loop_header_branch
    %11 = sbr.rel (%p9) target = $region8
  $region5: #{fno2d_forward.12} parent=0 // loop_body
    %s13 = ssub.s32 %s8, 1
    %s14 = ssub.s32 %s8, 2
    %s15 = sadd.s32 %s8, 1
    %s16 = ssub.s32 %s8, %s15
    %p17 = scmp.eq.s32.totalorder %s16, 0
    %s19 = sadd.s32 %s18, 1
    %s20 = scalar_select %p17, %s18, %s19
    %p23 = pneg %p17
    %p24 = scmp.eq.s32.totalorder %s8, 3
    %p25 = por %p23, %p24
    %p26 = scmp.ne.s32.totalorder %s18, %s21
    %p27 = scmp.eq.s32.totalorder %s8, 0
    %p28 = por %p26, %p27
    %p29 = scmp.ne.s32.totalorder %s18, %s21
    %p30 = scmp.eq.s32.totalorder %s13, 3
    %p31 = por %p29, %p30
    %p32 = scmp.ne.s32.totalorder %s21, %s22
    %p33 = scmp.eq.s32.totalorder %s13, 0
    %p34 = por %p32, %p33
    %p35 = scmp.ne.s32.totalorder %s21, %s22
    %p36 = scmp.eq.s32.totalorder %s14, 3
    %p37 = por %p35, %p36
    %p39 = scmp.ne.s32.totalorder %s22, %s38
    %p40 = scmp.eq.s32.totalorder %s14, 0
    %p41 = por %p39, %p40
    %s42 = ssub.s32 %s8, %s15
    %p43 = scmp.eq.s32.totalorder %s42, 0
    %s45 = sadd.s32 %s44, 1
    %s46 = scalar_select %p43, %s44, %s45
    %p49 = pneg %p43
    %p50 = scmp.eq.s32.totalorder %s8, 3
    %p51 = por %p49, %p50
    %p52 = scmp.ne.s32.totalorder %s44, %s47
    %p53 = scmp.eq.s32.totalorder %s8, 0
    %p54 = por %p52, %p53
    %p55 = scmp.ne.s32.totalorder %s44, %s47
    %p56 = scmp.eq.s32.totalorder %s13, 3
    %p57 = por %p55, %p56
    %p58 = scmp.ne.s32.totalorder %s47, %s48
    %p59 = scmp.eq.s32.totalorder %s13, 0
    %p60 = por %p58, %p59
    %p61 = scmp.ne.s32.totalorder %s47, %s48
    %p62 = scmp.eq.s32.totalorder %s14, 3
    %p63 = por %p61, %p62
    %p65 = scmp.ne.s32.totalorder %s48, %s64
    %p66 = scmp.eq.s32.totalorder %s14, 0
    %p67 = por %p65, %p66
    %s68 = ssub.s32 %s8, %s15
    %p69 = scmp.eq.s32.totalorder %s68, 0
    %s71 = sadd.s32 %s70, 1
    %s72 = scalar_select %p69, %s70, %s71
    %p75 = pneg %p69
    %p76 = scmp.eq.s32.totalorder %s8, 3
    %p77 = por %p75, %p76
    %p78 = scmp.ne.s32.totalorder %s70, %s73
    %p79 = scmp.eq.s32.totalorder %s8, 0
    %p80 = por %p78, %p79
    %p81 = scmp.ne.s32.totalorder %s70, %s73
    %p82 = scmp.eq.s32.totalorder %s13, 3
    %p83 = por %p81, %p82
    %p84 = scmp.ne.s32.totalorder %s73, %s74
    %p85 = scmp.eq.s32.totalorder %s13, 0
    %p86 = por %p84, %p85
    %p87 = scmp.ne.s32.totalorder %s73, %s74
    %p88 = scmp.eq.s32.totalorder %s14, 3
    %p89 = por %p87, %p88
    %p91 = scmp.ne.s32.totalorder %s74, %s90
    %p92 = scmp.eq.s32.totalorder %s14, 0
    %p93 = por %p91, %p92
    %p94 = scmp.le.s32.totalorder 1, %s8
    %p95 = scmp.lt.s32.totalorder %s8, 5
    %p96 = pnand %p94, %p95
    %p97 = pneg %p96
    // Predicated region
    $region9: #{fno2d_forward.12} parent=5 // pred_check
      _
    $region10: #{fno2d_forward.12} parent=5 // pred_check_branch
      %99 = sbr.rel (%p96) target = $region12
    $region11: #{fno2d_forward.12} parent=5 // pred_region
      %s100 = ssub.s32 %s8, 1
    $region12: #{fno2d_forward.12} parent=5 // pred_fallthru
      _
    %p101 = scmp.lt.s32.totalorder %s8, 4
    // Predicated region
    $region13: #{fno2d_forward.12} parent=5 // pred_check
      %p102 = pneg %p101
    $region14: #{fno2d_forward.12} parent=5 // pred_check_branch
      %104 = sbr.rel (%p102) target = $region16
    $region15: #{fno2d_forward.12} parent=5 // pred_region
      // Predicated region
      $region17: #{fno2d_forward.12} parent=15 // pred_check
        %p105 = pneg %p28
      $region18: #{fno2d_forward.12} parent=15 // pred_check_branch
        %107 = sbr.rel (%p105) target = $region20
      $region19: #{fno2d_forward.12} parent=15 // pred_region
        %p108 = scmp.lt.s32.totalorder %s8, 3
        %s109 = scalar_select %p108, %s8, 3
        %s110 = smul.addr %s109, 36
        %s111 = smul.addr %s110, 4
        %s112 = scalar_lea.vmem %s0, %s111
      $region20: #{fno2d_forward.12} parent=15 // pred_fallthru
        _
      // Predicated region
      $region21: #{fno2d_forward.12} parent=15 // pred_check
        %p113 = pneg %p54
      $region22: #{fno2d_forward.12} parent=15 // pred_check_branch
        %115 = sbr.rel (%p113) target = $region24
      $region23: #{fno2d_forward.12} parent=15 // pred_region
        %p116 = scmp.lt.s32.totalorder %s8, 3
        %s117 = scalar_select %p116, %s8, 3
        %s118 = smul.addr %s117, 108
        %s119 = smul.addr %s118, 8
        %s120 = scalar_lea.vmem %s1, %s119
      $region24: #{fno2d_forward.12} parent=15 // pred_fallthru
        _
    $region16: #{fno2d_forward.12} parent=5 // pred_fallthru
      _
    %p121 = scmp.le.s32.totalorder 1, %s8
    %p122 = scmp.lt.s32.totalorder %s8, 5
    %p123 = pnand %p121, %p122
    %p124 = pneg %p123
    // Predicated region
    $region25: #{fno2d_forward.12} parent=5 // pred_check
      _
    $region26: #{fno2d_forward.12} parent=5 // pred_check_branch
      %126 = sbr.rel (%p123) target = $region28
    $region27: #{fno2d_forward.12} parent=5 // pred_region
      %s127 = ssub.s32 %s8, 1
      %p128 = scmp.lt.s32.totalorder %s13, 3
      %s129 = scalar_select %p128, %s13, 3
      %s130 = smul.addr %s129, 36
      %s131 = smul.addr %s130, 4
      %s132 = scalar_lea.vmem %s0, %s131
      %p133 = pneg %p34
      %p134 = pneg %p31
      %p135 = scmp.lt.s32.totalorder %s13, 3
      %s136 = scalar_select %p135, %s13, 3
      %s137 = smul.addr %s136, 108
      %s138 = smul.addr %s137, 8
      %s139 = scalar_lea.vmem %s1, %s138
      %p140 = pneg %p60
      %p141 = pneg %p57
      %p142 = pneg %p86
      %p143 = pneg %p83
      %p144 = scmp.lt.s32.totalorder %s13, 3
      %s145 = scalar_select %p144, %s13, 3
      %s146 = smul.addr %s145, 36
      %s147 = smul.addr %s146, 4
      %s148 = scalar_lea.vmem %s2, %s147
      %p149 = scmp.lt.s32.totalorder %s13, 3
      %s150 = scalar_select %p149, %s13, 3
      %s151 = smul.addr %s150, 36
      %s152 = smul.addr %s151, 4
      %s153 = scalar_lea.vmem %s0, %s152
      %p154 = scmp.lt.s32.totalorder %s13, 3
      %s155 = scalar_select %p154, %s13, 3
      %s156 = smul.addr %s155, 108
      %s157 = smul.addr %s156, 8
      %s158 = scalar_lea.vmem %s1, %s157
      %p159 = scmp.lt.s32.totalorder %s13, 3
      %s160 = scalar_select %p159, %s13, 3
      %s161 = smul.addr %s160, 36
      %s162 = smul.addr %s161, 4
      %s163 = scalar_lea.vmem %s2, %s162
      %v164 = vld [vmem:[%s153] sm:$0xf]
      %v165 = vld [vmem:[%s153 + $0x4] sm:$0xf]
      %v166 = vld [vmem:[%s153 + $0x8] sm:$0xf]
      %v167 = vld [vmem:[%s153 + $0xc] sm:$0xf]
      %v168 = vld [vmem:[%s153 + $0x10] sm:$0xf]
      %v169 = vld [vmem:[%s153 + $0x14] sm:$0xf]
      %v170 = vld [vmem:[%s153 + $0x18] sm:$0xf]
      %v171 = vld [vmem:[%s153 + $0x1c] sm:$0xf]
      %v172 = vld [vmem:[%s153 + $0x20] sm:$0xf]
      %v173 = vld [vmem:[%s153 + $0x24] sm:$0xf]
      %v174 = vld [vmem:[%s153 + $0x28] sm:$0xf]
      %v175 = vld [vmem:[%s153 + $0x2c] sm:$0xf]
      %v176 = vld [vmem:[%s153 + $0x30] sm:$0xf]
      %v177 = vld [vmem:[%s153 + $0x34] sm:$0xf]
      %v178 = vld [vmem:[%s153 + $0x38] sm:$0xf]
      %v179 = vld [vmem:[%s153 + $0x3c] sm:$0xf]
      %v180 = vld [vmem:[%s153 + $0x40] sm:$0xf]
      %v181 = vld [vmem:[%s153 + $0x44] sm:$0xf]
      %v182 = vld [vmem:[%s153 + $0x48] sm:$0xf]
      %v183 = vld [vmem:[%s153 + $0x4c] sm:$0xf]
      %v184 = vld [vmem:[%s153 + $0x50] sm:$0xf]
      %v185 = vld [vmem:[%s153 + $0x54] sm:$0xf]
      %v186 = vld [vmem:[%s153 + $0x58] sm:$0xf]
      %v187 = vld [vmem:[%s153 + $0x5c] sm:$0xf]
      %v188 = vld [vmem:[%s153 + $0x60] sm:$0xf]
      %v189 = vld [vmem:[%s153 + $0x64] sm:$0xf]
      %v190 = vld [vmem:[%s153 + $0x68] sm:$0xf]
      %v191 = vld [vmem:[%s153 + $0x6c] sm:$0xf]
      %v192 = vld [vmem:[%s153 + $0x70] sm:$0xf]
      %v193 = vld [vmem:[%s153 + $0x74] sm:$0xf]
      %v194 = vld [vmem:[%s153 + $0x78] sm:$0xf]
      %v195 = vld [vmem:[%s153 + $0x7c] sm:$0xf]
      %v196 = vld [vmem:[%s153 + $0x80] sm:$0xf]
      %v197 = vld [vmem:[%s153 + $0x84] sm:$0xf]
      %v198 = vld [vmem:[%s153 + $0x88] sm:$0xf]
      %v199 = vld [vmem:[%s153 + $0x8c] sm:$0xf]
      %v200 = vld [vmem:[%s158] sm:$0xff]
      %v201 = vld [vmem:[%s158 + $0x8] sm:$0xff]
      %v202 = vld [vmem:[%s158 + $0x10] sm:$0xf]
      %v203 = vld [vmem:[%s158 + $0x18] sm:$0xff]
      %v204 = vld [vmem:[%s158 + $0x20] sm:$0xff]
      %v205 = vld [vmem:[%s158 + $0x28] sm:$0xf]
      %v206 = vld [vmem:[%s158 + $0x30] sm:$0xff]
      %v207 = vld [vmem:[%s158 + $0x38] sm:$0xff]
      %v208 = vld [vmem:[%s158 + $0x40] sm:$0xf]
      %v209 = vld [vmem:[%s158 + $0x48] sm:$0xff]
      %v210 = vld [vmem:[%s158 + $0x50] sm:$0xff]
      %v211 = vld [vmem:[%s158 + $0x58] sm:$0xf]
      %v212 = vld [vmem:[%s158 + $0x60] sm:$0xff]
      %v213 = vld [vmem:[%s158 + $0x68] sm:$0xff]
      %v214 = vld [vmem:[%s158 + $0x70] sm:$0xf]
      %v215 = vld [vmem:[%s158 + $0x78] sm:$0xff]
      %v216 = vld [vmem:[%s158 + $0x80] sm:$0xff]
      %v217 = vld [vmem:[%s158 + $0x88] sm:$0xf]
      %v218 = vld [vmem:[%s158 + $0x90] sm:$0xff]
      %v219 = vld [vmem:[%s158 + $0x98] sm:$0xff]
      %v220 = vld [vmem:[%s158 + $0xa0] sm:$0xf]
      %v221 = vld [vmem:[%s158 + $0xa8] sm:$0xff]
      %v222 = vld [vmem:[%s158 + $0xb0] sm:$0xff]
      %v223 = vld [vmem:[%s158 + $0xb8] sm:$0xf]
      %v224 = vld [vmem:[%s158 + $0xc0] sm:$0xff]
      %v225 = vld [vmem:[%s158 + $0xc8] sm:$0xff]
      %v226 = vld [vmem:[%s158 + $0xd0] sm:$0xf]
      %v227 = vld [vmem:[%s158 + $0xd8] sm:$0xff]
      %v228 = vld [vmem:[%s158 + $0xe0] sm:$0xff]
      %v229 = vld [vmem:[%s158 + $0xe8] sm:$0xf]
      %v230 = vld [vmem:[%s158 + $0xf0] sm:$0xff]
      %v231 = vld [vmem:[%s158 + $0xf8] sm:$0xff]
      %v232 = vld [vmem:[%s158 + $0x100] sm:$0xf]
      %v233 = vld [vmem:[%s158 + $0x108] sm:$0xff]
      %v234 = vld [vmem:[%s158 + $0x110] sm:$0xff]
      %v235 = vld [vmem:[%s158 + $0x118] sm:$0xf]
      %v236 = vld [vmem:[%s158 + $0x120] sm:$0xff]
      %v237 = vld [vmem:[%s158 + $0x128] sm:$0xff]
      %v238 = vld [vmem:[%s158 + $0x130] sm:$0xf]
      %v239 = vld [vmem:[%s158 + $0x138] sm:$0xff]
      %v240 = vld [vmem:[%s158 + $0x140] sm:$0xff]
      %v241 = vld [vmem:[%s158 + $0x148] sm:$0xf]
      %v242 = vld [vmem:[%s158 + $0x150] sm:$0xff]
      %v243 = vld [vmem:[%s158 + $0x158] sm:$0xff]
      %v244 = vld [vmem:[%s158 + $0x160] sm:$0xf]
      %v245 = vld [vmem:[%s158 + $0x168] sm:$0xff]
      %v246 = vld [vmem:[%s158 + $0x170] sm:$0xff]
      %v247 = vld [vmem:[%s158 + $0x178] sm:$0xf]
      %v248 = vld [vmem:[%s158 + $0x180] sm:$0xff]
      %v249 = vld [vmem:[%s158 + $0x188] sm:$0xff]
      %v250 = vld [vmem:[%s158 + $0x190] sm:$0xf]
      %v251 = vld [vmem:[%s158 + $0x198] sm:$0xff]
      %v252 = vld [vmem:[%s158 + $0x1a0] sm:$0xff]
      %v253 = vld [vmem:[%s158 + $0x1a8] sm:$0xf]
      %v254 = vld [vmem:[%s158 + $0x1b0] sm:$0xff]
      %v255 = vld [vmem:[%s158 + $0x1b8] sm:$0xff]
      %v256 = vld [vmem:[%s158 + $0x1c0] sm:$0xf]
      %v257 = vld [vmem:[%s158 + $0x1c8] sm:$0xff]
      %v258 = vld [vmem:[%s158 + $0x1d0] sm:$0xff]
      %v259 = vld [vmem:[%s158 + $0x1d8] sm:$0xf]
      %v260 = vld [vmem:[%s158 + $0x1e0] sm:$0xff]
      %v261 = vld [vmem:[%s158 + $0x1e8] sm:$0xff]
      %v262 = vld [vmem:[%s158 + $0x1f0] sm:$0xf]
      %v263 = vld [vmem:[%s158 + $0x1f8] sm:$0xff]
      %v264 = vld [vmem:[%s158 + $0x200] sm:$0xff]
      %v265 = vld [vmem:[%s158 + $0x208] sm:$0xf]
      %v266 = vld [vmem:[%s158 + $0x210] sm:$0xff]
      %v267 = vld [vmem:[%s158 + $0x218] sm:$0xff]
      %v268 = vld [vmem:[%s158 + $0x220] sm:$0xf]
      %v269 = vld [vmem:[%s158 + $0x228] sm:$0xff]
      %v270 = vld [vmem:[%s158 + $0x230] sm:$0xff]
      %v271 = vld [vmem:[%s158 + $0x238] sm:$0xf]
      %v272 = vld [vmem:[%s158 + $0x240] sm:$0xff]
      %v273 = vld [vmem:[%s158 + $0x248] sm:$0xff]
      %v274 = vld [vmem:[%s158 + $0x250] sm:$0xf]
      %v275 = vld [vmem:[%s158 + $0x258] sm:$0xff]
      %v276 = vld [vmem:[%s158 + $0x260] sm:$0xff]
      %v277 = vld [vmem:[%s158 + $0x268] sm:$0xf]
      %v278 = vld [vmem:[%s158 + $0x270] sm:$0xff]
      %v279 = vld [vmem:[%s158 + $0x278] sm:$0xff]
      %v280 = vld [vmem:[%s158 + $0x280] sm:$0xf]
      %v281 = vld [vmem:[%s158 + $0x288] sm:$0xff]
      %v282 = vld [vmem:[%s158 + $0x290] sm:$0xff]
      %v283 = vld [vmem:[%s158 + $0x298] sm:$0xf]
      %v284 = vld [vmem:[%s158 + $0x2a0] sm:$0xff]
      %v285 = vld [vmem:[%s158 + $0x2a8] sm:$0xff]
      %v286 = vld [vmem:[%s158 + $0x2b0] sm:$0xf]
      %v287 = vld [vmem:[%s158 + $0x2b8] sm:$0xff]
      %v288 = vld [vmem:[%s158 + $0x2c0] sm:$0xff]
      %v289 = vld [vmem:[%s158 + $0x2c8] sm:$0xf]
      %v290 = vld [vmem:[%s158 + $0x2d0] sm:$0xff]
      %v291 = vld [vmem:[%s158 + $0x2d8] sm:$0xff]
      %v292 = vld [vmem:[%s158 + $0x2e0] sm:$0xf]
      %v293 = vld [vmem:[%s158 + $0x2e8] sm:$0xff]
      %v294 = vld [vmem:[%s158 + $0x2f0] sm:$0xff]
      %v295 = vld [vmem:[%s158 + $0x2f8] sm:$0xf]
      %v296 = vld [vmem:[%s158 + $0x300] sm:$0xff]
      %v297 = vld [vmem:[%s158 + $0x308] sm:$0xff]
      %v298 = vld [vmem:[%s158 + $0x310] sm:$0xf]
      %v299 = vld [vmem:[%s158 + $0x318] sm:$0xff]
      %v300 = vld [vmem:[%s158 + $0x320] sm:$0xff]
      %v301 = vld [vmem:[%s158 + $0x328] sm:$0xf]
      %v302 = vld [vmem:[%s158 + $0x330] sm:$0xff]
      %v303 = vld [vmem:[%s158 + $0x338] sm:$0xff]
      %v304 = vld [vmem:[%s158 + $0x340] sm:$0xf]
      %v305 = vld [vmem:[%s158 + $0x348] sm:$0xff]
      %v306 = vld [vmem:[%s158 + $0x350] sm:$0xff]
      %v307 = vld [vmem:[%s158 + $0x358] sm:$0xf]
      %vm308 = vcmask 162816
      %v310 = vsel %vm308, %v164, 0
      %vm312 = vcmask 1043456
      %v314 = vsel %vm312, %v202, 0
      %316 = vmatpush.msra.mxu0 0.0
      %317 = vmatpush.msra.mxu0 0.0
      %318 = vmatpush.msra.mxu0 0.0
      %319 = vmatpush.msra.mxu0 0.0
      %320 = vmatpush.msra.mxu0 0.0
      %321 = vmatpush.msra.mxu0 0.0
      %322 = vmatpush.msra.mxu0 0.0
      %323 = vmatpush.msra.mxu0 0.0
      %324 = vmatpush.msra.mxu0 0.0
      %325 = vmatpush.msra.mxu0 0.0
      %326 = vmatpush.msra.mxu0 0.0
      %327 = vmatpush.msra.mxu0 0.0
      %328 = vmatpush.msra.mxu0 0.0
      %329 = vmatpush.msra.mxu0 %v314
      %330 = vmatpush.msra.mxu0 %v201
      %331 = vmatpush.msra.mxu0 %v200
      %332 = vmatmul.f32.gmra.mxu0 %v310
      %v333 = vpop.f32.mrf.mxu0
      %v334 = vadd.f32 0.0, %v333
      %335 = vdwg.mxu0
      %v337 = vsel %vm308, %v165, 0
      %v340 = vsel %vm312, %v205, 0
      %342 = vmatpush.msra.mxu0 0.0
      %343 = vmatpush.msra.mxu0 0.0
      %344 = vmatpush.msra.mxu0 0.0
      %345 = vmatpush.msra.mxu0 0.0
      %346 = vmatpush.msra.mxu0 0.0
      %347 = vmatpush.msra.mxu0 0.0
      %348 = vmatpush.msra.mxu0 0.0
      %349 = vmatpush.msra.mxu0 0.0
      %350 = vmatpush.msra.mxu0 0.0
      %351 = vmatpush.msra.mxu0 0.0
      %352 = vmatpush.msra.mxu0 0.0
      %353 = vmatpush.msra.mxu0 0.0
      %354 = vmatpush.msra.mxu0 0.0
      %355 = vmatpush.msra.mxu0 %v340
      %356 = vmatpush.msra.mxu0 %v204
      %357 = vmatpush.msra.mxu0 %v203
      %358 = vmatmul.f32.gmra.mxu0 %v337
      %v359 = vpop.f32.mrf.mxu0
      %v360 = vadd.f32 0.0, %v359
      %361 = vdwg.mxu0
      %v363 = vsel %vm308, %v166, 0
      %v366 = vsel %vm312, %v208, 0
      %368 = vmatpush.msra.mxu0 0.0
      %369 = vmatpush.msra.mxu0 0.0
      %370 = vmatpush.msra.mxu0 0.0
      %371 = vmatpush.msra.mxu0 0.0
      %372 = vmatpush.msra.mxu0 0.0
      %373 = vmatpush.msra.mxu0 0.0
      %374 = vmatpush.msra.mxu0 0.0
      %375 = vmatpush.msra.mxu0 0.0
      %376 = vmatpush.msra.mxu0 0.0
      %377 = vmatpush.msra.mxu0 0.0
      %378 = vmatpush.msra.mxu0 0.0
      %379 = vmatpush.msra.mxu0 0.0
      %380 = vmatpush.msra.mxu0 0.0
      %381 = vmatpush.msra.mxu0 %v366
      %382 = vmatpush.msra.mxu0 %v207
      %383 = vmatpush.msra.mxu0 %v206
      %384 = vmatmul.f32.gmra.mxu0 %v363
      %v385 = vpop.f32.mrf.mxu0
      %v386 = vadd.f32 0.0, %v385
      %387 = vdwg.mxu0
      %v389 = vsel %vm308, %v167, 0
      %v392 = vsel %vm312, %v211, 0
      %394 = vmatpush.msra.mxu0 0.0
      %395 = vmatpush.msra.mxu0 0.0
      %396 = vmatpush.msra.mxu0 0.0
      %397 = vmatpush.msra.mxu0 0.0
      %398 = vmatpush.msra.mxu0 0.0
      %399 = vmatpush.msra.mxu0 0.0
      %400 = vmatpush.msra.mxu0 0.0
      %401 = vmatpush.msra.mxu0 0.0
      %402 = vmatpush.msra.mxu0 0.0
      %403 = vmatpush.msra.mxu0 0.0
      %404 = vmatpush.msra.mxu0 0.0
      %405 = vmatpush.msra.mxu0 0.0
      %406 = vmatpush.msra.mxu0 0.0
      %407 = vmatpush.msra.mxu0 %v392
      %408 = vmatpush.msra.mxu0 %v210
      %409 = vmatpush.msra.mxu0 %v209
      %410 = vmatmul.f32.gmra.mxu0 %v389
      %v411 = vpop.f32.mrf.mxu0
      %v412 = vadd.f32 0.0, %v411
      %413 = vdwg.mxu0
      %v415 = vsel %vm308, %v168, 0
      %v418 = vsel %vm312, %v214, 0
      %420 = vmatpush.msra.mxu0 0.0
      %421 = vmatpush.msra.mxu0 0.0
      %422 = vmatpush.msra.mxu0 0.0
      %423 = vmatpush.msra.mxu0 0.0
      %424 = vmatpush.msra.mxu0 0.0
      %425 = vmatpush.msra.mxu0 0.0
      %426 = vmatpush.msra.mxu0 0.0
      %427 = vmatpush.msra.mxu0 0.0
      %428 = vmatpush.msra.mxu0 0.0
      %429 = vmatpush.msra.mxu0 0.0
      %430 = vmatpush.msra.mxu0 0.0
      %431 = vmatpush.msra.mxu0 0.0
      %432 = vmatpush.msra.mxu0 0.0
      %433 = vmatpush.msra.mxu0 %v418
      %434 = vmatpush.msra.mxu0 %v213
      %435 = vmatpush.msra.mxu0 %v212
      %436 = vmatmul.f32.gmra.mxu0 %v415
      %v437 = vpop.f32.mrf.mxu0
      %v438 = vadd.f32 0.0, %v437
      %439 = vdwg.mxu0
      %v441 = vsel %vm308, %v169, 0
      %v444 = vsel %vm312, %v217, 0
      %446 = vmatpush.msra.mxu0 0.0
      %447 = vmatpush.msra.mxu0 0.0
      %448 = vmatpush.msra.mxu0 0.0
      %449 = vmatpush.msra.mxu0 0.0
      %450 = vmatpush.msra.mxu0 0.0
      %451 = vmatpush.msra.mxu0 0.0
      %452 = vmatpush.msra.mxu0 0.0
      %453 = vmatpush.msra.mxu0 0.0
      %454 = vmatpush.msra.mxu0 0.0
      %455 = vmatpush.msra.mxu0 0.0
      %456 = vmatpush.msra.mxu0 0.0
      %457 = vmatpush.msra.mxu0 0.0
      %458 = vmatpush.msra.mxu0 0.0
      %459 = vmatpush.msra.mxu0 %v444
      %460 = vmatpush.msra.mxu0 %v216
      %461 = vmatpush.msra.mxu0 %v215
      %462 = vmatmul.f32.gmra.mxu0 %v441
      %v463 = vpop.f32.mrf.mxu0
      %v464 = vadd.f32 0.0, %v463
      %465 = vdwg.mxu0
      %v467 = vsel %vm308, %v170, 0
      %v470 = vsel %vm312, %v220, 0
      %472 = vmatpush.msra.mxu0 0.0
      %473 = vmatpush.msra.mxu0 0.0
      %474 = vmatpush.msra.mxu0 0.0
      %475 = vmatpush.msra.mxu0 0.0
      %476 = vmatpush.msra.mxu0 0.0
      %477 = vmatpush.msra.mxu0 0.0
      %478 = vmatpush.msra.mxu0 0.0
      %479 = vmatpush.msra.mxu0 0.0
      %480 = vmatpush.msra.mxu0 0.0
      %481 = vmatpush.msra.mxu0 0.0
      %482 = vmatpush.msra.mxu0 0.0
      %483 = vmatpush.msra.mxu0 0.0
      %484 = vmatpush.msra.mxu0 0.0
      %485 = vmatpush.msra.mxu0 %v470
      %486 = vmatpush.msra.mxu0 %v219
      %487 = vmatpush.msra.mxu0 %v218
      %488 = vmatmul.f32.gmra.mxu0 %v467
      %v489 = vpop.f32.mrf.mxu0
      %v490 = vadd.f32 0.0, %v489
      %491 = vdwg.mxu0
      %v493 = vsel %vm308, %v171, 0
      %v496 = vsel %vm312, %v223, 0
      %498 = vmatpush.msra.mxu0 0.0
      %499 = vmatpush.msra.mxu0 0.0
      %500 = vmatpush.msra.mxu0 0.0
      %501 = vmatpush.msra.mxu0 0.0
      %502 = vmatpush.msra.mxu0 0.0
      %503 = vmatpush.msra.mxu0 0.0
      %504 = vmatpush.msra.mxu0 0.0
      %505 = vmatpush.msra.mxu0 0.0
      %506 = vmatpush.msra.mxu0 0.0
      %507 = vmatpush.msra.mxu0 0.0
      %508 = vmatpush.msra.mxu0 0.0
      %509 = vmatpush.msra.mxu0 0.0
      %510 = vmatpush.msra.mxu0 0.0
      %511 = vmatpush.msra.mxu0 %v496
      %512 = vmatpush.msra.mxu0 %v222
      %513 = vmatpush.msra.mxu0 %v221
      %514 = vmatmul.f32.gmra.mxu0 %v493
      %v515 = vpop.f32.mrf.mxu0
      %v516 = vadd.f32 0.0, %v515
      %517 = vdwg.mxu0
      %v519 = vsel %vm308, %v172, 0
      %v522 = vsel %vm312, %v226, 0
      %524 = vmatpush.msra.mxu0 0.0
      %525 = vmatpush.msra.mxu0 0.0
      %526 = vmatpush.msra.mxu0 0.0
      %527 = vmatpush.msra.mxu0 0.0
      %528 = vmatpush.msra.mxu0 0.0
      %529 = vmatpush.msra.mxu0 0.0
      %530 = vmatpush.msra.mxu0 0.0
      %531 = vmatpush.msra.mxu0 0.0
      %532 = vmatpush.msra.mxu0 0.0
      %533 = vmatpush.msra.mxu0 0.0
      %534 = vmatpush.msra.mxu0 0.0
      %535 = vmatpush.msra.mxu0 0.0
      %536 = vmatpush.msra.mxu0 0.0
      %537 = vmatpush.msra.mxu0 %v522
      %538 = vmatpush.msra.mxu0 %v225
      %539 = vmatpush.msra.mxu0 %v224
      %540 = vmatmul.f32.gmra.mxu0 %v519
      %v541 = vpop.f32.mrf.mxu0
      %v542 = vadd.f32 0.0, %v541
      %543 = vdwg.mxu0
      %v545 = vsel %vm308, %v173, 0
      %v548 = vsel %vm312, %v229, 0
      %550 = vmatpush.msra.mxu0 0.0
      %551 = vmatpush.msra.mxu0 0.0
      %552 = vmatpush.msra.mxu0 0.0
      %553 = vmatpush.msra.mxu0 0.0
      %554 = vmatpush.msra.mxu0 0.0
      %555 = vmatpush.msra.mxu0 0.0
      %556 = vmatpush.msra.mxu0 0.0
      %557 = vmatpush.msra.mxu0 0.0
      %558 = vmatpush.msra.mxu0 0.0
      %559 = vmatpush.msra.mxu0 0.0
      %560 = vmatpush.msra.mxu0 0.0
      %561 = vmatpush.msra.mxu0 0.0
      %562 = vmatpush.msra.mxu0 0.0
      %563 = vmatpush.msra.mxu0 %v548
      %564 = vmatpush.msra.mxu0 %v228
      %565 = vmatpush.msra.mxu0 %v227
      %566 = vmatmul.f32.gmra.mxu0 %v545
      %v567 = vpop.f32.mrf.mxu0
      %v568 = vadd.f32 0.0, %v567
      %569 = vdwg.mxu0
      %v571 = vsel %vm308, %v174, 0
      %v574 = vsel %vm312, %v232, 0
      %576 = vmatpush.msra.mxu0 0.0
      %577 = vmatpush.msra.mxu0 0.0
      %578 = vmatpush.msra.mxu0 0.0
      %579 = vmatpush.msra.mxu0 0.0
      %580 = vmatpush.msra.mxu0 0.0
      %581 = vmatpush.msra.mxu0 0.0
      %582 = vmatpush.msra.mxu0 0.0
      %583 = vmatpush.msra.mxu0 0.0
      %584 = vmatpush.msra.mxu0 0.0
      %585 = vmatpush.msra.mxu0 0.0
      %586 = vmatpush.msra.mxu0 0.0
      %587 = vmatpush.msra.mxu0 0.0
      %588 = vmatpush.msra.mxu0 0.0
      %589 = vmatpush.msra.mxu0 %v574
      %590 = vmatpush.msra.mxu0 %v231
      %591 = vmatpush.msra.mxu0 %v230
      %592 = vmatmul.f32.gmra.mxu0 %v571
      %v593 = vpop.f32.mrf.mxu0
      %v594 = vadd.f32 0.0, %v593
      %595 = vdwg.mxu0
      %v597 = vsel %vm308, %v175, 0
      %v600 = vsel %vm312, %v235, 0
      %602 = vmatpush.msra.mxu0 0.0
      %603 = vmatpush.msra.mxu0 0.0
      %604 = vmatpush.msra.mxu0 0.0
      %605 = vmatpush.msra.mxu0 0.0
      %606 = vmatpush.msra.mxu0 0.0
      %607 = vmatpush.msra.mxu0 0.0
      %608 = vmatpush.msra.mxu0 0.0
      %609 = vmatpush.msra.mxu0 0.0
      %610 = vmatpush.msra.mxu0 0.0
      %611 = vmatpush.msra.mxu0 0.0
      %612 = vmatpush.msra.mxu0 0.0
      %613 = vmatpush.msra.mxu0 0.0
      %614 = vmatpush.msra.mxu0 0.0
      %615 = vmatpush.msra.mxu0 %v600
      %616 = vmatpush.msra.mxu0 %v234
      %617 = vmatpush.msra.mxu0 %v233
      %618 = vmatmul.f32.gmra.mxu0 %v597
      %v619 = vpop.f32.mrf.mxu0
      %v620 = vadd.f32 0.0, %v619
      %621 = vdwg.mxu0
      %v623 = vsel %vm308, %v176, 0
      %v626 = vsel %vm312, %v238, 0
      %628 = vmatpush.msra.mxu0 0.0
      %629 = vmatpush.msra.mxu0 0.0
      %630 = vmatpush.msra.mxu0 0.0
      %631 = vmatpush.msra.mxu0 0.0
      %632 = vmatpush.msra.mxu0 0.0
      %633 = vmatpush.msra.mxu0 0.0
      %634 = vmatpush.msra.mxu0 0.0
      %635 = vmatpush.msra.mxu0 0.0
      %636 = vmatpush.msra.mxu0 0.0
      %637 = vmatpush.msra.mxu0 0.0
      %638 = vmatpush.msra.mxu0 0.0
      %639 = vmatpush.msra.mxu0 0.0
      %640 = vmatpush.msra.mxu0 0.0
      %641 = vmatpush.msra.mxu0 %v626
      %642 = vmatpush.msra.mxu0 %v237
      %643 = vmatpush.msra.mxu0 %v236
      %644 = vmatmul.f32.gmra.mxu0 %v623
      %v645 = vpop.f32.mrf.mxu0
      %v646 = vadd.f32 0.0, %v645
      %647 = vdwg.mxu0
      %v649 = vsel %vm308, %v177, 0
      %v652 = vsel %vm312, %v241, 0
      %654 = vmatpush.msra.mxu0 0.0
      %655 = vmatpush.msra.mxu0 0.0
      %656 = vmatpush.msra.mxu0 0.0
      %657 = vmatpush.msra.mxu0 0.0
      %658 = vmatpush.msra.mxu0 0.0
      %659 = vmatpush.msra.mxu0 0.0
      %660 = vmatpush.msra.mxu0 0.0
      %661 = vmatpush.msra.mxu0 0.0
      %662 = vmatpush.msra.mxu0 0.0
      %663 = vmatpush.msra.mxu0 0.0
      %664 = vmatpush.msra.mxu0 0.0
      %665 = vmatpush.msra.mxu0 0.0
      %666 = vmatpush.msra.mxu0 0.0
      %667 = vmatpush.msra.mxu0 %v652
      %668 = vmatpush.msra.mxu0 %v240
      %669 = vmatpush.msra.mxu0 %v239
      %670 = vmatmul.f32.gmra.mxu0 %v649
      %v671 = vpop.f32.mrf.mxu0
      %v672 = vadd.f32 0.0, %v671
      %673 = vdwg.mxu0
      %v675 = vsel %vm308, %v178, 0
      %v678 = vsel %vm312, %v244, 0
      %680 = vmatpush.msra.mxu0 0.0
      %681 = vmatpush.msra.mxu0 0.0
      %682 = vmatpush.msra.mxu0 0.0
      %683 = vmatpush.msra.mxu0 0.0
      %684 = vmatpush.msra.mxu0 0.0
      %685 = vmatpush.msra.mxu0 0.0
      %686 = vmatpush.msra.mxu0 0.0
      %687 = vmatpush.msra.mxu0 0.0
      %688 = vmatpush.msra.mxu0 0.0
      %689 = vmatpush.msra.mxu0 0.0
      %690 = vmatpush.msra.mxu0 0.0
      %691 = vmatpush.msra.mxu0 0.0
      %692 = vmatpush.msra.mxu0 0.0
      %693 = vmatpush.msra.mxu0 %v678
      %694 = vmatpush.msra.mxu0 %v243
      %695 = vmatpush.msra.mxu0 %v242
      %696 = vmatmul.f32.gmra.mxu0 %v675
      %v697 = vpop.f32.mrf.mxu0
      %v698 = vadd.f32 0.0, %v697
      %699 = vdwg.mxu0
      %v701 = vsel %vm308, %v179, 0
      %v704 = vsel %vm312, %v247, 0
      %706 = vmatpush.msra.mxu0 0.0
      %707 = vmatpush.msra.mxu0 0.0
      %708 = vmatpush.msra.mxu0 0.0
      %709 = vmatpush.msra.mxu0 0.0
      %710 = vmatpush.msra.mxu0 0.0
      %711 = vmatpush.msra.mxu0 0.0
      %712 = vmatpush.msra.mxu0 0.0
      %713 = vmatpush.msra.mxu0 0.0
      %714 = vmatpush.msra.mxu0 0.0
      %715 = vmatpush.msra.mxu0 0.0
      %716 = vmatpush.msra.mxu0 0.0
      %717 = vmatpush.msra.mxu0 0.0
      %718 = vmatpush.msra.mxu0 0.0
      %719 = vmatpush.msra.mxu0 %v704
      %720 = vmatpush.msra.mxu0 %v246
      %721 = vmatpush.msra.mxu0 %v245
      %722 = vmatmul.f32.gmra.mxu0 %v701
      %v723 = vpop.f32.mrf.mxu0
      %v724 = vadd.f32 0.0, %v723
      %725 = vdwg.mxu0
      %v727 = vsel %vm308, %v180, 0
      %v730 = vsel %vm312, %v250, 0
      %732 = vmatpush.msra.mxu0 0.0
      %733 = vmatpush.msra.mxu0 0.0
      %734 = vmatpush.msra.mxu0 0.0
      %735 = vmatpush.msra.mxu0 0.0
      %736 = vmatpush.msra.mxu0 0.0
      %737 = vmatpush.msra.mxu0 0.0
      %738 = vmatpush.msra.mxu0 0.0
      %739 = vmatpush.msra.mxu0 0.0
      %740 = vmatpush.msra.mxu0 0.0
      %741 = vmatpush.msra.mxu0 0.0
      %742 = vmatpush.msra.mxu0 0.0
      %743 = vmatpush.msra.mxu0 0.0
      %744 = vmatpush.msra.mxu0 0.0
      %745 = vmatpush.msra.mxu0 %v730
      %746 = vmatpush.msra.mxu0 %v249
      %747 = vmatpush.msra.mxu0 %v248
      %748 = vmatmul.f32.gmra.mxu0 %v727
      %v749 = vpop.f32.mrf.mxu0
      %v750 = vadd.f32 0.0, %v749
      %751 = vdwg.mxu0
      %v753 = vsel %vm308, %v181, 0
      %v756 = vsel %vm312, %v253, 0
      %758 = vmatpush.msra.mxu0 0.0
      %759 = vmatpush.msra.mxu0 0.0
      %760 = vmatpush.msra.mxu0 0.0
      %761 = vmatpush.msra.mxu0 0.0
      %762 = vmatpush.msra.mxu0 0.0
      %763 = vmatpush.msra.mxu0 0.0
      %764 = vmatpush.msra.mxu0 0.0
      %765 = vmatpush.msra.mxu0 0.0
      %766 = vmatpush.msra.mxu0 0.0
      %767 = vmatpush.msra.mxu0 0.0
      %768 = vmatpush.msra.mxu0 0.0
      %769 = vmatpush.msra.mxu0 0.0
      %770 = vmatpush.msra.mxu0 0.0
      %771 = vmatpush.msra.mxu0 %v756
      %772 = vmatpush.msra.mxu0 %v252
      %773 = vmatpush.msra.mxu0 %v251
      %774 = vmatmul.f32.gmra.mxu0 %v753
      %v775 = vpop.f32.mrf.mxu0
      %v776 = vadd.f32 0.0, %v775
      %777 = vdwg.mxu0
      %v779 = vsel %vm308, %v182, 0
      %v782 = vsel %vm312, %v256, 0
      %784 = vmatpush.msra.mxu0 0.0
      %785 = vmatpush.msra.mxu0 0.0
      %786 = vmatpush.msra.mxu0 0.0
      %787 = vmatpush.msra.mxu0 0.0
      %788 = vmatpush.msra.mxu0 0.0
      %789 = vmatpush.msra.mxu0 0.0
      %790 = vmatpush.msra.mxu0 0.0
      %791 = vmatpush.msra.mxu0 0.0
      %792 = vmatpush.msra.mxu0 0.0
      %793 = vmatpush.msra.mxu0 0.0
      %794 = vmatpush.msra.mxu0 0.0
      %795 = vmatpush.msra.mxu0 0.0
      %796 = vmatpush.msra.mxu0 0.0
      %797 = vmatpush.msra.mxu0 %v782
      %798 = vmatpush.msra.mxu0 %v255
      %799 = vmatpush.msra.mxu0 %v254
      %800 = vmatmul.f32.gmra.mxu0 %v779
      %v801 = vpop.f32.mrf.mxu0
      %v802 = vadd.f32 0.0, %v801
      %803 = vdwg.mxu0
      %v805 = vsel %vm308, %v183, 0
      %v808 = vsel %vm312, %v259, 0
      %810 = vmatpush.msra.mxu0 0.0
      %811 = vmatpush.msra.mxu0 0.0
      %812 = vmatpush.msra.mxu0 0.0
      %813 = vmatpush.msra.mxu0 0.0
      %814 = vmatpush.msra.mxu0 0.0
      %815 = vmatpush.msra.mxu0 0.0
      %816 = vmatpush.msra.mxu0 0.0
      %817 = vmatpush.msra.mxu0 0.0
      %818 = vmatpush.msra.mxu0 0.0
      %819 = vmatpush.msra.mxu0 0.0
      %820 = vmatpush.msra.mxu0 0.0
      %821 = vmatpush.msra.mxu0 0.0
      %822 = vmatpush.msra.mxu0 0.0
      %823 = vmatpush.msra.mxu0 %v808
      %824 = vmatpush.msra.mxu0 %v258
      %825 = vmatpush.msra.mxu0 %v257
      %826 = vmatmul.f32.gmra.mxu0 %v805
      %v827 = vpop.f32.mrf.mxu0
      %v828 = vadd.f32 0.0, %v827
      %829 = vdwg.mxu0
      %v831 = vsel %vm308, %v184, 0
      %v834 = vsel %vm312, %v262, 0
      %836 = vmatpush.msra.mxu0 0.0
      %837 = vmatpush.msra.mxu0 0.0
      %838 = vmatpush.msra.mxu0 0.0
      %839 = vmatpush.msra.mxu0 0.0
      %840 = vmatpush.msra.mxu0 0.0
      %841 = vmatpush.msra.mxu0 0.0
      %842 = vmatpush.msra.mxu0 0.0
      %843 = vmatpush.msra.mxu0 0.0
      %844 = vmatpush.msra.mxu0 0.0
      %845 = vmatpush.msra.mxu0 0.0
      %846 = vmatpush.msra.mxu0 0.0
      %847 = vmatpush.msra.mxu0 0.0
      %848 = vmatpush.msra.mxu0 0.0
      %849 = vmatpush.msra.mxu0 %v834
      %850 = vmatpush.msra.mxu0 %v261
      %851 = vmatpush.msra.mxu0 %v260
      %852 = vmatmul.f32.gmra.mxu0 %v831
      %v853 = vpop.f32.mrf.mxu0
      %v854 = vadd.f32 0.0, %v853
      %855 = vdwg.mxu0
      %v857 = vsel %vm308, %v185, 0
      %v860 = vsel %vm312, %v265, 0
      %862 = vmatpush.msra.mxu0 0.0
      %863 = vmatpush.msra.mxu0 0.0
      %864 = vmatpush.msra.mxu0 0.0
      %865 = vmatpush.msra.mxu0 0.0
      %866 = vmatpush.msra.mxu0 0.0
      %867 = vmatpush.msra.mxu0 0.0
      %868 = vmatpush.msra.mxu0 0.0
      %869 = vmatpush.msra.mxu0 0.0
      %870 = vmatpush.msra.mxu0 0.0
      %871 = vmatpush.msra.mxu0 0.0
      %872 = vmatpush.msra.mxu0 0.0
      %873 = vmatpush.msra.mxu0 0.0
      %874 = vmatpush.msra.mxu0 0.0
      %875 = vmatpush.msra.mxu0 %v860
      %876 = vmatpush.msra.mxu0 %v264
      %877 = vmatpush.msra.mxu0 %v263
      %878 = vmatmul.f32.gmra.mxu0 %v857
      %v879 = vpop.f32.mrf.mxu0
      %v880 = vadd.f32 0.0, %v879
      %881 = vdwg.mxu0
      %v883 = vsel %vm308, %v186, 0
      %v886 = vsel %vm312, %v268, 0
      %888 = vmatpush.msra.mxu0 0.0
      %889 = vmatpush.msra.mxu0 0.0
      %890 = vmatpush.msra.mxu0 0.0
      %891 = vmatpush.msra.mxu0 0.0
      %892 = vmatpush.msra.mxu0 0.0
      %893 = vmatpush.msra.mxu0 0.0
      %894 = vmatpush.msra.mxu0 0.0
      %895 = vmatpush.msra.mxu0 0.0
      %896 = vmatpush.msra.mxu0 0.0
      %897 = vmatpush.msra.mxu0 0.0
      %898 = vmatpush.msra.mxu0 0.0
      %899 = vmatpush.msra.mxu0 0.0
      %900 = vmatpush.msra.mxu0 0.0
      %901 = vmatpush.msra.mxu0 %v886
      %902 = vmatpush.msra.mxu0 %v267
      %903 = vmatpush.msra.mxu0 %v266
      %904 = vmatmul.f32.gmra.mxu0 %v883
      %v905 = vpop.f32.mrf.mxu0
      %v906 = vadd.f32 0.0, %v905
      %907 = vdwg.mxu0
      %v909 = vsel %vm308, %v187, 0
      %v912 = vsel %vm312, %v271, 0
      %914 = vmatpush.msra.mxu0 0.0
      %915 = vmatpush.msra.mxu0 0.0
      %916 = vmatpush.msra.mxu0 0.0
      %917 = vmatpush.msra.mxu0 0.0
      %918 = vmatpush.msra.mxu0 0.0
      %919 = vmatpush.msra.mxu0 0.0
      %920 = vmatpush.msra.mxu0 0.0
      %921 = vmatpush.msra.mxu0 0.0
      %922 = vmatpush.msra.mxu0 0.0
      %923 = vmatpush.msra.mxu0 0.0
      %924 = vmatpush.msra.mxu0 0.0
      %925 = vmatpush.msra.mxu0 0.0
      %926 = vmatpush.msra.mxu0 0.0
      %927 = vmatpush.msra.mxu0 %v912
      %928 = vmatpush.msra.mxu0 %v270
      %929 = vmatpush.msra.mxu0 %v269
      %930 = vmatmul.f32.gmra.mxu0 %v909
      %v931 = vpop.f32.mrf.mxu0
      %v932 = vadd.f32 0.0, %v931
      %933 = vdwg.mxu0
      %v935 = vsel %vm308, %v188, 0
      %v938 = vsel %vm312, %v274, 0
      %940 = vmatpush.msra.mxu0 0.0
      %941 = vmatpush.msra.mxu0 0.0
      %942 = vmatpush.msra.mxu0 0.0
      %943 = vmatpush.msra.mxu0 0.0
      %944 = vmatpush.msra.mxu0 0.0
      %945 = vmatpush.msra.mxu0 0.0
      %946 = vmatpush.msra.mxu0 0.0
      %947 = vmatpush.msra.mxu0 0.0
      %948 = vmatpush.msra.mxu0 0.0
      %949 = vmatpush.msra.mxu0 0.0
      %950 = vmatpush.msra.mxu0 0.0
      %951 = vmatpush.msra.mxu0 0.0
      %952 = vmatpush.msra.mxu0 0.0
      %953 = vmatpush.msra.mxu0 %v938
      %954 = vmatpush.msra.mxu0 %v273
      %955 = vmatpush.msra.mxu0 %v272
      %956 = vmatmul.f32.gmra.mxu0 %v935
      %v957 = vpop.f32.mrf.mxu0
      %v958 = vadd.f32 0.0, %v957
      %959 = vdwg.mxu0
      %v961 = vsel %vm308, %v189, 0
      %v964 = vsel %vm312, %v277, 0
      %966 = vmatpush.msra.mxu0 0.0
      %967 = vmatpush.msra.mxu0 0.0
      %968 = vmatpush.msra.mxu0 0.0
      %969 = vmatpush.msra.mxu0 0.0
      %970 = vmatpush.msra.mxu0 0.0
      %971 = vmatpush.msra.mxu0 0.0
      %972 = vmatpush.msra.mxu0 0.0
      %973 = vmatpush.msra.mxu0 0.0
      %974 = vmatpush.msra.mxu0 0.0
      %975 = vmatpush.msra.mxu0 0.0
      %976 = vmatpush.msra.mxu0 0.0
      %977 = vmatpush.msra.mxu0 0.0
      %978 = vmatpush.msra.mxu0 0.0
      %979 = vmatpush.msra.mxu0 %v964
      %980 = vmatpush.msra.mxu0 %v276
      %981 = vmatpush.msra.mxu0 %v275
      %982 = vmatmul.f32.gmra.mxu0 %v961
      %v983 = vpop.f32.mrf.mxu0
      %v984 = vadd.f32 0.0, %v983
      %985 = vdwg.mxu0
      %v987 = vsel %vm308, %v190, 0
      %v990 = vsel %vm312, %v280, 0
      %992 = vmatpush.msra.mxu0 0.0
      %993 = vmatpush.msra.mxu0 0.0
      %994 = vmatpush.msra.mxu0 0.0
      %995 = vmatpush.msra.mxu0 0.0
      %996 = vmatpush.msra.mxu0 0.0
      %997 = vmatpush.msra.mxu0 0.0
      %998 = vmatpush.msra.mxu0 0.0
      %999 = vmatpush.msra.mxu0 0.0
      %1000 = vmatpush.msra.mxu0 0.0
      %1001 = vmatpush.msra.mxu0 0.0
      %1002 = vmatpush.msra.mxu0 0.0
      %1003 = vmatpush.msra.mxu0 0.0
      %1004 = vmatpush.msra.mxu0 0.0
      %1005 = vmatpush.msra.mxu0 %v990
      %1006 = vmatpush.msra.mxu0 %v279
      %1007 = vmatpush.msra.mxu0 %v278
      %1008 = vmatmul.f32.gmra.mxu0 %v987
      %v1009 = vpop.f32.mrf.mxu0
      %v1010 = vadd.f32 0.0, %v1009
      %1011 = vdwg.mxu0
      %v1013 = vsel %vm308, %v191, 0
      %v1016 = vsel %vm312, %v283, 0
      %1018 = vmatpush.msra.mxu0 0.0
      %1019 = vmatpush.msra.mxu0 0.0
      %1020 = vmatpush.msra.mxu0 0.0
      %1021 = vmatpush.msra.mxu0 0.0
      %1022 = vmatpush.msra.mxu0 0.0
      %1023 = vmatpush.msra.mxu0 0.0
      %1024 = vmatpush.msra.mxu0 0.0
      %1025 = vmatpush.msra.mxu0 0.0
      %1026 = vmatpush.msra.mxu0 0.0
      %1027 = vmatpush.msra.mxu0 0.0
      %1028 = vmatpush.msra.mxu0 0.0
      %1029 = vmatpush.msra.mxu0 0.0
      %1030 = vmatpush.msra.mxu0 0.0
      %1031 = vmatpush.msra.mxu0 %v1016
      %1032 = vmatpush.msra.mxu0 %v282
      %1033 = vmatpush.msra.mxu0 %v281
      %1034 = vmatmul.f32.gmra.mxu0 %v1013
      %v1035 = vpop.f32.mrf.mxu0
      %v1036 = vadd.f32 0.0, %v1035
      %1037 = vdwg.mxu0
      %v1039 = vsel %vm308, %v192, 0
      %v1042 = vsel %vm312, %v286, 0
      %1044 = vmatpush.msra.mxu0 0.0
      %1045 = vmatpush.msra.mxu0 0.0
      %1046 = vmatpush.msra.mxu0 0.0
      %1047 = vmatpush.msra.mxu0 0.0
      %1048 = vmatpush.msra.mxu0 0.0
      %1049 = vmatpush.msra.mxu0 0.0
      %1050 = vmatpush.msra.mxu0 0.0
      %1051 = vmatpush.msra.mxu0 0.0
      %1052 = vmatpush.msra.mxu0 0.0
      %1053 = vmatpush.msra.mxu0 0.0
      %1054 = vmatpush.msra.mxu0 0.0
      %1055 = vmatpush.msra.mxu0 0.0
      %1056 = vmatpush.msra.mxu0 0.0
      %1057 = vmatpush.msra.mxu0 %v1042
      %1058 = vmatpush.msra.mxu0 %v285
      %1059 = vmatpush.msra.mxu0 %v284
      %1060 = vmatmul.f32.gmra.mxu0 %v1039
      %v1061 = vpop.f32.mrf.mxu0
      %v1062 = vadd.f32 0.0, %v1061
      %1063 = vdwg.mxu0
      %v1065 = vsel %vm308, %v193, 0
      %v1068 = vsel %vm312, %v289, 0
      %1070 = vmatpush.msra.mxu0 0.0
      %1071 = vmatpush.msra.mxu0 0.0
      %1072 = vmatpush.msra.mxu0 0.0
      %1073 = vmatpush.msra.mxu0 0.0
      %1074 = vmatpush.msra.mxu0 0.0
      %1075 = vmatpush.msra.mxu0 0.0
      %1076 = vmatpush.msra.mxu0 0.0
      %1077 = vmatpush.msra.mxu0 0.0
      %1078 = vmatpush.msra.mxu0 0.0
      %1079 = vmatpush.msra.mxu0 0.0
      %1080 = vmatpush.msra.mxu0 0.0
      %1081 = vmatpush.msra.mxu0 0.0
      %1082 = vmatpush.msra.mxu0 0.0
      %1083 = vmatpush.msra.mxu0 %v1068
      %1084 = vmatpush.msra.mxu0 %v288
      %1085 = vmatpush.msra.mxu0 %v287
      %1086 = vmatmul.f32.gmra.mxu0 %v1065
      %v1087 = vpop.f32.mrf.mxu0
      %v1088 = vadd.f32 0.0, %v1087
      %1089 = vdwg.mxu0
      %v1091 = vsel %vm308, %v194, 0
      %v1094 = vsel %vm312, %v292, 0
      %1096 = vmatpush.msra.mxu0 0.0
      %1097 = vmatpush.msra.mxu0 0.0
      %1098 = vmatpush.msra.mxu0 0.0
      %1099 = vmatpush.msra.mxu0 0.0
      %1100 = vmatpush.msra.mxu0 0.0
      %1101 = vmatpush.msra.mxu0 0.0
      %1102 = vmatpush.msra.mxu0 0.0
      %1103 = vmatpush.msra.mxu0 0.0
      %1104 = vmatpush.msra.mxu0 0.0
      %1105 = vmatpush.msra.mxu0 0.0
      %1106 = vmatpush.msra.mxu0 0.0
      %1107 = vmatpush.msra.mxu0 0.0
      %1108 = vmatpush.msra.mxu0 0.0
      %1109 = vmatpush.msra.mxu0 %v1094
      %1110 = vmatpush.msra.mxu0 %v291
      %1111 = vmatpush.msra.mxu0 %v290
      %1112 = vmatmul.f32.gmra.mxu0 %v1091
      %v1113 = vpop.f32.mrf.mxu0
      %v1114 = vadd.f32 0.0, %v1113
      %1115 = vdwg.mxu0
      %v1117 = vsel %vm308, %v195, 0
      %v1120 = vsel %vm312, %v295, 0
      %1122 = vmatpush.msra.mxu0 0.0
      %1123 = vmatpush.msra.mxu0 0.0
      %1124 = vmatpush.msra.mxu0 0.0
      %1125 = vmatpush.msra.mxu0 0.0
      %1126 = vmatpush.msra.mxu0 0.0
      %1127 = vmatpush.msra.mxu0 0.0
      %1128 = vmatpush.msra.mxu0 0.0
      %1129 = vmatpush.msra.mxu0 0.0
      %1130 = vmatpush.msra.mxu0 0.0
      %1131 = vmatpush.msra.mxu0 0.0
      %1132 = vmatpush.msra.mxu0 0.0
      %1133 = vmatpush.msra.mxu0 0.0
      %1134 = vmatpush.msra.mxu0 0.0
      %1135 = vmatpush.msra.mxu0 %v1120
      %1136 = vmatpush.msra.mxu0 %v294
      %1137 = vmatpush.msra.mxu0 %v293
      %1138 = vmatmul.f32.gmra.mxu0 %v1117
      %v1139 = vpop.f32.mrf.mxu0
      %v1140 = vadd.f32 0.0, %v1139
      %1141 = vdwg.mxu0
      %v1143 = vsel %vm308, %v196, 0
      %v1146 = vsel %vm312, %v298, 0
      %1148 = vmatpush.msra.mxu0 0.0
      %1149 = vmatpush.msra.mxu0 0.0
      %1150 = vmatpush.msra.mxu0 0.0
      %1151 = vmatpush.msra.mxu0 0.0
      %1152 = vmatpush.msra.mxu0 0.0
      %1153 = vmatpush.msra.mxu0 0.0
      %1154 = vmatpush.msra.mxu0 0.0
      %1155 = vmatpush.msra.mxu0 0.0
      %1156 = vmatpush.msra.mxu0 0.0
      %1157 = vmatpush.msra.mxu0 0.0
      %1158 = vmatpush.msra.mxu0 0.0
      %1159 = vmatpush.msra.mxu0 0.0
      %1160 = vmatpush.msra.mxu0 0.0
      %1161 = vmatpush.msra.mxu0 %v1146
      %1162 = vmatpush.msra.mxu0 %v297
      %1163 = vmatpush.msra.mxu0 %v296
      %1164 = vmatmul.f32.gmra.mxu0 %v1143
      %v1165 = vpop.f32.mrf.mxu0
      %v1166 = vadd.f32 0.0, %v1165
      %1167 = vdwg.mxu0
      %v1169 = vsel %vm308, %v197, 0
      %v1172 = vsel %vm312, %v301, 0
      %1174 = vmatpush.msra.mxu0 0.0
      %1175 = vmatpush.msra.mxu0 0.0
      %1176 = vmatpush.msra.mxu0 0.0
      %1177 = vmatpush.msra.mxu0 0.0
      %1178 = vmatpush.msra.mxu0 0.0
      %1179 = vmatpush.msra.mxu0 0.0
      %1180 = vmatpush.msra.mxu0 0.0
      %1181 = vmatpush.msra.mxu0 0.0
      %1182 = vmatpush.msra.mxu0 0.0
      %1183 = vmatpush.msra.mxu0 0.0
      %1184 = vmatpush.msra.mxu0 0.0
      %1185 = vmatpush.msra.mxu0 0.0
      %1186 = vmatpush.msra.mxu0 0.0
      %1187 = vmatpush.msra.mxu0 %v1172
      %1188 = vmatpush.msra.mxu0 %v300
      %1189 = vmatpush.msra.mxu0 %v299
      %1190 = vmatmul.f32.gmra.mxu0 %v1169
      %v1191 = vpop.f32.mrf.mxu0
      %v1192 = vadd.f32 0.0, %v1191
      %1193 = vdwg.mxu0
      %v1195 = vsel %vm308, %v198, 0
      %v1198 = vsel %vm312, %v304, 0
      %1200 = vmatpush.msra.mxu0 0.0
      %1201 = vmatpush.msra.mxu0 0.0
      %1202 = vmatpush.msra.mxu0 0.0
      %1203 = vmatpush.msra.mxu0 0.0
      %1204 = vmatpush.msra.mxu0 0.0
      %1205 = vmatpush.msra.mxu0 0.0
      %1206 = vmatpush.msra.mxu0 0.0
      %1207 = vmatpush.msra.mxu0 0.0
      %1208 = vmatpush.msra.mxu0 0.0
      %1209 = vmatpush.msra.mxu0 0.0
      %1210 = vmatpush.msra.mxu0 0.0
      %1211 = vmatpush.msra.mxu0 0.0
      %1212 = vmatpush.msra.mxu0 0.0
      %1213 = vmatpush.msra.mxu0 %v1198
      %1214 = vmatpush.msra.mxu0 %v303
      %1215 = vmatpush.msra.mxu0 %v302
      %1216 = vmatmul.f32.gmra.mxu0 %v1195
      %v1217 = vpop.f32.mrf.mxu0
      %v1218 = vadd.f32 0.0, %v1217
      %1219 = vdwg.mxu0
      %v1221 = vsel %vm308, %v199, 0
      %v1224 = vsel %vm312, %v307, 0
      %1226 = vmatpush.msra.mxu0 0.0
      %1227 = vmatpush.msra.mxu0 0.0
      %1228 = vmatpush.msra.mxu0 0.0
      %1229 = vmatpush.msra.mxu0 0.0
      %1230 = vmatpush.msra.mxu0 0.0
      %1231 = vmatpush.msra.mxu0 0.0
      %1232 = vmatpush.msra.mxu0 0.0
      %1233 = vmatpush.msra.mxu0 0.0
      %1234 = vmatpush.msra.mxu0 0.0
      %1235 = vmatpush.msra.mxu0 0.0
      %1236 = vmatpush.msra.mxu0 0.0
      %1237 = vmatpush.msra.mxu0 0.0
      %1238 = vmatpush.msra.mxu0 0.0
      %1239 = vmatpush.msra.mxu0 %v1224
      %1240 = vmatpush.msra.mxu0 %v306
      %1241 = vmatpush.msra.mxu0 %v305
      %1242 = vmatmul.f32.gmra.mxu0 %v1221
      %v1243 = vpop.f32.mrf.mxu0
      %v1244 = vadd.f32 0.0, %v1243
      %1245 = vdwg.mxu0
      %v1282 = vrot.slane %v334, 2
      %v1283 = vrot.slane %v360, 2
      %v1284 = vrot.slane %v386, 2
      %v1285 = vrot.slane %v412, 2
      %v1286 = vrot.slane %v438, 2
      %v1287 = vrot.slane %v464, 2
      %v1288 = vrot.slane %v490, 2
      %v1289 = vrot.slane %v516, 2
      %v1290 = vrot.slane %v542, 2
      %v1291 = vrot.slane %v568, 2
      %v1292 = vrot.slane %v594, 2
      %v1293 = vrot.slane %v620, 2
      %v1294 = vrot.slane %v646, 2
      %v1295 = vrot.slane %v672, 2
      %v1296 = vrot.slane %v698, 2
      %v1297 = vrot.slane %v724, 2
      %v1298 = vrot.slane %v750, 2
      %v1299 = vrot.slane %v776, 2
      %v1300 = vrot.slane %v802, 2
      %v1301 = vrot.slane %v828, 2
      %v1302 = vrot.slane %v854, 2
      %v1303 = vrot.slane %v880, 2
      %v1304 = vrot.slane %v906, 2
      %v1305 = vrot.slane %v932, 2
      %v1306 = vrot.slane %v958, 2
      %v1307 = vrot.slane %v984, 2
      %v1308 = vrot.slane %v1010, 2
      %v1309 = vrot.slane %v1036, 2
      %v1310 = vrot.slane %v1062, 2
      %v1311 = vrot.slane %v1088, 2
      %v1312 = vrot.slane %v1114, 2
      %v1313 = vrot.slane %v1140, 2
      %v1314 = vrot.slane %v1166, 2
      %v1315 = vrot.slane %v1192, 2
      %v1316 = vrot.slane %v1218, 2
      %v1317 = vrot.slane %v1244, 2
      %1318 = vrot.lane.b32.xlu0 %v1282, 108
      %v1319 = vpop.permute.xlu0 %1318
      %1320 = vrot.lane.b32.xlu0 %v1283, 108
      %v1321 = vpop.permute.xlu0 %1320
      %1322 = vrot.lane.b32.xlu0 %v1284, 108
      %v1323 = vpop.permute.xlu0 %1322
      %1324 = vrot.lane.b32.xlu0 %v1285, 108
      %v1325 = vpop.permute.xlu0 %1324
      %1326 = vrot.lane.b32.xlu0 %v1286, 108
      %v1327 = vpop.permute.xlu0 %1326
      %1328 = vrot.lane.b32.xlu0 %v1287, 108
      %v1329 = vpop.permute.xlu0 %1328
      %1330 = vrot.lane.b32.xlu0 %v1288, 108
      %v1331 = vpop.permute.xlu0 %1330
      %1332 = vrot.lane.b32.xlu0 %v1289, 108
      %v1333 = vpop.permute.xlu0 %1332
      %1334 = vrot.lane.b32.xlu0 %v1290, 108
      %v1335 = vpop.permute.xlu0 %1334
      %1336 = vrot.lane.b32.xlu0 %v1291, 108
      %v1337 = vpop.permute.xlu0 %1336
      %1338 = vrot.lane.b32.xlu0 %v1292, 108
      %v1339 = vpop.permute.xlu0 %1338
      %1340 = vrot.lane.b32.xlu0 %v1293, 108
      %v1341 = vpop.permute.xlu0 %1340
      %1342 = vrot.lane.b32.xlu0 %v1294, 108
      %v1343 = vpop.permute.xlu0 %1342
      %1344 = vrot.lane.b32.xlu0 %v1295, 108
      %v1345 = vpop.permute.xlu0 %1344
      %1346 = vrot.lane.b32.xlu0 %v1296, 108
      %v1347 = vpop.permute.xlu0 %1346
      %1348 = vrot.lane.b32.xlu0 %v1297, 108
      %v1349 = vpop.permute.xlu0 %1348
      %1350 = vrot.lane.b32.xlu0 %v1298, 108
      %v1351 = vpop.permute.xlu0 %1350
      %1352 = vrot.lane.b32.xlu0 %v1299, 108
      %v1353 = vpop.permute.xlu0 %1352
      %1354 = vrot.lane.b32.xlu0 %v1300, 108
      %v1355 = vpop.permute.xlu0 %1354
      %1356 = vrot.lane.b32.xlu0 %v1301, 108
      %v1357 = vpop.permute.xlu0 %1356
      %1358 = vrot.lane.b32.xlu0 %v1302, 108
      %v1359 = vpop.permute.xlu0 %1358
      %1360 = vrot.lane.b32.xlu0 %v1303, 108
      %v1361 = vpop.permute.xlu0 %1360
      %1362 = vrot.lane.b32.xlu0 %v1304, 108
      %v1363 = vpop.permute.xlu0 %1362
      %1364 = vrot.lane.b32.xlu0 %v1305, 108
      %v1365 = vpop.permute.xlu0 %1364
      %1366 = vrot.lane.b32.xlu0 %v1306, 108
      %v1367 = vpop.permute.xlu0 %1366
      %1368 = vrot.lane.b32.xlu0 %v1307, 108
      %v1369 = vpop.permute.xlu0 %1368
      %1370 = vrot.lane.b32.xlu0 %v1308, 108
      %v1371 = vpop.permute.xlu0 %1370
      %1372 = vrot.lane.b32.xlu0 %v1309, 108
      %v1373 = vpop.permute.xlu0 %1372
      %1374 = vrot.lane.b32.xlu0 %v1310, 108
      %v1375 = vpop.permute.xlu0 %1374
      %1376 = vrot.lane.b32.xlu0 %v1311, 108
      %v1377 = vpop.permute.xlu0 %1376
      %1378 = vrot.lane.b32.xlu0 %v1312, 108
      %v1379 = vpop.permute.xlu0 %1378
      %1380 = vrot.lane.b32.xlu0 %v1313, 108
      %v1381 = vpop.permute.xlu0 %1380
      %1382 = vrot.lane.b32.xlu0 %v1314, 108
      %v1383 = vpop.permute.xlu0 %1382
      %1384 = vrot.lane.b32.xlu0 %v1315, 108
      %v1385 = vpop.permute.xlu0 %1384
      %1386 = vrot.lane.b32.xlu0 %v1316, 108
      %v1387 = vpop.permute.xlu0 %1386
      %1388 = vrot.lane.b32.xlu0 %v1317, 108
      %v1389 = vpop.permute.xlu0 %1388
      %v1426 = vsub.f32 %v334, %v1319
      %v1427 = vsub.f32 %v360, %v1321
      %v1428 = vsub.f32 %v386, %v1323
      %v1429 = vsub.f32 %v412, %v1325
      %v1430 = vsub.f32 %v438, %v1327
      %v1431 = vsub.f32 %v464, %v1329
      %v1432 = vsub.f32 %v490, %v1331
      %v1433 = vsub.f32 %v516, %v1333
      %v1434 = vsub.f32 %v542, %v1335
      %v1435 = vsub.f32 %v568, %v1337
      %v1436 = vsub.f32 %v594, %v1339
      %v1437 = vsub.f32 %v620, %v1341
      %v1438 = vsub.f32 %v646, %v1343
      %v1439 = vsub.f32 %v672, %v1345
      %v1440 = vsub.f32 %v698, %v1347
      %v1441 = vsub.f32 %v724, %v1349
      %v1442 = vsub.f32 %v750, %v1351
      %v1443 = vsub.f32 %v776, %v1353
      %v1444 = vsub.f32 %v802, %v1355
      %v1445 = vsub.f32 %v828, %v1357
      %v1446 = vsub.f32 %v854, %v1359
      %v1447 = vsub.f32 %v880, %v1361
      %v1448 = vsub.f32 %v906, %v1363
      %v1449 = vsub.f32 %v932, %v1365
      %v1450 = vsub.f32 %v958, %v1367
      %v1451 = vsub.f32 %v984, %v1369
      %v1452 = vsub.f32 %v1010, %v1371
      %v1453 = vsub.f32 %v1036, %v1373
      %v1454 = vsub.f32 %v1062, %v1375
      %v1455 = vsub.f32 %v1088, %v1377
      %v1456 = vsub.f32 %v1114, %v1379
      %v1457 = vsub.f32 %v1140, %v1381
      %v1458 = vsub.f32 %v1166, %v1383
      %v1459 = vsub.f32 %v1192, %v1385
      %v1460 = vsub.f32 %v1218, %v1387
      %v1461 = vsub.f32 %v1244, %v1389
      %vm1462 = vcmask 156672
      %1463 = vst.msk [vmem:[%s163] sm:$0x3] %vm1462, %v1426
      %1464 = vst.msk [vmem:[%s163 + $0x4] sm:$0x3] %vm1462, %v1427
      %1465 = vst.msk [vmem:[%s163 + $0x8] sm:$0x3] %vm1462, %v1428
      %1466 = vst.msk [vmem:[%s163 + $0xc] sm:$0x3] %vm1462, %v1429
      %1467 = vst.msk [vmem:[%s163 + $0x10] sm:$0x3] %vm1462, %v1430
      %1468 = vst.msk [vmem:[%s163 + $0x14] sm:$0x3] %vm1462, %v1431
      %1469 = vst.msk [vmem:[%s163 + $0x18] sm:$0x3] %vm1462, %v1432
      %1470 = vst.msk [vmem:[%s163 + $0x1c] sm:$0x3] %vm1462, %v1433
      %1471 = vst.msk [vmem:[%s163 + $0x20] sm:$0x3] %vm1462, %v1434
      %1472 = vst.msk [vmem:[%s163 + $0x24] sm:$0x3] %vm1462, %v1435
      %1473 = vst.msk [vmem:[%s163 + $0x28] sm:$0x3] %vm1462, %v1436
      %1474 = vst.msk [vmem:[%s163 + $0x2c] sm:$0x3] %vm1462, %v1437
      %1475 = vst.msk [vmem:[%s163 + $0x30] sm:$0x3] %vm1462, %v1438
      %1476 = vst.msk [vmem:[%s163 + $0x34] sm:$0x3] %vm1462, %v1439
      %1477 = vst.msk [vmem:[%s163 + $0x38] sm:$0x3] %vm1462, %v1440
      %1478 = vst.msk [vmem:[%s163 + $0x3c] sm:$0x3] %vm1462, %v1441
      %1479 = vst.msk [vmem:[%s163 + $0x40] sm:$0x3] %vm1462, %v1442
      %1480 = vst.msk [vmem:[%s163 + $0x44] sm:$0x3] %vm1462, %v1443
      %1481 = vst.msk [vmem:[%s163 + $0x48] sm:$0x3] %vm1462, %v1444
      %1482 = vst.msk [vmem:[%s163 + $0x4c] sm:$0x3] %vm1462, %v1445
      %1483 = vst.msk [vmem:[%s163 + $0x50] sm:$0x3] %vm1462, %v1446
      %1484 = vst.msk [vmem:[%s163 + $0x54] sm:$0x3] %vm1462, %v1447
      %1485 = vst.msk [vmem:[%s163 + $0x58] sm:$0x3] %vm1462, %v1448
      %1486 = vst.msk [vmem:[%s163 + $0x5c] sm:$0x3] %vm1462, %v1449
      %1487 = vst.msk [vmem:[%s163 + $0x60] sm:$0x3] %vm1462, %v1450
      %1488 = vst.msk [vmem:[%s163 + $0x64] sm:$0x3] %vm1462, %v1451
      %1489 = vst.msk [vmem:[%s163 + $0x68] sm:$0x3] %vm1462, %v1452
      %1490 = vst.msk [vmem:[%s163 + $0x6c] sm:$0x3] %vm1462, %v1453
      %1491 = vst.msk [vmem:[%s163 + $0x70] sm:$0x3] %vm1462, %v1454
      %1492 = vst.msk [vmem:[%s163 + $0x74] sm:$0x3] %vm1462, %v1455
      %1493 = vst.msk [vmem:[%s163 + $0x78] sm:$0x3] %vm1462, %v1456
      %1494 = vst.msk [vmem:[%s163 + $0x7c] sm:$0x3] %vm1462, %v1457
      %1495 = vst.msk [vmem:[%s163 + $0x80] sm:$0x3] %vm1462, %v1458
      %1496 = vst.msk [vmem:[%s163 + $0x84] sm:$0x3] %vm1462, %v1459
      %1497 = vst.msk [vmem:[%s163 + $0x88] sm:$0x3] %vm1462, %v1460
      %1498 = vst.msk [vmem:[%s163 + $0x8c] sm:$0x3] %vm1462, %v1461
      %1499 = vrot.lane.b32.xlu0 %v1282, 20
      %v1500 = vpop.permute.xlu0 %1499
      %1501 = vrot.lane.b32.xlu0 %v1283, 20
      %v1502 = vpop.permute.xlu0 %1501
      %1503 = vrot.lane.b32.xlu0 %v1284, 20
      %v1504 = vpop.permute.xlu0 %1503
      %1505 = vrot.lane.b32.xlu0 %v1285, 20
      %v1506 = vpop.permute.xlu0 %1505
      %1507 = vrot.lane.b32.xlu0 %v1286, 20
      %v1508 = vpop.permute.xlu0 %1507
      %1509 = vrot.lane.b32.xlu0 %v1287, 20
      %v1510 = vpop.permute.xlu0 %1509
      %1511 = vrot.lane.b32.xlu0 %v1288, 20
      %v1512 = vpop.permute.xlu0 %1511
      %1513 = vrot.lane.b32.xlu0 %v1289, 20
      %v1514 = vpop.permute.xlu0 %1513
      %1515 = vrot.lane.b32.xlu0 %v1290, 20
      %v1516 = vpop.permute.xlu0 %1515
      %1517 = vrot.lane.b32.xlu0 %v1291, 20
      %v1518 = vpop.permute.xlu0 %1517
      %1519 = vrot.lane.b32.xlu0 %v1292, 20
      %v1520 = vpop.permute.xlu0 %1519
      %1521 = vrot.lane.b32.xlu0 %v1293, 20
      %v1522 = vpop.permute.xlu0 %1521
      %1523 = vrot.lane.b32.xlu0 %v1294, 20
      %v1524 = vpop.permute.xlu0 %1523
      %1525 = vrot.lane.b32.xlu0 %v1295, 20
      %v1526 = vpop.permute.xlu0 %1525
      %1527 = vrot.lane.b32.xlu0 %v1296, 20
      %v1528 = vpop.permute.xlu0 %1527
      %1529 = vrot.lane.b32.xlu0 %v1297, 20
      %v1530 = vpop.permute.xlu0 %1529
      %1531 = vrot.lane.b32.xlu0 %v1298, 20
      %v1532 = vpop.permute.xlu0 %1531
      %1533 = vrot.lane.b32.xlu0 %v1299, 20
      %v1534 = vpop.permute.xlu0 %1533
      %1535 = vrot.lane.b32.xlu0 %v1300, 20
      %v1536 = vpop.permute.xlu0 %1535
      %1537 = vrot.lane.b32.xlu0 %v1301, 20
      %v1538 = vpop.permute.xlu0 %1537
      %1539 = vrot.lane.b32.xlu0 %v1302, 20
      %v1540 = vpop.permute.xlu0 %1539
      %1541 = vrot.lane.b32.xlu0 %v1303, 20
      %v1542 = vpop.permute.xlu0 %1541
      %1543 = vrot.lane.b32.xlu0 %v1304, 20
      %v1544 = vpop.permute.xlu0 %1543
      %1545 = vrot.lane.b32.xlu0 %v1305, 20
      %v1546 = vpop.permute.xlu0 %1545
      %1547 = vrot.lane.b32.xlu0 %v1306, 20
      %v1548 = vpop.permute.xlu0 %1547
      %1549 = vrot.lane.b32.xlu0 %v1307, 20
      %v1550 = vpop.permute.xlu0 %1549
      %1551 = vrot.lane.b32.xlu0 %v1308, 20
      %v1552 = vpop.permute.xlu0 %1551
      %1553 = vrot.lane.b32.xlu0 %v1309, 20
      %v1554 = vpop.permute.xlu0 %1553
      %1555 = vrot.lane.b32.xlu0 %v1310, 20
      %v1556 = vpop.permute.xlu0 %1555
      %1557 = vrot.lane.b32.xlu0 %v1311, 20
      %v1558 = vpop.permute.xlu0 %1557
      %1559 = vrot.lane.b32.xlu0 %v1312, 20
      %v1560 = vpop.permute.xlu0 %1559
      %1561 = vrot.lane.b32.xlu0 %v1313, 20
      %v1562 = vpop.permute.xlu0 %1561
      %1563 = vrot.lane.b32.xlu0 %v1314, 20
      %v1564 = vpop.permute.xlu0 %1563
      %1565 = vrot.lane.b32.xlu0 %v1315, 20
      %v1566 = vpop.permute.xlu0 %1565
      %1567 = vrot.lane.b32.xlu0 %v1316, 20
      %v1568 = vpop.permute.xlu0 %1567
      %1569 = vrot.lane.b32.xlu0 %v1317, 20
      %v1570 = vpop.permute.xlu0 %1569
      %v1607 = vadd.f32 %v334, %v1500
      %v1608 = vadd.f32 %v360, %v1502
      %v1609 = vadd.f32 %v386, %v1504
      %v1610 = vadd.f32 %v412, %v1506
      %v1611 = vadd.f32 %v438, %v1508
      %v1612 = vadd.f32 %v464, %v1510
      %v1613 = vadd.f32 %v490, %v1512
      %v1614 = vadd.f32 %v516, %v1514
      %v1615 = vadd.f32 %v542, %v1516
      %v1616 = vadd.f32 %v568, %v1518
      %v1617 = vadd.f32 %v594, %v1520
      %v1618 = vadd.f32 %v620, %v1522
      %v1619 = vadd.f32 %v646, %v1524
      %v1620 = vadd.f32 %v672, %v1526
      %v1621 = vadd.f32 %v698, %v1528
      %v1622 = vadd.f32 %v724, %v1530
      %v1623 = vadd.f32 %v750, %v1532
      %v1624 = vadd.f32 %v776, %v1534
      %v1625 = vadd.f32 %v802, %v1536
      %v1626 = vadd.f32 %v828, %v1538
      %v1627 = vadd.f32 %v854, %v1540
      %v1628 = vadd.f32 %v880, %v1542
      %v1629 = vadd.f32 %v906, %v1544
      %v1630 = vadd.f32 %v932, %v1546
      %v1631 = vadd.f32 %v958, %v1548
      %v1632 = vadd.f32 %v984, %v1550
      %v1633 = vadd.f32 %v1010, %v1552
      %v1634 = vadd.f32 %v1036, %v1554
      %v1635 = vadd.f32 %v1062, %v1556
      %v1636 = vadd.f32 %v1088, %v1558
      %v1637 = vadd.f32 %v1114, %v1560
      %v1638 = vadd.f32 %v1140, %v1562
      %v1639 = vadd.f32 %v1166, %v1564
      %v1640 = vadd.f32 %v1192, %v1566
      %v1641 = vadd.f32 %v1218, %v1568
      %v1642 = vadd.f32 %v1244, %v1570
      %1679 = vrot.lane.b32.xlu0 %v1607, 108
      %v1680 = vpop.permute.xlu0 %1679
      %1681 = vrot.lane.b32.xlu0 %v1608, 108
      %v1682 = vpop.permute.xlu0 %1681
      %1683 = vrot.lane.b32.xlu0 %v1609, 108
      %v1684 = vpop.permute.xlu0 %1683
      %1685 = vrot.lane.b32.xlu0 %v1610, 108
      %v1686 = vpop.permute.xlu0 %1685
      %1687 = vrot.lane.b32.xlu0 %v1611, 108
      %v1688 = vpop.permute.xlu0 %1687
      %1689 = vrot.lane.b32.xlu0 %v1612, 108
      %v1690 = vpop.permute.xlu0 %1689
      %1691 = vrot.lane.b32.xlu0 %v1613, 108
      %v1692 = vpop.permute.xlu0 %1691
      %1693 = vrot.lane.b32.xlu0 %v1614, 108
      %v1694 = vpop.permute.xlu0 %1693
      %1695 = vrot.lane.b32.xlu0 %v1615, 108
      %v1696 = vpop.permute.xlu0 %1695
      %1697 = vrot.lane.b32.xlu0 %v1616, 108
      %v1698 = vpop.permute.xlu0 %1697
      %1699 = vrot.lane.b32.xlu0 %v1617, 108
      %v1700 = vpop.permute.xlu0 %1699
      %1701 = vrot.lane.b32.xlu0 %v1618, 108
      %v1702 = vpop.permute.xlu0 %1701
      %1703 = vrot.lane.b32.xlu0 %v1619, 108
      %v1704 = vpop.permute.xlu0 %1703
      %1705 = vrot.lane.b32.xlu0 %v1620, 108
      %v1706 = vpop.permute.xlu0 %1705
      %1707 = vrot.lane.b32.xlu0 %v1621, 108
      %v1708 = vpop.permute.xlu0 %1707
      %1709 = vrot.lane.b32.xlu0 %v1622, 108
      %v1710 = vpop.permute.xlu0 %1709
      %1711 = vrot.lane.b32.xlu0 %v1623, 108
      %v1712 = vpop.permute.xlu0 %1711
      %1713 = vrot.lane.b32.xlu0 %v1624, 108
      %v1714 = vpop.permute.xlu0 %1713
      %1715 = vrot.lane.b32.xlu0 %v1625, 108
      %v1716 = vpop.permute.xlu0 %1715
      %1717 = vrot.lane.b32.xlu0 %v1626, 108
      %v1718 = vpop.permute.xlu0 %1717
      %1719 = vrot.lane.b32.xlu0 %v1627, 108
      %v1720 = vpop.permute.xlu0 %1719
      %1721 = vrot.lane.b32.xlu0 %v1628, 108
      %v1722 = vpop.permute.xlu0 %1721
      %1723 = vrot.lane.b32.xlu0 %v1629, 108
      %v1724 = vpop.permute.xlu0 %1723
      %1725 = vrot.lane.b32.xlu0 %v1630, 108
      %v1726 = vpop.permute.xlu0 %1725
      %1727 = vrot.lane.b32.xlu0 %v1631, 108
      %v1728 = vpop.permute.xlu0 %1727
      %1729 = vrot.lane.b32.xlu0 %v1632, 108
      %v1730 = vpop.permute.xlu0 %1729
      %1731 = vrot.lane.b32.xlu0 %v1633, 108
      %v1732 = vpop.permute.xlu0 %1731
      %1733 = vrot.lane.b32.xlu0 %v1634, 108
      %v1734 = vpop.permute.xlu0 %1733
      %1735 = vrot.lane.b32.xlu0 %v1635, 108
      %v1736 = vpop.permute.xlu0 %1735
      %1737 = vrot.lane.b32.xlu0 %v1636, 108
      %v1738 = vpop.permute.xlu0 %1737
      %1739 = vrot.lane.b32.xlu0 %v1637, 108
      %v1740 = vpop.permute.xlu0 %1739
      %1741 = vrot.lane.b32.xlu0 %v1638, 108
      %v1742 = vpop.permute.xlu0 %1741
      %1743 = vrot.lane.b32.xlu0 %v1639, 108
      %v1744 = vpop.permute.xlu0 %1743
      %1745 = vrot.lane.b32.xlu0 %v1640, 108
      %v1746 = vpop.permute.xlu0 %1745
      %1747 = vrot.lane.b32.xlu0 %v1641, 108
      %v1748 = vpop.permute.xlu0 %1747
      %1749 = vrot.lane.b32.xlu0 %v1642, 108
      %v1750 = vpop.permute.xlu0 %1749
      %1787 = vst.msk [vmem:[%s163 + $0x2] sm:$0x3] %vm1462, %v1680
      %1788 = vst.msk [vmem:[%s163 + $0x6] sm:$0x3] %vm1462, %v1682
      %1789 = vst.msk [vmem:[%s163 + $0xa] sm:$0x3] %vm1462, %v1684
      %1790 = vst.msk [vmem:[%s163 + $0xe] sm:$0x3] %vm1462, %v1686
      %1791 = vst.msk [vmem:[%s163 + $0x12] sm:$0x3] %vm1462, %v1688
      %1792 = vst.msk [vmem:[%s163 + $0x16] sm:$0x3] %vm1462, %v1690
      %1793 = vst.msk [vmem:[%s163 + $0x1a] sm:$0x3] %vm1462, %v1692
      %1794 = vst.msk [vmem:[%s163 + $0x1e] sm:$0x3] %vm1462, %v1694
      %1795 = vst.msk [vmem:[%s163 + $0x22] sm:$0x3] %vm1462, %v1696
      %1796 = vst.msk [vmem:[%s163 + $0x26] sm:$0x3] %vm1462, %v1698
      %1797 = vst.msk [vmem:[%s163 + $0x2a] sm:$0x3] %vm1462, %v1700
      %1798 = vst.msk [vmem:[%s163 + $0x2e] sm:$0x3] %vm1462, %v1702
      %1799 = vst.msk [vmem:[%s163 + $0x32] sm:$0x3] %vm1462, %v1704
      %1800 = vst.msk [vmem:[%s163 + $0x36] sm:$0x3] %vm1462, %v1706
      %1801 = vst.msk [vmem:[%s163 + $0x3a] sm:$0x3] %vm1462, %v1708
      %1802 = vst.msk [vmem:[%s163 + $0x3e] sm:$0x3] %vm1462, %v1710
      %1803 = vst.msk [vmem:[%s163 + $0x42] sm:$0x3] %vm1462, %v1712
      %1804 = vst.msk [vmem:[%s163 + $0x46] sm:$0x3] %vm1462, %v1714
      %1805 = vst.msk [vmem:[%s163 + $0x4a] sm:$0x3] %vm1462, %v1716
      %1806 = vst.msk [vmem:[%s163 + $0x4e] sm:$0x3] %vm1462, %v1718
      %1807 = vst.msk [vmem:[%s163 + $0x52] sm:$0x3] %vm1462, %v1720
      %1808 = vst.msk [vmem:[%s163 + $0x56] sm:$0x3] %vm1462, %v1722
      %1809 = vst.msk [vmem:[%s163 + $0x5a] sm:$0x3] %vm1462, %v1724
      %1810 = vst.msk [vmem:[%s163 + $0x5e] sm:$0x3] %vm1462, %v1726
      %1811 = vst.msk [vmem:[%s163 + $0x62] sm:$0x3] %vm1462, %v1728
      %1812 = vst.msk [vmem:[%s163 + $0x66] sm:$0x3] %vm1462, %v1730
      %1813 = vst.msk [vmem:[%s163 + $0x6a] sm:$0x3] %vm1462, %v1732
      %1814 = vst.msk [vmem:[%s163 + $0x6e] sm:$0x3] %vm1462, %v1734
      %1815 = vst.msk [vmem:[%s163 + $0x72] sm:$0x3] %vm1462, %v1736
      %1816 = vst.msk [vmem:[%s163 + $0x76] sm:$0x3] %vm1462, %v1738
      %1817 = vst.msk [vmem:[%s163 + $0x7a] sm:$0x3] %vm1462, %v1740
      %1818 = vst.msk [vmem:[%s163 + $0x7e] sm:$0x3] %vm1462, %v1742
      %1819 = vst.msk [vmem:[%s163 + $0x82] sm:$0x3] %vm1462, %v1744
      %1820 = vst.msk [vmem:[%s163 + $0x86] sm:$0x3] %vm1462, %v1746
      %1821 = vst.msk [vmem:[%s163 + $0x8a] sm:$0x3] %vm1462, %v1748
      %1822 = vst.msk [vmem:[%s163 + $0x8e] sm:$0x3] %vm1462, %v1750
      %p1823 = scmp.lt.s32.totalorder %s13, 3
      %s1824 = scalar_select %p1823, %s13, 3
      %s1825 = smul.addr %s1824, 36
      %s1826 = smul.addr %s1825, 4
      %s1827 = scalar_lea.vmem %s2, %s1826
      // Predicated region
      $region29: #{fno2d_forward.12} parent=27 // pred_check
        %p1828 = pneg %p83
      $region30: #{fno2d_forward.12} parent=27 // pred_check_branch
        %1830 = sbr.rel (%p1828) target = $region32
      $region31: #{fno2d_forward.12} parent=27 // pred_region
        _
      $region32: #{fno2d_forward.12} parent=27 // pred_fallthru
        _
    $region28: #{fno2d_forward.12} parent=5 // pred_fallthru
      _
    %p1831 = scmp.le.s32.totalorder 2, %s8
    // Predicated region
    $region33: #{fno2d_forward.12} parent=5 // pred_check
      %p1832 = pneg %p1831
    $region34: #{fno2d_forward.12} parent=5 // pred_check_branch
      %1834 = sbr.rel (%p1832) target = $region36
    $region35: #{fno2d_forward.12} parent=5 // pred_region
      %s1835 = ssub.s32 %s8, 2
      // Predicated region
      $region37: #{fno2d_forward.12} parent=35 // pred_check
        %p1836 = pneg %p89
      $region38: #{fno2d_forward.12} parent=35 // pred_check_branch
        %1838 = sbr.rel (%p1836) target = $region40
      $region39: #{fno2d_forward.12} parent=35 // pred_region
        %p1839 = scmp.lt.s32.totalorder %s14, 3
        %s1840 = scalar_select %p1839, %s14, 3
        %s1841 = smul.addr %s1840, 36
        %s1842 = smul.addr %s1841, 4
        %s1843 = scalar_lea.vmem %s2, %s1842
      $region40: #{fno2d_forward.12} parent=35 // pred_fallthru
        _
    $region36: #{fno2d_forward.12} parent=5 // pred_fallthru
      _
  $region6: #{fno2d_forward.12} parent=0 // loop_footer
    %s12 = sadd.s32 1, %s8
  $region7: #{fno2d_forward.12} parent=0 // loop_footer_branch
    %7 = sbr.rel target = $region3
  $region8: #{fno2d_forward.12} parent=0 // loop_exit
    _

// kernel: reverse.8
$region0: #{reverse.8}
  #allocation0 [shape = 's32[1]{0}', space=sflag, size = 0x4, scoped, tag = 'scoped memory for reverse.8']
  %s0 = inlined_call_operand.vmem [shape: f32[2,20,2,16,7], index: 0, kind: input, shape index: {}]
  %s1 = inlined_call_operand.vmem [shape: f32[2,20,2,16,7], index: 1, kind: output, shape index: {}]
  %s2 = scalar_lea.vmem %s0, 96
  %v3 = vld [vmem:[%s2] sm:$0xff]
  %4 = vst [vmem:[%s1] sm:$0xff] %v3
  %s5 = scalar_lea.vmem %s0, 320
  %v6 = vld [vmem:[%s5] sm:$0xff]
  %s7 = scalar_lea.vmem %s1, 224
  %8 = vst [vmem:[%s7] sm:$0xff] %v6
  %s9 = scalar_lea.vmem %s0, 208
  %v10 = vld [vmem:[%s9] sm:$0xff]
  %s11 = scalar_lea.vmem %s1, 112
  %12 = vst [vmem:[%s11] sm:$0xff] %v10
  %s13 = scalar_lea.vmem %s0, 432
  %v14 = vld [vmem:[%s13] sm:$0xff]
  %s15 = scalar_lea.vmem %s1, 336
  %16 = vst [vmem:[%s15] sm:$0xff] %v14
  %s17 = scalar_lea.vmem %s0, 80
  %v18 = vld [vmem:[%s17] sm:$0xff]
  %s19 = scalar_lea.vmem %s1, 16
  %20 = vst [vmem:[%s19] sm:$0xff] %v18
  %s21 = scalar_lea.vmem %s0, 304
  %v22 = vld [vmem:[%s21] sm:$0xff]
  %s23 = scalar_lea.vmem %s1, 240
  %24 = vst [vmem:[%s23] sm:$0xff] %v22
  %s25 = scalar_lea.vmem %s0, 192
  %v26 = vld [vmem:[%s25] sm:$0xff]
  %s27 = scalar_lea.vmem %s1, 128
  %28 = vst [vmem:[%s27] sm:$0xff] %v26
  %s29 = scalar_lea.vmem %s0, 416
  %v30 = vld [vmem:[%s29] sm:$0xff]
  %s31 = scalar_lea.vmem %s1, 352
  %32 = vst [vmem:[%s31] sm:$0xff] %v30
  %s33 = scalar_lea.vmem %s0, 64
  %v34 = vld [vmem:[%s33] sm:$0xff]
  %s35 = scalar_lea.vmem %s1, 32
  %36 = vst [vmem:[%s35] sm:$0xff] %v34
  %s37 = scalar_lea.vmem %s0, 288
  %v38 = vld [vmem:[%s37] sm:$0xff]
  %s39 = scalar_lea.vmem %s1, 256
  %40 = vst [vmem:[%s39] sm:$0xff] %v38
  %s41 = scalar_lea.vmem %s0, 176
  %v42 = vld [vmem:[%s41] sm:$0xff]
  %s43 = scalar_lea.vmem %s1, 144
  %44 = vst [vmem:[%s43] sm:$0xff] %v42
  %s45 = scalar_lea.vmem %s0, 400
  %v46 = vld [vmem:[%s45] sm:$0xff]
  %s47 = scalar_lea.vmem %s1, 368
  %48 = vst [vmem:[%s47] sm:$0xff] %v46
  %s49 = scalar_lea.vmem %s0, 48
  %v50 = vld [vmem:[%s49] sm:$0xff]
  %s51 = scalar_lea.vmem %s1, 48
  %52 = vst [vmem:[%s51] sm:$0xff] %v50
  %s53 = scalar_lea.vmem %s0, 272
  %v54 = vld [vmem:[%s53] sm:$0xff]
  %s55 = scalar_lea.vmem %s1, 272
  %56 = vst [vmem:[%s55] sm:$0xff] %v54
  %s57 = scalar_lea.vmem %s0, 160
  %v58 = vld [vmem:[%s57] sm:$0xff]
  %s59 = scalar_lea.vmem %s1, 160
  %60 = vst [vmem:[%s59] sm:$0xff] %v58
  %s61 = scalar_lea.vmem %s0, 384
  %v62 = vld [vmem:[%s61] sm:$0xff]
  %s63 = scalar_lea.vmem %s1, 384
  %64 = vst [vmem:[%s63] sm:$0xff] %v62
  %s65 = scalar_lea.vmem %s0, 32
  %v66 = vld [vmem:[%s65] sm:$0xff]
  %s67 = scalar_lea.vmem %s1, 64
  %68 = vst [vmem:[%s67] sm:$0xff] %v66
  %s69 = scalar_lea.vmem %s0, 256
  %v70 = vld [vmem:[%s69] sm:$0xff]
  %s71 = scalar_lea.vmem %s1, 288
  %72 = vst [vmem:[%s71] sm:$0xff] %v70
  %s73 = scalar_lea.vmem %s0, 144
  %v74 = vld [vmem:[%s73] sm:$0xff]
  %s75 = scalar_lea.vmem %s1, 176
  %76 = vst [vmem:[%s75] sm:$0xff] %v74
  %s77 = scalar_lea.vmem %s0, 368
  %v78 = vld [vmem:[%s77] sm:$0xff]
  %s79 = scalar_lea.vmem %s1, 400
  %80 = vst [vmem:[%s79] sm:$0xff] %v78
  %s81 = scalar_lea.vmem %s0, 16
  %v82 = vld [vmem:[%s81] sm:$0xff]
  %s83 = scalar_lea.vmem %s1, 80
  %84 = vst [vmem:[%s83] sm:$0xff] %v82
  %s85 = scalar_lea.vmem %s0, 240
  %v86 = vld [vmem:[%s85] sm:$0xff]
  %s87 = scalar_lea.vmem %s1, 304
  %88 = vst [vmem:[%s87] sm:$0xff] %v86
  %s89 = scalar_lea.vmem %s0, 128
  %v90 = vld [vmem:[%s89] sm:$0xff]
  %s91 = scalar_lea.vmem %s1, 192
  %92 = vst [vmem:[%s91] sm:$0xff] %v90
  %s93 = scalar_lea.vmem %s0, 352
  %v94 = vld [vmem:[%s93] sm:$0xff]
  %s95 = scalar_lea.vmem %s1, 416
  %96 = vst [vmem:[%s95] sm:$0xff] %v94
  %v97 = vld [vmem:[%s0] sm:$0xff]
  %s98 = scalar_lea.vmem %s1, 96
  %99 = vst [vmem:[%s98] sm:$0xff] %v97
  %s100 = scalar_lea.vmem %s0, 224
  %v101 = vld [vmem:[%s100] sm:$0xff]
  %s102 = scalar_lea.vmem %s1, 320
  %103 = vst [vmem:[%s102] sm:$0xff] %v101
  %s104 = scalar_lea.vmem %s0, 112
  %v105 = vld [vmem:[%s104] sm:$0xff]
  %s106 = scalar_lea.vmem %s1, 208
  %107 = vst [vmem:[%s106] sm:$0xff] %v105
  %s108 = scalar_lea.vmem %s0, 336
  %v109 = vld [vmem:[%s108] sm:$0xff]
  %s110 = scalar_lea.vmem %s1, 432
  %111 = vst [vmem:[%s110] sm:$0xff] %v109
  %s112 = scalar_lea.vmem %s0, 104
  %v113 = vld [vmem:[%s112] sm:$0xff]
  %s114 = scalar_lea.vmem %s1, 8
  %115 = vst [vmem:[%s114] sm:$0xff] %v113
  %s116 = scalar_lea.vmem %s0, 328
  %v117 = vld [vmem:[%s116] sm:$0xff]
  %s118 = scalar_lea.vmem %s1, 232
  %119 = vst [vmem:[%s118] sm:$0xff] %v117
  %s120 = scalar_lea.vmem %s0, 216
  %v121 = vld [vmem:[%s120] sm:$0xff]
  %s122 = scalar_lea.vmem %s1, 120
  %123 = vst [vmem:[%s122] sm:$0xff] %v121
  %s124 = scalar_lea.vmem %s0, 440
  %v125 = vld [vmem:[%s124] sm:$0xff]
  %s126 = scalar_lea.vmem %s1, 344
  %127 = vst [vmem:[%s126] sm:$0xff] %v125
  %s128 = scalar_lea.vmem %s0, 88
  %v129 = vld [vmem:[%s128] sm:$0xff]
  %s130 = scalar_lea.vmem %s1, 24
  %131 = vst [vmem:[%s130] sm:$0xff] %v129
  %s132 = scalar_lea.vmem %s0, 312
  %v133 = vld [vmem:[%s132] sm:$0xff]
  %s134 = scalar_lea.vmem %s1, 248
  %135 = vst [vmem:[%s134] sm:$0xff] %v133
  %s136 = scalar_lea.vmem %s0, 200
  %v137 = vld [vmem:[%s136] sm:$0xff]
  %s138 = scalar_lea.vmem %s1, 136
  %139 = vst [vmem:[%s138] sm:$0xff] %v137
  %s140 = scalar_lea.vmem %s0, 424
  %v141 = vld [vmem:[%s140] sm:$0xff]
  %s142 = scalar_lea.vmem %s1, 360
  %143 = vst [vmem:[%s142] sm:$0xff] %v141
  %s144 = scalar_lea.vmem %s0, 72
  %v145 = vld [vmem:[%s144] sm:$0xff]
  %s146 = scalar_lea.vmem %s1, 40
  %147 = vst [vmem:[%s146] sm:$0xff] %v145
  %s148 = scalar_lea.vmem %s0, 296
  %v149 = vld [vmem:[%s148] sm:$0xff]
  %s150 = scalar_lea.vmem %s1, 264
  %151 = vst [vmem:[%s150] sm:$0xff] %v149
  %s152 = scalar_lea.vmem %s0, 184
  %v153 = vld [vmem:[%s152] sm:$0xff]
  %s154 = scalar_lea.vmem %s1, 152
  %155 = vst [vmem:[%s154] sm:$0xff] %v153
  %s156 = scalar_lea.vmem %s0, 408
  %v157 = vld [vmem:[%s156] sm:$0xff]
  %s158 = scalar_lea.vmem %s1, 376
  %159 = vst [vmem:[%s158] sm:$0xff] %v157
  %s160 = scalar_lea.vmem %s0, 56
  %v161 = vld [vmem:[%s160] sm:$0xff]
  %s162 = scalar_lea.vmem %s1, 56
  %163 = vst [vmem:[%s162] sm:$0xff] %v161
  %s164 = scalar_lea.vmem %s0, 280
  %v165 = vld [vmem:[%s164] sm:$0xff]
  %s166 = scalar_lea.vmem %s1, 280
  %167 = vst [vmem:[%s166] sm:$0xff] %v165
  %s168 = scalar_lea.vmem %s0, 168
  %v169 = vld [vmem:[%s168] sm:$0xff]
  %s170 = scalar_lea.vmem %s1, 168
  %171 = vst [vmem:[%s170] sm:$0xff] %v169
  %s172 = scalar_lea.vmem %s0, 392
  %v173 = vld [vmem:[%s172] sm:$0xff]
  %s174 = scalar_lea.vmem %s1, 392
  %175 = vst [vmem:[%s174] sm:$0xff] %v173
  %s176 = scalar_lea.vmem %s0, 40
  %v177 = vld [vmem:[%s176] sm:$0xff]
  %s178 = scalar_lea.vmem %s1, 72
  %179 = vst [vmem:[%s178] sm:$0xff] %v177
  %s180 = scalar_lea.vmem %s0, 264
  %v181 = vld [vmem:[%s180] sm:$0xff]
  %s182 = scalar_lea.vmem %s1, 296
  %183 = vst [vmem:[%s182] sm:$0xff] %v181
  %s184 = scalar_lea.vmem %s0, 152
  %v185 = vld [vmem:[%s184] sm:$0xff]
  %s186 = scalar_lea.vmem %s1, 184
  %187 = vst [vmem:[%s186] sm:$0xff] %v185
  %s188 = scalar_lea.vmem %s0, 376
  %v189 = vld [vmem:[%s188] sm:$0xff]
  %s190 = scalar_lea.vmem %s1, 408
  %191 = vst [vmem:[%s190] sm:$0xff] %v189
  %s192 = scalar_lea.vmem %s0, 24
  %v193 = vld [vmem:[%s192] sm:$0xff]
  %s194 = scalar_lea.vmem %s1, 88
  %195 = vst [vmem:[%s194] sm:$0xff] %v193
  %s196 = scalar_lea.vmem %s0, 248
  %v197 = vld [vmem:[%s196] sm:$0xff]
  %s198 = scalar_lea.vmem %s1, 312
  %199 = vst [vmem:[%s198] sm:$0xff] %v197
  %s200 = scalar_lea.vmem %s0, 136
  %v201 = vld [vmem:[%s200] sm:$0xff]
  %s202 = scalar_lea.vmem %s1, 200
  %203 = vst [vmem:[%s202] sm:$0xff] %v201
  %s204 = scalar_lea.vmem %s0, 360
  %v205 = vld [vmem:[%s204] sm:$0xff]
  %s206 = scalar_lea.vmem %s1, 424
  %207 = vst [vmem:[%s206] sm:$0xff] %v205
  %s208 = scalar_lea.vmem %s0, 8
  %v209 = vld [vmem:[%s208] sm:$0xff]
  %s210 = scalar_lea.vmem %s1, 104
  %211 = vst [vmem:[%s210] sm:$0xff] %v209
  %s212 = scalar_lea.vmem %s0, 232
  %v213 = vld [vmem:[%s212] sm:$0xff]
  %s214 = scalar_lea.vmem %s1, 328
  %215 = vst [vmem:[%s214] sm:$0xff] %v213
  %s216 = scalar_lea.vmem %s0, 120
  %v217 = vld [vmem:[%s216] sm:$0xff]
  %s218 = scalar_lea.vmem %s1, 216
  %219 = vst [vmem:[%s218] sm:$0xff] %v217
  %s220 = scalar_lea.vmem %s0, 344
  %v221 = vld [vmem:[%s220] sm:$0xff]
  %s222 = scalar_lea.vmem %s1, 440
  %223 = vst [vmem:[%s222] sm:$0xff] %v221

// kernel: fno2d_forward.13
$region0: #{fno2d_forward.13}
  #allocation0 [shape = 'u32[]', space=smem, size = 0x4, offset = 0x4, fixed_abs, tag = 'smem constant byte address 0x4 - core index']
  #allocation1 [shape = 'u32[72,128]{1,0:T(1,128)}', space=vmem, size = 0x9000, scoped, tag = 'internal scratch']
  %s0 = inlined_call_operand.vmem [shape: f32[2,32], index: 0, kind: input, shape index: {}]
  %s1 = inlined_call_operand.vmem [shape: f32[32,32], index: 1, kind: input, shape index: {}]
  %s2 = inlined_call_operand.vmem [shape: f32[1,32], index: 2, kind: input, shape index: {}]
  %s3 = inlined_call_operand.vmem [shape: f32[32,20], index: 3, kind: input, shape index: {}]
  %s4 = inlined_call_operand.vmem [shape: f32[1,20], index: 4, kind: input, shape index: {}]
  %s5 = inlined_call_operand.vmem [shape: f32[2,20], index: 5, kind: output, shape index: {}]
  %s6 = sld [smem:[#allocation0]]
  $region30: #{fno2d_forward.13} parent=0
    _
  %s8 = ssub.s32 1, %s6
  %s9 = scalar_select 0, %s8, %s6
  // Predicated region
  $region2: #{fno2d_forward.13} parent=0 // pred_check
    _
  $region3: #{fno2d_forward.13} parent=0 // pred_check_branch
    %11 = sbr.rel (0) target = $region5
  $region4: #{fno2d_forward.13} parent=0 // pred_region
    _
  $region5: #{fno2d_forward.13} parent=0 // pred_fallthru
    _
  // Predicated region
  $region6: #{fno2d_forward.13} parent=0 // pred_check
    _
  $region7: #{fno2d_forward.13} parent=0 // pred_check_branch
    %13 = sbr.rel (0) target = $region9
  $region8: #{fno2d_forward.13} parent=0 // pred_region
    _
  $region9: #{fno2d_forward.13} parent=0 // pred_fallthru
    _
  // Predicated region
  $region10: #{fno2d_forward.13} parent=0 // pred_check
    _
  $region11: #{fno2d_forward.13} parent=0 // pred_check_branch
    %15 = sbr.rel (0) target = $region13
  $region12: #{fno2d_forward.13} parent=0 // pred_region
    _
  $region13: #{fno2d_forward.13} parent=0 // pred_fallthru
    _
  // Predicated region
  $region14: #{fno2d_forward.13} parent=0 // pred_check
    _
  $region15: #{fno2d_forward.13} parent=0 // pred_check_branch
    %17 = sbr.rel (0) target = $region17
  $region16: #{fno2d_forward.13} parent=0 // pred_region
    _
  $region17: #{fno2d_forward.13} parent=0 // pred_fallthru
    _
  // Predicated region
  $region18: #{fno2d_forward.13} parent=0 // pred_check
    _
  $region19: #{fno2d_forward.13} parent=0 // pred_check_branch
    %19 = sbr.rel (0) target = $region21
  $region20: #{fno2d_forward.13} parent=0 // pred_region
    _
  $region21: #{fno2d_forward.13} parent=0 // pred_fallthru
    _
  %v20 = vld [vmem:[%s0] sm:$0x3]
  %v21 = vld [vmem:[%s1] sm:$0xff]
  %v22 = vld [vmem:[%s1 + $0x8] sm:$0xff]
  %v23 = vld [vmem:[%s1 + $0x10] sm:$0xff]
  %v24 = vld [vmem:[%s1 + $0x18] sm:$0xff]
  %v25 = vld [vmem:[%s2] sm:$0x1]
  %v27 = vperm.slane %v25, 0
  %vm29 = vcmask 261120
  %v31 = vsel %vm29, %v20, 0
  %33 = vmatpush.msra.mxu0 0.0
  %34 = vmatpush.msra.mxu0 0.0
  %35 = vmatpush.msra.mxu0 0.0
  %36 = vmatpush.msra.mxu0 0.0
  %37 = vmatpush.msra.mxu0 0.0
  %38 = vmatpush.msra.mxu0 0.0
  %39 = vmatpush.msra.mxu0 0.0
  %40 = vmatpush.msra.mxu0 0.0
  %41 = vmatpush.msra.mxu0 0.0
  %42 = vmatpush.msra.mxu0 0.0
  %43 = vmatpush.msra.mxu0 0.0
  %44 = vmatpush.msra.mxu0 0.0
  %45 = vmatpush.msra.mxu0 %v24
  %46 = vmatpush.msra.mxu0 %v23
  %47 = vmatpush.msra.mxu0 %v22
  %48 = vmatpush.msra.mxu0 %v21
  %49 = vmatmul.f32.gmra.mxu0 %v31
  %v50 = vpop.f32.mrf.mxu0
  %v51 = vadd.f32 %v27, %v50
  %52 = vdwg.mxu0
  %v53 = vxor.u32 %v51, 2147483648
  %v54 = vmul.f32 %v53, 1.442695
  %v55 = vpow.pop %v54
  %v56 = vadd.f32 %v55, 1.0
  %v57 = vrcp.pop %v56
  %v58 = vmul.f32 %v56, %v57
  %v59 = vsub.f32 1.0, %v58
  %v60 = vmul.f32 %v57, %v59
  %v61 = vadd.f32 %v57, %v60
  %vm62 = vweird.f32 %v56
  %vm63 = vweird.f32 %v57
  %vm64 = vmor %vm62, %vm63
  %v65 = vsel %vm64, %v57, %v61
  %v66 = vand.u32 2147483647, %v56
  %vm67 = vcmp.eq.f32.partialorder %v66, 8.507059e+37
  %v68 = vand.u32 %v56, 2147483648
  %v69 = vor.u32 1.1754944e-38, %v68
  %v70 = vsel %vm67, %v69, %v65
  %v71 = vmul.f32 1.0, %v70
  %v72 = vmul.f32 %v51, %v71
  %v73 = vld [vmem:[%s3] sm:$0xff]
  %v74 = vld [vmem:[%s3 + $0x8] sm:$0xff]
  %v75 = vld [vmem:[%s3 + $0x10] sm:$0xff]
  %v76 = vld [vmem:[%s3 + $0x18] sm:$0xff]
  %v77 = vld [vmem:[%s4] sm:$0x1]
  %v79 = vperm.slane %v77, 0
  %v82 = vsel %vm29, %v72, 0
  %84 = vmatpush.msra.mxu0 0.0
  %85 = vmatpush.msra.mxu0 0.0
  %86 = vmatpush.msra.mxu0 0.0
  %87 = vmatpush.msra.mxu0 0.0
  %88 = vmatpush.msra.mxu0 0.0
  %89 = vmatpush.msra.mxu0 0.0
  %90 = vmatpush.msra.mxu0 0.0
  %91 = vmatpush.msra.mxu0 0.0
  %92 = vmatpush.msra.mxu0 0.0
  %93 = vmatpush.msra.mxu0 0.0
  %94 = vmatpush.msra.mxu0 0.0
  %95 = vmatpush.msra.mxu0 0.0
  %96 = vmatpush.msra.mxu0 %v76
  %97 = vmatpush.msra.mxu0 %v75
  %98 = vmatpush.msra.mxu0 %v74
  %99 = vmatpush.msra.mxu0 %v73
  %100 = vmatmul.f32.gmra.mxu0 %v82
  %v101 = vpop.f32.mrf.mxu0
  %v102 = vadd.f32 %v79, %v101
  %103 = vdwg.mxu0
  %vm104 = vcmask 156672
  %105 = vst.msk [vmem:[%s5] sm:$0x3] %vm104, %v102
  // Predicated region
  $region22: #{fno2d_forward.13} parent=0 // pred_check
    _
  $region23: #{fno2d_forward.13} parent=0 // pred_check_branch
    %107 = sbr.rel (0) target = $region25
  $region24: #{fno2d_forward.13} parent=0 // pred_region
    _
  $region25: #{fno2d_forward.13} parent=0 // pred_fallthru
    _
  // Predicated region
  $region26: #{fno2d_forward.13} parent=0 // pred_check
    _
  $region27: #{fno2d_forward.13} parent=0 // pred_check_branch
    %109 = sbr.rel (0) target = $region29
  $region28: #{fno2d_forward.13} parent=0 // pred_region
    _
  $region29: #{fno2d_forward.13} parent=0 // pred_fallthru
    _

// kernel: fno2d_forward.14
$region0: #{fno2d_forward.14}
  #allocation0 [shape = 'u32[]', space=smem, size = 0x4, offset = 0x4, fixed_abs, tag = 'smem constant byte address 0x4 - core index']
  #allocation1 [shape = 'u32[72,128]{1,0:T(1,128)}', space=vmem, size = 0x9000, scoped, tag = 'internal scratch']
  %s0 = inlined_call_operand.vmem [shape: f32[2,20,512], index: 0, kind: input, shape index: {}]
  %s1 = inlined_call_operand.vmem [shape: f32[2,20,512], index: 1, kind: input, shape index: {}]
  %s2 = inlined_call_operand.vmem [shape: f32[2,20,20], index: 2, kind: input, shape index: {}]
  %s3 = inlined_call_operand.vmem [shape: f32[2,20,1], index: 3, kind: input, shape index: {}]
  %s4 = inlined_call_operand.vmem [shape: f32[20,512], index: 4, kind: input, shape index: {}]
  %s5 = inlined_call_operand.vmem [shape: f32[2,20,512], index: 5, kind: output, shape index: {}]
  %s6 = sld [smem:[#allocation0]]
  $region149: #{fno2d_forward.14} parent=0
    _
  %s8 = ssub.s32 1, %s6
  %s9 = scalar_select 0, %s8, %s6
  $region1: #{fno2d_forward.14} parent=0
    #allocation2 [shape = 'u8[49152]{0}', space=vmem, size = 0xc000, scoped, tag = 'input window, operand 0']
    #allocation3 [shape = 'u8[49152]{0}', space=vmem, size = 0xc000, scoped, tag = 'input window, operand 1']
    #allocation4 [shape = 'u8[49152]{0}', space=vmem, size = 0xc000, scoped, tag = 'input window, operand 4']
    #allocation5 [shape = 'u8[49152]{0}', space=vmem, size = 0xc000, scoped, tag = 'output window, operand 0']
    loop: start=0, step=1, limit=6
    $region2: #{fno2d_forward.14} parent=1 // loop_pre_header
      _
    $region3: #{fno2d_forward.14} parent=1 // loop_header
      %s11 = sphi 0, %s15
      %p12 = scmp.ge.s32.totalorder %s11, 6
      %s18 = sphi 0, %s30
      %s19 = sphi 0, %s26
      %s20 = sphi 0, %s18
      %s21 = sphi 0, %s19
      %s22 = sphi 0, %s20
      %s23 = sphi 0, %s21
      %s35 = sphi 0, %s37
      %s38 = sphi 0, %s35
      %s39 = sphi 0, %s38
      %s55 = sphi 0, %s39
      %s63 = sphi 0, %s65
      %s66 = sphi 0, %s63
      %s67 = sphi 0, %s66
      %s83 = sphi 0, %s67
      %s89 = sphi 0, %s91
      %s92 = sphi 0, %s89
      %s93 = sphi 0, %s92
      %s109 = sphi 0, %s93
      %s115 = sphi 0, %s117
      %s118 = sphi 0, %s115
      %s119 = sphi 0, %s118
      %s135 = sphi 0, %s119
      %s141 = sphi 0, %s143
      %s144 = sphi 0, %s141
      %s145 = sphi 0, %s144
      %s161 = sphi 0, %s145
      %s169 = sphi 0, %s171
      %s172 = sphi 0, %s169
      %s173 = sphi 0, %s172
      %s189 = sphi 0, %s173
    $region4: #{fno2d_forward.14} parent=1 // loop_header_branch
      %14 = sbr.rel (%p12) target = $region8
    $region5: #{fno2d_forward.14} parent=1 // loop_body
      %s16 = ssub.s32 %s11, 1
      %s17 = ssub.s32 %s11, 2
      %s24 = sadd.s32 1, %s19
      %p25 = scmp.ge.s32.totalorder %s24, 2
      %s26 = scalar_select %p25, 0, %s24
      %s27 = sadd.s32 1, %s18
      %s28 = scalar_select %p25, %s27, %s18
      %p29 = scmp.ge.s32.totalorder %s28, 2
      %s30 = scalar_select %p29, 0, %s28
      %s31 = ssub.s32 %s18, %s30
      %s32 = ssub.s32 %s19, %s26
      %s33 = sor.u32 %s31, %s32
      %p34 = scmp.eq.s32.totalorder %s33, 0
      %s36 = sadd.s32 %s35, 1
      %s37 = scalar_select %p34, %s35, %s36
      %p40 = pneg %p34
      %p41 = scmp.eq.s32.totalorder %s11, 3
      %p42 = por %p40, %p41
      %p43 = scmp.ne.s32.totalorder %s35, %s38
      %p44 = scmp.eq.s32.totalorder %s11, 0
      %p45 = por %p43, %p44
      %p46 = scmp.ne.s32.totalorder %s35, %s38
      %p47 = scmp.eq.s32.totalorder %s16, 3
      %p48 = por %p46, %p47
      %p49 = scmp.ne.s32.totalorder %s38, %s39
      %p50 = scmp.eq.s32.totalorder %s16, 0
      %p51 = por %p49, %p50
      %p52 = scmp.ne.s32.totalorder %s38, %s39
      %p53 = scmp.eq.s32.totalorder %s17, 3
      %p54 = por %p52, %p53
      %p56 = scmp.ne.s32.totalorder %s39, %s55
      %p57 = scmp.eq.s32.totalorder %s17, 0
      %p58 = por %p56, %p57
      %s59 = ssub.s32 %s18, %s30
      %s60 = ssub.s32 %s19, %s26
      %s61 = sor.u32 %s59, %s60
      %p62 = scmp.eq.s32.totalorder %s61, 0
      %s64 = sadd.s32 %s63, 1
      %s65 = scalar_select %p62, %s63, %s64
      %p68 = pneg %p62
      %p69 = scmp.eq.s32.totalorder %s11, 3
      %p70 = por %p68, %p69
      %p71 = scmp.ne.s32.totalorder %s63, %s66
      %p72 = scmp.eq.s32.totalorder %s11, 0
      %p73 = por %p71, %p72
      %p74 = scmp.ne.s32.totalorder %s63, %s66
      %p75 = scmp.eq.s32.totalorder %s16, 3
      %p76 = por %p74, %p75
      %p77 = scmp.ne.s32.totalorder %s66, %s67
      %p78 = scmp.eq.s32.totalorder %s16, 0
      %p79 = por %p77, %p78
      %p80 = scmp.ne.s32.totalorder %s66, %s67
      %p81 = scmp.eq.s32.totalorder %s17, 3
      %p82 = por %p80, %p81
      %p84 = scmp.ne.s32.totalorder %s67, %s83
      %p85 = scmp.eq.s32.totalorder %s17, 0
      %p86 = por %p84, %p85
      %s87 = ssub.s32 %s18, %s30
      %p88 = scmp.eq.s32.totalorder %s87, 0
      %s90 = sadd.s32 %s89, 1
      %s91 = scalar_select %p88, %s89, %s90
      %p94 = pneg %p88
      %p95 = scmp.eq.s32.totalorder %s11, 3
      %p96 = por %p94, %p95
      %p97 = scmp.ne.s32.totalorder %s89, %s92
      %p98 = scmp.eq.s32.totalorder %s11, 0
      %p99 = por %p97, %p98
      %p100 = scmp.ne.s32.totalorder %s89, %s92
      %p101 = scmp.eq.s32.totalorder %s16, 3
      %p102 = por %p100, %p101
      %p103 = scmp.ne.s32.totalorder %s92, %s93
      %p104 = scmp.eq.s32.totalorder %s16, 0
      %p105 = por %p103, %p104
      %p106 = scmp.ne.s32.totalorder %s92, %s93
      %p107 = scmp.eq.s32.totalorder %s17, 3
      %p108 = por %p106, %p107
      %p110 = scmp.ne.s32.totalorder %s93, %s109
      %p111 = scmp.eq.s32.totalorder %s17, 0
      %p112 = por %p110, %p111
      %s113 = ssub.s32 %s18, %s30
      %p114 = scmp.eq.s32.totalorder %s113, 0
      %s116 = sadd.s32 %s115, 1
      %s117 = scalar_select %p114, %s115, %s116
      %p120 = pneg %p114
      %p121 = scmp.eq.s32.totalorder %s11, 3
      %p122 = por %p120, %p121
      %p123 = scmp.ne.s32.totalorder %s115, %s118
      %p124 = scmp.eq.s32.totalorder %s11, 0
      %p125 = por %p123, %p124
      %p126 = scmp.ne.s32.totalorder %s115, %s118
      %p127 = scmp.eq.s32.totalorder %s16, 3
      %p128 = por %p126, %p127
      %p129 = scmp.ne.s32.totalorder %s118, %s119
      %p130 = scmp.eq.s32.totalorder %s16, 0
      %p131 = por %p129, %p130
      %p132 = scmp.ne.s32.totalorder %s118, %s119
      %p133 = scmp.eq.s32.totalorder %s17, 3
      %p134 = por %p132, %p133
      %p136 = scmp.ne.s32.totalorder %s119, %s135
      %p137 = scmp.eq.s32.totalorder %s17, 0
      %p138 = por %p136, %p137
      %s139 = ssub.s32 %s19, %s26
      %p140 = scmp.eq.s32.totalorder %s139, 0
      %s142 = sadd.s32 %s141, 1
      %s143 = scalar_select %p140, %s141, %s142
      %p146 = pneg %p140
      %p147 = scmp.eq.s32.totalorder %s11, 3
      %p148 = por %p146, %p147
      %p149 = scmp.ne.s32.totalorder %s141, %s144
      %p150 = scmp.eq.s32.totalorder %s11, 0
      %p151 = por %p149, %p150
      %p152 = scmp.ne.s32.totalorder %s141, %s144
      %p153 = scmp.eq.s32.totalorder %s16, 3
      %p154 = por %p152, %p153
      %p155 = scmp.ne.s32.totalorder %s144, %s145
      %p156 = scmp.eq.s32.totalorder %s16, 0
      %p157 = por %p155, %p156
      %p158 = scmp.ne.s32.totalorder %s144, %s145
      %p159 = scmp.eq.s32.totalorder %s17, 3
      %p160 = por %p158, %p159
      %p162 = scmp.ne.s32.totalorder %s145, %s161
      %p163 = scmp.eq.s32.totalorder %s17, 0
      %p164 = por %p162, %p163
      %s165 = ssub.s32 %s18, %s30
      %s166 = ssub.s32 %s19, %s26
      %s167 = sor.u32 %s165, %s166
      %p168 = scmp.eq.s32.totalorder %s167, 0
      %s170 = sadd.s32 %s169, 1
      %s171 = scalar_select %p168, %s169, %s170
      %p174 = pneg %p168
      %p175 = scmp.eq.s32.totalorder %s11, 3
      %p176 = por %p174, %p175
      %p177 = scmp.ne.s32.totalorder %s169, %s172
      %p178 = scmp.eq.s32.totalorder %s11, 0
      %p179 = por %p177, %p178
      %p180 = scmp.ne.s32.totalorder %s169, %s172
      %p181 = scmp.eq.s32.totalorder %s16, 3
      %p182 = por %p180, %p181
      %p183 = scmp.ne.s32.totalorder %s172, %s173
      %p184 = scmp.eq.s32.totalorder %s16, 0
      %p185 = por %p183, %p184
      %p186 = scmp.ne.s32.totalorder %s172, %s173
      %p187 = scmp.eq.s32.totalorder %s17, 3
      %p188 = por %p186, %p187
      %p190 = scmp.ne.s32.totalorder %s173, %s189
      %p191 = scmp.eq.s32.totalorder %s17, 0
      %p192 = por %p190, %p191
      %p193 = scmp.le.s32.totalorder 1, %s11
      %p194 = scmp.lt.s32.totalorder %s11, 5
      %p195 = pnand %p193, %p194
      %p196 = pneg %p195
      // Predicated region
      $region9: #{fno2d_forward.14} parent=5 // pred_check
        _
      $region10: #{fno2d_forward.14} parent=5 // pred_check_branch
        %198 = sbr.rel (%p195) target = $region12
      $region11: #{fno2d_forward.14} parent=5 // pred_region
        %s199 = ssub.s32 %s11, 1
      $region12: #{fno2d_forward.14} parent=5 // pred_fallthru
        _
      %p200 = scmp.lt.s32.totalorder %s11, 4
      // Predicated region
      $region13: #{fno2d_forward.14} parent=5 // pred_check
        %p201 = pneg %p200
      $region14: #{fno2d_forward.14} parent=5 // pred_check_branch
        %203 = sbr.rel (%p201) target = $region16
      $region15: #{fno2d_forward.14} parent=5 // pred_region
        // Predicated region
        $region17: #{fno2d_forward.14} parent=15 // pred_check
          %p204 = pneg %p45
        $region18: #{fno2d_forward.14} parent=15 // pred_check_branch
          %206 = sbr.rel (%p204) target = $region20
        $region19: #{fno2d_forward.14} parent=15 // pred_region
          %s207 = sand.u32 %s35, 1
          %s208 = sand.u32 %s35, 1
          %s209 = smul.addr %s208, 48
          %s210 = scalar_lea.vmem [#allocation2], %s209
          %s211 = smul.u32 2, %s19
          %s212 = smul.addr %s18, 12
          %s213 = sadd.s32 %s211, %s212
          %s214 = smul.addr %s213, 8
          %s215 = scalar_lea.vmem %s0, %s214
          // Predicated region
          $region21: #{fno2d_forward.14} parent=19 // pred_check
            _
          $region22: #{fno2d_forward.14} parent=19 // pred_check_branch
            %217 = sbr.rel (0) target = $region24
          $region23: #{fno2d_forward.14} parent=19 // pred_region
            // Predicated region
            $region25: #{fno2d_forward.14} parent=23 // pred_check
              _
            $region26: #{fno2d_forward.14} parent=23 // pred_check_branch
              %219 = sbr.rel (0) target = $region28
            $region27: #{fno2d_forward.14} parent=23 // pred_region
              loop: start=0, step=1, limit=1
              $region29: #{fno2d_forward.14} parent=27 // loop_pre_header
                _
              $region30: #{fno2d_forward.14} parent=27 // loop_header
                %s221 = sphi 0, %s225
                %p222 = scmp.ge.s32.totalorder %s221, 1
                %s226 = sphi %s215, %s215
                %s227 = sphi %s210, %s210
              $region31: #{fno2d_forward.14} parent=27 // loop_header_branch
                %224 = sbr.rel (%p222) target = $region35
              $region32: #{fno2d_forward.14} parent=27 // loop_body
                %v228 = vld [vmem:[%s226] sm:$0xff]
                %229 = vst [vmem:[%s227] sm:$0xff] %v228
                %v230 = vld [vmem:[%s226 + $0x8] sm:$0xff]
                %231 = vst [vmem:[%s227 + $0x8] sm:$0xff] %v230
                %v232 = vld [vmem:[%s226 + $0x20] sm:$0xff]
                %233 = vst [vmem:[%s227 + $0x10] sm:$0xff] %v232
                %v234 = vld [vmem:[%s226 + $0x28] sm:$0xff]
                %235 = vst [vmem:[%s227 + $0x18] sm:$0xff] %v234
                %v236 = vld [vmem:[%s226 + $0x40] sm:$0xff]
                %237 = vst [vmem:[%s227 + $0x20] sm:$0xff] %v236
                %v238 = vld [vmem:[%s226 + $0x48] sm:$0xff]
                %239 = vst [vmem:[%s227 + $0x28] sm:$0xff] %v238
              $region33: #{fno2d_forward.14} parent=27 // loop_footer
                %s225 = sadd.s32 1, %s221
              $region34: #{fno2d_forward.14} parent=27 // loop_footer_branch
                %220 = sbr.rel target = $region30
              $region35: #{fno2d_forward.14} parent=27 // loop_exit
                _
            $region28: #{fno2d_forward.14} parent=23 // pred_fallthru
              _
            // Predicated region
            $region36: #{fno2d_forward.14} parent=23 // pred_check
              _
            $region37: #{fno2d_forward.14} parent=23 // pred_check_branch
              %241 = sbr.rel target = $region39
            $region38: #{fno2d_forward.14} parent=23 // pred_region
              _
            $region39: #{fno2d_forward.14} parent=23 // pred_fallthru
              _
          $region24: #{fno2d_forward.14} parent=19 // pred_fallthru
            _
          %242 = vnop
        $region20: #{fno2d_forward.14} parent=15 // pred_fallthru
          _
        // Predicated region
        $region40: #{fno2d_forward.14} parent=15 // pred_check
          %p243 = pneg %p73
        $region41: #{fno2d_forward.14} parent=15 // pred_check_branch
          %245 = sbr.rel (%p243) target = $region43
        $region42: #{fno2d_forward.14} parent=15 // pred_region
          %s246 = sand.u32 %s63, 1
          %s247 = sand.u32 %s63, 1
          %s248 = smul.addr %s247, 48
          %s249 = scalar_lea.vmem [#allocation3], %s248
          %s250 = smul.u32 2, %s19
          %s251 = smul.addr %s18, 12
          %s252 = sadd.s32 %s250, %s251
          %s253 = smul.addr %s252, 8
          %s254 = scalar_lea.vmem %s1, %s253
          // Predicated region
          $region44: #{fno2d_forward.14} parent=42 // pred_check
            _
          $region45: #{fno2d_forward.14} parent=42 // pred_check_branch
            %256 = sbr.rel (0) target = $region47
          $region46: #{fno2d_forward.14} parent=42 // pred_region
            // Predicated region
            $region48: #{fno2d_forward.14} parent=46 // pred_check
              _
            $region49: #{fno2d_forward.14} parent=46 // pred_check_branch
              %258 = sbr.rel (0) target = $region51
            $region50: #{fno2d_forward.14} parent=46 // pred_region
              loop: start=0, step=1, limit=1
              $region52: #{fno2d_forward.14} parent=50 // loop_pre_header
                _
              $region53: #{fno2d_forward.14} parent=50 // loop_header
                %s260 = sphi 0, %s264
                %p261 = scmp.ge.s32.totalorder %s260, 1
                %s265 = sphi %s254, %s254
                %s266 = sphi %s249, %s249
              $region54: #{fno2d_forward.14} parent=50 // loop_header_branch
                %263 = sbr.rel (%p261) target = $region58
              $region55: #{fno2d_forward.14} parent=50 // loop_body
                %v267 = vld [vmem:[%s265] sm:$0xff]
                %268 = vst [vmem:[%s266] sm:$0xff] %v267
                %v269 = vld [vmem:[%s265 + $0x8] sm:$0xff]
                %270 = vst [vmem:[%s266 + $0x8] sm:$0xff] %v269
                %v271 = vld [vmem:[%s265 + $0x20] sm:$0xff]
                %272 = vst [vmem:[%s266 + $0x10] sm:$0xff] %v271
                %v273 = vld [vmem:[%s265 + $0x28] sm:$0xff]
                %274 = vst [vmem:[%s266 + $0x18] sm:$0xff] %v273
                %v275 = vld [vmem:[%s265 + $0x40] sm:$0xff]
                %276 = vst [vmem:[%s266 + $0x20] sm:$0xff] %v275
                %v277 = vld [vmem:[%s265 + $0x48] sm:$0xff]
                %278 = vst [vmem:[%s266 + $0x28] sm:$0xff] %v277
              $region56: #{fno2d_forward.14} parent=50 // loop_footer
                %s264 = sadd.s32 1, %s260
              $region57: #{fno2d_forward.14} parent=50 // loop_footer_branch
                %259 = sbr.rel target = $region53
              $region58: #{fno2d_forward.14} parent=50 // loop_exit
                _
            $region51: #{fno2d_forward.14} parent=46 // pred_fallthru
              _
            // Predicated region
            $region59: #{fno2d_forward.14} parent=46 // pred_check
              _
            $region60: #{fno2d_forward.14} parent=46 // pred_check_branch
              %280 = sbr.rel target = $region62
            $region61: #{fno2d_forward.14} parent=46 // pred_region
              _
            $region62: #{fno2d_forward.14} parent=46 // pred_fallthru
              _
          $region47: #{fno2d_forward.14} parent=42 // pred_fallthru
            _
          %281 = vnop
        $region43: #{fno2d_forward.14} parent=15 // pred_fallthru
          _
        // Predicated region
        $region63: #{fno2d_forward.14} parent=15 // pred_check
          %p282 = pneg %p99
        $region64: #{fno2d_forward.14} parent=15 // pred_check_branch
          %284 = sbr.rel (%p282) target = $region66
        $region65: #{fno2d_forward.14} parent=15 // pred_region
          %p285 = scmp.lt.s32.totalorder %s18, 1
          %s286 = scalar_select %p285, %s18, 1
          %s287 = smul.addr %s286, 3
          %s288 = smul.addr %s287, 8
          %s289 = scalar_lea.vmem %s2, %s288
        $region66: #{fno2d_forward.14} parent=15 // pred_fallthru
          _
        // Predicated region
        $region67: #{fno2d_forward.14} parent=15 // pred_check
          %p290 = pneg %p125
        $region68: #{fno2d_forward.14} parent=15 // pred_check_branch
          %292 = sbr.rel (%p290) target = $region70
        $region69: #{fno2d_forward.14} parent=15 // pred_region
          %p293 = scmp.lt.s32.totalorder %s18, 1
          %s294 = scalar_select %p293, %s18, 1
          %s295 = smul.addr %s294, 3
          %s296 = smul.addr %s295, 8
          %s297 = scalar_lea.vmem %s3, %s296
        $region70: #{fno2d_forward.14} parent=15 // pred_fallthru
          _
        // Predicated region
        $region71: #{fno2d_forward.14} parent=15 // pred_check
          %p298 = pneg %p151
        $region72: #{fno2d_forward.14} parent=15 // pred_check_branch
          %300 = sbr.rel (%p298) target = $region74
        $region73: #{fno2d_forward.14} parent=15 // pred_region
          %s301 = sand.u32 %s141, 1
          %s302 = sand.u32 %s141, 1
          %s303 = smul.addr %s302, 48
          %s304 = scalar_lea.vmem [#allocation4], %s303
          %s305 = smul.u32 2, %s19
          %s306 = smul.addr %s305, 8
          %s307 = scalar_lea.vmem %s4, %s306
          // Predicated region
          $region75: #{fno2d_forward.14} parent=73 // pred_check
            _
          $region76: #{fno2d_forward.14} parent=73 // pred_check_branch
            %309 = sbr.rel (0) target = $region78
          $region77: #{fno2d_forward.14} parent=73 // pred_region
            // Predicated region
            $region79: #{fno2d_forward.14} parent=77 // pred_check
              _
            $region80: #{fno2d_forward.14} parent=77 // pred_check_branch
              %311 = sbr.rel (0) target = $region82
            $region81: #{fno2d_forward.14} parent=77 // pred_region
              loop: start=0, step=1, limit=1
              $region83: #{fno2d_forward.14} parent=81 // loop_pre_header
                _
              $region84: #{fno2d_forward.14} parent=81 // loop_header
                %s313 = sphi 0, %s317
                %p314 = scmp.ge.s32.totalorder %s313, 1
                %s318 = sphi %s307, %s307
                %s319 = sphi %s304, %s304
              $region85: #{fno2d_forward.14} parent=81 // loop_header_branch
                %316 = sbr.rel (%p314) target = $region89
              $region86: #{fno2d_forward.14} parent=81 // loop_body
                %v320 = vld [vmem:[%s318] sm:$0xff]
                %321 = vst [vmem:[%s319] sm:$0xff] %v320
                %v322 = vld [vmem:[%s318 + $0x8] sm:$0xff]
                %323 = vst [vmem:[%s319 + $0x8] sm:$0xff] %v322
                %v324 = vld [vmem:[%s318 + $0x20] sm:$0xff]
                %325 = vst [vmem:[%s319 + $0x10] sm:$0xff] %v324
                %v326 = vld [vmem:[%s318 + $0x28] sm:$0xff]
                %327 = vst [vmem:[%s319 + $0x18] sm:$0xff] %v326
                %v328 = vld [vmem:[%s318 + $0x40] sm:$0xff]
                %329 = vst [vmem:[%s319 + $0x20] sm:$0xff] %v328
                %v330 = vld [vmem:[%s318 + $0x48] sm:$0xff]
                %331 = vst [vmem:[%s319 + $0x28] sm:$0xff] %v330
              $region87: #{fno2d_forward.14} parent=81 // loop_footer
                %s317 = sadd.s32 1, %s313
              $region88: #{fno2d_forward.14} parent=81 // loop_footer_branch
                %312 = sbr.rel target = $region84
              $region89: #{fno2d_forward.14} parent=81 // loop_exit
                _
            $region82: #{fno2d_forward.14} parent=77 // pred_fallthru
              _
            // Predicated region
            $region90: #{fno2d_forward.14} parent=77 // pred_check
              _
            $region91: #{fno2d_forward.14} parent=77 // pred_check_branch
              %333 = sbr.rel target = $region93
            $region92: #{fno2d_forward.14} parent=77 // pred_region
              _
            $region93: #{fno2d_forward.14} parent=77 // pred_fallthru
              _
          $region78: #{fno2d_forward.14} parent=73 // pred_fallthru
            _
          %334 = vnop
        $region74: #{fno2d_forward.14} parent=15 // pred_fallthru
          _
      $region16: #{fno2d_forward.14} parent=5 // pred_fallthru
        _
      %p335 = scmp.le.s32.totalorder 1, %s11
      %p336 = scmp.lt.s32.totalorder %s11, 5
      %p337 = pnand %p335, %p336
      %p338 = pneg %p337
      // Predicated region
      $region94: #{fno2d_forward.14} parent=5 // pred_check
        _
      $region95: #{fno2d_forward.14} parent=5 // pred_check_branch
        %340 = sbr.rel (%p337) target = $region97
      $region96: #{fno2d_forward.14} parent=5 // pred_region
        %s341 = ssub.s32 %s11, 1
        %s342 = sand.u32 %s38, 1
        %s343 = sand.u32 %s38, 1
        %s344 = smul.addr %s343, 48
        %s345 = scalar_lea.vmem [#allocation2], %s344
        // Predicated region
        $region98: #{fno2d_forward.14} parent=96 // pred_check
          %p346 = pneg %p51
        $region99: #{fno2d_forward.14} parent=96 // pred_check_branch
          %348 = sbr.rel (%p346) target = $region101
        $region100: #{fno2d_forward.14} parent=96 // pred_region
          _
        $region101: #{fno2d_forward.14} parent=96 // pred_fallthru
          _
        %s349 = sand.u32 %s66, 1
        %s350 = sand.u32 %s66, 1
        %s351 = smul.addr %s350, 48
        %s352 = scalar_lea.vmem [#allocation3], %s351
        // Predicated region
        $region102: #{fno2d_forward.14} parent=96 // pred_check
          %p353 = pneg %p79
        $region103: #{fno2d_forward.14} parent=96 // pred_check_branch
          %355 = sbr.rel (%p353) target = $region105
        $region104: #{fno2d_forward.14} parent=96 // pred_region
          _
        $region105: #{fno2d_forward.14} parent=96 // pred_fallthru
          _
        %s356 = sand.u32 %s144, 1
        %s357 = sand.u32 %s144, 1
        %s358 = smul.addr %s357, 48
        %s359 = scalar_lea.vmem [#allocation4], %s358
        // Predicated region
        $region106: #{fno2d_forward.14} parent=96 // pred_check
          %p360 = pneg %p157
        $region107: #{fno2d_forward.14} parent=96 // pred_check_branch
          %362 = sbr.rel (%p360) target = $region109
        $region108: #{fno2d_forward.14} parent=96 // pred_region
          _
        $region109: #{fno2d_forward.14} parent=96 // pred_fallthru
          _
        %s363 = sand.u32 %s38, 1
        %s364 = sand.u32 %s38, 1
        %s365 = smul.addr %s364, 48
        %s366 = scalar_lea.vmem [#allocation2], %s365
        %p367 = pneg %p51
        %p368 = pneg %p48
        %s369 = sand.u32 %s66, 1
        %s370 = sand.u32 %s66, 1
        %s371 = smul.addr %s370, 48
        %s372 = scalar_lea.vmem [#allocation3], %s371
        %p373 = pneg %p79
        %p374 = pneg %p76
        %p375 = scmp.lt.s32.totalorder %s20, 1
        %s376 = scalar_select %p375, %s20, 1
        %s377 = smul.addr %s376, 3
        %s378 = smul.addr %s377, 8
        %s379 = scalar_lea.vmem %s2, %s378
        %p380 = pneg %p105
        %p381 = pneg %p102
        %p382 = scmp.lt.s32.totalorder %s20, 1
        %s383 = scalar_select %p382, %s20, 1
        %s384 = smul.addr %s383, 3
        %s385 = smul.addr %s384, 8
        %s386 = scalar_lea.vmem %s3, %s385
        %p387 = pneg %p131
        %p388 = pneg %p128
        %s389 = sand.u32 %s144, 1
        %s390 = sand.u32 %s144, 1
        %s391 = smul.addr %s390, 48
        %s392 = scalar_lea.vmem [#allocation4], %s391
        %p393 = pneg %p157
        %p394 = pneg %p154
        %p395 = pneg %p185
        %p396 = pneg %p182
        %s397 = sand.u32 %s172, 1
        %s398 = sand.u32 %s172, 1
        %s399 = smul.addr %s398, 48
        %s400 = scalar_lea.vmem [#allocation5], %s399
        %s401 = smul.u32 2, %s21
        %s402 = smul.u32 2, %s21
        %p403 = scmp.lt.s32.totalorder %s20, 1
        %s404 = scalar_select %p403, %s20, 1
        %s405 = smul.addr %s404, 3
        %s406 = smul.addr %s405, 8
        %s407 = scalar_lea.vmem %s2, %s406
        %p408 = scmp.lt.s32.totalorder %s20, 1
        %s409 = scalar_select %p408, %s20, 1
        %s410 = smul.addr %s409, 3
        %s411 = smul.addr %s410, 8
        %s412 = scalar_lea.vmem %s3, %s411
        %s413 = smul.u32 2, %s21
        %s414 = smul.u32 2, %s21
        %v415 = vld [vmem:[%s407] sm:$0xff]
        %v416 = vld [vmem:[%s407 + $0x8] sm:$0xff]
        %v417 = vld [vmem:[%s407 + $0x10] sm:$0xf]
        %v418 = vld [vmem:[%s345] sm:$0xff]
        %v419 = vld [vmem:[%s345 + $0x8] sm:$0xff]
        %v420 = vld [vmem:[%s345 + $0x10] sm:$0xff]
        %v421 = vld [vmem:[%s345 + $0x18] sm:$0xff]
        %v422 = vld [vmem:[%s345 + $0x20] sm:$0xf]
        %v423 = vld [vmem:[%s345 + $0x28] sm:$0xf]
        %v424 = vld [vmem:[%s412] sm:$0xff]
        %v425 = vld [vmem:[%s412 + $0x8] sm:$0xff]
        %v426 = vld [vmem:[%s412 + $0x10] sm:$0xf]
        %428 = vset.pattern.permute.xlu0 0
        %429 = vperm.xlu0 %428, %v424
        %v430 = vpop.permute.xlu0 %429
        %433 = vset.pattern.permute.xlu0 0
        %434 = vperm.xlu0 %433, %v425
        %v435 = vpop.permute.xlu0 %434
        %438 = vset.pattern.permute.xlu0 0
        %439 = vperm.xlu0 %438, %v426
        %v440 = vpop.permute.xlu0 %439
        %vm442 = vcmask 162816
        %v444 = vsel %vm442, %v415, 0
        %v447 = vsel %vm442, %v416, 0
        %v450 = vsel %vm442, %v417, 0
        %vm452 = vcmask 1043456
        %v454 = vsel %vm452, %v422, 0
        %v457 = vsel %vm452, %v423, 0
        %459 = vmatpush.msra.mxu0 0.0
        %460 = vmatpush.msra.mxu0 0.0
        %461 = vmatpush.msra.mxu0 0.0
        %462 = vmatpush.msra.mxu0 0.0
        %463 = vmatpush.msra.mxu0 0.0
        %464 = vmatpush.msra.mxu0 0.0
        %465 = vmatpush.msra.mxu0 0.0
        %466 = vmatpush.msra.mxu0 0.0
        %467 = vmatpush.msra.mxu0 0.0
        %468 = vmatpush.msra.mxu0 0.0
        %469 = vmatpush.msra.mxu0 0.0
        %470 = vmatpush.msra.mxu0 0.0
        %471 = vmatpush.msra.mxu0 0.0
        %472 = vmatpush.msra.mxu0 %v454
        %473 = vmatpush.msra.mxu0 %v420
        %474 = vmatpush.msra.mxu0 %v418
        %475 = vmatmul.f32.gmra.mxu0 %v444
        %v476 = vpop.f32.mrf.mxu0
        %v477 = vadd.f32 %v430, %v476
        %478 = vmatmul.f32.gmra.mxu0 %v447
        %v479 = vpop.f32.mrf.mxu0
        %v480 = vadd.f32 %v435, %v479
        %481 = vmatmul.f32.gmra.mxu0 %v450
        %v482 = vpop.f32.mrf.mxu0
        %v483 = vadd.f32 %v440, %v482
        %484 = vdwg.mxu0
        %485 = vmatpush.msra.mxu0 0.0
        %486 = vmatpush.msra.mxu0 0.0
        %487 = vmatpush.msra.mxu0 0.0
        %488 = vmatpush.msra.mxu0 0.0
        %489 = vmatpush.msra.mxu0 0.0
        %490 = vmatpush.msra.mxu0 0.0
        %491 = vmatpush.msra.mxu0 0.0
        %492 = vmatpush.msra.mxu0 0.0
        %493 = vmatpush.msra.mxu0 0.0
        %494 = vmatpush.msra.mxu0 0.0
        %495 = vmatpush.msra.mxu0 0.0
        %496 = vmatpush.msra.mxu0 0.0
        %497 = vmatpush.msra.mxu0 0.0
        %498 = vmatpush.msra.mxu0 %v457
        %499 = vmatpush.msra.mxu0 %v421
        %500 = vmatpush.msra.mxu0 %v419
        %501 = vmatmul.f32.gmra.mxu0 %v444
        %v502 = vpop.f32.mrf.mxu0
        %v503 = vadd.f32 %v430, %v502
        %504 = vmatmul.f32.gmra.mxu0 %v447
        %v505 = vpop.f32.mrf.mxu0
        %v506 = vadd.f32 %v435, %v505
        %507 = vmatmul.f32.gmra.mxu0 %v450
        %v508 = vpop.f32.mrf.mxu0
        %v509 = vadd.f32 %v440, %v508
        %510 = vdwg.mxu0
        %v511 = vld [vmem:[%s352] sm:$0xff]
        %v512 = vld [vmem:[%s352 + $0x8] sm:$0xff]
        %v513 = vld [vmem:[%s352 + $0x10] sm:$0xff]
        %v514 = vld [vmem:[%s352 + $0x18] sm:$0xff]
        %v515 = vld [vmem:[%s352 + $0x20] sm:$0xf]
        %v516 = vld [vmem:[%s352 + $0x28] sm:$0xf]
        %v517 = vadd.f32 %v477, %v511
        %v518 = vadd.f32 %v503, %v512
        %v519 = vadd.f32 %v480, %v513
        %v520 = vadd.f32 %v506, %v514
        %v521 = vadd.f32 %v483, %v515
        %v522 = vadd.f32 %v509, %v516
        %p523 = scmp.eq.s32.totalorder %s20, 0
        // Predicated region
        $region110: #{fno2d_forward.14} parent=96 // pred_check
          %p524 = pneg %p523
        $region111: #{fno2d_forward.14} parent=96 // pred_check_branch
          %526 = sbr.rel (%p524) target = $region113
        $region112: #{fno2d_forward.14} parent=96 // pred_region
          %v527 = vld [vmem:[%s359] sm:$0xff]
          %v528 = vld [vmem:[%s359 + $0x8] sm:$0xff]
          %v529 = vld [vmem:[%s359 + $0x10] sm:$0xff]
          %v530 = vld [vmem:[%s359 + $0x18] sm:$0xff]
          %v531 = vld [vmem:[%s359 + $0x20] sm:$0xf]
          %v532 = vld [vmem:[%s359 + $0x28] sm:$0xf]
          %v533 = vadd.f32 %v517, %v527
          %v534 = vadd.f32 %v518, %v528
          %v535 = vadd.f32 %v519, %v529
          %v536 = vadd.f32 %v520, %v530
          %v537 = vadd.f32 %v521, %v531
          %v538 = vadd.f32 %v522, %v532
          %v539 = vmul.f32 %v533, 0.5
          %v540 = vmul.f32 %v534, 0.5
          %v541 = vmul.f32 %v535, 0.5
          %v542 = vmul.f32 %v536, 0.5
          %v543 = vmul.f32 %v537, 0.5
          %v544 = vmul.f32 %v538, 0.5
          %v545 = vmul.f32 %v533, 0.70710677
          %v546 = vmul.f32 %v534, 0.70710677
          %v547 = vmul.f32 %v535, 0.70710677
          %v548 = vmul.f32 %v536, 0.70710677
          %v549 = vmul.f32 %v537, 0.70710677
          %v550 = vmul.f32 %v538, 0.70710677
          %v551 = vmul.f32 %v545, %v545
          %v552 = vmin.f32 16.0, %v551
          %v553 = vmul.f32 %v552, 2.1237322e-06
          %v554 = vadd.f32 %v553, 0.00028619796
          %v555 = vmul.f32 %v552, %v554
          %v556 = vadd.f32 %v555, 0.0036580483
          %v557 = vmul.f32 %v552, %v556
          %v558 = vadd.f32 %v557, 0.05243302
          %v559 = vmul.f32 %v552, %v558
          %v560 = vadd.f32 %v559, 0.18741608
          %v561 = vmul.f32 %v552, %v560
          %v562 = vadd.f32 %v561, 1.1283791
          %v563 = vmul.f32 %v545, %v562
          %v564 = vmul.f32 %v552, 3.8918573e-05
          %v565 = vadd.f32 %v564, 0.001143296
          %v566 = vmul.f32 %v552, %v565
          %v567 = vadd.f32 %v566, 0.014752088
          %v568 = vmul.f32 %v552, %v567
          %v569 = vadd.f32 %v568, 0.112945676
          %v570 = vmul.f32 %v552, %v569
          %v571 = vadd.f32 %v570, 0.4994258
          %v572 = vmul.f32 %v552, %v571
          %v573 = vadd.f32 %v572, 1.0
          %v574 = vrcp.pop %v573
          %v575 = vmul.f32 %v573, %v574
          %v576 = vsub.f32 1.0, %v575
          %v577 = vmul.f32 %v574, %v576
          %v578 = vadd.f32 %v574, %v577
          %vm579 = vweird.f32 %v573
          %vm580 = vweird.f32 %v574
          %vm581 = vmor %vm579, %vm580
          %v582 = vsel %vm581, %v574, %v578
          %v583 = vand.u32 2147483647, %v573
          %vm584 = vcmp.eq.f32.partialorder %v583, 8.507059e+37
          %v585 = vand.u32 %v573, 2147483648
          %v586 = vor.u32 1.1754944e-38, %v585
          %v587 = vsel %vm584, %v586, %v582
          %v588 = vmul.f32 %v563, %v587
          %v589 = vmin.f32 %v588, 1.0
          %v590 = vmax.f32 %v589, -1.0
          %v591 = vmul.f32 %v546, %v546
          %v592 = vmin.f32 16.0, %v591
          %v593 = vmul.f32 %v592, 2.1237322e-06
          %v594 = vadd.f32 %v593, 0.00028619796
          %v595 = vmul.f32 %v592, %v594
          %v596 = vadd.f32 %v595, 0.0036580483
          %v597 = vmul.f32 %v592, %v596
          %v598 = vadd.f32 %v597, 0.05243302
          %v599 = vmul.f32 %v592, %v598
          %v600 = vadd.f32 %v599, 0.18741608
          %v601 = vmul.f32 %v592, %v600
          %v602 = vadd.f32 %v601, 1.1283791
          %v603 = vmul.f32 %v546, %v602
          %v604 = vmul.f32 %v592, 3.8918573e-05
          %v605 = vadd.f32 %v604, 0.001143296
          %v606 = vmul.f32 %v592, %v605
          %v607 = vadd.f32 %v606, 0.014752088
          %v608 = vmul.f32 %v592, %v607
          %v609 = vadd.f32 %v608, 0.112945676
          %v610 = vmul.f32 %v592, %v609
          %v611 = vadd.f32 %v610, 0.4994258
          %v612 = vmul.f32 %v592, %v611
          %v613 = vadd.f32 %v612, 1.0
          %v614 = vrcp.pop %v613
          %v615 = vmul.f32 %v613, %v614
          %v616 = vsub.f32 1.0, %v615
          %v617 = vmul.f32 %v614, %v616
          %v618 = vadd.f32 %v614, %v617
          %vm619 = vweird.f32 %v613
          %vm620 = vweird.f32 %v614
          %vm621 = vmor %vm619, %vm620
          %v622 = vsel %vm621, %v614, %v618
          %v623 = vand.u32 2147483647, %v613
          %vm624 = vcmp.eq.f32.partialorder %v623, 8.507059e+37
          %v625 = vand.u32 %v613, 2147483648
          %v626 = vor.u32 1.1754944e-38, %v625
          %v627 = vsel %vm624, %v626, %v622
          %v628 = vmul.f32 %v603, %v627
          %v629 = vmin.f32 %v628, 1.0
          %v630 = vmax.f32 %v629, -1.0
          %v631 = vmul.f32 %v547, %v547
          %v632 = vmin.f32 16.0, %v631
          %v633 = vmul.f32 %v632, 2.1237322e-06
          %v634 = vadd.f32 %v633, 0.00028619796
          %v635 = vmul.f32 %v632, %v634
          %v636 = vadd.f32 %v635, 0.0036580483
          %v637 = vmul.f32 %v632, %v636
          %v638 = vadd.f32 %v637, 0.05243302
          %v639 = vmul.f32 %v632, %v638
          %v640 = vadd.f32 %v639, 0.18741608
          %v641 = vmul.f32 %v632, %v640
          %v642 = vadd.f32 %v641, 1.1283791
          %v643 = vmul.f32 %v547, %v642
          %v644 = vmul.f32 %v632, 3.8918573e-05
          %v645 = vadd.f32 %v644, 0.001143296
          %v646 = vmul.f32 %v632, %v645
          %v647 = vadd.f32 %v646, 0.014752088
          %v648 = vmul.f32 %v632, %v647
          %v649 = vadd.f32 %v648, 0.112945676
          %v650 = vmul.f32 %v632, %v649
          %v651 = vadd.f32 %v650, 0.4994258
          %v652 = vmul.f32 %v632, %v651
          %v653 = vadd.f32 %v652, 1.0
          %v654 = vrcp.pop %v653
          %v655 = vmul.f32 %v653, %v654
          %v656 = vsub.f32 1.0, %v655
          %v657 = vmul.f32 %v654, %v656
          %v658 = vadd.f32 %v654, %v657
          %vm659 = vweird.f32 %v653
          %vm660 = vweird.f32 %v654
          %vm661 = vmor %vm659, %vm660
          %v662 = vsel %vm661, %v654, %v658
          %v663 = vand.u32 2147483647, %v653
          %vm664 = vcmp.eq.f32.partialorder %v663, 8.507059e+37
          %v665 = vand.u32 %v653, 2147483648
          %v666 = vor.u32 1.1754944e-38, %v665
          %v667 = vsel %vm664, %v666, %v662
          %v668 = vmul.f32 %v643, %v667
          %v669 = vmin.f32 %v668, 1.0
          %v670 = vmax.f32 %v669, -1.0
          %v671 = vmul.f32 %v548, %v548
          %v672 = vmin.f32 16.0, %v671
          %v673 = vmul.f32 %v672, 2.1237322e-06
          %v674 = vadd.f32 %v673, 0.00028619796
          %v675 = vmul.f32 %v672, %v674
          %v676 = vadd.f32 %v675, 0.0036580483
          %v677 = vmul.f32 %v672, %v676
          %v678 = vadd.f32 %v677, 0.05243302
          %v679 = vmul.f32 %v672, %v678
          %v680 = vadd.f32 %v679, 0.18741608
          %v681 = vmul.f32 %v672, %v680
          %v682 = vadd.f32 %v681, 1.1283791
          %v683 = vmul.f32 %v548, %v682
          %v684 = vmul.f32 %v672, 3.8918573e-05
          %v685 = vadd.f32 %v684, 0.001143296
          %v686 = vmul.f32 %v672, %v685
          %v687 = vadd.f32 %v686, 0.014752088
          %v688 = vmul.f32 %v672, %v687
          %v689 = vadd.f32 %v688, 0.112945676
          %v690 = vmul.f32 %v672, %v689
          %v691 = vadd.f32 %v690, 0.4994258
          %v692 = vmul.f32 %v672, %v691
          %v693 = vadd.f32 %v692, 1.0
          %v694 = vrcp.pop %v693
          %v695 = vmul.f32 %v693, %v694
          %v696 = vsub.f32 1.0, %v695
          %v697 = vmul.f32 %v694, %v696
          %v698 = vadd.f32 %v694, %v697
          %vm699 = vweird.f32 %v693
          %vm700 = vweird.f32 %v694
          %vm701 = vmor %vm699, %vm700
          %v702 = vsel %vm701, %v694, %v698
          %v703 = vand.u32 2147483647, %v693
          %vm704 = vcmp.eq.f32.partialorder %v703, 8.507059e+37
          %v705 = vand.u32 %v693, 2147483648
          %v706 = vor.u32 1.1754944e-38, %v705
          %v707 = vsel %vm704, %v706, %v702
          %v708 = vmul.f32 %v683, %v707
          %v709 = vmin.f32 %v708, 1.0
          %v710 = vmax.f32 %v709, -1.0
          %v711 = vmul.f32 %v549, %v549
          %v712 = vmin.f32 16.0, %v711
          %v713 = vmul.f32 %v712, 2.1237322e-06
          %v714 = vadd.f32 %v713, 0.00028619796
          %v715 = vmul.f32 %v712, %v714
          %v716 = vadd.f32 %v715, 0.0036580483
          %v717 = vmul.f32 %v712, %v716
          %v718 = vadd.f32 %v717, 0.05243302
          %v719 = vmul.f32 %v712, %v718
          %v720 = vadd.f32 %v719, 0.18741608
          %v721 = vmul.f32 %v712, %v720
          %v722 = vadd.f32 %v721, 1.1283791
          %v723 = vmul.f32 %v549, %v722
          %v724 = vmul.f32 %v712, 3.8918573e-05
          %v725 = vadd.f32 %v724, 0.001143296
          %v726 = vmul.f32 %v712, %v725
          %v727 = vadd.f32 %v726, 0.014752088
          %v728 = vmul.f32 %v712, %v727
          %v729 = vadd.f32 %v728, 0.112945676
          %v730 = vmul.f32 %v712, %v729
          %v731 = vadd.f32 %v730, 0.4994258
          %v732 = vmul.f32 %v712, %v731
          %v733 = vadd.f32 %v732, 1.0
          %v734 = vrcp.pop %v733
          %v735 = vmul.f32 %v733, %v734
          %v736 = vsub.f32 1.0, %v735
          %v737 = vmul.f32 %v734, %v736
          %v738 = vadd.f32 %v734, %v737
          %vm739 = vweird.f32 %v733
          %vm740 = vweird.f32 %v734
          %vm741 = vmor %vm739, %vm740
          %v742 = vsel %vm741, %v734, %v738
          %v743 = vand.u32 2147483647, %v733
          %vm744 = vcmp.eq.f32.partialorder %v743, 8.507059e+37
          %v745 = vand.u32 %v733, 2147483648
          %v746 = vor.u32 1.1754944e-38, %v745
          %v747 = vsel %vm744, %v746, %v742
          %v748 = vmul.f32 %v723, %v747
          %v749 = vmin.f32 %v748, 1.0
          %v750 = vmax.f32 %v749, -1.0
          %v751 = vmul.f32 %v550, %v550
          %v752 = vmin.f32 16.0, %v751
          %v753 = vmul.f32 %v752, 2.1237322e-06
          %v754 = vadd.f32 %v753, 0.00028619796
          %v755 = vmul.f32 %v752, %v754
          %v756 = vadd.f32 %v755, 0.0036580483
          %v757 = vmul.f32 %v752, %v756
          %v758 = vadd.f32 %v757, 0.05243302
          %v759 = vmul.f32 %v752, %v758
          %v760 = vadd.f32 %v759, 0.18741608
          %v761 = vmul.f32 %v752, %v760
          %v762 = vadd.f32 %v761, 1.1283791
          %v763 = vmul.f32 %v550, %v762
          %v764 = vmul.f32 %v752, 3.8918573e-05
          %v765 = vadd.f32 %v764, 0.001143296
          %v766 = vmul.f32 %v752, %v765
          %v767 = vadd.f32 %v766, 0.014752088
          %v768 = vmul.f32 %v752, %v767
          %v769 = vadd.f32 %v768, 0.112945676
          %v770 = vmul.f32 %v752, %v769
          %v771 = vadd.f32 %v770, 0.4994258
          %v772 = vmul.f32 %v752, %v771
          %v773 = vadd.f32 %v772, 1.0
          %v774 = vrcp.pop %v773
          %v775 = vmul.f32 %v773, %v774
          %v776 = vsub.f32 1.0, %v775
          %v777 = vmul.f32 %v774, %v776
          %v778 = vadd.f32 %v774, %v777
          %vm779 = vweird.f32 %v773
          %vm780 = vweird.f32 %v774
          %vm781 = vmor %vm779, %vm780
          %v782 = vsel %vm781, %v774, %v778
          %v783 = vand.u32 2147483647, %v773
          %vm784 = vcmp.eq.f32.partialorder %v783, 8.507059e+37
          %v785 = vand.u32 %v773, 2147483648
          %v786 = vor.u32 1.1754944e-38, %v785
          %v787 = vsel %vm784, %v786, %v782
          %v788 = vmul.f32 %v763, %v787
          %v789 = vmin.f32 %v788, 1.0
          %v790 = vmax.f32 %v789, -1.0
          %v791 = vadd.f32 %v590, 1.0
          %v792 = vadd.f32 %v630, 1.0
          %v793 = vadd.f32 %v670, 1.0
          %v794 = vadd.f32 %v710, 1.0
          %v795 = vadd.f32 %v750, 1.0
          %v796 = vadd.f32 %v790, 1.0
          %v797 = vmul.f32 %v539, %v791
          %v798 = vmul.f32 %v540, %v792
          %v799 = vmul.f32 %v541, %v793
          %v800 = vmul.f32 %v542, %v794
          %v801 = vmul.f32 %v543, %v795
          %v802 = vmul.f32 %v544, %v796
          %803 = vst [vmem:[%s400] sm:$0xff] %v797
          %804 = vst [vmem:[%s400 + $0x8] sm:$0xff] %v798
          %805 = vst [vmem:[%s400 + $0x10] sm:$0xff] %v799
          %806 = vst [vmem:[%s400 + $0x18] sm:$0xff] %v800
          %807 = vst [vmem:[%s400 + $0x20] sm:$0xf] %v801
          %808 = vst [vmem:[%s400 + $0x28] sm:$0xf] %v802
        $region113: #{fno2d_forward.14} parent=96 // pred_fallthru
          _
        %p809 = scmp.ne.s32.totalorder %s20, 0
        // Predicated region
        $region114: #{fno2d_forward.14} parent=96 // pred_check
          %p810 = pneg %p809
        $region115: #{fno2d_forward.14} parent=96 // pred_check_branch
          %812 = sbr.rel (%p810) target = $region117
        $region116: #{fno2d_forward.14} parent=96 // pred_region
          %v813 = vmul.f32 %v517, 0.5
          %v814 = vmul.f32 %v518, 0.5
          %v815 = vmul.f32 %v519, 0.5
          %v816 = vmul.f32 %v520, 0.5
          %v817 = vmul.f32 %v521, 0.5
          %v818 = vmul.f32 %v522, 0.5
          %v819 = vmul.f32 %v517, 0.70710677
          %v820 = vmul.f32 %v518, 0.70710677
          %v821 = vmul.f32 %v519, 0.70710677
          %v822 = vmul.f32 %v520, 0.70710677
          %v823 = vmul.f32 %v521, 0.70710677
          %v824 = vmul.f32 %v522, 0.70710677
          %v825 = vmul.f32 %v819, %v819
          %v826 = vmin.f32 16.0, %v825
          %v827 = vmul.f32 %v826, 2.1237322e-06
          %v828 = vadd.f32 %v827, 0.00028619796
          %v829 = vmul.f32 %v826, %v828
          %v830 = vadd.f32 %v829, 0.0036580483
          %v831 = vmul.f32 %v826, %v830
          %v832 = vadd.f32 %v831, 0.05243302
          %v833 = vmul.f32 %v826, %v832
          %v834 = vadd.f32 %v833, 0.18741608
          %v835 = vmul.f32 %v826, %v834
          %v836 = vadd.f32 %v835, 1.1283791
          %v837 = vmul.f32 %v819, %v836
          %v838 = vmul.f32 %v826, 3.8918573e-05
          %v839 = vadd.f32 %v838, 0.001143296
          %v840 = vmul.f32 %v826, %v839
          %v841 = vadd.f32 %v840, 0.014752088
          %v842 = vmul.f32 %v826, %v841
          %v843 = vadd.f32 %v842, 0.112945676
          %v844 = vmul.f32 %v826, %v843
          %v845 = vadd.f32 %v844, 0.4994258
          %v846 = vmul.f32 %v826, %v845
          %v847 = vadd.f32 %v846, 1.0
          %v848 = vrcp.pop %v847
          %v849 = vmul.f32 %v847, %v848
          %v850 = vsub.f32 1.0, %v849
          %v851 = vmul.f32 %v848, %v850
          %v852 = vadd.f32 %v848, %v851
          %vm853 = vweird.f32 %v847
          %vm854 = vweird.f32 %v848
          %vm855 = vmor %vm853, %vm854
          %v856 = vsel %vm855, %v848, %v852
          %v857 = vand.u32 2147483647, %v847
          %vm858 = vcmp.eq.f32.partialorder %v857, 8.507059e+37
          %v859 = vand.u32 %v847, 2147483648
          %v860 = vor.u32 1.1754944e-38, %v859
          %v861 = vsel %vm858, %v860, %v856
          %v862 = vmul.f32 %v837, %v861
          %v863 = vmin.f32 %v862, 1.0
          %v864 = vmax.f32 %v863, -1.0
          %v865 = vmul.f32 %v820, %v820
          %v866 = vmin.f32 16.0, %v865
          %v867 = vmul.f32 %v866, 2.1237322e-06
          %v868 = vadd.f32 %v867, 0.00028619796
          %v869 = vmul.f32 %v866, %v868
          %v870 = vadd.f32 %v869, 0.0036580483
          %v871 = vmul.f32 %v866, %v870
          %v872 = vadd.f32 %v871, 0.05243302
          %v873 = vmul.f32 %v866, %v872
          %v874 = vadd.f32 %v873, 0.18741608
          %v875 = vmul.f32 %v866, %v874
          %v876 = vadd.f32 %v875, 1.1283791
          %v877 = vmul.f32 %v820, %v876
          %v878 = vmul.f32 %v866, 3.8918573e-05
          %v879 = vadd.f32 %v878, 0.001143296
          %v880 = vmul.f32 %v866, %v879
          %v881 = vadd.f32 %v880, 0.014752088
          %v882 = vmul.f32 %v866, %v881
          %v883 = vadd.f32 %v882, 0.112945676
          %v884 = vmul.f32 %v866, %v883
          %v885 = vadd.f32 %v884, 0.4994258
          %v886 = vmul.f32 %v866, %v885
          %v887 = vadd.f32 %v886, 1.0
          %v888 = vrcp.pop %v887
          %v889 = vmul.f32 %v887, %v888
          %v890 = vsub.f32 1.0, %v889
          %v891 = vmul.f32 %v888, %v890
          %v892 = vadd.f32 %v888, %v891
          %vm893 = vweird.f32 %v887
          %vm894 = vweird.f32 %v888
          %vm895 = vmor %vm893, %vm894
          %v896 = vsel %vm895, %v888, %v892
          %v897 = vand.u32 2147483647, %v887
          %vm898 = vcmp.eq.f32.partialorder %v897, 8.507059e+37
          %v899 = vand.u32 %v887, 2147483648
          %v900 = vor.u32 1.1754944e-38, %v899
          %v901 = vsel %vm898, %v900, %v896
          %v902 = vmul.f32 %v877, %v901
          %v903 = vmin.f32 %v902, 1.0
          %v904 = vmax.f32 %v903, -1.0
          %v905 = vmul.f32 %v821, %v821
          %v906 = vmin.f32 16.0, %v905
          %v907 = vmul.f32 %v906, 2.1237322e-06
          %v908 = vadd.f32 %v907, 0.00028619796
          %v909 = vmul.f32 %v906, %v908
          %v910 = vadd.f32 %v909, 0.0036580483
          %v911 = vmul.f32 %v906, %v910
          %v912 = vadd.f32 %v911, 0.05243302
          %v913 = vmul.f32 %v906, %v912
          %v914 = vadd.f32 %v913, 0.18741608
          %v915 = vmul.f32 %v906, %v914
          %v916 = vadd.f32 %v915, 1.1283791
          %v917 = vmul.f32 %v821, %v916
          %v918 = vmul.f32 %v906, 3.8918573e-05
          %v919 = vadd.f32 %v918, 0.001143296
          %v920 = vmul.f32 %v906, %v919
          %v921 = vadd.f32 %v920, 0.014752088
          %v922 = vmul.f32 %v906, %v921
          %v923 = vadd.f32 %v922, 0.112945676
          %v924 = vmul.f32 %v906, %v923
          %v925 = vadd.f32 %v924, 0.4994258
          %v926 = vmul.f32 %v906, %v925
          %v927 = vadd.f32 %v926, 1.0
          %v928 = vrcp.pop %v927
          %v929 = vmul.f32 %v927, %v928
          %v930 = vsub.f32 1.0, %v929
          %v931 = vmul.f32 %v928, %v930
          %v932 = vadd.f32 %v928, %v931
          %vm933 = vweird.f32 %v927
          %vm934 = vweird.f32 %v928
          %vm935 = vmor %vm933, %vm934
          %v936 = vsel %vm935, %v928, %v932
          %v937 = vand.u32 2147483647, %v927
          %vm938 = vcmp.eq.f32.partialorder %v937, 8.507059e+37
          %v939 = vand.u32 %v927, 2147483648
          %v940 = vor.u32 1.1754944e-38, %v939
          %v941 = vsel %vm938, %v940, %v936
          %v942 = vmul.f32 %v917, %v941
          %v943 = vmin.f32 %v942, 1.0
          %v944 = vmax.f32 %v943, -1.0
          %v945 = vmul.f32 %v822, %v822
          %v946 = vmin.f32 16.0, %v945
          %v947 = vmul.f32 %v946, 2.1237322e-06
          %v948 = vadd.f32 %v947, 0.00028619796
          %v949 = vmul.f32 %v946, %v948
          %v950 = vadd.f32 %v949, 0.0036580483
          %v951 = vmul.f32 %v946, %v950
          %v952 = vadd.f32 %v951, 0.05243302
          %v953 = vmul.f32 %v946, %v952
          %v954 = vadd.f32 %v953, 0.18741608
          %v955 = vmul.f32 %v946, %v954
          %v956 = vadd.f32 %v955, 1.1283791
          %v957 = vmul.f32 %v822, %v956
          %v958 = vmul.f32 %v946, 3.8918573e-05
          %v959 = vadd.f32 %v958, 0.001143296
          %v960 = vmul.f32 %v946, %v959
          %v961 = vadd.f32 %v960, 0.014752088
          %v962 = vmul.f32 %v946, %v961
          %v963 = vadd.f32 %v962, 0.112945676
          %v964 = vmul.f32 %v946, %v963
          %v965 = vadd.f32 %v964, 0.4994258
          %v966 = vmul.f32 %v946, %v965
          %v967 = vadd.f32 %v966, 1.0
          %v968 = vrcp.pop %v967
          %v969 = vmul.f32 %v967, %v968
          %v970 = vsub.f32 1.0, %v969
          %v971 = vmul.f32 %v968, %v970
          %v972 = vadd.f32 %v968, %v971
          %vm973 = vweird.f32 %v967
          %vm974 = vweird.f32 %v968
          %vm975 = vmor %vm973, %vm974
          %v976 = vsel %vm975, %v968, %v972
          %v977 = vand.u32 2147483647, %v967
          %vm978 = vcmp.eq.f32.partialorder %v977, 8.507059e+37
          %v979 = vand.u32 %v967, 2147483648
          %v980 = vor.u32 1.1754944e-38, %v979
          %v981 = vsel %vm978, %v980, %v976
          %v982 = vmul.f32 %v957, %v981
          %v983 = vmin.f32 %v982, 1.0
          %v984 = vmax.f32 %v983, -1.0
          %v985 = vmul.f32 %v823, %v823
          %v986 = vmin.f32 16.0, %v985
          %v987 = vmul.f32 %v986, 2.1237322e-06
          %v988 = vadd.f32 %v987, 0.00028619796
          %v989 = vmul.f32 %v986, %v988
          %v990 = vadd.f32 %v989, 0.0036580483
          %v991 = vmul.f32 %v986, %v990
          %v992 = vadd.f32 %v991, 0.05243302
          %v993 = vmul.f32 %v986, %v992
          %v994 = vadd.f32 %v993, 0.18741608
          %v995 = vmul.f32 %v986, %v994
          %v996 = vadd.f32 %v995, 1.1283791
          %v997 = vmul.f32 %v823, %v996
          %v998 = vmul.f32 %v986, 3.8918573e-05
          %v999 = vadd.f32 %v998, 0.001143296
          %v1000 = vmul.f32 %v986, %v999
          %v1001 = vadd.f32 %v1000, 0.014752088
          %v1002 = vmul.f32 %v986, %v1001
          %v1003 = vadd.f32 %v1002, 0.112945676
          %v1004 = vmul.f32 %v986, %v1003
          %v1005 = vadd.f32 %v1004, 0.4994258
          %v1006 = vmul.f32 %v986, %v1005
          %v1007 = vadd.f32 %v1006, 1.0
          %v1008 = vrcp.pop %v1007
          %v1009 = vmul.f32 %v1007, %v1008
          %v1010 = vsub.f32 1.0, %v1009
          %v1011 = vmul.f32 %v1008, %v1010
          %v1012 = vadd.f32 %v1008, %v1011
          %vm1013 = vweird.f32 %v1007
          %vm1014 = vweird.f32 %v1008
          %vm1015 = vmor %vm1013, %vm1014
          %v1016 = vsel %vm1015, %v1008, %v1012
          %v1017 = vand.u32 2147483647, %v1007
          %vm1018 = vcmp.eq.f32.partialorder %v1017, 8.507059e+37
          %v1019 = vand.u32 %v1007, 2147483648
          %v1020 = vor.u32 1.1754944e-38, %v1019
          %v1021 = vsel %vm1018, %v1020, %v1016
          %v1022 = vmul.f32 %v997, %v1021
          %v1023 = vmin.f32 %v1022, 1.0
          %v1024 = vmax.f32 %v1023, -1.0
          %v1025 = vmul.f32 %v824, %v824
          %v1026 = vmin.f32 16.0, %v1025
          %v1027 = vmul.f32 %v1026, 2.1237322e-06
          %v1028 = vadd.f32 %v1027, 0.00028619796
          %v1029 = vmul.f32 %v1026, %v1028
          %v1030 = vadd.f32 %v1029, 0.0036580483
          %v1031 = vmul.f32 %v1026, %v1030
          %v1032 = vadd.f32 %v1031, 0.05243302
          %v1033 = vmul.f32 %v1026, %v1032
          %v1034 = vadd.f32 %v1033, 0.18741608
          %v1035 = vmul.f32 %v1026, %v1034
          %v1036 = vadd.f32 %v1035, 1.1283791
          %v1037 = vmul.f32 %v824, %v1036
          %v1038 = vmul.f32 %v1026, 3.8918573e-05
          %v1039 = vadd.f32 %v1038, 0.001143296
          %v1040 = vmul.f32 %v1026, %v1039
          %v1041 = vadd.f32 %v1040, 0.014752088
          %v1042 = vmul.f32 %v1026, %v1041
          %v1043 = vadd.f32 %v1042, 0.112945676
          %v1044 = vmul.f32 %v1026, %v1043
          %v1045 = vadd.f32 %v1044, 0.4994258
          %v1046 = vmul.f32 %v1026, %v1045
          %v1047 = vadd.f32 %v1046, 1.0
          %v1048 = vrcp.pop %v1047
          %v1049 = vmul.f32 %v1047, %v1048
          %v1050 = vsub.f32 1.0, %v1049
          %v1051 = vmul.f32 %v1048, %v1050
          %v1052 = vadd.f32 %v1048, %v1051
          %vm1053 = vweird.f32 %v1047
          %vm1054 = vweird.f32 %v1048
          %vm1055 = vmor %vm1053, %vm1054
          %v1056 = vsel %vm1055, %v1048, %v1052
          %v1057 = vand.u32 2147483647, %v1047
          %vm1058 = vcmp.eq.f32.partialorder %v1057, 8.507059e+37
          %v1059 = vand.u32 %v1047, 2147483648
          %v1060 = vor.u32 1.1754944e-38, %v1059
          %v1061 = vsel %vm1058, %v1060, %v1056
          %v1062 = vmul.f32 %v1037, %v1061
          %v1063 = vmin.f32 %v1062, 1.0
          %v1064 = vmax.f32 %v1063, -1.0
          %v1065 = vadd.f32 %v864, 1.0
          %v1066 = vadd.f32 %v904, 1.0
          %v1067 = vadd.f32 %v944, 1.0
          %v1068 = vadd.f32 %v984, 1.0
          %v1069 = vadd.f32 %v1024, 1.0
          %v1070 = vadd.f32 %v1064, 1.0
          %v1071 = vmul.f32 %v813, %v1065
          %v1072 = vmul.f32 %v814, %v1066
          %v1073 = vmul.f32 %v815, %v1067
          %v1074 = vmul.f32 %v816, %v1068
          %v1075 = vmul.f32 %v817, %v1069
          %v1076 = vmul.f32 %v818, %v1070
          %1077 = vst [vmem:[%s400] sm:$0xff] %v1071
          %1078 = vst [vmem:[%s400 + $0x8] sm:$0xff] %v1072
          %1079 = vst [vmem:[%s400 + $0x10] sm:$0xff] %v1073
          %1080 = vst [vmem:[%s400 + $0x18] sm:$0xff] %v1074
          %1081 = vst [vmem:[%s400 + $0x20] sm:$0xf] %v1075
          %1082 = vst [vmem:[%s400 + $0x28] sm:$0xf] %v1076
        $region117: #{fno2d_forward.14} parent=96 // pred_fallthru
          _
        %s1083 = sand.u32 %s172, 1
        %s1084 = sand.u32 %s172, 1
        %s1085 = smul.addr %s1084, 48
        %s1086 = scalar_lea.vmem [#allocation5], %s1085
        // Predicated region
        $region118: #{fno2d_forward.14} parent=96 // pred_check
          %p1087 = pneg %p182
        $region119: #{fno2d_forward.14} parent=96 // pred_check_branch
          %1089 = sbr.rel (%p1087) target = $region121
        $region120: #{fno2d_forward.14} parent=96 // pred_region
          %s1090 = smul.u32 2, %s21
          %s1091 = smul.addr %s20, 12
          %s1092 = sadd.s32 %s1090, %s1091
          %s1093 = smul.addr %s1092, 8
          %s1094 = scalar_lea.vmem %s5, %s1093
          // Predicated region
          $region122: #{fno2d_forward.14} parent=120 // pred_check
            _
          $region123: #{fno2d_forward.14} parent=120 // pred_check_branch
            %1096 = sbr.rel (0) target = $region125
          $region124: #{fno2d_forward.14} parent=120 // pred_region
            // Predicated region
            $region126: #{fno2d_forward.14} parent=124 // pred_check
              _
            $region127: #{fno2d_forward.14} parent=124 // pred_check_branch
              %1098 = sbr.rel (0) target = $region129
            $region128: #{fno2d_forward.14} parent=124 // pred_region
              loop: start=0, step=1, limit=1
              $region130: #{fno2d_forward.14} parent=128 // loop_pre_header
                _
              $region131: #{fno2d_forward.14} parent=128 // loop_header
                %s1100 = sphi 0, %s1104
                %p1101 = scmp.ge.s32.totalorder %s1100, 1
                %s1105 = sphi %s1086, %s1086
                %s1106 = sphi %s1094, %s1094
              $region132: #{fno2d_forward.14} parent=128 // loop_header_branch
                %1103 = sbr.rel (%p1101) target = $region136
              $region133: #{fno2d_forward.14} parent=128 // loop_body
                %v1107 = vld [vmem:[%s1105] sm:$0xff]
                %1108 = vst [vmem:[%s1106] sm:$0xff] %v1107
                %v1109 = vld [vmem:[%s1105 + $0x8] sm:$0xff]
                %1110 = vst [vmem:[%s1106 + $0x8] sm:$0xff] %v1109
                %v1111 = vld [vmem:[%s1105 + $0x10] sm:$0xff]
                %1112 = vst [vmem:[%s1106 + $0x20] sm:$0xff] %v1111
                %v1113 = vld [vmem:[%s1105 + $0x18] sm:$0xff]
                %1114 = vst [vmem:[%s1106 + $0x28] sm:$0xff] %v1113
                %v1115 = vld [vmem:[%s1105 + $0x20] sm:$0xff]
                %1116 = vst [vmem:[%s1106 + $0x40] sm:$0xff] %v1115
                %v1117 = vld [vmem:[%s1105 + $0x28] sm:$0xff]
                %1118 = vst [vmem:[%s1106 + $0x48] sm:$0xff] %v1117
              $region134: #{fno2d_forward.14} parent=128 // loop_footer
                %s1104 = sadd.s32 1, %s1100
              $region135: #{fno2d_forward.14} parent=128 // loop_footer_branch
                %1099 = sbr.rel target = $region131
              $region136: #{fno2d_forward.14} parent=128 // loop_exit
                _
            $region129: #{fno2d_forward.14} parent=124 // pred_fallthru
              _
            // Predicated region
            $region137: #{fno2d_forward.14} parent=124 // pred_check
              _
            $region138: #{fno2d_forward.14} parent=124 // pred_check_branch
              %1120 = sbr.rel target = $region140
            $region139: #{fno2d_forward.14} parent=124 // pred_region
              _
            $region140: #{fno2d_forward.14} parent=124 // pred_fallthru
              _
          $region125: #{fno2d_forward.14} parent=120 // pred_fallthru
            _
          %1121 = vnop
        $region121: #{fno2d_forward.14} parent=96 // pred_fallthru
          _
      $region97: #{fno2d_forward.14} parent=5 // pred_fallthru
        _
      %p1122 = scmp.le.s32.totalorder 2, %s11
      // Predicated region
      $region141: #{fno2d_forward.14} parent=5 // pred_check
        %p1123 = pneg %p1122
      $region142: #{fno2d_forward.14} parent=5 // pred_check_branch
        %1125 = sbr.rel (%p1123) target = $region144
      $region143: #{fno2d_forward.14} parent=5 // pred_region
        %s1126 = ssub.s32 %s11, 2
        // Predicated region
        $region145: #{fno2d_forward.14} parent=143 // pred_check
          %p1127 = pneg %p188
        $region146: #{fno2d_forward.14} parent=143 // pred_check_branch
          %1129 = sbr.rel (%p1127) target = $region148
        $region147: #{fno2d_forward.14} parent=143 // pred_region
          %s1130 = sand.u32 %s173, 1
          %s1131 = sand.u32 %s173, 1
          %s1132 = smul.addr %s1131, 48
          %s1133 = scalar_lea.vmem [#allocation5], %s1132
        $region148: #{fno2d_forward.14} parent=143 // pred_fallthru
          _
      $region144: #{fno2d_forward.14} parent=5 // pred_fallthru
        _
    $region6: #{fno2d_forward.14} parent=1 // loop_footer
      %s15 = sadd.s32 1, %s11
    $region7: #{fno2d_forward.14} parent=1 // loop_footer_branch
      %10 = sbr.rel target = $region3
    $region8: #{fno2d_forward.14} parent=1 // loop_exit
      _

// kernel: fno2d_forward.20
$region0: #{fno2d_forward.20}
  #allocation0 [shape = 'u32[]', space=smem, size = 0x4, offset = 0x4, fixed_abs, tag = 'smem constant byte address 0x4 - core index']
  #allocation1 [shape = 'u32[72,128]{1,0:T(1,128)}', space=vmem, size = 0x9000, scoped, tag = 'internal scratch']
  %s0 = inlined_call_operand.vmem [shape: f32[2,20,512], index: 0, kind: input, shape index: {}]
  %s1 = inlined_call_operand.vmem [shape: f32[2,20,512], index: 1, kind: input, shape index: {}]
  %s2 = inlined_call_operand.vmem [shape: f32[2,20,20], index: 2, kind: input, shape index: {}]
  %s3 = inlined_call_operand.vmem [shape: f32[2,20,1], index: 3, kind: input, shape index: {}]
  %s4 = inlined_call_operand.vmem [shape: f32[20,512], index: 4, kind: input, shape index: {}]
  %s5 = inlined_call_operand.vmem [shape: f32[2,20,512], index: 5, kind: output, shape index: {}]
  %s6 = sld [smem:[#allocation0]]
  $region149: #{fno2d_forward.20} parent=0
    _
  %s8 = ssub.s32 1, %s6
  %s9 = scalar_select 0, %s8, %s6
  $region1: #{fno2d_forward.20} parent=0
    #allocation2 [shape = 'u8[49152]{0}', space=vmem, size = 0xc000, scoped, tag = 'input window, operand 0']
    #allocation3 [shape = 'u8[49152]{0}', space=vmem, size = 0xc000, scoped, tag = 'input window, operand 1']
    #allocation4 [shape = 'u8[49152]{0}', space=vmem, size = 0xc000, scoped, tag = 'input window, operand 4']
    #allocation5 [shape = 'u8[49152]{0}', space=vmem, size = 0xc000, scoped, tag = 'output window, operand 0']
    loop: start=0, step=1, limit=6
    $region2: #{fno2d_forward.20} parent=1 // loop_pre_header
      _
    $region3: #{fno2d_forward.20} parent=1 // loop_header
      %s11 = sphi 0, %s15
      %p12 = scmp.ge.s32.totalorder %s11, 6
      %s18 = sphi 0, %s30
      %s19 = sphi 0, %s26
      %s20 = sphi 0, %s18
      %s21 = sphi 0, %s19
      %s22 = sphi 0, %s20
      %s23 = sphi 0, %s21
      %s35 = sphi 0, %s37
      %s38 = sphi 0, %s35
      %s39 = sphi 0, %s38
      %s55 = sphi 0, %s39
      %s63 = sphi 0, %s65
      %s66 = sphi 0, %s63
      %s67 = sphi 0, %s66
      %s83 = sphi 0, %s67
      %s89 = sphi 0, %s91
      %s92 = sphi 0, %s89
      %s93 = sphi 0, %s92
      %s109 = sphi 0, %s93
      %s115 = sphi 0, %s117
      %s118 = sphi 0, %s115
      %s119 = sphi 0, %s118
      %s135 = sphi 0, %s119
      %s141 = sphi 0, %s143
      %s144 = sphi 0, %s141
      %s145 = sphi 0, %s144
      %s161 = sphi 0, %s145
      %s169 = sphi 0, %s171
      %s172 = sphi 0, %s169
      %s173 = sphi 0, %s172
      %s189 = sphi 0, %s173
    $region4: #{fno2d_forward.20} parent=1 // loop_header_branch
      %14 = sbr.rel (%p12) target = $region8
    $region5: #{fno2d_forward.20} parent=1 // loop_body
      %s16 = ssub.s32 %s11, 1
      %s17 = ssub.s32 %s11, 2
      %s24 = sadd.s32 1, %s19
      %p25 = scmp.ge.s32.totalorder %s24, 2
      %s26 = scalar_select %p25, 0, %s24
      %s27 = sadd.s32 1, %s18
      %s28 = scalar_select %p25, %s27, %s18
      %p29 = scmp.ge.s32.totalorder %s28, 2
      %s30 = scalar_select %p29, 0, %s28
      %s31 = ssub.s32 %s18, %s30
      %s32 = ssub.s32 %s19, %s26
      %s33 = sor.u32 %s31, %s32
      %p34 = scmp.eq.s32.totalorder %s33, 0
      %s36 = sadd.s32 %s35, 1
      %s37 = scalar_select %p34, %s35, %s36
      %p40 = pneg %p34
      %p41 = scmp.eq.s32.totalorder %s11, 3
      %p42 = por %p40, %p41
      %p43 = scmp.ne.s32.totalorder %s35, %s38
      %p44 = scmp.eq.s32.totalorder %s11, 0
      %p45 = por %p43, %p44
      %p46 = scmp.ne.s32.totalorder %s35, %s38
      %p47 = scmp.eq.s32.totalorder %s16, 3
      %p48 = por %p46, %p47
      %p49 = scmp.ne.s32.totalorder %s38, %s39
      %p50 = scmp.eq.s32.totalorder %s16, 0
      %p51 = por %p49, %p50
      %p52 = scmp.ne.s32.totalorder %s38, %s39
      %p53 = scmp.eq.s32.totalorder %s17, 3
      %p54 = por %p52, %p53
      %p56 = scmp.ne.s32.totalorder %s39, %s55
      %p57 = scmp.eq.s32.totalorder %s17, 0
      %p58 = por %p56, %p57
      %s59 = ssub.s32 %s18, %s30
      %s60 = ssub.s32 %s19, %s26
      %s61 = sor.u32 %s59, %s60
      %p62 = scmp.eq.s32.totalorder %s61, 0
      %s64 = sadd.s32 %s63, 1
      %s65 = scalar_select %p62, %s63, %s64
      %p68 = pneg %p62
      %p69 = scmp.eq.s32.totalorder %s11, 3
      %p70 = por %p68, %p69
      %p71 = scmp.ne.s32.totalorder %s63, %s66
      %p72 = scmp.eq.s32.totalorder %s11, 0
      %p73 = por %p71, %p72
      %p74 = scmp.ne.s32.totalorder %s63, %s66
      %p75 = scmp.eq.s32.totalorder %s16, 3
      %p76 = por %p74, %p75
      %p77 = scmp.ne.s32.totalorder %s66, %s67
      %p78 = scmp.eq.s32.totalorder %s16, 0
      %p79 = por %p77, %p78
      %p80 = scmp.ne.s32.totalorder %s66, %s67
      %p81 = scmp.eq.s32.totalorder %s17, 3
      %p82 = por %p80, %p81
      %p84 = scmp.ne.s32.totalorder %s67, %s83
      %p85 = scmp.eq.s32.totalorder %s17, 0
      %p86 = por %p84, %p85
      %s87 = ssub.s32 %s18, %s30
      %p88 = scmp.eq.s32.totalorder %s87, 0
      %s90 = sadd.s32 %s89, 1
      %s91 = scalar_select %p88, %s89, %s90
      %p94 = pneg %p88
      %p95 = scmp.eq.s32.totalorder %s11, 3
      %p96 = por %p94, %p95
      %p97 = scmp.ne.s32.totalorder %s89, %s92
      %p98 = scmp.eq.s32.totalorder %s11, 0
      %p99 = por %p97, %p98
      %p100 = scmp.ne.s32.totalorder %s89, %s92
      %p101 = scmp.eq.s32.totalorder %s16, 3
      %p102 = por %p100, %p101
      %p103 = scmp.ne.s32.totalorder %s92, %s93
      %p104 = scmp.eq.s32.totalorder %s16, 0
      %p105 = por %p103, %p104
      %p106 = scmp.ne.s32.totalorder %s92, %s93
      %p107 = scmp.eq.s32.totalorder %s17, 3
      %p108 = por %p106, %p107
      %p110 = scmp.ne.s32.totalorder %s93, %s109
      %p111 = scmp.eq.s32.totalorder %s17, 0
      %p112 = por %p110, %p111
      %s113 = ssub.s32 %s18, %s30
      %p114 = scmp.eq.s32.totalorder %s113, 0
      %s116 = sadd.s32 %s115, 1
      %s117 = scalar_select %p114, %s115, %s116
      %p120 = pneg %p114
      %p121 = scmp.eq.s32.totalorder %s11, 3
      %p122 = por %p120, %p121
      %p123 = scmp.ne.s32.totalorder %s115, %s118
      %p124 = scmp.eq.s32.totalorder %s11, 0
      %p125 = por %p123, %p124
      %p126 = scmp.ne.s32.totalorder %s115, %s118
      %p127 = scmp.eq.s32.totalorder %s16, 3
      %p128 = por %p126, %p127
      %p129 = scmp.ne.s32.totalorder %s118, %s119
      %p130 = scmp.eq.s32.totalorder %s16, 0
      %p131 = por %p129, %p130
      %p132 = scmp.ne.s32.totalorder %s118, %s119
      %p133 = scmp.eq.s32.totalorder %s17, 3
      %p134 = por %p132, %p133
      %p136 = scmp.ne.s32.totalorder %s119, %s135
      %p137 = scmp.eq.s32.totalorder %s17, 0
      %p138 = por %p136, %p137
      %s139 = ssub.s32 %s19, %s26
      %p140 = scmp.eq.s32.totalorder %s139, 0
      %s142 = sadd.s32 %s141, 1
      %s143 = scalar_select %p140, %s141, %s142
      %p146 = pneg %p140
      %p147 = scmp.eq.s32.totalorder %s11, 3
      %p148 = por %p146, %p147
      %p149 = scmp.ne.s32.totalorder %s141, %s144
      %p150 = scmp.eq.s32.totalorder %s11, 0
      %p151 = por %p149, %p150
      %p152 = scmp.ne.s32.totalorder %s141, %s144
      %p153 = scmp.eq.s32.totalorder %s16, 3
      %p154 = por %p152, %p153
      %p155 = scmp.ne.s32.totalorder %s144, %s145
      %p156 = scmp.eq.s32.totalorder %s16, 0
      %p157 = por %p155, %p156
      %p158 = scmp.ne.s32.totalorder %s144, %s145
      %p159 = scmp.eq.s32.totalorder %s17, 3
      %p160 = por %p158, %p159
      %p162 = scmp.ne.s32.totalorder %s145, %s161
      %p163 = scmp.eq.s32.totalorder %s17, 0
      %p164 = por %p162, %p163
      %s165 = ssub.s32 %s18, %s30
      %s166 = ssub.s32 %s19, %s26
      %s167 = sor.u32 %s165, %s166
      %p168 = scmp.eq.s32.totalorder %s167, 0
      %s170 = sadd.s32 %s169, 1
      %s171 = scalar_select %p168, %s169, %s170
      %p174 = pneg %p168
      %p175 = scmp.eq.s32.totalorder %s11, 3
      %p176 = por %p174, %p175
      %p177 = scmp.ne.s32.totalorder %s169, %s172
      %p178 = scmp.eq.s32.totalorder %s11, 0
      %p179 = por %p177, %p178
      %p180 = scmp.ne.s32.totalorder %s169, %s172
      %p181 = scmp.eq.s32.totalorder %s16, 3
      %p182 = por %p180, %p181
      %p183 = scmp.ne.s32.totalorder %s172, %s173
      %p184 = scmp.eq.s32.totalorder %s16, 0
      %p185 = por %p183, %p184
      %p186 = scmp.ne.s32.totalorder %s172, %s173
      %p187 = scmp.eq.s32.totalorder %s17, 3
      %p188 = por %p186, %p187
      %p190 = scmp.ne.s32.totalorder %s173, %s189
      %p191 = scmp.eq.s32.totalorder %s17, 0
      %p192 = por %p190, %p191
      %p193 = scmp.le.s32.totalorder 1, %s11
      %p194 = scmp.lt.s32.totalorder %s11, 5
      %p195 = pnand %p193, %p194
      %p196 = pneg %p195
      // Predicated region
      $region9: #{fno2d_forward.20} parent=5 // pred_check
        _
      $region10: #{fno2d_forward.20} parent=5 // pred_check_branch
        %198 = sbr.rel (%p195) target = $region12
      $region11: #{fno2d_forward.20} parent=5 // pred_region
        %s199 = ssub.s32 %s11, 1
      $region12: #{fno2d_forward.20} parent=5 // pred_fallthru
        _
      %p200 = scmp.lt.s32.totalorder %s11, 4
      // Predicated region
      $region13: #{fno2d_forward.20} parent=5 // pred_check
        %p201 = pneg %p200
      $region14: #{fno2d_forward.20} parent=5 // pred_check_branch
        %203 = sbr.rel (%p201) target = $region16
      $region15: #{fno2d_forward.20} parent=5 // pred_region
        // Predicated region
        $region17: #{fno2d_forward.20} parent=15 // pred_check
          %p204 = pneg %p45
        $region18: #{fno2d_forward.20} parent=15 // pred_check_branch
          %206 = sbr.rel (%p204) target = $region20
        $region19: #{fno2d_forward.20} parent=15 // pred_region
          %s207 = sand.u32 %s35, 1
          %s208 = sand.u32 %s35, 1
          %s209 = smul.addr %s208, 48
          %s210 = scalar_lea.vmem [#allocation2], %s209
          %s211 = smul.u32 2, %s19
          %s212 = smul.addr %s18, 12
          %s213 = sadd.s32 %s211, %s212
          %s214 = smul.addr %s213, 8
          %s215 = scalar_lea.vmem %s0, %s214
          // Predicated region
          $region21: #{fno2d_forward.20} parent=19 // pred_check
            _
          $region22: #{fno2d_forward.20} parent=19 // pred_check_branch
            %217 = sbr.rel (0) target = $region24
          $region23: #{fno2d_forward.20} parent=19 // pred_region
            // Predicated region
            $region25: #{fno2d_forward.20} parent=23 // pred_check
              _
            $region26: #{fno2d_forward.20} parent=23 // pred_check_branch
              %219 = sbr.rel (0) target = $region28
            $region27: #{fno2d_forward.20} parent=23 // pred_region
              loop: start=0, step=1, limit=1
              $region29: #{fno2d_forward.20} parent=27 // loop_pre_header
                _
              $region30: #{fno2d_forward.20} parent=27 // loop_header
                %s221 = sphi 0, %s225
                %p222 = scmp.ge.s32.totalorder %s221, 1
                %s226 = sphi %s215, %s215
                %s227 = sphi %s210, %s210
              $region31: #{fno2d_forward.20} parent=27 // loop_header_branch
                %224 = sbr.rel (%p222) target = $region35
              $region32: #{fno2d_forward.20} parent=27 // loop_body
                %v228 = vld [vmem:[%s226] sm:$0xff]
                %229 = vst [vmem:[%s227] sm:$0xff] %v228
                %v230 = vld [vmem:[%s226 + $0x8] sm:$0xff]
                %231 = vst [vmem:[%s227 + $0x8] sm:$0xff] %v230
                %v232 = vld [vmem:[%s226 + $0x20] sm:$0xff]
                %233 = vst [vmem:[%s227 + $0x10] sm:$0xff] %v232
                %v234 = vld [vmem:[%s226 + $0x28] sm:$0xff]
                %235 = vst [vmem:[%s227 + $0x18] sm:$0xff] %v234
                %v236 = vld [vmem:[%s226 + $0x40] sm:$0xff]
                %237 = vst [vmem:[%s227 + $0x20] sm:$0xff] %v236
                %v238 = vld [vmem:[%s226 + $0x48] sm:$0xff]
                %239 = vst [vmem:[%s227 + $0x28] sm:$0xff] %v238
              $region33: #{fno2d_forward.20} parent=27 // loop_footer
                %s225 = sadd.s32 1, %s221
              $region34: #{fno2d_forward.20} parent=27 // loop_footer_branch
                %220 = sbr.rel target = $region30
              $region35: #{fno2d_forward.20} parent=27 // loop_exit
                _
            $region28: #{fno2d_forward.20} parent=23 // pred_fallthru
              _
            // Predicated region
            $region36: #{fno2d_forward.20} parent=23 // pred_check
              _
            $region37: #{fno2d_forward.20} parent=23 // pred_check_branch
              %241 = sbr.rel target = $region39
            $region38: #{fno2d_forward.20} parent=23 // pred_region
              _
            $region39: #{fno2d_forward.20} parent=23 // pred_fallthru
              _
          $region24: #{fno2d_forward.20} parent=19 // pred_fallthru
            _
          %242 = vnop
        $region20: #{fno2d_forward.20} parent=15 // pred_fallthru
          _
        // Predicated region
        $region40: #{fno2d_forward.20} parent=15 // pred_check
          %p243 = pneg %p73
        $region41: #{fno2d_forward.20} parent=15 // pred_check_branch
          %245 = sbr.rel (%p243) target = $region43
        $region42: #{fno2d_forward.20} parent=15 // pred_region
          %s246 = sand.u32 %s63, 1
          %s247 = sand.u32 %s63, 1
          %s248 = smul.addr %s247, 48
          %s249 = scalar_lea.vmem [#allocation3], %s248
          %s250 = smul.u32 2, %s19
          %s251 = smul.addr %s18, 12
          %s252 = sadd.s32 %s250, %s251
          %s253 = smul.addr %s252, 8
          %s254 = scalar_lea.vmem %s1, %s253
          // Predicated region
          $region44: #{fno2d_forward.20} parent=42 // pred_check
            _
          $region45: #{fno2d_forward.20} parent=42 // pred_check_branch
            %256 = sbr.rel (0) target = $region47
          $region46: #{fno2d_forward.20} parent=42 // pred_region
            // Predicated region
            $region48: #{fno2d_forward.20} parent=46 // pred_check
              _
            $region49: #{fno2d_forward.20} parent=46 // pred_check_branch
              %258 = sbr.rel (0) target = $region51
            $region50: #{fno2d_forward.20} parent=46 // pred_region
              loop: start=0, step=1, limit=1
              $region52: #{fno2d_forward.20} parent=50 // loop_pre_header
                _
              $region53: #{fno2d_forward.20} parent=50 // loop_header
                %s260 = sphi 0, %s264
                %p261 = scmp.ge.s32.totalorder %s260, 1
                %s265 = sphi %s254, %s254
                %s266 = sphi %s249, %s249
              $region54: #{fno2d_forward.20} parent=50 // loop_header_branch
                %263 = sbr.rel (%p261) target = $region58
              $region55: #{fno2d_forward.20} parent=50 // loop_body
                %v267 = vld [vmem:[%s265] sm:$0xff]
                %268 = vst [vmem:[%s266] sm:$0xff] %v267
                %v269 = vld [vmem:[%s265 + $0x8] sm:$0xff]
                %270 = vst [vmem:[%s266 + $0x8] sm:$0xff] %v269
                %v271 = vld [vmem:[%s265 + $0x20] sm:$0xff]
                %272 = vst [vmem:[%s266 + $0x10] sm:$0xff] %v271
                %v273 = vld [vmem:[%s265 + $0x28] sm:$0xff]
                %274 = vst [vmem:[%s266 + $0x18] sm:$0xff] %v273
                %v275 = vld [vmem:[%s265 + $0x40] sm:$0xff]
                %276 = vst [vmem:[%s266 + $0x20] sm:$0xff] %v275
                %v277 = vld [vmem:[%s265 + $0x48] sm:$0xff]
                %278 = vst [vmem:[%s266 + $0x28] sm:$0xff] %v277
              $region56: #{fno2d_forward.20} parent=50 // loop_footer
                %s264 = sadd.s32 1, %s260
              $region57: #{fno2d_forward.20} parent=50 // loop_footer_branch
                %259 = sbr.rel target = $region53
              $region58: #{fno2d_forward.20} parent=50 // loop_exit
                _
            $region51: #{fno2d_forward.20} parent=46 // pred_fallthru
              _
            // Predicated region
            $region59: #{fno2d_forward.20} parent=46 // pred_check
              _
            $region60: #{fno2d_forward.20} parent=46 // pred_check_branch
              %280 = sbr.rel target = $region62
            $region61: #{fno2d_forward.20} parent=46 // pred_region
              _
            $region62: #{fno2d_forward.20} parent=46 // pred_fallthru
              _
          $region47: #{fno2d_forward.20} parent=42 // pred_fallthru
            _
          %281 = vnop
        $region43: #{fno2d_forward.20} parent=15 // pred_fallthru
          _
        // Predicated region
        $region63: #{fno2d_forward.20} parent=15 // pred_check
          %p282 = pneg %p99
        $region64: #{fno2d_forward.20} parent=15 // pred_check_branch
          %284 = sbr.rel (%p282) target = $region66
        $region65: #{fno2d_forward.20} parent=15 // pred_region
          %p285 = scmp.lt.s32.totalorder %s18, 1
          %s286 = scalar_select %p285, %s18, 1
          %s287 = smul.addr %s286, 3
          %s288 = smul.addr %s287, 8
          %s289 = scalar_lea.vmem %s2, %s288
        $region66: #{fno2d_forward.20} parent=15 // pred_fallthru
          _
        // Predicated region
        $region67: #{fno2d_forward.20} parent=15 // pred_check
          %p290 = pneg %p125
        $region68: #{fno2d_forward.20} parent=15 // pred_check_branch
          %292 = sbr.rel (%p290) target = $region70
        $region69: #{fno2d_forward.20} parent=15 // pred_region
          %p293 = scmp.lt.s32.totalorder %s18, 1
          %s294 = scalar_select %p293, %s18, 1
          %s295 = smul.addr %s294, 3
          %s296 = smul.addr %s295, 8
          %s297 = scalar_lea.vmem %s3, %s296
        $region70: #{fno2d_forward.20} parent=15 // pred_fallthru
          _
        // Predicated region
        $region71: #{fno2d_forward.20} parent=15 // pred_check
          %p298 = pneg %p151
        $region72: #{fno2d_forward.20} parent=15 // pred_check_branch
          %300 = sbr.rel (%p298) target = $region74
        $region73: #{fno2d_forward.20} parent=15 // pred_region
          %s301 = sand.u32 %s141, 1
          %s302 = sand.u32 %s141, 1
          %s303 = smul.addr %s302, 48
          %s304 = scalar_lea.vmem [#allocation4], %s303
          %s305 = smul.u32 2, %s19
          %s306 = smul.addr %s305, 8
          %s307 = scalar_lea.vmem %s4, %s306
          // Predicated region
          $region75: #{fno2d_forward.20} parent=73 // pred_check
            _
          $region76: #{fno2d_forward.20} parent=73 // pred_check_branch
            %309 = sbr.rel (0) target = $region78
          $region77: #{fno2d_forward.20} parent=73 // pred_region
            // Predicated region
            $region79: #{fno2d_forward.20} parent=77 // pred_check
              _
            $region80: #{fno2d_forward.20} parent=77 // pred_check_branch
              %311 = sbr.rel (0) target = $region82
            $region81: #{fno2d_forward.20} parent=77 // pred_region
              loop: start=0, step=1, limit=1
              $region83: #{fno2d_forward.20} parent=81 // loop_pre_header
                _
              $region84: #{fno2d_forward.20} parent=81 // loop_header
                %s313 = sphi 0, %s317
                %p314 = scmp.ge.s32.totalorder %s313, 1
                %s318 = sphi %s307, %s307
                %s319 = sphi %s304, %s304
              $region85: #{fno2d_forward.20} parent=81 // loop_header_branch
                %316 = sbr.rel (%p314) target = $region89
              $region86: #{fno2d_forward.20} parent=81 // loop_body
                %v320 = vld [vmem:[%s318] sm:$0xff]
                %321 = vst [vmem:[%s319] sm:$0xff] %v320
                %v322 = vld [vmem:[%s318 + $0x8] sm:$0xff]
                %323 = vst [vmem:[%s319 + $0x8] sm:$0xff] %v322
                %v324 = vld [vmem:[%s318 + $0x20] sm:$0xff]
                %325 = vst [vmem:[%s319 + $0x10] sm:$0xff] %v324
                %v326 = vld [vmem:[%s318 + $0x28] sm:$0xff]
                %327 = vst [vmem:[%s319 + $0x18] sm:$0xff] %v326
                %v328 = vld [vmem:[%s318 + $0x40] sm:$0xff]
                %329 = vst [vmem:[%s319 + $0x20] sm:$0xff] %v328
                %v330 = vld [vmem:[%s318 + $0x48] sm:$0xff]
                %331 = vst [vmem:[%s319 + $0x28] sm:$0xff] %v330
              $region87: #{fno2d_forward.20} parent=81 // loop_footer
                %s317 = sadd.s32 1, %s313
              $region88: #{fno2d_forward.20} parent=81 // loop_footer_branch
                %312 = sbr.rel target = $region84
              $region89: #{fno2d_forward.20} parent=81 // loop_exit
                _
            $region82: #{fno2d_forward.20} parent=77 // pred_fallthru
              _
            // Predicated region
            $region90: #{fno2d_forward.20} parent=77 // pred_check
              _
            $region91: #{fno2d_forward.20} parent=77 // pred_check_branch
              %333 = sbr.rel target = $region93
            $region92: #{fno2d_forward.20} parent=77 // pred_region
              _
            $region93: #{fno2d_forward.20} parent=77 // pred_fallthru
              _
          $region78: #{fno2d_forward.20} parent=73 // pred_fallthru
            _
          %334 = vnop
        $region74: #{fno2d_forward.20} parent=15 // pred_fallthru
          _
      $region16: #{fno2d_forward.20} parent=5 // pred_fallthru
        _
      %p335 = scmp.le.s32.totalorder 1, %s11
      %p336 = scmp.lt.s32.totalorder %s11, 5
      %p337 = pnand %p335, %p336
      %p338 = pneg %p337
      // Predicated region
      $region94: #{fno2d_forward.20} parent=5 // pred_check
        _
      $region95: #{fno2d_forward.20} parent=5 // pred_check_branch
        %340 = sbr.rel (%p337) target = $region97
      $region96: #{fno2d_forward.20} parent=5 // pred_region
        %s341 = ssub.s32 %s11, 1
        %s342 = sand.u32 %s38, 1
        %s343 = sand.u32 %s38, 1
        %s344 = smul.addr %s343, 48
        %s345 = scalar_lea.vmem [#allocation2], %s344
        // Predicated region
        $region98: #{fno2d_forward.20} parent=96 // pred_check
          %p346 = pneg %p51
        $region99: #{fno2d_forward.20} parent=96 // pred_check_branch
          %348 = sbr.rel (%p346) target = $region101
        $region100: #{fno2d_forward.20} parent=96 // pred_region
          _
        $region101: #{fno2d_forward.20} parent=96 // pred_fallthru
          _
        %s349 = sand.u32 %s66, 1
        %s350 = sand.u32 %s66, 1
        %s351 = smul.addr %s350, 48
        %s352 = scalar_lea.vmem [#allocation3], %s351
        // Predicated region
        $region102: #{fno2d_forward.20} parent=96 // pred_check
          %p353 = pneg %p79
        $region103: #{fno2d_forward.20} parent=96 // pred_check_branch
          %355 = sbr.rel (%p353) target = $region105
        $region104: #{fno2d_forward.20} parent=96 // pred_region
          _
        $region105: #{fno2d_forward.20} parent=96 // pred_fallthru
          _
        %s356 = sand.u32 %s144, 1
        %s357 = sand.u32 %s144, 1
        %s358 = smul.addr %s357, 48
        %s359 = scalar_lea.vmem [#allocation4], %s358
        // Predicated region
        $region106: #{fno2d_forward.20} parent=96 // pred_check
          %p360 = pneg %p157
        $region107: #{fno2d_forward.20} parent=96 // pred_check_branch
          %362 = sbr.rel (%p360) target = $region109
        $region108: #{fno2d_forward.20} parent=96 // pred_region
          _
        $region109: #{fno2d_forward.20} parent=96 // pred_fallthru
          _
        %s363 = sand.u32 %s38, 1
        %s364 = sand.u32 %s38, 1
        %s365 = smul.addr %s364, 48
        %s366 = scalar_lea.vmem [#allocation2], %s365
        %p367 = pneg %p51
        %p368 = pneg %p48
        %s369 = sand.u32 %s66, 1
        %s370 = sand.u32 %s66, 1
        %s371 = smul.addr %s370, 48
        %s372 = scalar_lea.vmem [#allocation3], %s371
        %p373 = pneg %p79
        %p374 = pneg %p76
        %p375 = scmp.lt.s32.totalorder %s20, 1
        %s376 = scalar_select %p375, %s20, 1
        %s377 = smul.addr %s376, 3
        %s378 = smul.addr %s377, 8
        %s379 = scalar_lea.vmem %s2, %s378
        %p380 = pneg %p105
        %p381 = pneg %p102
        %p382 = scmp.lt.s32.totalorder %s20, 1
        %s383 = scalar_select %p382, %s20, 1
        %s384 = smul.addr %s383, 3
        %s385 = smul.addr %s384, 8
        %s386 = scalar_lea.vmem %s3, %s385
        %p387 = pneg %p131
        %p388 = pneg %p128
        %s389 = sand.u32 %s144, 1
        %s390 = sand.u32 %s144, 1
        %s391 = smul.addr %s390, 48
        %s392 = scalar_lea.vmem [#allocation4], %s391
        %p393 = pneg %p157
        %p394 = pneg %p154
        %p395 = pneg %p185
        %p396 = pneg %p182
        %s397 = sand.u32 %s172, 1
        %s398 = sand.u32 %s172, 1
        %s399 = smul.addr %s398, 48
        %s400 = scalar_lea.vmem [#allocation5], %s399
        %s401 = smul.u32 2, %s21
        %s402 = smul.u32 2, %s21
        %p403 = scmp.lt.s32.totalorder %s20, 1
        %s404 = scalar_select %p403, %s20, 1
        %s405 = smul.addr %s404, 3
        %s406 = smul.addr %s405, 8
        %s407 = scalar_lea.vmem %s2, %s406
        %p408 = scmp.lt.s32.totalorder %s20, 1
        %s409 = scalar_select %p408, %s20, 1
        %s410 = smul.addr %s409, 3
        %s411 = smul.addr %s410, 8
        %s412 = scalar_lea.vmem %s3, %s411
        %s413 = smul.u32 2, %s21
        %s414 = smul.u32 2, %s21
        %v415 = vld [vmem:[%s407] sm:$0xff]
        %v416 = vld [vmem:[%s407 + $0x8] sm:$0xff]
        %v417 = vld [vmem:[%s407 + $0x10] sm:$0xf]
        %v418 = vld [vmem:[%s345] sm:$0xff]
        %v419 = vld [vmem:[%s345 + $0x8] sm:$0xff]
        %v420 = vld [vmem:[%s345 + $0x10] sm:$0xff]
        %v421 = vld [vmem:[%s345 + $0x18] sm:$0xff]
        %v422 = vld [vmem:[%s345 + $0x20] sm:$0xf]
        %v423 = vld [vmem:[%s345 + $0x28] sm:$0xf]
        %v424 = vld [vmem:[%s412] sm:$0xff]
        %v425 = vld [vmem:[%s412 + $0x8] sm:$0xff]
        %v426 = vld [vmem:[%s412 + $0x10] sm:$0xf]
        %428 = vset.pattern.permute.xlu0 0
        %429 = vperm.xlu0 %428, %v424
        %v430 = vpop.permute.xlu0 %429
        %433 = vset.pattern.permute.xlu0 0
        %434 = vperm.xlu0 %433, %v425
        %v435 = vpop.permute.xlu0 %434
        %438 = vset.pattern.permute.xlu0 0
        %439 = vperm.xlu0 %438, %v426
        %v440 = vpop.permute.xlu0 %439
        %vm442 = vcmask 162816
        %v444 = vsel %vm442, %v415, 0
        %v447 = vsel %vm442, %v416, 0
        %v450 = vsel %vm442, %v417, 0
        %vm452 = vcmask 1043456
        %v454 = vsel %vm452, %v422, 0
        %v457 = vsel %vm452, %v423, 0
        %459 = vmatpush.msra.mxu0 0.0
        %460 = vmatpush.msra.mxu0 0.0
        %461 = vmatpush.msra.mxu0 0.0
        %462 = vmatpush.msra.mxu0 0.0
        %463 = vmatpush.msra.mxu0 0.0
        %464 = vmatpush.msra.mxu0 0.0
        %465 = vmatpush.msra.mxu0 0.0
        %466 = vmatpush.msra.mxu0 0.0
        %467 = vmatpush.msra.mxu0 0.0
        %468 = vmatpush.msra.mxu0 0.0
        %469 = vmatpush.msra.mxu0 0.0
        %470 = vmatpush.msra.mxu0 0.0
        %471 = vmatpush.msra.mxu0 0.0
        %472 = vmatpush.msra.mxu0 %v454
        %473 = vmatpush.msra.mxu0 %v420
        %474 = vmatpush.msra.mxu0 %v418
        %475 = vmatmul.f32.gmra.mxu0 %v444
        %v476 = vpop.f32.mrf.mxu0
        %v477 = vadd.f32 %v430, %v476
        %478 = vmatmul.f32.gmra.mxu0 %v447
        %v479 = vpop.f32.mrf.mxu0
        %v480 = vadd.f32 %v435, %v479
        %481 = vmatmul.f32.gmra.mxu0 %v450
        %v482 = vpop.f32.mrf.mxu0
        %v483 = vadd.f32 %v440, %v482
        %484 = vdwg.mxu0
        %485 = vmatpush.msra.mxu0 0.0
        %486 = vmatpush.msra.mxu0 0.0
        %487 = vmatpush.msra.mxu0 0.0
        %488 = vmatpush.msra.mxu0 0.0
        %489 = vmatpush.msra.mxu0 0.0
        %490 = vmatpush.msra.mxu0 0.0
        %491 = vmatpush.msra.mxu0 0.0
        %492 = vmatpush.msra.mxu0 0.0
        %493 = vmatpush.msra.mxu0 0.0
        %494 = vmatpush.msra.mxu0 0.0
        %495 = vmatpush.msra.mxu0 0.0
        %496 = vmatpush.msra.mxu0 0.0
        %497 = vmatpush.msra.mxu0 0.0
        %498 = vmatpush.msra.mxu0 %v457
        %499 = vmatpush.msra.mxu0 %v421
        %500 = vmatpush.msra.mxu0 %v419
        %501 = vmatmul.f32.gmra.mxu0 %v444
        %v502 = vpop.f32.mrf.mxu0
        %v503 = vadd.f32 %v430, %v502
        %504 = vmatmul.f32.gmra.mxu0 %v447
        %v505 = vpop.f32.mrf.mxu0
        %v506 = vadd.f32 %v435, %v505
        %507 = vmatmul.f32.gmra.mxu0 %v450
        %v508 = vpop.f32.mrf.mxu0
        %v509 = vadd.f32 %v440, %v508
        %510 = vdwg.mxu0
        %v511 = vld [vmem:[%s352] sm:$0xff]
        %v512 = vld [vmem:[%s352 + $0x8] sm:$0xff]
        %v513 = vld [vmem:[%s352 + $0x10] sm:$0xff]
        %v514 = vld [vmem:[%s352 + $0x18] sm:$0xff]
        %v515 = vld [vmem:[%s352 + $0x20] sm:$0xf]
        %v516 = vld [vmem:[%s352 + $0x28] sm:$0xf]
        %v517 = vadd.f32 %v477, %v511
        %v518 = vadd.f32 %v503, %v512
        %v519 = vadd.f32 %v480, %v513
        %v520 = vadd.f32 %v506, %v514
        %v521 = vadd.f32 %v483, %v515
        %v522 = vadd.f32 %v509, %v516
        %p523 = scmp.eq.s32.totalorder %s20, 0
        // Predicated region
        $region110: #{fno2d_forward.20} parent=96 // pred_check
          %p524 = pneg %p523
        $region111: #{fno2d_forward.20} parent=96 // pred_check_branch
          %526 = sbr.rel (%p524) target = $region113
        $region112: #{fno2d_forward.20} parent=96 // pred_region
          %v527 = vld [vmem:[%s359] sm:$0xff]
          %v528 = vld [vmem:[%s359 + $0x8] sm:$0xff]
          %v529 = vld [vmem:[%s359 + $0x10] sm:$0xff]
          %v530 = vld [vmem:[%s359 + $0x18] sm:$0xff]
          %v531 = vld [vmem:[%s359 + $0x20] sm:$0xf]
          %v532 = vld [vmem:[%s359 + $0x28] sm:$0xf]
          %v533 = vadd.f32 %v517, %v527
          %v534 = vadd.f32 %v518, %v528
          %v535 = vadd.f32 %v519, %v529
          %v536 = vadd.f32 %v520, %v530
          %v537 = vadd.f32 %v521, %v531
          %v538 = vadd.f32 %v522, %v532
          %539 = vst [vmem:[%s400] sm:$0xff] %v533
          %540 = vst [vmem:[%s400 + $0x8] sm:$0xff] %v534
          %541 = vst [vmem:[%s400 + $0x10] sm:$0xff] %v535
          %542 = vst [vmem:[%s400 + $0x18] sm:$0xff] %v536
          %543 = vst [vmem:[%s400 + $0x20] sm:$0xf] %v537
          %544 = vst [vmem:[%s400 + $0x28] sm:$0xf] %v538
        $region113: #{fno2d_forward.20} parent=96 // pred_fallthru
          _
        %p545 = scmp.ne.s32.totalorder %s20, 0
        // Predicated region
        $region114: #{fno2d_forward.20} parent=96 // pred_check
          %p546 = pneg %p545
        $region115: #{fno2d_forward.20} parent=96 // pred_check_branch
          %548 = sbr.rel (%p546) target = $region117
        $region116: #{fno2d_forward.20} parent=96 // pred_region
          %549 = vst [vmem:[%s400] sm:$0xff] %v517
          %550 = vst [vmem:[%s400 + $0x8] sm:$0xff] %v518
          %551 = vst [vmem:[%s400 + $0x10] sm:$0xff] %v519
          %552 = vst [vmem:[%s400 + $0x18] sm:$0xff] %v520
          %553 = vst [vmem:[%s400 + $0x20] sm:$0xf] %v521
          %554 = vst [vmem:[%s400 + $0x28] sm:$0xf] %v522
        $region117: #{fno2d_forward.20} parent=96 // pred_fallthru
          _
        %s555 = sand.u32 %s172, 1
        %s556 = sand.u32 %s172, 1
        %s557 = smul.addr %s556, 48
        %s558 = scalar_lea.vmem [#allocation5], %s557
        // Predicated region
        $region118: #{fno2d_forward.20} parent=96 // pred_check
          %p559 = pneg %p182
        $region119: #{fno2d_forward.20} parent=96 // pred_check_branch
          %561 = sbr.rel (%p559) target = $region121
        $region120: #{fno2d_forward.20} parent=96 // pred_region
          %s562 = smul.u32 2, %s21
          %s563 = smul.addr %s20, 12
          %s564 = sadd.s32 %s562, %s563
          %s565 = smul.addr %s564, 8
          %s566 = scalar_lea.vmem %s5, %s565
          // Predicated region
          $region122: #{fno2d_forward.20} parent=120 // pred_check
            _
          $region123: #{fno2d_forward.20} parent=120 // pred_check_branch
            %568 = sbr.rel (0) target = $region125
          $region124: #{fno2d_forward.20} parent=120 // pred_region
            // Predicated region
            $region126: #{fno2d_forward.20} parent=124 // pred_check
              _
            $region127: #{fno2d_forward.20} parent=124 // pred_check_branch
              %570 = sbr.rel (0) target = $region129
            $region128: #{fno2d_forward.20} parent=124 // pred_region
              loop: start=0, step=1, limit=1
              $region130: #{fno2d_forward.20} parent=128 // loop_pre_header
                _
              $region131: #{fno2d_forward.20} parent=128 // loop_header
                %s572 = sphi 0, %s576
                %p573 = scmp.ge.s32.totalorder %s572, 1
                %s577 = sphi %s558, %s558
                %s578 = sphi %s566, %s566
              $region132: #{fno2d_forward.20} parent=128 // loop_header_branch
                %575 = sbr.rel (%p573) target = $region136
              $region133: #{fno2d_forward.20} parent=128 // loop_body
                %v579 = vld [vmem:[%s577] sm:$0xff]
                %580 = vst [vmem:[%s578] sm:$0xff] %v579
                %v581 = vld [vmem:[%s577 + $0x8] sm:$0xff]
                %582 = vst [vmem:[%s578 + $0x8] sm:$0xff] %v581
                %v583 = vld [vmem:[%s577 + $0x10] sm:$0xff]
                %584 = vst [vmem:[%s578 + $0x20] sm:$0xff] %v583
                %v585 = vld [vmem:[%s577 + $0x18] sm:$0xff]
                %586 = vst [vmem:[%s578 + $0x28] sm:$0xff] %v585
                %v587 = vld [vmem:[%s577 + $0x20] sm:$0xff]
                %588 = vst [vmem:[%s578 + $0x40] sm:$0xff] %v587
                %v589 = vld [vmem:[%s577 + $0x28] sm:$0xff]
                %590 = vst [vmem:[%s578 + $0x48] sm:$0xff] %v589
              $region134: #{fno2d_forward.20} parent=128 // loop_footer
                %s576 = sadd.s32 1, %s572
              $region135: #{fno2d_forward.20} parent=128 // loop_footer_branch
                %571 = sbr.rel target = $region131
              $region136: #{fno2d_forward.20} parent=128 // loop_exit
                _
            $region129: #{fno2d_forward.20} parent=124 // pred_fallthru
              _
            // Predicated region
            $region137: #{fno2d_forward.20} parent=124 // pred_check
              _
            $region138: #{fno2d_forward.20} parent=124 // pred_check_branch
              %592 = sbr.rel target = $region140
            $region139: #{fno2d_forward.20} parent=124 // pred_region
              _
            $region140: #{fno2d_forward.20} parent=124 // pred_fallthru
              _
          $region125: #{fno2d_forward.20} parent=120 // pred_fallthru
            _
          %593 = vnop
        $region121: #{fno2d_forward.20} parent=96 // pred_fallthru
          _
      $region97: #{fno2d_forward.20} parent=5 // pred_fallthru
        _
      %p594 = scmp.le.s32.totalorder 2, %s11
      // Predicated region
      $region141: #{fno2d_forward.20} parent=5 // pred_check
        %p595 = pneg %p594
      $region142: #{fno2d_forward.20} parent=5 // pred_check_branch
        %597 = sbr.rel (%p595) target = $region144
      $region143: #{fno2d_forward.20} parent=5 // pred_region
        %s598 = ssub.s32 %s11, 2
        // Predicated region
        $region145: #{fno2d_forward.20} parent=143 // pred_check
          %p599 = pneg %p188
        $region146: #{fno2d_forward.20} parent=143 // pred_check_branch
          %601 = sbr.rel (%p599) target = $region148
        $region147: #{fno2d_forward.20} parent=143 // pred_region
          %s602 = sand.u32 %s173, 1
          %s603 = sand.u32 %s173, 1
          %s604 = smul.addr %s603, 48
          %s605 = scalar_lea.vmem [#allocation5], %s604
        $region148: #{fno2d_forward.20} parent=143 // pred_fallthru
          _
      $region144: #{fno2d_forward.20} parent=5 // pred_fallthru
        _
    $region6: #{fno2d_forward.20} parent=1 // loop_footer
      %s15 = sadd.s32 1, %s11
    $region7: #{fno2d_forward.20} parent=1 // loop_footer_branch
      %10 = sbr.rel target = $region3
    $region8: #{fno2d_forward.20} parent=1 // loop_exit
      _

// kernel: fno2d_forward.21
$region0: #{fno2d_forward.21}
  #allocation0 [shape = 'u32[]', space=smem, size = 0x4, offset = 0x4, fixed_abs, tag = 'smem constant byte address 0x4 - core index']
  #allocation1 [shape = 'u32[72,128]{1,0:T(1,128)}', space=vmem, size = 0x9000, scoped, tag = 'internal scratch']
  #allocation2 [shape = 'f32[1,1]{1,0:T(1,128)S(1)}', space=vmem, size = 0x200, scoped, tag = 'scoped memory for fno2d_forward.21']
  %s0 = inlined_call_operand.vmem [shape: f32[20,512], index: 0, kind: input, shape index: {}]
  %s1 = inlined_call_operand.vmem [shape: f32[20,512], index: 1, kind: input, shape index: {}]
  %s2 = inlined_call_operand.vmem [shape: f32[20,40], index: 2, kind: input, shape index: {}]
  %s3 = inlined_call_operand.vmem [shape: f32[20,1], index: 3, kind: input, shape index: {}]
  %s4 = inlined_call_operand.vmem [shape: f32[20,20], index: 4, kind: input, shape index: {}]
  %s5 = inlined_call_operand.vmem [shape: f32[20,1], index: 5, kind: input, shape index: {}]
  %s6 = inlined_call_operand.vmem [shape: f32[128,20], index: 6, kind: input, shape index: {}]
  %s7 = inlined_call_operand.vmem [shape: f32[128,1], index: 7, kind: input, shape index: {}]
  %s8 = inlined_call_operand.vmem [shape: f32[1,128], index: 8, kind: input, shape index: {}]
  %s9 = inlined_call_operand.<no memory space> [shape: f32[1,1], index: 9, kind: input, shape index: {}]
  %s10 = inlined_call_operand.vmem [shape: f32[1,512], index: 10, kind: output, shape index: {}]
  %s11 = sld [smem:[#allocation0]]
  $region149: #{fno2d_forward.21} parent=0
    _
  %s13 = ssub.s32 1, %s11
  %s14 = scalar_select 0, %s13, %s11
  %v15 = vstv %s9
  %16 = vst [vmem:[#allocation2] sm:$0x1] %v15
  $region1: #{fno2d_forward.21} parent=0
    #allocation3 [shape = 'u8[24576]{0}', space=vmem, size = 0x6000, scoped, tag = 'input window, operand 0']
    #allocation4 [shape = 'u8[24576]{0}', space=vmem, size = 0x6000, scoped, tag = 'input window, operand 1']
    loop: start=0, step=1, limit=6
    $region2: #{fno2d_forward.21} parent=1 // loop_pre_header
      _
    $region3: #{fno2d_forward.21} parent=1 // loop_header
      %s18 = sphi 0, %s22
      %p19 = scmp.ge.s32.totalorder %s18, 6
      %s28 = sphi 0, %s30
      %s31 = sphi 0, %s28
      %s32 = sphi 0, %s31
      %s48 = sphi 0, %s32
      %s54 = sphi 0, %s56
      %s57 = sphi 0, %s54
      %s58 = sphi 0, %s57
      %s74 = sphi 0, %s58
      %s78 = sphi 0, %s78
      %s80 = sphi 0, %s78
      %s81 = sphi 0, %s80
      %s95 = sphi 0, %s81
      %s99 = sphi 0, %s99
      %s101 = sphi 0, %s99
      %s102 = sphi 0, %s101
      %s116 = sphi 0, %s102
      %s120 = sphi 0, %s120
      %s122 = sphi 0, %s120
      %s123 = sphi 0, %s122
      %s137 = sphi 0, %s123
      %s141 = sphi 0, %s141
      %s143 = sphi 0, %s141
      %s144 = sphi 0, %s143
      %s158 = sphi 0, %s144
      %s162 = sphi 0, %s162
      %s164 = sphi 0, %s162
      %s165 = sphi 0, %s164
      %s179 = sphi 0, %s165
      %s183 = sphi 0, %s183
      %s185 = sphi 0, %s183
      %s186 = sphi 0, %s185
      %s200 = sphi 0, %s186
      %s204 = sphi 0, %s204
      %s206 = sphi 0, %s204
      %s207 = sphi 0, %s206
      %s221 = sphi 0, %s207
      %s225 = sphi 0, %s225
      %s227 = sphi 0, %s225
      %s228 = sphi 0, %s227
      %s242 = sphi 0, %s228
      %s248 = sphi 0, %s250
      %s251 = sphi 0, %s248
      %s252 = sphi 0, %s251
      %s268 = sphi 0, %s252
    $region4: #{fno2d_forward.21} parent=1 // loop_header_branch
      %21 = sbr.rel (%p19) target = $region8
    $region5: #{fno2d_forward.21} parent=1 // loop_body
      %s23 = ssub.s32 %s18, 1
      %s24 = ssub.s32 %s18, 2
      %s25 = sadd.s32 %s18, 1
      %s26 = ssub.s32 %s18, %s25
      %p27 = scmp.eq.s32.totalorder %s26, 0
      %s29 = sadd.s32 %s28, 1
      %s30 = scalar_select %p27, %s28, %s29
      %p33 = pneg %p27
      %p34 = scmp.eq.s32.totalorder %s18, 3
      %p35 = por %p33, %p34
      %p36 = scmp.ne.s32.totalorder %s28, %s31
      %p37 = scmp.eq.s32.totalorder %s18, 0
      %p38 = por %p36, %p37
      %p39 = scmp.ne.s32.totalorder %s28, %s31
      %p40 = scmp.eq.s32.totalorder %s23, 3
      %p41 = por %p39, %p40
      %p42 = scmp.ne.s32.totalorder %s31, %s32
      %p43 = scmp.eq.s32.totalorder %s23, 0
      %p44 = por %p42, %p43
      %p45 = scmp.ne.s32.totalorder %s31, %s32
      %p46 = scmp.eq.s32.totalorder %s24, 3
      %p47 = por %p45, %p46
      %p49 = scmp.ne.s32.totalorder %s32, %s48
      %p50 = scmp.eq.s32.totalorder %s24, 0
      %p51 = por %p49, %p50
      %s52 = ssub.s32 %s18, %s25
      %p53 = scmp.eq.s32.totalorder %s52, 0
      %s55 = sadd.s32 %s54, 1
      %s56 = scalar_select %p53, %s54, %s55
      %p59 = pneg %p53
      %p60 = scmp.eq.s32.totalorder %s18, 3
      %p61 = por %p59, %p60
      %p62 = scmp.ne.s32.totalorder %s54, %s57
      %p63 = scmp.eq.s32.totalorder %s18, 0
      %p64 = por %p62, %p63
      %p65 = scmp.ne.s32.totalorder %s54, %s57
      %p66 = scmp.eq.s32.totalorder %s23, 3
      %p67 = por %p65, %p66
      %p68 = scmp.ne.s32.totalorder %s57, %s58
      %p69 = scmp.eq.s32.totalorder %s23, 0
      %p70 = por %p68, %p69
      %p71 = scmp.ne.s32.totalorder %s57, %s58
      %p72 = scmp.eq.s32.totalorder %s24, 3
      %p73 = por %p71, %p72
      %p75 = scmp.ne.s32.totalorder %s58, %s74
      %p76 = scmp.eq.s32.totalorder %s24, 0
      %p77 = por %p75, %p76
      %s79 = sadd.s32 %s78, 1
      %p82 = scmp.eq.s32.totalorder %s18, 3
      %p83 = scmp.ne.s32.totalorder %s78, %s80
      %p84 = scmp.eq.s32.totalorder %s18, 0
      %p85 = por %p83, %p84
      %p86 = scmp.ne.s32.totalorder %s78, %s80
      %p87 = scmp.eq.s32.totalorder %s23, 3
      %p88 = por %p86, %p87
      %p89 = scmp.ne.s32.totalorder %s80, %s81
      %p90 = scmp.eq.s32.totalorder %s23, 0
      %p91 = por %p89, %p90
      %p92 = scmp.ne.s32.totalorder %s80, %s81
      %p93 = scmp.eq.s32.totalorder %s24, 3
      %p94 = por %p92, %p93
      %p96 = scmp.ne.s32.totalorder %s81, %s95
      %p97 = scmp.eq.s32.totalorder %s24, 0
      %p98 = por %p96, %p97
      %s100 = sadd.s32 %s99, 1
      %p103 = scmp.eq.s32.totalorder %s18, 3
      %p104 = scmp.ne.s32.totalorder %s99, %s101
      %p105 = scmp.eq.s32.totalorder %s18, 0
      %p106 = por %p104, %p105
      %p107 = scmp.ne.s32.totalorder %s99, %s101
      %p108 = scmp.eq.s32.totalorder %s23, 3
      %p109 = por %p107, %p108
      %p110 = scmp.ne.s32.totalorder %s101, %s102
      %p111 = scmp.eq.s32.totalorder %s23, 0
      %p112 = por %p110, %p111
      %p113 = scmp.ne.s32.totalorder %s101, %s102
      %p114 = scmp.eq.s32.totalorder %s24, 3
      %p115 = por %p113, %p114
      %p117 = scmp.ne.s32.totalorder %s102, %s116
      %p118 = scmp.eq.s32.totalorder %s24, 0
      %p119 = por %p117, %p118
      %s121 = sadd.s32 %s120, 1
      %p124 = scmp.eq.s32.totalorder %s18, 3
      %p125 = scmp.ne.s32.totalorder %s120, %s122
      %p126 = scmp.eq.s32.totalorder %s18, 0
      %p127 = por %p125, %p126
      %p128 = scmp.ne.s32.totalorder %s120, %s122
      %p129 = scmp.eq.s32.totalorder %s23, 3
      %p130 = por %p128, %p129
      %p131 = scmp.ne.s32.totalorder %s122, %s123
      %p132 = scmp.eq.s32.totalorder %s23, 0
      %p133 = por %p131, %p132
      %p134 = scmp.ne.s32.totalorder %s122, %s123
      %p135 = scmp.eq.s32.totalorder %s24, 3
      %p136 = por %p134, %p135
      %p138 = scmp.ne.s32.totalorder %s123, %s137
      %p139 = scmp.eq.s32.totalorder %s24, 0
      %p140 = por %p138, %p139
      %s142 = sadd.s32 %s141, 1
      %p145 = scmp.eq.s32.totalorder %s18, 3
      %p146 = scmp.ne.s32.totalorder %s141, %s143
      %p147 = scmp.eq.s32.totalorder %s18, 0
      %p148 = por %p146, %p147
      %p149 = scmp.ne.s32.totalorder %s141, %s143
      %p150 = scmp.eq.s32.totalorder %s23, 3
      %p151 = por %p149, %p150
      %p152 = scmp.ne.s32.totalorder %s143, %s144
      %p153 = scmp.eq.s32.totalorder %s23, 0
      %p154 = por %p152, %p153
      %p155 = scmp.ne.s32.totalorder %s143, %s144
      %p156 = scmp.eq.s32.totalorder %s24, 3
      %p157 = por %p155, %p156
      %p159 = scmp.ne.s32.totalorder %s144, %s158
      %p160 = scmp.eq.s32.totalorder %s24, 0
      %p161 = por %p159, %p160
      %s163 = sadd.s32 %s162, 1
      %p166 = scmp.eq.s32.totalorder %s18, 3
      %p167 = scmp.ne.s32.totalorder %s162, %s164
      %p168 = scmp.eq.s32.totalorder %s18, 0
      %p169 = por %p167, %p168
      %p170 = scmp.ne.s32.totalorder %s162, %s164
      %p171 = scmp.eq.s32.totalorder %s23, 3
      %p172 = por %p170, %p171
      %p173 = scmp.ne.s32.totalorder %s164, %s165
      %p174 = scmp.eq.s32.totalorder %s23, 0
      %p175 = por %p173, %p174
      %p176 = scmp.ne.s32.totalorder %s164, %s165
      %p177 = scmp.eq.s32.totalorder %s24, 3
      %p178 = por %p176, %p177
      %p180 = scmp.ne.s32.totalorder %s165, %s179
      %p181 = scmp.eq.s32.totalorder %s24, 0
      %p182 = por %p180, %p181
      %s184 = sadd.s32 %s183, 1
      %p187 = scmp.eq.s32.totalorder %s18, 3
      %p188 = scmp.ne.s32.totalorder %s183, %s185
      %p189 = scmp.eq.s32.totalorder %s18, 0
      %p190 = por %p188, %p189
      %p191 = scmp.ne.s32.totalorder %s183, %s185
      %p192 = scmp.eq.s32.totalorder %s23, 3
      %p193 = por %p191, %p192
      %p194 = scmp.ne.s32.totalorder %s185, %s186
      %p195 = scmp.eq.s32.totalorder %s23, 0
      %p196 = por %p194, %p195
      %p197 = scmp.ne.s32.totalorder %s185, %s186
      %p198 = scmp.eq.s32.totalorder %s24, 3
      %p199 = por %p197, %p198
      %p201 = scmp.ne.s32.totalorder %s186, %s200
      %p202 = scmp.eq.s32.totalorder %s24, 0
      %p203 = por %p201, %p202
      %s205 = sadd.s32 %s204, 1
      %p208 = scmp.eq.s32.totalorder %s18, 3
      %p209 = scmp.ne.s32.totalorder %s204, %s206
      %p210 = scmp.eq.s32.totalorder %s18, 0
      %p211 = por %p209, %p210
      %p212 = scmp.ne.s32.totalorder %s204, %s206
      %p213 = scmp.eq.s32.totalorder %s23, 3
      %p214 = por %p212, %p213
      %p215 = scmp.ne.s32.totalorder %s206, %s207
      %p216 = scmp.eq.s32.totalorder %s23, 0
      %p217 = por %p215, %p216
      %p218 = scmp.ne.s32.totalorder %s206, %s207
      %p219 = scmp.eq.s32.totalorder %s24, 3
      %p220 = por %p218, %p219
      %p222 = scmp.ne.s32.totalorder %s207, %s221
      %p223 = scmp.eq.s32.totalorder %s24, 0
      %p224 = por %p222, %p223
      %s226 = sadd.s32 %s225, 1
      %p229 = scmp.eq.s32.totalorder %s18, 3
      %p230 = scmp.ne.s32.totalorder %s225, %s227
      %p231 = scmp.eq.s32.totalorder %s18, 0
      %p232 = por %p230, %p231
      %p233 = scmp.ne.s32.totalorder %s225, %s227
      %p234 = scmp.eq.s32.totalorder %s23, 3
      %p235 = por %p233, %p234
      %p236 = scmp.ne.s32.totalorder %s227, %s228
      %p237 = scmp.eq.s32.totalorder %s23, 0
      %p238 = por %p236, %p237
      %p239 = scmp.ne.s32.totalorder %s227, %s228
      %p240 = scmp.eq.s32.totalorder %s24, 3
      %p241 = por %p239, %p240
      %p243 = scmp.ne.s32.totalorder %s228, %s242
      %p244 = scmp.eq.s32.totalorder %s24, 0
      %p245 = por %p243, %p244
      %s246 = ssub.s32 %s18, %s25
      %p247 = scmp.eq.s32.totalorder %s246, 0
      %s249 = sadd.s32 %s248, 1
      %s250 = scalar_select %p247, %s248, %s249
      %p253 = pneg %p247
      %p254 = scmp.eq.s32.totalorder %s18, 3
      %p255 = por %p253, %p254
      %p256 = scmp.ne.s32.totalorder %s248, %s251
      %p257 = scmp.eq.s32.totalorder %s18, 0
      %p258 = por %p256, %p257
      %p259 = scmp.ne.s32.totalorder %s248, %s251
      %p260 = scmp.eq.s32.totalorder %s23, 3
      %p261 = por %p259, %p260
      %p262 = scmp.ne.s32.totalorder %s251, %s252
      %p263 = scmp.eq.s32.totalorder %s23, 0
      %p264 = por %p262, %p263
      %p265 = scmp.ne.s32.totalorder %s251, %s252
      %p266 = scmp.eq.s32.totalorder %s24, 3
      %p267 = por %p265, %p266
      %p269 = scmp.ne.s32.totalorder %s252, %s268
      %p270 = scmp.eq.s32.totalorder %s24, 0
      %p271 = por %p269, %p270
      %p272 = scmp.le.s32.totalorder 1, %s18
      %p273 = scmp.lt.s32.totalorder %s18, 5
      %p274 = pnand %p272, %p273
      %p275 = pneg %p274
      // Predicated region
      $region9: #{fno2d_forward.21} parent=5 // pred_check
        _
      $region10: #{fno2d_forward.21} parent=5 // pred_check_branch
        %277 = sbr.rel (%p274) target = $region12
      $region11: #{fno2d_forward.21} parent=5 // pred_region
        %s278 = ssub.s32 %s18, 1
        // Predicated region
        $region13: #{fno2d_forward.21} parent=11 // pred_check
          %p279 = pneg %p91
        $region14: #{fno2d_forward.21} parent=11 // pred_check_branch
          %281 = sbr.rel (%p279) target = $region16
        $region15: #{fno2d_forward.21} parent=11 // pred_region
          _
        $region16: #{fno2d_forward.21} parent=11 // pred_fallthru
          _
        // Predicated region
        $region17: #{fno2d_forward.21} parent=11 // pred_check
          %p282 = pneg %p112
        $region18: #{fno2d_forward.21} parent=11 // pred_check_branch
          %284 = sbr.rel (%p282) target = $region20
        $region19: #{fno2d_forward.21} parent=11 // pred_region
          _
        $region20: #{fno2d_forward.21} parent=11 // pred_fallthru
          _
        // Predicated region
        $region21: #{fno2d_forward.21} parent=11 // pred_check
          %p285 = pneg %p133
        $region22: #{fno2d_forward.21} parent=11 // pred_check_branch
          %287 = sbr.rel (%p285) target = $region24
        $region23: #{fno2d_forward.21} parent=11 // pred_region
          _
        $region24: #{fno2d_forward.21} parent=11 // pred_fallthru
          _
        // Predicated region
        $region25: #{fno2d_forward.21} parent=11 // pred_check
          %p288 = pneg %p154
        $region26: #{fno2d_forward.21} parent=11 // pred_check_branch
          %290 = sbr.rel (%p288) target = $region28
        $region27: #{fno2d_forward.21} parent=11 // pred_region
          _
        $region28: #{fno2d_forward.21} parent=11 // pred_fallthru
          _
        // Predicated region
        $region29: #{fno2d_forward.21} parent=11 // pred_check
          %p291 = pneg %p175
        $region30: #{fno2d_forward.21} parent=11 // pred_check_branch
          %293 = sbr.rel (%p291) target = $region32
        $region31: #{fno2d_forward.21} parent=11 // pred_region
          _
        $region32: #{fno2d_forward.21} parent=11 // pred_fallthru
          _
        // Predicated region
        $region33: #{fno2d_forward.21} parent=11 // pred_check
          %p294 = pneg %p196
        $region34: #{fno2d_forward.21} parent=11 // pred_check_branch
          %296 = sbr.rel (%p294) target = $region36
        $region35: #{fno2d_forward.21} parent=11 // pred_region
          _
        $region36: #{fno2d_forward.21} parent=11 // pred_fallthru
          _
        // Predicated region
        $region37: #{fno2d_forward.21} parent=11 // pred_check
          %p297 = pneg %p217
        $region38: #{fno2d_forward.21} parent=11 // pred_check_branch
          %299 = sbr.rel (%p297) target = $region40
        $region39: #{fno2d_forward.21} parent=11 // pred_region
          _
        $region40: #{fno2d_forward.21} parent=11 // pred_fallthru
          _
        // Predicated region
        $region41: #{fno2d_forward.21} parent=11 // pred_check
          %p300 = pneg %p238
        $region42: #{fno2d_forward.21} parent=11 // pred_check_branch
          %302 = sbr.rel (%p300) target = $region44
        $region43: #{fno2d_forward.21} parent=11 // pred_region
          _
        $region44: #{fno2d_forward.21} parent=11 // pred_fallthru
          _
      $region12: #{fno2d_forward.21} parent=5 // pred_fallthru
        _
      %p303 = scmp.lt.s32.totalorder %s18, 4
      // Predicated region
      $region45: #{fno2d_forward.21} parent=5 // pred_check
        %p304 = pneg %p303
      $region46: #{fno2d_forward.21} parent=5 // pred_check_branch
        %306 = sbr.rel (%p304) target = $region48
      $region47: #{fno2d_forward.21} parent=5 // pred_region
        // Predicated region
        $region49: #{fno2d_forward.21} parent=47 // pred_check
          %p307 = pneg %p38
        $region50: #{fno2d_forward.21} parent=47 // pred_check_branch
          %309 = sbr.rel (%p307) target = $region52
        $region51: #{fno2d_forward.21} parent=47 // pred_region
          %s310 = sand.u32 %s28, 1
          %s311 = sand.u32 %s28, 1
          %s312 = smul.addr %s311, 24
          %s313 = scalar_lea.vmem [#allocation3], %s312
          %s314 = smul.addr %s18, 8
          %s315 = scalar_lea.vmem %s0, %s314
          // Predicated region
          $region53: #{fno2d_forward.21} parent=51 // pred_check
            _
          $region54: #{fno2d_forward.21} parent=51 // pred_check_branch
            %317 = sbr.rel (0) target = $region56
          $region55: #{fno2d_forward.21} parent=51 // pred_region
            // Predicated region
            $region57: #{fno2d_forward.21} parent=55 // pred_check
              _
            $region58: #{fno2d_forward.21} parent=55 // pred_check_branch
              %319 = sbr.rel (0) target = $region60
            $region59: #{fno2d_forward.21} parent=55 // pred_region
              // Predicated region
              $region72: #{fno2d_forward.21} parent=59 // pred_check
                _
              $region73: #{fno2d_forward.21} parent=59 // pred_check_branch
                %339 = sbr.rel (0) target = $region75
              $region74: #{fno2d_forward.21} parent=59 // pred_region
                loop: start=0, step=1, limit=1
                $region76: #{fno2d_forward.21} parent=74 // loop_pre_header
                  _
                $region77: #{fno2d_forward.21} parent=74 // loop_header
                  %s341 = sphi 0, %s345
                  %p342 = scmp.ge.s32.totalorder %s341, 1
                  %s346 = sphi %s315, %s315
                  %s347 = sphi %s313, %s313
                $region78: #{fno2d_forward.21} parent=74 // loop_header_branch
                  %344 = sbr.rel (%p342) target = $region82
                $region79: #{fno2d_forward.21} parent=74 // loop_body
                  %v348 = vld [vmem:[%s346] sm:$0xff]
                  %349 = vst [vmem:[%s347] sm:$0xff] %v348
                  %v350 = vld [vmem:[%s346 + $0x20] sm:$0xff]
                  %351 = vst [vmem:[%s347 + $0x8] sm:$0xff] %v350
                  %v352 = vld [vmem:[%s346 + $0x40] sm:$0xff]
                  %353 = vst [vmem:[%s347 + $0x10] sm:$0xff] %v352
                $region80: #{fno2d_forward.21} parent=74 // loop_footer
                  %s345 = sadd.s32 1, %s341
                $region81: #{fno2d_forward.21} parent=74 // loop_footer_branch
                  %340 = sbr.rel target = $region77
                $region82: #{fno2d_forward.21} parent=74 // loop_exit
                  _
              $region75: #{fno2d_forward.21} parent=59 // pred_fallthru
                _
              // Predicated region
              $region83: #{fno2d_forward.21} parent=59 // pred_check
                _
              $region84: #{fno2d_forward.21} parent=59 // pred_check_branch
                %355 = sbr.rel target = $region86
              $region85: #{fno2d_forward.21} parent=59 // pred_region
                _
              $region86: #{fno2d_forward.21} parent=59 // pred_fallthru
                _
            $region60: #{fno2d_forward.21} parent=55 // pred_fallthru
              _
            // Predicated region
            $region61: #{fno2d_forward.21} parent=55 // pred_check
              _
            $region62: #{fno2d_forward.21} parent=55 // pred_check_branch
              %321 = sbr.rel target = $region64
            $region63: #{fno2d_forward.21} parent=55 // pred_region
              %s323 = ssub.s32 256, 1
              loop: start=0, step=1, limit=1
              $region65: #{fno2d_forward.21} parent=63 // loop_pre_header
                _
              $region66: #{fno2d_forward.21} parent=63 // loop_header
                %s325 = sphi 0, %s329
                %p326 = scmp.ge.s32.totalorder %s325, 1
                %s330 = sphi %s315, %s315
                %s331 = sphi %s313, %s313
              $region67: #{fno2d_forward.21} parent=63 // loop_header_branch
                %328 = sbr.rel (%p326) target = $region71
              $region68: #{fno2d_forward.21} parent=63 // loop_body
                %v332 = vld [vmem:[%s330] sm:%s323]
                %333 = vst [vmem:[%s331] sm:%s323] %v332
                %v334 = vld [vmem:[%s330 + $0x20] sm:%s323]
                %335 = vst [vmem:[%s331 + $0x8] sm:%s323] %v334
                %v336 = vld [vmem:[%s330 + $0x40] sm:%s323]
                %337 = vst [vmem:[%s331 + $0x10] sm:%s323] %v336
              $region69: #{fno2d_forward.21} parent=63 // loop_footer
                %s329 = sadd.s32 1, %s325
              $region70: #{fno2d_forward.21} parent=63 // loop_footer_branch
                %324 = sbr.rel target = $region66
              $region71: #{fno2d_forward.21} parent=63 // loop_exit
                _
            $region64: #{fno2d_forward.21} parent=55 // pred_fallthru
              _
          $region56: #{fno2d_forward.21} parent=51 // pred_fallthru
            _
          %356 = vnop
        $region52: #{fno2d_forward.21} parent=47 // pred_fallthru
          _
        // Predicated region
        $region87: #{fno2d_forward.21} parent=47 // pred_check
          %p357 = pneg %p64
        $region88: #{fno2d_forward.21} parent=47 // pred_check_branch
          %359 = sbr.rel (%p357) target = $region90
        $region89: #{fno2d_forward.21} parent=47 // pred_region
          %s360 = sand.u32 %s54, 1
          %s361 = sand.u32 %s54, 1
          %s362 = smul.addr %s361, 24
          %s363 = scalar_lea.vmem [#allocation4], %s362
          %s364 = smul.addr %s18, 8
          %s365 = scalar_lea.vmem %s1, %s364
          // Predicated region
          $region91: #{fno2d_forward.21} parent=89 // pred_check
            _
          $region92: #{fno2d_forward.21} parent=89 // pred_check_branch
            %367 = sbr.rel (0) target = $region94
          $region93: #{fno2d_forward.21} parent=89 // pred_region
            // Predicated region
            $region95: #{fno2d_forward.21} parent=93 // pred_check
              _
            $region96: #{fno2d_forward.21} parent=93 // pred_check_branch
              %369 = sbr.rel (0) target = $region98
            $region97: #{fno2d_forward.21} parent=93 // pred_region
              // Predicated region
              $region110: #{fno2d_forward.21} parent=97 // pred_check
                _
              $region111: #{fno2d_forward.21} parent=97 // pred_check_branch
                %389 = sbr.rel (0) target = $region113
              $region112: #{fno2d_forward.21} parent=97 // pred_region
                loop: start=0, step=1, limit=1
                $region114: #{fno2d_forward.21} parent=112 // loop_pre_header
                  _
                $region115: #{fno2d_forward.21} parent=112 // loop_header
                  %s391 = sphi 0, %s395
                  %p392 = scmp.ge.s32.totalorder %s391, 1
                  %s396 = sphi %s365, %s365
                  %s397 = sphi %s363, %s363
                $region116: #{fno2d_forward.21} parent=112 // loop_header_branch
                  %394 = sbr.rel (%p392) target = $region120
                $region117: #{fno2d_forward.21} parent=112 // loop_body
                  %v398 = vld [vmem:[%s396] sm:$0xff]
                  %399 = vst [vmem:[%s397] sm:$0xff] %v398
                  %v400 = vld [vmem:[%s396 + $0x20] sm:$0xff]
                  %401 = vst [vmem:[%s397 + $0x8] sm:$0xff] %v400
                  %v402 = vld [vmem:[%s396 + $0x40] sm:$0xff]
                  %403 = vst [vmem:[%s397 + $0x10] sm:$0xff] %v402
                $region118: #{fno2d_forward.21} parent=112 // loop_footer
                  %s395 = sadd.s32 1, %s391
                $region119: #{fno2d_forward.21} parent=112 // loop_footer_branch
                  %390 = sbr.rel target = $region115
                $region120: #{fno2d_forward.21} parent=112 // loop_exit
                  _
              $region113: #{fno2d_forward.21} parent=97 // pred_fallthru
                _
              // Predicated region
              $region121: #{fno2d_forward.21} parent=97 // pred_check
                _
              $region122: #{fno2d_forward.21} parent=97 // pred_check_branch
                %405 = sbr.rel target = $region124
              $region123: #{fno2d_forward.21} parent=97 // pred_region
                _
              $region124: #{fno2d_forward.21} parent=97 // pred_fallthru
                _
            $region98: #{fno2d_forward.21} parent=93 // pred_fallthru
              _
            // Predicated region
            $region99: #{fno2d_forward.21} parent=93 // pred_check
              _
            $region100: #{fno2d_forward.21} parent=93 // pred_check_branch
              %371 = sbr.rel target = $region102
            $region101: #{fno2d_forward.21} parent=93 // pred_region
              %s373 = ssub.s32 256, 1
              loop: start=0, step=1, limit=1
              $region103: #{fno2d_forward.21} parent=101 // loop_pre_header
                _
              $region104: #{fno2d_forward.21} parent=101 // loop_header
                %s375 = sphi 0, %s379
                %p376 = scmp.ge.s32.totalorder %s375, 1
                %s380 = sphi %s365, %s365
                %s381 = sphi %s363, %s363
              $region105: #{fno2d_forward.21} parent=101 // loop_header_branch
                %378 = sbr.rel (%p376) target = $region109
              $region106: #{fno2d_forward.21} parent=101 // loop_body
                %v382 = vld [vmem:[%s380] sm:%s373]
                %383 = vst [vmem:[%s381] sm:%s373] %v382
                %v384 = vld [vmem:[%s380 + $0x20] sm:%s373]
                %385 = vst [vmem:[%s381 + $0x8] sm:%s373] %v384
                %v386 = vld [vmem:[%s380 + $0x40] sm:%s373]
                %387 = vst [vmem:[%s381 + $0x10] sm:%s373] %v386
              $region107: #{fno2d_forward.21} parent=101 // loop_footer
                %s379 = sadd.s32 1, %s375
              $region108: #{fno2d_forward.21} parent=101 // loop_footer_branch
                %374 = sbr.rel target = $region104
              $region109: #{fno2d_forward.21} parent=101 // loop_exit
                _
            $region102: #{fno2d_forward.21} parent=93 // pred_fallthru
              _
          $region94: #{fno2d_forward.21} parent=89 // pred_fallthru
            _
          %406 = vnop
        $region90: #{fno2d_forward.21} parent=47 // pred_fallthru
          _
      $region48: #{fno2d_forward.21} parent=5 // pred_fallthru
        _
      %p407 = scmp.le.s32.totalorder 1, %s18
      %p408 = scmp.lt.s32.totalorder %s18, 5
      %p409 = pnand %p407, %p408
      %p410 = pneg %p409
      // Predicated region
      $region125: #{fno2d_forward.21} parent=5 // pred_check
        _
      $region126: #{fno2d_forward.21} parent=5 // pred_check_branch
        %412 = sbr.rel (%p409) target = $region128
      $region127: #{fno2d_forward.21} parent=5 // pred_region
        %s413 = ssub.s32 %s18, 1
        %s414 = sand.u32 %s31, 1
        %s415 = sand.u32 %s31, 1
        %s416 = smul.addr %s415, 24
        %s417 = scalar_lea.vmem [#allocation3], %s416
        // Predicated region
        $region129: #{fno2d_forward.21} parent=127 // pred_check
          %p418 = pneg %p44
        $region130: #{fno2d_forward.21} parent=127 // pred_check_branch
          %420 = sbr.rel (%p418) target = $region132
        $region131: #{fno2d_forward.21} parent=127 // pred_region
          _
        $region132: #{fno2d_forward.21} parent=127 // pred_fallthru
          _
        %s421 = sand.u32 %s57, 1
        %s422 = sand.u32 %s57, 1
        %s423 = smul.addr %s422, 24
        %s424 = scalar_lea.vmem [#allocation4], %s423
        // Predicated region
        $region133: #{fno2d_forward.21} parent=127 // pred_check
          %p425 = pneg %p70
        $region134: #{fno2d_forward.21} parent=127 // pred_check_branch
          %427 = sbr.rel (%p425) target = $region136
        $region135: #{fno2d_forward.21} parent=127 // pred_region
          _
        $region136: #{fno2d_forward.21} parent=127 // pred_fallthru
          _
        %s428 = sand.u32 %s31, 1
        %s429 = sand.u32 %s31, 1
        %s430 = smul.addr %s429, 24
        %s431 = scalar_lea.vmem [#allocation3], %s430
        %p432 = pneg %p44
        %p433 = pneg %p41
        %s434 = sand.u32 %s57, 1
        %s435 = sand.u32 %s57, 1
        %s436 = smul.addr %s435, 24
        %s437 = scalar_lea.vmem [#allocation4], %s436
        %p438 = pneg %p70
        %p439 = pneg %p67
        %p440 = pneg %p91
        %p441 = pneg %p88
        %p442 = pneg %p112
        %p443 = pneg %p109
        %p444 = pneg %p133
        %p445 = pneg %p130
        %p446 = pneg %p154
        %p447 = pneg %p151
        %p448 = pneg %p175
        %p449 = pneg %p172
        %p450 = pneg %p196
        %p451 = pneg %p193
        %p452 = pneg %p217
        %p453 = pneg %p214
        %p454 = pneg %p238
        %p455 = pneg %p235
        %p456 = pneg %p264
        %p457 = pneg %p261
        %p458 = scmp.lt.s32.totalorder %s23, 3
        %s459 = scalar_select %p458, %s23, 3
        %s460 = scalar_lea.vmem %s10, %s459
        %p461 = scmp.lt.s32.totalorder %s23, 3
        %s462 = scalar_select %p461, %s23, 3
        %s463 = scalar_lea.vmem %s10, %s462
        %v464 = vld [vmem:[%s2] sm:$0xff]
        %v465 = vld [vmem:[%s2 + $0x8] sm:$0xff]
        %v466 = vld [vmem:[%s2 + $0x10] sm:$0xf]
        %v467 = vld [vmem:[%s417] sm:$0xff]
        %v468 = vld [vmem:[%s417 + $0x8] sm:$0xff]
        %v469 = vld [vmem:[%s417 + $0x10] sm:$0xf]
        %v470 = vld [vmem:[%s424] sm:$0xff]
        %v471 = vld [vmem:[%s424 + $0x8] sm:$0xff]
        %v472 = vld [vmem:[%s424 + $0x10] sm:$0xf]
        %476 = vrot.lane.b32.xlu0 %v464, 108
        %v477 = vpop.permute.xlu0 %476
        %478 = vrot.lane.b32.xlu0 %v465, 108
        %v479 = vpop.permute.xlu0 %478
        %480 = vrot.lane.b32.xlu0 %v466, 108
        %v481 = vpop.permute.xlu0 %480
        %vm482 = vcmask 162816
        %v483 = vsel %vm482, %v477, 0
        %v485 = vsel %vm482, %v479, 0
        %v487 = vsel %vm482, %v481, 0
        %vm489 = vcmask 1043456
        %v491 = vsel %vm489, %v472, 0
        %493 = vmatpush.msra.mxu0 0.0
        %494 = vmatpush.msra.mxu0 0.0
        %495 = vmatpush.msra.mxu0 0.0
        %496 = vmatpush.msra.mxu0 0.0
        %497 = vmatpush.msra.mxu0 0.0
        %498 = vmatpush.msra.mxu0 0.0
        %499 = vmatpush.msra.mxu0 0.0
        %500 = vmatpush.msra.mxu0 0.0
        %501 = vmatpush.msra.mxu0 0.0
        %502 = vmatpush.msra.mxu0 0.0
        %503 = vmatpush.msra.mxu0 0.0
        %504 = vmatpush.msra.mxu0 0.0
        %505 = vmatpush.msra.mxu0 0.0
        %506 = vmatpush.msra.mxu0 %v491
        %507 = vmatpush.msra.mxu0 %v471
        %508 = vmatpush.msra.mxu0 %v470
        %509 = vmatmul.f32.gmra.mxu0 %v483
        %v510 = vpop.f32.mrf.mxu0
        %v511 = vadd.f32 0.0, %v510
        %512 = vmatmul.f32.gmra.mxu0 %v485
        %v513 = vpop.f32.mrf.mxu0
        %v514 = vadd.f32 0.0, %v513
        %515 = vmatmul.f32.gmra.mxu0 %v487
        %v516 = vpop.f32.mrf.mxu0
        %v517 = vadd.f32 0.0, %v516
        %518 = vdwg.mxu0
        %v519 = vsel %vm482, %v464, 0
        %v521 = vsel %vm482, %v465, 0
        %v523 = vsel %vm482, %v466, 0
        %v526 = vsel %vm489, %v469, 0
        %528 = vmatpush.msra.mxu0 0.0
        %529 = vmatpush.msra.mxu0 0.0
        %530 = vmatpush.msra.mxu0 0.0
        %531 = vmatpush.msra.mxu0 0.0
        %532 = vmatpush.msra.mxu0 0.0
        %533 = vmatpush.msra.mxu0 0.0
        %534 = vmatpush.msra.mxu0 0.0
        %535 = vmatpush.msra.mxu0 0.0
        %536 = vmatpush.msra.mxu0 0.0
        %537 = vmatpush.msra.mxu0 0.0
        %538 = vmatpush.msra.mxu0 0.0
        %539 = vmatpush.msra.mxu0 0.0
        %540 = vmatpush.msra.mxu0 0.0
        %541 = vmatpush.msra.mxu0 %v526
        %542 = vmatpush.msra.mxu0 %v468
        %543 = vmatpush.msra.mxu0 %v467
        %544 = vmatmul.f32.gmra.mxu0 %v519
        %v545 = vpop.f32.mrf.mxu0
        %v546 = vadd.f32 %v511, %v545
        %547 = vmatmul.f32.gmra.mxu0 %v521
        %v548 = vpop.f32.mrf.mxu0
        %v549 = vadd.f32 %v514, %v548
        %550 = vmatmul.f32.gmra.mxu0 %v523
        %v551 = vpop.f32.mrf.mxu0
        %v552 = vadd.f32 %v517, %v551
        %553 = vdwg.mxu0
        %v554 = vld [vmem:[%s3] sm:$0xff]
        %v555 = vld [vmem:[%s3 + $0x8] sm:$0xff]
        %v556 = vld [vmem:[%s3 + $0x10] sm:$0xf]
        %558 = vset.pattern.permute.xlu0 0
        %559 = vperm.xlu0 %558, %v554
        %v560 = vpop.permute.xlu0 %559
        %563 = vset.pattern.permute.xlu0 0
        %564 = vperm.xlu0 %563, %v555
        %v565 = vpop.permute.xlu0 %564
        %568 = vset.pattern.permute.xlu0 0
        %569 = vperm.xlu0 %568, %v556
        %v570 = vpop.permute.xlu0 %569
        %v572 = vadd.f32 %v546, %v560
        %v573 = vadd.f32 %v549, %v565
        %v574 = vadd.f32 %v552, %v570
        %v575 = vmul.f32 %v572, 0.5
        %v576 = vmul.f32 %v573, 0.5
        %v577 = vmul.f32 %v574, 0.5
        %v578 = vmul.f32 %v572, 0.70710677
        %v579 = vmul.f32 %v573, 0.70710677
        %v580 = vmul.f32 %v574, 0.70710677
        %v581 = vmul.f32 %v578, %v578
        %v582 = vmin.f32 16.0, %v581
        %v583 = vmul.f32 %v582, 2.1237322e-06
        %v584 = vadd.f32 %v583, 0.00028619796
        %v585 = vmul.f32 %v582, %v584
        %v586 = vadd.f32 %v585, 0.0036580483
        %v587 = vmul.f32 %v582, %v586
        %v588 = vadd.f32 %v587, 0.05243302
        %v589 = vmul.f32 %v582, %v588
        %v590 = vadd.f32 %v589, 0.18741608
        %v591 = vmul.f32 %v582, %v590
        %v592 = vadd.f32 %v591, 1.1283791
        %v593 = vmul.f32 %v578, %v592
        %v594 = vmul.f32 %v582, 3.8918573e-05
        %v595 = vadd.f32 %v594, 0.001143296
        %v596 = vmul.f32 %v582, %v595
        %v597 = vadd.f32 %v596, 0.014752088
        %v598 = vmul.f32 %v582, %v597
        %v599 = vadd.f32 %v598, 0.112945676
        %v600 = vmul.f32 %v582, %v599
        %v601 = vadd.f32 %v600, 0.4994258
        %v602 = vmul.f32 %v582, %v601
        %v603 = vadd.f32 %v602, 1.0
        %v604 = vrcp.pop %v603
        %v605 = vmul.f32 %v603, %v604
        %v606 = vsub.f32 1.0, %v605
        %v607 = vmul.f32 %v604, %v606
        %v608 = vadd.f32 %v604, %v607
        %vm609 = vweird.f32 %v603
        %vm610 = vweird.f32 %v604
        %vm611 = vmor %vm609, %vm610
        %v612 = vsel %vm611, %v604, %v608
        %v613 = vand.u32 2147483647, %v603
        %vm614 = vcmp.eq.f32.partialorder %v613, 8.507059e+37
        %v615 = vand.u32 %v603, 2147483648
        %v616 = vor.u32 1.1754944e-38, %v615
        %v617 = vsel %vm614, %v616, %v612
        %v618 = vmul.f32 %v593, %v617
        %v619 = vmin.f32 %v618, 1.0
        %v620 = vmax.f32 %v619, -1.0
        %v621 = vmul.f32 %v579, %v579
        %v622 = vmin.f32 16.0, %v621
        %v623 = vmul.f32 %v622, 2.1237322e-06
        %v624 = vadd.f32 %v623, 0.00028619796
        %v625 = vmul.f32 %v622, %v624
        %v626 = vadd.f32 %v625, 0.0036580483
        %v627 = vmul.f32 %v622, %v626
        %v628 = vadd.f32 %v627, 0.05243302
        %v629 = vmul.f32 %v622, %v628
        %v630 = vadd.f32 %v629, 0.18741608
        %v631 = vmul.f32 %v622, %v630
        %v632 = vadd.f32 %v631, 1.1283791
        %v633 = vmul.f32 %v579, %v632
        %v634 = vmul.f32 %v622, 3.8918573e-05
        %v635 = vadd.f32 %v634, 0.001143296
        %v636 = vmul.f32 %v622, %v635
        %v637 = vadd.f32 %v636, 0.014752088
        %v638 = vmul.f32 %v622, %v637
        %v639 = vadd.f32 %v638, 0.112945676
        %v640 = vmul.f32 %v622, %v639
        %v641 = vadd.f32 %v640, 0.4994258
        %v642 = vmul.f32 %v622, %v641
        %v643 = vadd.f32 %v642, 1.0
        %v644 = vrcp.pop %v643
        %v645 = vmul.f32 %v643, %v644
        %v646 = vsub.f32 1.0, %v645
        %v647 = vmul.f32 %v644, %v646
        %v648 = vadd.f32 %v644, %v647
        %vm649 = vweird.f32 %v643
        %vm650 = vweird.f32 %v644
        %vm651 = vmor %vm649, %vm650
        %v652 = vsel %vm651, %v644, %v648
        %v653 = vand.u32 2147483647, %v643
        %vm654 = vcmp.eq.f32.partialorder %v653, 8.507059e+37
        %v655 = vand.u32 %v643, 2147483648
        %v656 = vor.u32 1.1754944e-38, %v655
        %v657 = vsel %vm654, %v656, %v652
        %v658 = vmul.f32 %v633, %v657
        %v659 = vmin.f32 %v658, 1.0
        %v660 = vmax.f32 %v659, -1.0
        %v661 = vmul.f32 %v580, %v580
        %v662 = vmin.f32 16.0, %v661
        %v663 = vmul.f32 %v662, 2.1237322e-06
        %v664 = vadd.f32 %v663, 0.00028619796
        %v665 = vmul.f32 %v662, %v664
        %v666 = vadd.f32 %v665, 0.0036580483
        %v667 = vmul.f32 %v662, %v666
        %v668 = vadd.f32 %v667, 0.05243302
        %v669 = vmul.f32 %v662, %v668
        %v670 = vadd.f32 %v669, 0.18741608
        %v671 = vmul.f32 %v662, %v670
        %v672 = vadd.f32 %v671, 1.1283791
        %v673 = vmul.f32 %v580, %v672
        %v674 = vmul.f32 %v662, 3.8918573e-05
        %v675 = vadd.f32 %v674, 0.001143296
        %v676 = vmul.f32 %v662, %v675
        %v677 = vadd.f32 %v676, 0.014752088
        %v678 = vmul.f32 %v662, %v677
        %v679 = vadd.f32 %v678, 0.112945676
        %v680 = vmul.f32 %v662, %v679
        %v681 = vadd.f32 %v680, 0.4994258
        %v682 = vmul.f32 %v662, %v681
        %v683 = vadd.f32 %v682, 1.0
        %v684 = vrcp.pop %v683
        %v685 = vmul.f32 %v683, %v684
        %v686 = vsub.f32 1.0, %v685
        %v687 = vmul.f32 %v684, %v686
        %v688 = vadd.f32 %v684, %v687
        %vm689 = vweird.f32 %v683
        %vm690 = vweird.f32 %v684
        %vm691 = vmor %vm689, %vm690
        %v692 = vsel %vm691, %v684, %v688
        %v693 = vand.u32 2147483647, %v683
        %vm694 = vcmp.eq.f32.partialorder %v693, 8.507059e+37
        %v695 = vand.u32 %v683, 2147483648
        %v696 = vor.u32 1.1754944e-38, %v695
        %v697 = vsel %vm694, %v696, %v692
        %v698 = vmul.f32 %v673, %v697
        %v699 = vmin.f32 %v698, 1.0
        %v700 = vmax.f32 %v699, -1.0
        %v701 = vadd.f32 %v620, 1.0
        %v702 = vadd.f32 %v660, 1.0
        %v703 = vadd.f32 %v700, 1.0
        %v704 = vmul.f32 %v575, %v701
        %v705 = vmul.f32 %v576, %v702
        %v706 = vmul.f32 %v577, %v703
        %v707 = vld [vmem:[%s4] sm:$0xff]
        %v708 = vld [vmem:[%s4 + $0x8] sm:$0xff]
        %v709 = vld [vmem:[%s4 + $0x10] sm:$0xf]
        %v710 = vld [vmem:[%s5] sm:$0xff]
        %v711 = vld [vmem:[%s5 + $0x8] sm:$0xff]
        %v712 = vld [vmem:[%s5 + $0x10] sm:$0xf]
        %714 = vset.pattern.permute.xlu0 0
        %715 = vperm.xlu0 %714, %v710
        %v716 = vpop.permute.xlu0 %715
        %719 = vset.pattern.permute.xlu0 0
        %720 = vperm.xlu0 %719, %v711
        %v721 = vpop.permute.xlu0 %720
        %724 = vset.pattern.permute.xlu0 0
        %725 = vperm.xlu0 %724, %v712
        %v726 = vpop.permute.xlu0 %725
        %v729 = vsel %vm482, %v707, 0
        %v732 = vsel %vm482, %v708, 0
        %v735 = vsel %vm482, %v709, 0
        %v738 = vsel %vm489, %v706, 0
        %740 = vmatpush.msra.mxu0 0.0
        %741 = vmatpush.msra.mxu0 0.0
        %742 = vmatpush.msra.mxu0 0.0
        %743 = vmatpush.msra.mxu0 0.0
        %744 = vmatpush.msra.mxu0 0.0
        %745 = vmatpush.msra.mxu0 0.0
        %746 = vmatpush.msra.mxu0 0.0
        %747 = vmatpush.msra.mxu0 0.0
        %748 = vmatpush.msra.mxu0 0.0
        %749 = vmatpush.msra.mxu0 0.0
        %750 = vmatpush.msra.mxu0 0.0
        %751 = vmatpush.msra.mxu0 0.0
        %752 = vmatpush.msra.mxu0 0.0
        %753 = vmatpush.msra.mxu0 %v738
        %754 = vmatpush.msra.mxu0 %v705
        %755 = vmatpush.msra.mxu0 %v704
        %756 = vmatmul.f32.gmra.mxu0 %v729
        %v757 = vpop.f32.mrf.mxu0
        %v758 = vadd.f32 %v716, %v757
        %759 = vmatmul.f32.gmra.mxu0 %v732
        %v760 = vpop.f32.mrf.mxu0
        %v761 = vadd.f32 %v721, %v760
        %762 = vmatmul.f32.gmra.mxu0 %v735
        %v763 = vpop.f32.mrf.mxu0
        %v764 = vadd.f32 %v726, %v763
        %765 = vdwg.mxu0
        %v766 = vmul.f32 %v758, 0.5
        %v767 = vmul.f32 %v761, 0.5
        %v768 = vmul.f32 %v764, 0.5
        %v769 = vmul.f32 %v758, 0.70710677
        %v770 = vmul.f32 %v761, 0.70710677
        %v771 = vmul.f32 %v764, 0.70710677
        %v772 = vmul.f32 %v769, %v769
        %v773 = vmin.f32 16.0, %v772
        %v774 = vmul.f32 %v773, 2.1237322e-06
        %v775 = vadd.f32 %v774, 0.00028619796
        %v776 = vmul.f32 %v773, %v775
        %v777 = vadd.f32 %v776, 0.0036580483
        %v778 = vmul.f32 %v773, %v777
        %v779 = vadd.f32 %v778, 0.05243302
        %v780 = vmul.f32 %v773, %v779
        %v781 = vadd.f32 %v780, 0.18741608
        %v782 = vmul.f32 %v773, %v781
        %v783 = vadd.f32 %v782, 1.1283791
        %v784 = vmul.f32 %v769, %v783
        %v785 = vmul.f32 %v773, 3.8918573e-05
        %v786 = vadd.f32 %v785, 0.001143296
        %v787 = vmul.f32 %v773, %v786
        %v788 = vadd.f32 %v787, 0.014752088
        %v789 = vmul.f32 %v773, %v788
        %v790 = vadd.f32 %v789, 0.112945676
        %v791 = vmul.f32 %v773, %v790
        %v792 = vadd.f32 %v791, 0.4994258
        %v793 = vmul.f32 %v773, %v792
        %v794 = vadd.f32 %v793, 1.0
        %v795 = vrcp.pop %v794
        %v796 = vmul.f32 %v794, %v795
        %v797 = vsub.f32 1.0, %v796
        %v798 = vmul.f32 %v795, %v797
        %v799 = vadd.f32 %v795, %v798
        %vm800 = vweird.f32 %v794
        %vm801 = vweird.f32 %v795
        %vm802 = vmor %vm800, %vm801
        %v803 = vsel %vm802, %v795, %v799
        %v804 = vand.u32 2147483647, %v794
        %vm805 = vcmp.eq.f32.partialorder %v804, 8.507059e+37
        %v806 = vand.u32 %v794, 2147483648
        %v807 = vor.u32 1.1754944e-38, %v806
        %v808 = vsel %vm805, %v807, %v803
        %v809 = vmul.f32 %v784, %v808
        %v810 = vmin.f32 %v809, 1.0
        %v811 = vmax.f32 %v810, -1.0
        %v812 = vmul.f32 %v770, %v770
        %v813 = vmin.f32 16.0, %v812
        %v814 = vmul.f32 %v813, 2.1237322e-06
        %v815 = vadd.f32 %v814, 0.00028619796
        %v816 = vmul.f32 %v813, %v815
        %v817 = vadd.f32 %v816, 0.0036580483
        %v818 = vmul.f32 %v813, %v817
        %v819 = vadd.f32 %v818, 0.05243302
        %v820 = vmul.f32 %v813, %v819
        %v821 = vadd.f32 %v820, 0.18741608
        %v822 = vmul.f32 %v813, %v821
        %v823 = vadd.f32 %v822, 1.1283791
        %v824 = vmul.f32 %v770, %v823
        %v825 = vmul.f32 %v813, 3.8918573e-05
        %v826 = vadd.f32 %v825, 0.001143296
        %v827 = vmul.f32 %v813, %v826
        %v828 = vadd.f32 %v827, 0.014752088
        %v829 = vmul.f32 %v813, %v828
        %v830 = vadd.f32 %v829, 0.112945676
        %v831 = vmul.f32 %v813, %v830
        %v832 = vadd.f32 %v831, 0.4994258
        %v833 = vmul.f32 %v813, %v832
        %v834 = vadd.f32 %v833, 1.0
        %v835 = vrcp.pop %v834
        %v836 = vmul.f32 %v834, %v835
        %v837 = vsub.f32 1.0, %v836
        %v838 = vmul.f32 %v835, %v837
        %v839 = vadd.f32 %v835, %v838
        %vm840 = vweird.f32 %v834
        %vm841 = vweird.f32 %v835
        %vm842 = vmor %vm840, %vm841
        %v843 = vsel %vm842, %v835, %v839
        %v844 = vand.u32 2147483647, %v834
        %vm845 = vcmp.eq.f32.partialorder %v844, 8.507059e+37
        %v846 = vand.u32 %v834, 2147483648
        %v847 = vor.u32 1.1754944e-38, %v846
        %v848 = vsel %vm845, %v847, %v843
        %v849 = vmul.f32 %v824, %v848
        %v850 = vmin.f32 %v849, 1.0
        %v851 = vmax.f32 %v850, -1.0
        %v852 = vmul.f32 %v771, %v771
        %v853 = vmin.f32 16.0, %v852
        %v854 = vmul.f32 %v853, 2.1237322e-06
        %v855 = vadd.f32 %v854, 0.00028619796
        %v856 = vmul.f32 %v853, %v855
        %v857 = vadd.f32 %v856, 0.0036580483
        %v858 = vmul.f32 %v853, %v857
        %v859 = vadd.f32 %v858, 0.05243302
        %v860 = vmul.f32 %v853, %v859
        %v861 = vadd.f32 %v860, 0.18741608
        %v862 = vmul.f32 %v853, %v861
        %v863 = vadd.f32 %v862, 1.1283791
        %v864 = vmul.f32 %v771, %v863
        %v865 = vmul.f32 %v853, 3.8918573e-05
        %v866 = vadd.f32 %v865, 0.001143296
        %v867 = vmul.f32 %v853, %v866
        %v868 = vadd.f32 %v867, 0.014752088
        %v869 = vmul.f32 %v853, %v868
        %v870 = vadd.f32 %v869, 0.112945676
        %v871 = vmul.f32 %v853, %v870
        %v872 = vadd.f32 %v871, 0.4994258
        %v873 = vmul.f32 %v853, %v872
        %v874 = vadd.f32 %v873, 1.0
        %v875 = vrcp.pop %v874
        %v876 = vmul.f32 %v874, %v875
        %v877 = vsub.f32 1.0, %v876
        %v878 = vmul.f32 %v875, %v877
        %v879 = vadd.f32 %v875, %v878
        %vm880 = vweird.f32 %v874
        %vm881 = vweird.f32 %v875
        %vm882 = vmor %vm880, %vm881
        %v883 = vsel %vm882, %v875, %v879
        %v884 = vand.u32 2147483647, %v874
        %vm885 = vcmp.eq.f32.partialorder %v884, 8.507059e+37
        %v886 = vand.u32 %v874, 2147483648
        %v887 = vor.u32 1.1754944e-38, %v886
        %v888 = vsel %vm885, %v887, %v883
        %v889 = vmul.f32 %v864, %v888
        %v890 = vmin.f32 %v889, 1.0
        %v891 = vmax.f32 %v890, -1.0
        %v892 = vadd.f32 %v811, 1.0
        %v893 = vadd.f32 %v851, 1.0
        %v894 = vadd.f32 %v891, 1.0
        %v895 = vmul.f32 %v766, %v892
        %v896 = vmul.f32 %v767, %v893
        %v897 = vmul.f32 %v768, %v894
        %v898 = vld [vmem:[%s6] sm:$0xff]
        %v899 = vld [vmem:[%s6 + $0x8] sm:$0xff]
        %v900 = vld [vmem:[%s6 + $0x10] sm:$0xff]
        %v901 = vld [vmem:[%s6 + $0x18] sm:$0xff]
        %v902 = vld [vmem:[%s6 + $0x20] sm:$0xff]
        %v903 = vld [vmem:[%s6 + $0x28] sm:$0xff]
        %v904 = vld [vmem:[%s6 + $0x30] sm:$0xff]
        %v905 = vld [vmem:[%s6 + $0x38] sm:$0xff]
        %v906 = vld [vmem:[%s6 + $0x40] sm:$0xff]
        %v907 = vld [vmem:[%s6 + $0x48] sm:$0xff]
        %v908 = vld [vmem:[%s6 + $0x50] sm:$0xff]
        %v909 = vld [vmem:[%s6 + $0x58] sm:$0xff]
        %v910 = vld [vmem:[%s6 + $0x60] sm:$0xff]
        %v911 = vld [vmem:[%s6 + $0x68] sm:$0xff]
        %v912 = vld [vmem:[%s6 + $0x70] sm:$0xff]
        %v913 = vld [vmem:[%s6 + $0x78] sm:$0xff]
        %v914 = vld [vmem:[%s7] sm:$0xff]
        %v915 = vld [vmem:[%s7 + $0x8] sm:$0xff]
        %v916 = vld [vmem:[%s7 + $0x10] sm:$0xff]
        %v917 = vld [vmem:[%s7 + $0x18] sm:$0xff]
        %v918 = vld [vmem:[%s7 + $0x20] sm:$0xff]
        %v919 = vld [vmem:[%s7 + $0x28] sm:$0xff]
        %v920 = vld [vmem:[%s7 + $0x30] sm:$0xff]
        %v921 = vld [vmem:[%s7 + $0x38] sm:$0xff]
        %v922 = vld [vmem:[%s7 + $0x40] sm:$0xff]
        %v923 = vld [vmem:[%s7 + $0x48] sm:$0xff]
        %v924 = vld [vmem:[%s7 + $0x50] sm:$0xff]
        %v925 = vld [vmem:[%s7 + $0x58] sm:$0xff]
        %v926 = vld [vmem:[%s7 + $0x60] sm:$0xff]
        %v927 = vld [vmem:[%s7 + $0x68] sm:$0xff]
        %v928 = vld [vmem:[%s7 + $0x70] sm:$0xff]
        %v929 = vld [vmem:[%s7 + $0x78] sm:$0xff]
        %931 = vset.pattern.permute.xlu0 0
        %932 = vperm.xlu0 %931, %v914
        %v933 = vpop.permute.xlu0 %932
        %936 = vset.pattern.permute.xlu0 0
        %937 = vperm.xlu0 %936, %v915
        %v938 = vpop.permute.xlu0 %937
        %941 = vset.pattern.permute.xlu0 0
        %942 = vperm.xlu0 %941, %v916
        %v943 = vpop.permute.xlu0 %942
        %946 = vset.pattern.permute.xlu0 0
        %947 = vperm.xlu0 %946, %v917
        %v948 = vpop.permute.xlu0 %947
        %951 = vset.pattern.permute.xlu0 0
        %952 = vperm.xlu0 %951, %v918
        %v953 = vpop.permute.xlu0 %952
        %956 = vset.pattern.permute.xlu0 0
        %957 = vperm.xlu0 %956, %v919
        %v958 = vpop.permute.xlu0 %957
        %961 = vset.pattern.permute.xlu0 0
        %962 = vperm.xlu0 %961, %v920
        %v963 = vpop.permute.xlu0 %962
        %966 = vset.pattern.permute.xlu0 0
        %967 = vperm.xlu0 %966, %v921
        %v968 = vpop.permute.xlu0 %967
        %971 = vset.pattern.permute.xlu0 0
        %972 = vperm.xlu0 %971, %v922
        %v973 = vpop.permute.xlu0 %972
        %976 = vset.pattern.permute.xlu0 0
        %977 = vperm.xlu0 %976, %v923
        %v978 = vpop.permute.xlu0 %977
        %981 = vset.pattern.permute.xlu0 0
        %982 = vperm.xlu0 %981, %v924
        %v983 = vpop.permute.xlu0 %982
        %986 = vset.pattern.permute.xlu0 0
        %987 = vperm.xlu0 %986, %v925
        %v988 = vpop.permute.xlu0 %987
        %991 = vset.pattern.permute.xlu0 0
        %992 = vperm.xlu0 %991, %v926
        %v993 = vpop.permute.xlu0 %992
        %996 = vset.pattern.permute.xlu0 0
        %997 = vperm.xlu0 %996, %v927
        %v998 = vpop.permute.xlu0 %997
        %1001 = vset.pattern.permute.xlu0 0
        %1002 = vperm.xlu0 %1001, %v928
        %v1003 = vpop.permute.xlu0 %1002
        %1006 = vset.pattern.permute.xlu0 0
        %1007 = vperm.xlu0 %1006, %v929
        %v1008 = vpop.permute.xlu0 %1007
        %v1011 = vsel %vm482, %v898, 0
        %v1014 = vsel %vm482, %v899, 0
        %v1017 = vsel %vm482, %v900, 0
        %v1020 = vsel %vm482, %v901, 0
        %v1023 = vsel %vm482, %v902, 0
        %v1026 = vsel %vm482, %v903, 0
        %v1029 = vsel %vm482, %v904, 0
        %v1032 = vsel %vm482, %v905, 0
        %v1035 = vsel %vm482, %v906, 0
        %v1038 = vsel %vm482, %v907, 0
        %v1041 = vsel %vm482, %v908, 0
        %v1044 = vsel %vm482, %v909, 0
        %v1047 = vsel %vm482, %v910, 0
        %v1050 = vsel %vm482, %v911, 0
        %v1053 = vsel %vm482, %v912, 0
        %v1056 = vsel %vm482, %v913, 0
        %v1059 = vsel %vm489, %v897, 0
        %1061 = vmatpush.msra.mxu0 0.0
        %1062 = vmatpush.msra.mxu0 0.0
        %1063 = vmatpush.msra.mxu0 0.0
        %1064 = vmatpush.msra.mxu0 0.0
        %1065 = vmatpush.msra.mxu0 0.0
        %1066 = vmatpush.msra.mxu0 0.0
        %1067 = vmatpush.msra.mxu0 0.0
        %1068 = vmatpush.msra.mxu0 0.0
        %1069 = vmatpush.msra.mxu0 0.0
        %1070 = vmatpush.msra.mxu0 0.0
        %1071 = vmatpush.msra.mxu0 0.0
        %1072 = vmatpush.msra.mxu0 0.0
        %1073 = vmatpush.msra.mxu0 0.0
        %1074 = vmatpush.msra.mxu0 %v1059
        %1075 = vmatpush.msra.mxu0 %v896
        %1076 = vmatpush.msra.mxu0 %v895
        %1077 = vmatmul.f32.gmra.mxu0 %v1011
        %v1078 = vpop.f32.mrf.mxu0
        %v1079 = vadd.f32 %v933, %v1078
        %1080 = vmatmul.f32.gmra.mxu0 %v1014
        %v1081 = vpop.f32.mrf.mxu0
        %v1082 = vadd.f32 %v938, %v1081
        %1083 = vmatmul.f32.gmra.mxu0 %v1017
        %v1084 = vpop.f32.mrf.mxu0
        %v1085 = vadd.f32 %v943, %v1084
        %1086 = vmatmul.f32.gmra.mxu0 %v1020
        %v1087 = vpop.f32.mrf.mxu0
        %v1088 = vadd.f32 %v948, %v1087
        %1089 = vmatmul.f32.gmra.mxu0 %v1023
        %v1090 = vpop.f32.mrf.mxu0
        %v1091 = vadd.f32 %v953, %v1090
        %1092 = vmatmul.f32.gmra.mxu0 %v1026
        %v1093 = vpop.f32.mrf.mxu0
        %v1094 = vadd.f32 %v958, %v1093
        %1095 = vmatmul.f32.gmra.mxu0 %v1029
        %v1096 = vpop.f32.mrf.mxu0
        %v1097 = vadd.f32 %v963, %v1096
        %1098 = vmatmul.f32.gmra.mxu0 %v1032
        %v1099 = vpop.f32.mrf.mxu0
        %v1100 = vadd.f32 %v968, %v1099
        %1101 = vmatmul.f32.gmra.mxu0 %v1035
        %v1102 = vpop.f32.mrf.mxu0
        %v1103 = vadd.f32 %v973, %v1102
        %1104 = vmatmul.f32.gmra.mxu0 %v1038
        %v1105 = vpop.f32.mrf.mxu0
        %v1106 = vadd.f32 %v978, %v1105
        %1107 = vmatmul.f32.gmra.mxu0 %v1041
        %v1108 = vpop.f32.mrf.mxu0
        %v1109 = vadd.f32 %v983, %v1108
        %1110 = vmatmul.f32.gmra.mxu0 %v1044
        %v1111 = vpop.f32.mrf.mxu0
        %v1112 = vadd.f32 %v988, %v1111
        %1113 = vmatmul.f32.gmra.mxu0 %v1047
        %v1114 = vpop.f32.mrf.mxu0
        %v1115 = vadd.f32 %v993, %v1114
        %1116 = vmatmul.f32.gmra.mxu0 %v1050
        %v1117 = vpop.f32.mrf.mxu0
        %v1118 = vadd.f32 %v998, %v1117
        %1119 = vmatmul.f32.gmra.mxu0 %v1053
        %v1120 = vpop.f32.mrf.mxu0
        %v1121 = vadd.f32 %v1003, %v1120
        %1122 = vmatmul.f32.gmra.mxu0 %v1056
        %v1123 = vpop.f32.mrf.mxu0
        %v1124 = vadd.f32 %v1008, %v1123
        %1125 = vdwg.mxu0
        %v1126 = vmul.f32 %v1079, 0.5
        %v1127 = vmul.f32 %v1082, 0.5
        %v1128 = vmul.f32 %v1085, 0.5
        %v1129 = vmul.f32 %v1088, 0.5
        %v1130 = vmul.f32 %v1091, 0.5
        %v1131 = vmul.f32 %v1094, 0.5
        %v1132 = vmul.f32 %v1097, 0.5
        %v1133 = vmul.f32 %v1100, 0.5
        %v1134 = vmul.f32 %v1103, 0.5
        %v1135 = vmul.f32 %v1106, 0.5
        %v1136 = vmul.f32 %v1109, 0.5
        %v1137 = vmul.f32 %v1112, 0.5
        %v1138 = vmul.f32 %v1115, 0.5
        %v1139 = vmul.f32 %v1118, 0.5
        %v1140 = vmul.f32 %v1121, 0.5
        %v1141 = vmul.f32 %v1124, 0.5
        %v1142 = vmul.f32 %v1079, 0.70710677
        %v1143 = vmul.f32 %v1082, 0.70710677
        %v1144 = vmul.f32 %v1085, 0.70710677
        %v1145 = vmul.f32 %v1088, 0.70710677
        %v1146 = vmul.f32 %v1091, 0.70710677
        %v1147 = vmul.f32 %v1094, 0.70710677
        %v1148 = vmul.f32 %v1097, 0.70710677
        %v1149 = vmul.f32 %v1100, 0.70710677
        %v1150 = vmul.f32 %v1103, 0.70710677
        %v1151 = vmul.f32 %v1106, 0.70710677
        %v1152 = vmul.f32 %v1109, 0.70710677
        %v1153 = vmul.f32 %v1112, 0.70710677
        %v1154 = vmul.f32 %v1115, 0.70710677
        %v1155 = vmul.f32 %v1118, 0.70710677
        %v1156 = vmul.f32 %v1121, 0.70710677
        %v1157 = vmul.f32 %v1124, 0.70710677
        %v1158 = vmul.f32 %v1142, %v1142
        %v1159 = vmin.f32 16.0, %v1158
        %v1160 = vmul.f32 %v1159, 2.1237322e-06
        %v1161 = vadd.f32 %v1160, 0.00028619796
        %v1162 = vmul.f32 %v1159, %v1161
        %v1163 = vadd.f32 %v1162, 0.0036580483
        %v1164 = vmul.f32 %v1159, %v1163
        %v1165 = vadd.f32 %v1164, 0.05243302
        %v1166 = vmul.f32 %v1159, %v1165
        %v1167 = vadd.f32 %v1166, 0.18741608
        %v1168 = vmul.f32 %v1159, %v1167
        %v1169 = vadd.f32 %v1168, 1.1283791
        %v1170 = vmul.f32 %v1142, %v1169
        %v1171 = vmul.f32 %v1159, 3.8918573e-05
        %v1172 = vadd.f32 %v1171, 0.001143296
        %v1173 = vmul.f32 %v1159, %v1172
        %v1174 = vadd.f32 %v1173, 0.014752088
        %v1175 = vmul.f32 %v1159, %v1174
        %v1176 = vadd.f32 %v1175, 0.112945676
        %v1177 = vmul.f32 %v1159, %v1176
        %v1178 = vadd.f32 %v1177, 0.4994258
        %v1179 = vmul.f32 %v1159, %v1178
        %v1180 = vadd.f32 %v1179, 1.0
        %v1181 = vrcp.pop %v1180
        %v1182 = vmul.f32 %v1180, %v1181
        %v1183 = vsub.f32 1.0, %v1182
        %v1184 = vmul.f32 %v1181, %v1183
        %v1185 = vadd.f32 %v1181, %v1184
        %vm1186 = vweird.f32 %v1180
        %vm1187 = vweird.f32 %v1181
        %vm1188 = vmor %vm1186, %vm1187
        %v1189 = vsel %vm1188, %v1181, %v1185
        %v1190 = vand.u32 2147483647, %v1180
        %vm1191 = vcmp.eq.f32.partialorder %v1190, 8.507059e+37
        %v1192 = vand.u32 %v1180, 2147483648
        %v1193 = vor.u32 1.1754944e-38, %v1192
        %v1194 = vsel %vm1191, %v1193, %v1189
        %v1195 = vmul.f32 %v1170, %v1194
        %v1196 = vmin.f32 %v1195, 1.0
        %v1197 = vmax.f32 %v1196, -1.0
        %v1198 = vmul.f32 %v1143, %v1143
        %v1199 = vmin.f32 16.0, %v1198
        %v1200 = vmul.f32 %v1199, 2.1237322e-06
        %v1201 = vadd.f32 %v1200, 0.00028619796
        %v1202 = vmul.f32 %v1199, %v1201
        %v1203 = vadd.f32 %v1202, 0.0036580483
        %v1204 = vmul.f32 %v1199, %v1203
        %v1205 = vadd.f32 %v1204, 0.05243302
        %v1206 = vmul.f32 %v1199, %v1205
        %v1207 = vadd.f32 %v1206, 0.18741608
        %v1208 = vmul.f32 %v1199, %v1207
        %v1209 = vadd.f32 %v1208, 1.1283791
        %v1210 = vmul.f32 %v1143, %v1209
        %v1211 = vmul.f32 %v1199, 3.8918573e-05
        %v1212 = vadd.f32 %v1211, 0.001143296
        %v1213 = vmul.f32 %v1199, %v1212
        %v1214 = vadd.f32 %v1213, 0.014752088
        %v1215 = vmul.f32 %v1199, %v1214
        %v1216 = vadd.f32 %v1215, 0.112945676
        %v1217 = vmul.f32 %v1199, %v1216
        %v1218 = vadd.f32 %v1217, 0.4994258
        %v1219 = vmul.f32 %v1199, %v1218
        %v1220 = vadd.f32 %v1219, 1.0
        %v1221 = vrcp.pop %v1220
        %v1222 = vmul.f32 %v1220, %v1221
        %v1223 = vsub.f32 1.0, %v1222
        %v1224 = vmul.f32 %v1221, %v1223
        %v1225 = vadd.f32 %v1221, %v1224
        %vm1226 = vweird.f32 %v1220
        %vm1227 = vweird.f32 %v1221
        %vm1228 = vmor %vm1226, %vm1227
        %v1229 = vsel %vm1228, %v1221, %v1225
        %v1230 = vand.u32 2147483647, %v1220
        %vm1231 = vcmp.eq.f32.partialorder %v1230, 8.507059e+37
        %v1232 = vand.u32 %v1220, 2147483648
        %v1233 = vor.u32 1.1754944e-38, %v1232
        %v1234 = vsel %vm1231, %v1233, %v1229
        %v1235 = vmul.f32 %v1210, %v1234
        %v1236 = vmin.f32 %v1235, 1.0
        %v1237 = vmax.f32 %v1236, -1.0
        %v1238 = vmul.f32 %v1144, %v1144
        %v1239 = vmin.f32 16.0, %v1238
        %v1240 = vmul.f32 %v1239, 2.1237322e-06
        %v1241 = vadd.f32 %v1240, 0.00028619796
        %v1242 = vmul.f32 %v1239, %v1241
        %v1243 = vadd.f32 %v1242, 0.0036580483
        %v1244 = vmul.f32 %v1239, %v1243
        %v1245 = vadd.f32 %v1244, 0.05243302
        %v1246 = vmul.f32 %v1239, %v1245
        %v1247 = vadd.f32 %v1246, 0.18741608
        %v1248 = vmul.f32 %v1239, %v1247
        %v1249 = vadd.f32 %v1248, 1.1283791
        %v1250 = vmul.f32 %v1144, %v1249
        %v1251 = vmul.f32 %v1239, 3.8918573e-05
        %v1252 = vadd.f32 %v1251, 0.001143296
        %v1253 = vmul.f32 %v1239, %v1252
        %v1254 = vadd.f32 %v1253, 0.014752088
        %v1255 = vmul.f32 %v1239, %v1254
        %v1256 = vadd.f32 %v1255, 0.112945676
        %v1257 = vmul.f32 %v1239, %v1256
        %v1258 = vadd.f32 %v1257, 0.4994258
        %v1259 = vmul.f32 %v1239, %v1258
        %v1260 = vadd.f32 %v1259, 1.0
        %v1261 = vrcp.pop %v1260
        %v1262 = vmul.f32 %v1260, %v1261
        %v1263 = vsub.f32 1.0, %v1262
        %v1264 = vmul.f32 %v1261, %v1263
        %v1265 = vadd.f32 %v1261, %v1264
        %vm1266 = vweird.f32 %v1260
        %vm1267 = vweird.f32 %v1261
        %vm1268 = vmor %vm1266, %vm1267
        %v1269 = vsel %vm1268, %v1261, %v1265
        %v1270 = vand.u32 2147483647, %v1260
        %vm1271 = vcmp.eq.f32.partialorder %v1270, 8.507059e+37
        %v1272 = vand.u32 %v1260, 2147483648
        %v1273 = vor.u32 1.1754944e-38, %v1272
        %v1274 = vsel %vm1271, %v1273, %v1269
        %v1275 = vmul.f32 %v1250, %v1274
        %v1276 = vmin.f32 %v1275, 1.0
        %v1277 = vmax.f32 %v1276, -1.0
        %v1278 = vmul.f32 %v1145, %v1145
        %v1279 = vmin.f32 16.0, %v1278
        %v1280 = vmul.f32 %v1279, 2.1237322e-06
        %v1281 = vadd.f32 %v1280, 0.00028619796
        %v1282 = vmul.f32 %v1279, %v1281
        %v1283 = vadd.f32 %v1282, 0.0036580483
        %v1284 = vmul.f32 %v1279, %v1283
        %v1285 = vadd.f32 %v1284, 0.05243302
        %v1286 = vmul.f32 %v1279, %v1285
        %v1287 = vadd.f32 %v1286, 0.18741608
        %v1288 = vmul.f32 %v1279, %v1287
        %v1289 = vadd.f32 %v1288, 1.1283791
        %v1290 = vmul.f32 %v1145, %v1289
        %v1291 = vmul.f32 %v1279, 3.8918573e-05
        %v1292 = vadd.f32 %v1291, 0.001143296
        %v1293 = vmul.f32 %v1279, %v1292
        %v1294 = vadd.f32 %v1293, 0.014752088
        %v1295 = vmul.f32 %v1279, %v1294
        %v1296 = vadd.f32 %v1295, 0.112945676
        %v1297 = vmul.f32 %v1279, %v1296
        %v1298 = vadd.f32 %v1297, 0.4994258
        %v1299 = vmul.f32 %v1279, %v1298
        %v1300 = vadd.f32 %v1299, 1.0
        %v1301 = vrcp.pop %v1300
        %v1302 = vmul.f32 %v1300, %v1301
        %v1303 = vsub.f32 1.0, %v1302
        %v1304 = vmul.f32 %v1301, %v1303
        %v1305 = vadd.f32 %v1301, %v1304
        %vm1306 = vweird.f32 %v1300
        %vm1307 = vweird.f32 %v1301
        %vm1308 = vmor %vm1306, %vm1307
        %v1309 = vsel %vm1308, %v1301, %v1305
        %v1310 = vand.u32 2147483647, %v1300
        %vm1311 = vcmp.eq.f32.partialorder %v1310, 8.507059e+37
        %v1312 = vand.u32 %v1300, 2147483648
        %v1313 = vor.u32 1.1754944e-38, %v1312
        %v1314 = vsel %vm1311, %v1313, %v1309
        %v1315 = vmul.f32 %v1290, %v1314
        %v1316 = vmin.f32 %v1315, 1.0
        %v1317 = vmax.f32 %v1316, -1.0
        %v1318 = vmul.f32 %v1146, %v1146
        %v1319 = vmin.f32 16.0, %v1318
        %v1320 = vmul.f32 %v1319, 2.1237322e-06
        %v1321 = vadd.f32 %v1320, 0.00028619796
        %v1322 = vmul.f32 %v1319, %v1321
        %v1323 = vadd.f32 %v1322, 0.0036580483
        %v1324 = vmul.f32 %v1319, %v1323
        %v1325 = vadd.f32 %v1324, 0.05243302
        %v1326 = vmul.f32 %v1319, %v1325
        %v1327 = vadd.f32 %v1326, 0.18741608
        %v1328 = vmul.f32 %v1319, %v1327
        %v1329 = vadd.f32 %v1328, 1.1283791
        %v1330 = vmul.f32 %v1146, %v1329
        %v1331 = vmul.f32 %v1319, 3.8918573e-05
        %v1332 = vadd.f32 %v1331, 0.001143296
        %v1333 = vmul.f32 %v1319, %v1332
        %v1334 = vadd.f32 %v1333, 0.014752088
        %v1335 = vmul.f32 %v1319, %v1334
        %v1336 = vadd.f32 %v1335, 0.112945676
        %v1337 = vmul.f32 %v1319, %v1336
        %v1338 = vadd.f32 %v1337, 0.4994258
        %v1339 = vmul.f32 %v1319, %v1338
        %v1340 = vadd.f32 %v1339, 1.0
        %v1341 = vrcp.pop %v1340
        %v1342 = vmul.f32 %v1340, %v1341
        %v1343 = vsub.f32 1.0, %v1342
        %v1344 = vmul.f32 %v1341, %v1343
        %v1345 = vadd.f32 %v1341, %v1344
        %vm1346 = vweird.f32 %v1340
        %vm1347 = vweird.f32 %v1341
        %vm1348 = vmor %vm1346, %vm1347
        %v1349 = vsel %vm1348, %v1341, %v1345
        %v1350 = vand.u32 2147483647, %v1340
        %vm1351 = vcmp.eq.f32.partialorder %v1350, 8.507059e+37
        %v1352 = vand.u32 %v1340, 2147483648
        %v1353 = vor.u32 1.1754944e-38, %v1352
        %v1354 = vsel %vm1351, %v1353, %v1349
        %v1355 = vmul.f32 %v1330, %v1354
        %v1356 = vmin.f32 %v1355, 1.0
        %v1357 = vmax.f32 %v1356, -1.0
        %v1358 = vmul.f32 %v1147, %v1147
        %v1359 = vmin.f32 16.0, %v1358
        %v1360 = vmul.f32 %v1359, 2.1237322e-06
        %v1361 = vadd.f32 %v1360, 0.00028619796
        %v1362 = vmul.f32 %v1359, %v1361
        %v1363 = vadd.f32 %v1362, 0.0036580483
        %v1364 = vmul.f32 %v1359, %v1363
        %v1365 = vadd.f32 %v1364, 0.05243302
        %v1366 = vmul.f32 %v1359, %v1365
        %v1367 = vadd.f32 %v1366, 0.18741608
        %v1368 = vmul.f32 %v1359, %v1367
        %v1369 = vadd.f32 %v1368, 1.1283791
        %v1370 = vmul.f32 %v1147, %v1369
        %v1371 = vmul.f32 %v1359, 3.8918573e-05
        %v1372 = vadd.f32 %v1371, 0.001143296
        %v1373 = vmul.f32 %v1359, %v1372
        %v1374 = vadd.f32 %v1373, 0.014752088
        %v1375 = vmul.f32 %v1359, %v1374
        %v1376 = vadd.f32 %v1375, 0.112945676
        %v1377 = vmul.f32 %v1359, %v1376
        %v1378 = vadd.f32 %v1377, 0.4994258
        %v1379 = vmul.f32 %v1359, %v1378
        %v1380 = vadd.f32 %v1379, 1.0
        %v1381 = vrcp.pop %v1380
        %v1382 = vmul.f32 %v1380, %v1381
        %v1383 = vsub.f32 1.0, %v1382
        %v1384 = vmul.f32 %v1381, %v1383
        %v1385 = vadd.f32 %v1381, %v1384
        %vm1386 = vweird.f32 %v1380
        %vm1387 = vweird.f32 %v1381
        %vm1388 = vmor %vm1386, %vm1387
        %v1389 = vsel %vm1388, %v1381, %v1385
        %v1390 = vand.u32 2147483647, %v1380
        %vm1391 = vcmp.eq.f32.partialorder %v1390, 8.507059e+37
        %v1392 = vand.u32 %v1380, 2147483648
        %v1393 = vor.u32 1.1754944e-38, %v1392
        %v1394 = vsel %vm1391, %v1393, %v1389
        %v1395 = vmul.f32 %v1370, %v1394
        %v1396 = vmin.f32 %v1395, 1.0
        %v1397 = vmax.f32 %v1396, -1.0
        %v1398 = vmul.f32 %v1148, %v1148
        %v1399 = vmin.f32 16.0, %v1398
        %v1400 = vmul.f32 %v1399, 2.1237322e-06
        %v1401 = vadd.f32 %v1400, 0.00028619796
        %v1402 = vmul.f32 %v1399, %v1401
        %v1403 = vadd.f32 %v1402, 0.0036580483
        %v1404 = vmul.f32 %v1399, %v1403
        %v1405 = vadd.f32 %v1404, 0.05243302
        %v1406 = vmul.f32 %v1399, %v1405
        %v1407 = vadd.f32 %v1406, 0.18741608
        %v1408 = vmul.f32 %v1399, %v1407
        %v1409 = vadd.f32 %v1408, 1.1283791
        %v1410 = vmul.f32 %v1148, %v1409
        %v1411 = vmul.f32 %v1399, 3.8918573e-05
        %v1412 = vadd.f32 %v1411, 0.001143296
        %v1413 = vmul.f32 %v1399, %v1412
        %v1414 = vadd.f32 %v1413, 0.014752088
        %v1415 = vmul.f32 %v1399, %v1414
        %v1416 = vadd.f32 %v1415, 0.112945676
        %v1417 = vmul.f32 %v1399, %v1416
        %v1418 = vadd.f32 %v1417, 0.4994258
        %v1419 = vmul.f32 %v1399, %v1418
        %v1420 = vadd.f32 %v1419, 1.0
        %v1421 = vrcp.pop %v1420
        %v1422 = vmul.f32 %v1420, %v1421
        %v1423 = vsub.f32 1.0, %v1422
        %v1424 = vmul.f32 %v1421, %v1423
        %v1425 = vadd.f32 %v1421, %v1424
        %vm1426 = vweird.f32 %v1420
        %vm1427 = vweird.f32 %v1421
        %vm1428 = vmor %vm1426, %vm1427
        %v1429 = vsel %vm1428, %v1421, %v1425
        %v1430 = vand.u32 2147483647, %v1420
        %vm1431 = vcmp.eq.f32.partialorder %v1430, 8.507059e+37
        %v1432 = vand.u32 %v1420, 2147483648
        %v1433 = vor.u32 1.1754944e-38, %v1432
        %v1434 = vsel %vm1431, %v1433, %v1429
        %v1435 = vmul.f32 %v1410, %v1434
        %v1436 = vmin.f32 %v1435, 1.0
        %v1437 = vmax.f32 %v1436, -1.0
        %v1438 = vmul.f32 %v1149, %v1149
        %v1439 = vmin.f32 16.0, %v1438
        %v1440 = vmul.f32 %v1439, 2.1237322e-06
        %v1441 = vadd.f32 %v1440, 0.00028619796
        %v1442 = vmul.f32 %v1439, %v1441
        %v1443 = vadd.f32 %v1442, 0.0036580483
        %v1444 = vmul.f32 %v1439, %v1443
        %v1445 = vadd.f32 %v1444, 0.05243302
        %v1446 = vmul.f32 %v1439, %v1445
        %v1447 = vadd.f32 %v1446, 0.18741608
        %v1448 = vmul.f32 %v1439, %v1447
        %v1449 = vadd.f32 %v1448, 1.1283791
        %v1450 = vmul.f32 %v1149, %v1449
        %v1451 = vmul.f32 %v1439, 3.8918573e-05
        %v1452 = vadd.f32 %v1451, 0.001143296
        %v1453 = vmul.f32 %v1439, %v1452
        %v1454 = vadd.f32 %v1453, 0.014752088
        %v1455 = vmul.f32 %v1439, %v1454
        %v1456 = vadd.f32 %v1455, 0.112945676
        %v1457 = vmul.f32 %v1439, %v1456
        %v1458 = vadd.f32 %v1457, 0.4994258
        %v1459 = vmul.f32 %v1439, %v1458
        %v1460 = vadd.f32 %v1459, 1.0
        %v1461 = vrcp.pop %v1460
        %v1462 = vmul.f32 %v1460, %v1461
        %v1463 = vsub.f32 1.0, %v1462
        %v1464 = vmul.f32 %v1461, %v1463
        %v1465 = vadd.f32 %v1461, %v1464
        %vm1466 = vweird.f32 %v1460
        %vm1467 = vweird.f32 %v1461
        %vm1468 = vmor %vm1466, %vm1467
        %v1469 = vsel %vm1468, %v1461, %v1465
        %v1470 = vand.u32 2147483647, %v1460
        %vm1471 = vcmp.eq.f32.partialorder %v1470, 8.507059e+37
        %v1472 = vand.u32 %v1460, 2147483648
        %v1473 = vor.u32 1.1754944e-38, %v1472
        %v1474 = vsel %vm1471, %v1473, %v1469
        %v1475 = vmul.f32 %v1450, %v1474
        %v1476 = vmin.f32 %v1475, 1.0
        %v1477 = vmax.f32 %v1476, -1.0
        %v1478 = vmul.f32 %v1150, %v1150
        %v1479 = vmin.f32 16.0, %v1478
        %v1480 = vmul.f32 %v1479, 2.1237322e-06
        %v1481 = vadd.f32 %v1480, 0.00028619796
        %v1482 = vmul.f32 %v1479, %v1481
        %v1483 = vadd.f32 %v1482, 0.0036580483
        %v1484 = vmul.f32 %v1479, %v1483
        %v1485 = vadd.f32 %v1484, 0.05243302
        %v1486 = vmul.f32 %v1479, %v1485
        %v1487 = vadd.f32 %v1486, 0.18741608
        %v1488 = vmul.f32 %v1479, %v1487
        %v1489 = vadd.f32 %v1488, 1.1283791
        %v1490 = vmul.f32 %v1150, %v1489
        %v1491 = vmul.f32 %v1479, 3.8918573e-05
        %v1492 = vadd.f32 %v1491, 0.001143296
        %v1493 = vmul.f32 %v1479, %v1492
        %v1494 = vadd.f32 %v1493, 0.014752088
        %v1495 = vmul.f32 %v1479, %v1494
        %v1496 = vadd.f32 %v1495, 0.112945676
        %v1497 = vmul.f32 %v1479, %v1496
        %v1498 = vadd.f32 %v1497, 0.4994258
        %v1499 = vmul.f32 %v1479, %v1498
        %v1500 = vadd.f32 %v1499, 1.0
        %v1501 = vrcp.pop %v1500
        %v1502 = vmul.f32 %v1500, %v1501
        %v1503 = vsub.f32 1.0, %v1502
        %v1504 = vmul.f32 %v1501, %v1503
        %v1505 = vadd.f32 %v1501, %v1504
        %vm1506 = vweird.f32 %v1500
        %vm1507 = vweird.f32 %v1501
        %vm1508 = vmor %vm1506, %vm1507
        %v1509 = vsel %vm1508, %v1501, %v1505
        %v1510 = vand.u32 2147483647, %v1500
        %vm1511 = vcmp.eq.f32.partialorder %v1510, 8.507059e+37
        %v1512 = vand.u32 %v1500, 2147483648
        %v1513 = vor.u32 1.1754944e-38, %v1512
        %v1514 = vsel %vm1511, %v1513, %v1509
        %v1515 = vmul.f32 %v1490, %v1514
        %v1516 = vmin.f32 %v1515, 1.0
        %v1517 = vmax.f32 %v1516, -1.0
        %v1518 = vmul.f32 %v1151, %v1151
        %v1519 = vmin.f32 16.0, %v1518
        %v1520 = vmul.f32 %v1519, 2.1237322e-06
        %v1521 = vadd.f32 %v1520, 0.00028619796
        %v1522 = vmul.f32 %v1519, %v1521
        %v1523 = vadd.f32 %v1522, 0.0036580483
        %v1524 = vmul.f32 %v1519, %v1523
        %v1525 = vadd.f32 %v1524, 0.05243302
        %v1526 = vmul.f32 %v1519, %v1525
        %v1527 = vadd.f32 %v1526, 0.18741608
        %v1528 = vmul.f32 %v1519, %v1527
        %v1529 = vadd.f32 %v1528, 1.1283791
        %v1530 = vmul.f32 %v1151, %v1529
        %v1531 = vmul.f32 %v1519, 3.8918573e-05
        %v1532 = vadd.f32 %v1531, 0.001143296
        %v1533 = vmul.f32 %v1519, %v1532
        %v1534 = vadd.f32 %v1533, 0.014752088
        %v1535 = vmul.f32 %v1519, %v1534
        %v1536 = vadd.f32 %v1535, 0.112945676
        %v1537 = vmul.f32 %v1519, %v1536
        %v1538 = vadd.f32 %v1537, 0.4994258
        %v1539 = vmul.f32 %v1519, %v1538
        %v1540 = vadd.f32 %v1539, 1.0
        %v1541 = vrcp.pop %v1540
        %v1542 = vmul.f32 %v1540, %v1541
        %v1543 = vsub.f32 1.0, %v1542
        %v1544 = vmul.f32 %v1541, %v1543
        %v1545 = vadd.f32 %v1541, %v1544
        %vm1546 = vweird.f32 %v1540
        %vm1547 = vweird.f32 %v1541
        %vm1548 = vmor %vm1546, %vm1547
        %v1549 = vsel %vm1548, %v1541, %v1545
        %v1550 = vand.u32 2147483647, %v1540
        %vm1551 = vcmp.eq.f32.partialorder %v1550, 8.507059e+37
        %v1552 = vand.u32 %v1540, 2147483648
        %v1553 = vor.u32 1.1754944e-38, %v1552
        %v1554 = vsel %vm1551, %v1553, %v1549
        %v1555 = vmul.f32 %v1530, %v1554
        %v1556 = vmin.f32 %v1555, 1.0
        %v1557 = vmax.f32 %v1556, -1.0
        %v1558 = vmul.f32 %v1152, %v1152
        %v1559 = vmin.f32 16.0, %v1558
        %v1560 = vmul.f32 %v1559, 2.1237322e-06
        %v1561 = vadd.f32 %v1560, 0.00028619796
        %v1562 = vmul.f32 %v1559, %v1561
        %v1563 = vadd.f32 %v1562, 0.0036580483
        %v1564 = vmul.f32 %v1559, %v1563
        %v1565 = vadd.f32 %v1564, 0.05243302
        %v1566 = vmul.f32 %v1559, %v1565
        %v1567 = vadd.f32 %v1566, 0.18741608
        %v1568 = vmul.f32 %v1559, %v1567
        %v1569 = vadd.f32 %v1568, 1.1283791
        %v1570 = vmul.f32 %v1152, %v1569
        %v1571 = vmul.f32 %v1559, 3.8918573e-05
        %v1572 = vadd.f32 %v1571, 0.001143296
        %v1573 = vmul.f32 %v1559, %v1572
        %v1574 = vadd.f32 %v1573, 0.014752088
        %v1575 = vmul.f32 %v1559, %v1574
        %v1576 = vadd.f32 %v1575, 0.112945676
        %v1577 = vmul.f32 %v1559, %v1576
        %v1578 = vadd.f32 %v1577, 0.4994258
        %v1579 = vmul.f32 %v1559, %v1578
        %v1580 = vadd.f32 %v1579, 1.0
        %v1581 = vrcp.pop %v1580
        %v1582 = vmul.f32 %v1580, %v1581
        %v1583 = vsub.f32 1.0, %v1582
        %v1584 = vmul.f32 %v1581, %v1583
        %v1585 = vadd.f32 %v1581, %v1584
        %vm1586 = vweird.f32 %v1580
        %vm1587 = vweird.f32 %v1581
        %vm1588 = vmor %vm1586, %vm1587
        %v1589 = vsel %vm1588, %v1581, %v1585
        %v1590 = vand.u32 2147483647, %v1580
        %vm1591 = vcmp.eq.f32.partialorder %v1590, 8.507059e+37
        %v1592 = vand.u32 %v1580, 2147483648
        %v1593 = vor.u32 1.1754944e-38, %v1592
        %v1594 = vsel %vm1591, %v1593, %v1589
        %v1595 = vmul.f32 %v1570, %v1594
        %v1596 = vmin.f32 %v1595, 1.0
        %v1597 = vmax.f32 %v1596, -1.0
        %v1598 = vmul.f32 %v1153, %v1153
        %v1599 = vmin.f32 16.0, %v1598
        %v1600 = vmul.f32 %v1599, 2.1237322e-06
        %v1601 = vadd.f32 %v1600, 0.00028619796
        %v1602 = vmul.f32 %v1599, %v1601
        %v1603 = vadd.f32 %v1602, 0.0036580483
        %v1604 = vmul.f32 %v1599, %v1603
        %v1605 = vadd.f32 %v1604, 0.05243302
        %v1606 = vmul.f32 %v1599, %v1605
        %v1607 = vadd.f32 %v1606, 0.18741608
        %v1608 = vmul.f32 %v1599, %v1607
        %v1609 = vadd.f32 %v1608, 1.1283791
        %v1610 = vmul.f32 %v1153, %v1609
        %v1611 = vmul.f32 %v1599, 3.8918573e-05
        %v1612 = vadd.f32 %v1611, 0.001143296
        %v1613 = vmul.f32 %v1599, %v1612
        %v1614 = vadd.f32 %v1613, 0.014752088
        %v1615 = vmul.f32 %v1599, %v1614
        %v1616 = vadd.f32 %v1615, 0.112945676
        %v1617 = vmul.f32 %v1599, %v1616
        %v1618 = vadd.f32 %v1617, 0.4994258
        %v1619 = vmul.f32 %v1599, %v1618
        %v1620 = vadd.f32 %v1619, 1.0
        %v1621 = vrcp.pop %v1620
        %v1622 = vmul.f32 %v1620, %v1621
        %v1623 = vsub.f32 1.0, %v1622
        %v1624 = vmul.f32 %v1621, %v1623
        %v1625 = vadd.f32 %v1621, %v1624
        %vm1626 = vweird.f32 %v1620
        %vm1627 = vweird.f32 %v1621
        %vm1628 = vmor %vm1626, %vm1627
        %v1629 = vsel %vm1628, %v1621, %v1625
        %v1630 = vand.u32 2147483647, %v1620
        %vm1631 = vcmp.eq.f32.partialorder %v1630, 8.507059e+37
        %v1632 = vand.u32 %v1620, 2147483648
        %v1633 = vor.u32 1.1754944e-38, %v1632
        %v1634 = vsel %vm1631, %v1633, %v1629
        %v1635 = vmul.f32 %v1610, %v1634
        %v1636 = vmin.f32 %v1635, 1.0
        %v1637 = vmax.f32 %v1636, -1.0
        %v1638 = vmul.f32 %v1154, %v1154
        %v1639 = vmin.f32 16.0, %v1638
        %v1640 = vmul.f32 %v1639, 2.1237322e-06
        %v1641 = vadd.f32 %v1640, 0.00028619796
        %v1642 = vmul.f32 %v1639, %v1641
        %v1643 = vadd.f32 %v1642, 0.0036580483
        %v1644 = vmul.f32 %v1639, %v1643
        %v1645 = vadd.f32 %v1644, 0.05243302
        %v1646 = vmul.f32 %v1639, %v1645
        %v1647 = vadd.f32 %v1646, 0.18741608
        %v1648 = vmul.f32 %v1639, %v1647
        %v1649 = vadd.f32 %v1648, 1.1283791
        %v1650 = vmul.f32 %v1154, %v1649
        %v1651 = vmul.f32 %v1639, 3.8918573e-05
        %v1652 = vadd.f32 %v1651, 0.001143296
        %v1653 = vmul.f32 %v1639, %v1652
        %v1654 = vadd.f32 %v1653, 0.014752088
        %v1655 = vmul.f32 %v1639, %v1654
        %v1656 = vadd.f32 %v1655, 0.112945676
        %v1657 = vmul.f32 %v1639, %v1656
        %v1658 = vadd.f32 %v1657, 0.4994258
        %v1659 = vmul.f32 %v1639, %v1658
        %v1660 = vadd.f32 %v1659, 1.0
        %v1661 = vrcp.pop %v1660
        %v1662 = vmul.f32 %v1660, %v1661
        %v1663 = vsub.f32 1.0, %v1662
        %v1664 = vmul.f32 %v1661, %v1663
        %v1665 = vadd.f32 %v1661, %v1664
        %vm1666 = vweird.f32 %v1660
        %vm1667 = vweird.f32 %v1661
        %vm1668 = vmor %vm1666, %vm1667
        %v1669 = vsel %vm1668, %v1661, %v1665
        %v1670 = vand.u32 2147483647, %v1660
        %vm1671 = vcmp.eq.f32.partialorder %v1670, 8.507059e+37
        %v1672 = vand.u32 %v1660, 2147483648
        %v1673 = vor.u32 1.1754944e-38, %v1672
        %v1674 = vsel %vm1671, %v1673, %v1669
        %v1675 = vmul.f32 %v1650, %v1674
        %v1676 = vmin.f32 %v1675, 1.0
        %v1677 = vmax.f32 %v1676, -1.0
        %v1678 = vmul.f32 %v1155, %v1155
        %v1679 = vmin.f32 16.0, %v1678
        %v1680 = vmul.f32 %v1679, 2.1237322e-06
        %v1681 = vadd.f32 %v1680, 0.00028619796
        %v1682 = vmul.f32 %v1679, %v1681
        %v1683 = vadd.f32 %v1682, 0.0036580483
        %v1684 = vmul.f32 %v1679, %v1683
        %v1685 = vadd.f32 %v1684, 0.05243302
        %v1686 = vmul.f32 %v1679, %v1685
        %v1687 = vadd.f32 %v1686, 0.18741608
        %v1688 = vmul.f32 %v1679, %v1687
        %v1689 = vadd.f32 %v1688, 1.1283791
        %v1690 = vmul.f32 %v1155, %v1689
        %v1691 = vmul.f32 %v1679, 3.8918573e-05
        %v1692 = vadd.f32 %v1691, 0.001143296
        %v1693 = vmul.f32 %v1679, %v1692
        %v1694 = vadd.f32 %v1693, 0.014752088
        %v1695 = vmul.f32 %v1679, %v1694
        %v1696 = vadd.f32 %v1695, 0.112945676
        %v1697 = vmul.f32 %v1679, %v1696
        %v1698 = vadd.f32 %v1697, 0.4994258
        %v1699 = vmul.f32 %v1679, %v1698
        %v1700 = vadd.f32 %v1699, 1.0
        %v1701 = vrcp.pop %v1700
        %v1702 = vmul.f32 %v1700, %v1701
        %v1703 = vsub.f32 1.0, %v1702
        %v1704 = vmul.f32 %v1701, %v1703
        %v1705 = vadd.f32 %v1701, %v1704
        %vm1706 = vweird.f32 %v1700
        %vm1707 = vweird.f32 %v1701
        %vm1708 = vmor %vm1706, %vm1707
        %v1709 = vsel %vm1708, %v1701, %v1705
        %v1710 = vand.u32 2147483647, %v1700
        %vm1711 = vcmp.eq.f32.partialorder %v1710, 8.507059e+37
        %v1712 = vand.u32 %v1700, 2147483648
        %v1713 = vor.u32 1.1754944e-38, %v1712
        %v1714 = vsel %vm1711, %v1713, %v1709
        %v1715 = vmul.f32 %v1690, %v1714
        %v1716 = vmin.f32 %v1715, 1.0
        %v1717 = vmax.f32 %v1716, -1.0
        %v1718 = vmul.f32 %v1156, %v1156
        %v1719 = vmin.f32 16.0, %v1718
        %v1720 = vmul.f32 %v1719, 2.1237322e-06
        %v1721 = vadd.f32 %v1720, 0.00028619796
        %v1722 = vmul.f32 %v1719, %v1721
        %v1723 = vadd.f32 %v1722, 0.0036580483
        %v1724 = vmul.f32 %v1719, %v1723
        %v1725 = vadd.f32 %v1724, 0.05243302
        %v1726 = vmul.f32 %v1719, %v1725
        %v1727 = vadd.f32 %v1726, 0.18741608
        %v1728 = vmul.f32 %v1719, %v1727
        %v1729 = vadd.f32 %v1728, 1.1283791
        %v1730 = vmul.f32 %v1156, %v1729
        %v1731 = vmul.f32 %v1719, 3.8918573e-05
        %v1732 = vadd.f32 %v1731, 0.001143296
        %v1733 = vmul.f32 %v1719, %v1732
        %v1734 = vadd.f32 %v1733, 0.014752088
        %v1735 = vmul.f32 %v1719, %v1734
        %v1736 = vadd.f32 %v1735, 0.112945676
        %v1737 = vmul.f32 %v1719, %v1736
        %v1738 = vadd.f32 %v1737, 0.4994258
        %v1739 = vmul.f32 %v1719, %v1738
        %v1740 = vadd.f32 %v1739, 1.0
        %v1741 = vrcp.pop %v1740
        %v1742 = vmul.f32 %v1740, %v1741
        %v1743 = vsub.f32 1.0, %v1742
        %v1744 = vmul.f32 %v1741, %v1743
        %v1745 = vadd.f32 %v1741, %v1744
        %vm1746 = vweird.f32 %v1740
        %vm1747 = vweird.f32 %v1741
        %vm1748 = vmor %vm1746, %vm1747
        %v1749 = vsel %vm1748, %v1741, %v1745
        %v1750 = vand.u32 2147483647, %v1740
        %vm1751 = vcmp.eq.f32.partialorder %v1750, 8.507059e+37
        %v1752 = vand.u32 %v1740, 2147483648
        %v1753 = vor.u32 1.1754944e-38, %v1752
        %v1754 = vsel %vm1751, %v1753, %v1749
        %v1755 = vmul.f32 %v1730, %v1754
        %v1756 = vmin.f32 %v1755, 1.0
        %v1757 = vmax.f32 %v1756, -1.0
        %v1758 = vmul.f32 %v1157, %v1157
        %v1759 = vmin.f32 16.0, %v1758
        %v1760 = vmul.f32 %v1759, 2.1237322e-06
        %v1761 = vadd.f32 %v1760, 0.00028619796
        %v1762 = vmul.f32 %v1759, %v1761
        %v1763 = vadd.f32 %v1762, 0.0036580483
        %v1764 = vmul.f32 %v1759, %v1763
        %v1765 = vadd.f32 %v1764, 0.05243302
        %v1766 = vmul.f32 %v1759, %v1765
        %v1767 = vadd.f32 %v1766, 0.18741608
        %v1768 = vmul.f32 %v1759, %v1767
        %v1769 = vadd.f32 %v1768, 1.1283791
        %v1770 = vmul.f32 %v1157, %v1769
        %v1771 = vmul.f32 %v1759, 3.8918573e-05
        %v1772 = vadd.f32 %v1771, 0.001143296
        %v1773 = vmul.f32 %v1759, %v1772
        %v1774 = vadd.f32 %v1773, 0.014752088
        %v1775 = vmul.f32 %v1759, %v1774
        %v1776 = vadd.f32 %v1775, 0.112945676
        %v1777 = vmul.f32 %v1759, %v1776
        %v1778 = vadd.f32 %v1777, 0.4994258
        %v1779 = vmul.f32 %v1759, %v1778
        %v1780 = vadd.f32 %v1779, 1.0
        %v1781 = vrcp.pop %v1780
        %v1782 = vmul.f32 %v1780, %v1781
        %v1783 = vsub.f32 1.0, %v1782
        %v1784 = vmul.f32 %v1781, %v1783
        %v1785 = vadd.f32 %v1781, %v1784
        %vm1786 = vweird.f32 %v1780
        %vm1787 = vweird.f32 %v1781
        %vm1788 = vmor %vm1786, %vm1787
        %v1789 = vsel %vm1788, %v1781, %v1785
        %v1790 = vand.u32 2147483647, %v1780
        %vm1791 = vcmp.eq.f32.partialorder %v1790, 8.507059e+37
        %v1792 = vand.u32 %v1780, 2147483648
        %v1793 = vor.u32 1.1754944e-38, %v1792
        %v1794 = vsel %vm1791, %v1793, %v1789
        %v1795 = vmul.f32 %v1770, %v1794
        %v1796 = vmin.f32 %v1795, 1.0
        %v1797 = vmax.f32 %v1796, -1.0
        %v1798 = vadd.f32 %v1197, 1.0
        %v1799 = vadd.f32 %v1237, 1.0
        %v1800 = vadd.f32 %v1277, 1.0
        %v1801 = vadd.f32 %v1317, 1.0
        %v1802 = vadd.f32 %v1357, 1.0
        %v1803 = vadd.f32 %v1397, 1.0
        %v1804 = vadd.f32 %v1437, 1.0
        %v1805 = vadd.f32 %v1477, 1.0
        %v1806 = vadd.f32 %v1517, 1.0
        %v1807 = vadd.f32 %v1557, 1.0
        %v1808 = vadd.f32 %v1597, 1.0
        %v1809 = vadd.f32 %v1637, 1.0
        %v1810 = vadd.f32 %v1677, 1.0
        %v1811 = vadd.f32 %v1717, 1.0
        %v1812 = vadd.f32 %v1757, 1.0
        %v1813 = vadd.f32 %v1797, 1.0
        %v1814 = vmul.f32 %v1126, %v1798
        %v1815 = vmul.f32 %v1127, %v1799
        %v1816 = vmul.f32 %v1128, %v1800
        %v1817 = vmul.f32 %v1129, %v1801
        %v1818 = vmul.f32 %v1130, %v1802
        %v1819 = vmul.f32 %v1131, %v1803
        %v1820 = vmul.f32 %v1132, %v1804
        %v1821 = vmul.f32 %v1133, %v1805
        %v1822 = vmul.f32 %v1134, %v1806
        %v1823 = vmul.f32 %v1135, %v1807
        %v1824 = vmul.f32 %v1136, %v1808
        %v1825 = vmul.f32 %v1137, %v1809
        %v1826 = vmul.f32 %v1138, %v1810
        %v1827 = vmul.f32 %v1139, %v1811
        %v1828 = vmul.f32 %v1140, %v1812
        %v1829 = vmul.f32 %v1141, %v1813
        %v1830 = vld [vmem:[%s8] sm:$0x1]
        %v1831 = vld [vmem:[#allocation2] sm:$0x1]
        %1833 = vset.pattern.permute.xlu0 0
        %1834 = vperm.xlu0 %1833, %v1831
        %v1835 = vpop.permute.xlu0 %1834
        %v1837 = vperm.slane %v1835, 0
        %1838 = vmatpush.msra.mxu0 %v1829
        %1839 = vmatpush.msra.mxu0 %v1828
        %1840 = vmatpush.msra.mxu0 %v1827
        %1841 = vmatpush.msra.mxu0 %v1826
        %1842 = vmatpush.msra.mxu0 %v1825
        %1843 = vmatpush.msra.mxu0 %v1824
        %1844 = vmatpush.msra.mxu0 %v1823
        %1845 = vmatpush.msra.mxu0 %v1822
        %1846 = vmatpush.msra.mxu0 %v1821
        %1847 = vmatpush.msra.mxu0 %v1820
        %1848 = vmatpush.msra.mxu0 %v1819
        %1849 = vmatpush.msra.mxu0 %v1818
        %1850 = vmatpush.msra.mxu0 %v1817
        %1851 = vmatpush.msra.mxu0 %v1816
        %1852 = vmatpush.msra.mxu0 %v1815
        %1853 = vmatpush.msra.mxu0 %v1814
        %1854 = vmatmul.f32.gmra.mxu0 %v1830
        %v1855 = vpop.f32.mrf.mxu0
        %v1856 = vadd.f32 %v1837, %v1855
        %1857 = vdwg.mxu0
        %1858 = vst [vmem:[%s463] sm:$0x1] %v1856
        %p1859 = scmp.lt.s32.totalorder %s23, 3
        %s1860 = scalar_select %p1859, %s23, 3
        %s1861 = scalar_lea.vmem %s10, %s1860
        // Predicated region
        $region137: #{fno2d_forward.21} parent=127 // pred_check
          %p1862 = pneg %p261
        $region138: #{fno2d_forward.21} parent=127 // pred_check_branch
          %1864 = sbr.rel (%p1862) target = $region140
        $region139: #{fno2d_forward.21} parent=127 // pred_region
          _
        $region140: #{fno2d_forward.21} parent=127 // pred_fallthru
          _
      $region128: #{fno2d_forward.21} parent=5 // pred_fallthru
        _
      %p1865 = scmp.le.s32.totalorder 2, %s18
      // Predicated region
      $region141: #{fno2d_forward.21} parent=5 // pred_check
        %p1866 = pneg %p1865
      $region142: #{fno2d_forward.21} parent=5 // pred_check_branch
        %1868 = sbr.rel (%p1866) target = $region144
      $region143: #{fno2d_forward.21} parent=5 // pred_region
        %s1869 = ssub.s32 %s18, 2
        // Predicated region
        $region145: #{fno2d_forward.21} parent=143 // pred_check
          %p1870 = pneg %p267
        $region146: #{fno2d_forward.21} parent=143 // pred_check_branch
          %1872 = sbr.rel (%p1870) target = $region148
        $region147: #{fno2d_forward.21} parent=143 // pred_region
          %p1873 = scmp.lt.s32.totalorder %s24, 3
          %s1874 = scalar_select %p1873, %s24, 3
          %s1875 = scalar_lea.vmem %s10, %s1874
        $region148: #{fno2d_forward.21} parent=143 // pred_fallthru
          _
      $region144: #{fno2d_forward.21} parent=5 // pred_fallthru
        _
    $region6: #{fno2d_forward.21} parent=1 // loop_footer
      %s22 = sadd.s32 1, %s18
    $region7: #{fno2d_forward.21} parent=1 // loop_footer_branch
      %17 = sbr.rel target = $region3
    $region8: #{fno2d_forward.21} parent=1 // loop_exit
      _

</llo_original>
